<compile_context>
chip_gen: v6e
topology: v6e:2x2x1
jax: 0.10.0
libtpu: 0.0.40
codegen_flags: <defaults>
</compile_context>

<pallas_src>
import functools

import jax
import jax.numpy as jnp
from jax import lax
from jax.experimental import pallas as pl
from jax.experimental.pallas import tpu as pltpu

EPS = 1e-5
LANE = 128                       # pad channel dims to a multiple of the lane width
KERNELS = (1, 3, 5, 7)           # SKConv branch kernel sizes
KB = len(KERNELS)
PAD = max(KERNELS) // 2          # shared spatial halo (= 3)
KK = (2 * PAD + 1) ** 2          # 49 taps in the shared 7x7 footprint
VMEM_LIMIT = 48 * 1024 * 1024


def _round_up(x, m):
    return (x + m - 1) // m * m


# ---------------------------------------------------------------------------
# Pass 1: all four branch convolutions (single im2col matmul) + BN statistics.
# ---------------------------------------------------------------------------
def _conv_stats_kernel(x_ref, w_ref, z_ref, stats_ref):
    """Grid axis = batch element ("parallel").
    x_ref:     (HW, KKCin_p)       bf16 im2col-packed image (taps packed on lanes).
    w_ref:     (KKCin_p, 4*Cout_p) bf16 packed branch weights.
    z_ref:     (HW, 4*Cout_p)      bf16 pre-BN activations, branch-packed on lanes.
    stats_ref: (1, 2, 4*Cout_p)    f32 per-image [sum, sum_sq] (reduced over N outside)."""
    acc = jnp.dot(x_ref[...], w_ref[...], preferred_element_type=jnp.float32)
    z_ref[...] = acc.astype(z_ref.dtype)
    # Statistics from the f32 accumulator (NOT the bf16-quantized z).
    stats_ref[0, 0:1, :] = jnp.sum(acc, axis=0, keepdims=True)
    stats_ref[0, 1:2, :] = jnp.sum(acc * acc, axis=0, keepdims=True)


# ---------------------------------------------------------------------------
# Pass 2: fused BN scale/shift + ReLU, pool, fc -> fcs -> softmax, weighted combine.
# ---------------------------------------------------------------------------
def _sk_fuse_kernel(z_ref, scale_ref, shift_ref, fcw_ref, fcb_ref,
                    fcsw_ref, fcsb_ref, o_ref):
    hw = z_ref.shape[0]
    cp = o_ref.shape[1]                        # Cout_p
    kb = z_ref.shape[1] // cp

    # BN pre-folded into scale/shift -> one wide FMA + max over the whole packed slab.
    f = jnp.maximum(z_ref[...].astype(jnp.float32) * scale_ref[...] + shift_ref[...], 0.0)

    u = f[:, 0:cp]
    for b in range(1, kb):
        u = u + f[:, b * cp:(b + 1) * cp]

    # Global average pool (this grid step owns one full image).
    s = jnp.sum(u, axis=0, keepdims=True) * (1.0 / hw)               # (1, Cout_p)
    s8 = jnp.broadcast_to(s, (8, cp))                                # sublane-tile M
    zfc = jnp.dot(s8, fcw_ref[...], preferred_element_type=jnp.float32) + fcb_ref[...]
    logits = (jnp.dot(zfc, fcsw_ref[...], preferred_element_type=jnp.float32)
              + fcsb_ref[...])                                       # (8, 4*Cout_p)

    lg = [logits[0:1, b * cp:(b + 1) * cp] for b in range(kb)]
    m = lg[0]
    for b in range(1, kb):
        m = jnp.maximum(m, lg[b])
    exps = [jnp.exp(l - m) for l in lg]
    denom = exps[0]
    for b in range(1, kb):
        denom = denom + exps[b]
    inv = pl.reciprocal(denom, approx=True)                          # EUP slot, ~free

    out = (exps[0] * inv) * f[:, 0:cp]
    for b in range(1, kb):
        out = out + (exps[b] * inv) * f[:, b * cp:(b + 1) * cp]
    o_ref[...] = out.astype(o_ref.dtype)


# ---------------------------------------------------------------------------
# Wrappers
# ---------------------------------------------------------------------------
def _im2col_pack(x_real, kkc_p):
    """(N, H, W, Cin) real channels -> (N*H*W, KKCin_p) bf16 with the 49 taps of the
    shared 7x7 footprint packed along the lane dimension (tap-major, channel-minor)."""
    n, h, w, c = x_real.shape
    xp = jnp.pad(x_real, ((0, 0), (PAD, PAD), (PAD, PAD), (0, 0)))
    k = 2 * PAD + 1
    cols = [xp[:, ty:ty + h, tx:tx + w, :] for ty in range(k) for tx in range(k)]
    packed = jnp.concatenate(cols, axis=-1)                          # (N, H, W, 49*Cin)
    packed = jnp.pad(packed, ((0, 0), (0, 0), (0, 0), (0, kkc_p - k * k * c)))
    return packed.astype(jnp.bfloat16).reshape(n * h * w, kkc_p)


def _skconv_pallas(x_real, prep, c_out):
    """One SKConv layer.  x_real: (N, H, W, Cin) real (unpadded) channels, f32.
    Returns (N, H, W, c_out) f32 (real channels only, ready for the next layer)."""
    n, h, w, _ = x_real.shape
    hw = h * w
    m = n * hw
    kkc_p, kbcout = prep["w_packed"].shape
    cout_p = kbcout // KB
    d_p = prep["fc_w"].shape[1]

    x_packed = _im2col_pack(x_real, kkc_p)

    z, stats = pl.pallas_call(
        _conv_stats_kernel,
        out_shape=(jax.ShapeDtypeStruct((m, kbcout), jnp.bfloat16),
                   jax.ShapeDtypeStruct((n, 2, kbcout), jnp.float32)),
        grid=(n,),
        in_specs=[pl.BlockSpec((hw, kkc_p), lambda i: (i, 0)),
                  pl.BlockSpec((kkc_p, kbcout), lambda i: (0, 0))],
        out_specs=(pl.BlockSpec((hw, kbcout), lambda i: (i, 0)),
                   pl.BlockSpec((1, 2, kbcout), lambda i: (i, 0, 0))),
        compiler_params=pltpu.CompilerParams(
            dimension_semantics=("parallel",),      # per-image stats -> no carry
            vmem_limit_bytes=VMEM_LIMIT),
    )(x_packed, prep["w_packed"])

    # Finalize BatchNorm (training-mode batch statistics over N*H*W) into a single
    # per-channel scale/shift.  The conv bias cancels exactly under batch-stat BN and
    # is folded away.  gamma/beta are zero-padded so padded lanes give scale=shift=0.
    tot = jnp.sum(stats, axis=0)                                     # (2, 4*Cout_p)
    mean = tot[0] / m
    var = jnp.maximum(tot[1] / m - mean * mean, 0.0)
    scale = prep["gamma"] * lax.rsqrt(var + EPS)
    shift = prep["beta"] - mean * scale
    scale = scale.reshape(1, kbcout)
    shift = shift.reshape(1, kbcout)

    out2d = pl.pallas_call(
        _sk_fuse_kernel,
        out_shape=jax.ShapeDtypeStruct((m, cout_p), jnp.float32),
        grid=(n,),
        in_specs=[
            pl.BlockSpec((hw, kbcout), lambda i: (i, 0)),
            pl.BlockSpec((1, kbcout), lambda i: (0, 0)),
            pl.BlockSpec((1, kbcout), lambda i: (0, 0)),
            pl.BlockSpec((cout_p, d_p), lambda i: (0, 0)),
            pl.BlockSpec((1, d_p), lambda i: (0, 0)),
            pl.BlockSpec((d_p, kbcout), lambda i: (0, 0)),
            pl.BlockSpec((1, kbcout), lambda i: (0, 0)),
        ],
        out_specs=pl.BlockSpec((hw, cout_p), lambda i: (i, 0)),
        compiler_params=pltpu.CompilerParams(
            dimension_semantics=("parallel",),      # independent per batch element
            vmem_limit_bytes=VMEM_LIMIT),
    )(z, scale, shift, prep["fc_w"], prep["fc_b"], prep["fcs_w"], prep["fcs_b"])

    return out2d.reshape(n, h, w, cout_p)[..., :c_out]


@functools.partial(jax.jit, static_argnames=("c_out",))
def double_conv_pallas(x_nchw, prep1, prep2, *, c_out):
    # Single NCHW -> channels-last transpose at entry; both SKConv layers then chain
    # in the channels-last layout with only real channels flowing between them.
    x = jnp.transpose(x_nchw, (0, 2, 3, 1))
    y = _skconv_pallas(x, prep1, c_out)
    y = _skconv_pallas(y, prep2, c_out)
    return jnp.transpose(y, (0, 3, 1, 2))


# ---------------------------------------------------------------------------
# Parameters (PyTorch-shaped) and kernel-friendly packing
# ---------------------------------------------------------------------------
def _make_skconv_raw(key, c_in, c_out, d):
    raw = {"conv_w": [], "conv_b": [], "bn_g": [], "bn_b": [], "fcs_w": [], "fcs_b": []}
    for k in KERNELS:
        key, k1, k2, k3, k4 = jax.random.split(key, 5)
        fan = c_in * k * k
        raw["conv_w"].append(
            jax.random.normal(k1, (c_out, c_in, k, k), jnp.float32) / jnp.sqrt(fan))
        raw["conv_b"].append(0.1 * jax.random.normal(k2, (c_out,), jnp.float32))
        raw["bn_g"].append(1.0 + 0.1 * jax.random.normal(k3, (c_out,), jnp.float32))
        raw["bn_b"].append(0.1 * jax.random.normal(k4, (c_out,), jnp.float32))
    key, k1, k2 = jax.random.split(key, 3)
    raw["fc_w"] = jax.random.normal(k1, (d, c_out), jnp.float32) / jnp.sqrt(c_out)
    raw["fc_b"] = 0.1 * jax.random.normal(k2, (d,), jnp.float32)
    for _ in KERNELS:
        key, k1, k2 = jax.random.split(key, 3)
        raw["fcs_w"].append(jax.random.normal(k1, (c_out, d), jnp.float32) / jnp.sqrt(d))
        raw["fcs_b"].append(0.1 * jax.random.normal(k2, (c_out,), jnp.float32))
    return raw


def _prep_skconv_params(raw, c_in, c_out, d):
    """Pack all four branch conv kernels into a single im2col weight
    (49*Cin padded to a lane multiple, 4*Cout_p), bf16.  Everything else is
    zero-padded so the lane (last) dim is a 128 multiple and branch-packed.
    Conv biases are omitted on purpose: under batch-statistics BN they cancel.
    Padded gamma/beta MUST stay zero so padded lanes produce exact zeros."""
    cout_p = _round_up(c_out, LANE)
    d_p = _round_up(d, LANE)
    kkc = KK * c_in
    kkc_p = _round_up(kkc, LANE)

    w_cols = []
    for b, k in enumerate(KERNELS):
        w_hwio = jnp.transpose(raw["conv_w"][b], (2, 3, 1, 0))       # (k, k, cin, cout)
        off = PAD - k // 2
        big = jnp.zeros((2 * PAD + 1, 2 * PAD + 1, c_in, c_out), jnp.float32)
        big = big.at[off:off + k, off:off + k].set(w_hwio)           # embed in 7x7 taps
        big = big.reshape(kkc, c_out)
        big = jnp.pad(big, ((0, kkc_p - kkc), (0, cout_p - c_out)))
        w_cols.append(big)
    w_packed = jnp.concatenate(w_cols, axis=1).astype(jnp.bfloat16)  # (kkc_p, 4*cout_p)

    gamma = jnp.concatenate([jnp.pad(raw["bn_g"][b], (0, cout_p - c_out))
                             for b in range(KB)])                    # (4*cout_p,)
    beta = jnp.concatenate([jnp.pad(raw["bn_b"][b], (0, cout_p - c_out))
                            for b in range(KB)])
    fc_w = jnp.pad(raw["fc_w"].T, ((0, cout_p - c_out), (0, d_p - d)))   # (cout_p, d_p)
    fc_b = jnp.pad(raw["fc_b"], (0, d_p - d)).reshape(1, d_p)
    fcs_w = jnp.concatenate(
        [jnp.pad(raw["fcs_w"][b].T, ((0, d_p - d), (0, cout_p - c_out)))
         for b in range(KB)], axis=1)                                # (d_p, 4*cout_p)
    fcs_b = jnp.concatenate([jnp.pad(raw["fcs_b"][b], (0, cout_p - c_out))
                             for b in range(KB)]).reshape(1, KB * cout_p)
    return dict(w_packed=w_packed, gamma=gamma, beta=beta,
                fc_w=fc_w, fc_b=fc_b, fcs_w=fcs_w, fcs_b=fcs_b)


# ---------------------------------------------------------------------------
# Pure-JAX reference (independent code path, includes the conv bias explicitly)
# ---------------------------------------------------------------------------
def _skconv_ref(x_nchw, raw):
    conv_outs = []
    for i, _k in enumerate(KERNELS):
        z = lax.conv_general_dilated(
            x_nchw, raw["conv_w"][i], window_strides=(1, 1), padding="SAME",
            dimension_numbers=("NCHW", "OIHW", "NCHW"),
            precision=lax.Precision.HIGHEST)
        z = z + raw["conv_b"][i][None, :, None, None]
        mean = jnp.mean(z, axis=(0, 2, 3), keepdims=True)
        var = jnp.mean((z - mean) ** 2, axis=(0, 2, 3), keepdims=True)
        y = (z - mean) * lax.rsqrt(var + EPS)
        y = y * raw["bn_g"][i][None, :, None, None] + raw["bn_b"][i][None, :, None, None]
        conv_outs.append(jnp.maximum(y, 0.0))
    feats = jnp.stack(conv_outs, 0)                                  # (4, N, C, H, W)
    feats_s = jnp.mean(sum(conv_outs), axis=(2, 3))                  # (N, C)
    feats_z = (jnp.dot(feats_s, raw["fc_w"].T, precision=lax.Precision.HIGHEST)
               + raw["fc_b"])
    logits = [jnp.dot(feats_z, raw["fcs_w"][i].T, precision=lax.Precision.HIGHEST)
              + raw["fcs_b"][i] for i in range(len(KERNELS))]
    attn = jax.nn.softmax(jnp.stack(logits, 0), axis=0)              # (4, N, C)
    return jnp.sum(attn[:, :, :, None, None] * feats, axis=0)


if __name__ == "__main__":
    key = jax.random.PRNGKey(0)
    kx, kp1, kp2 = jax.random.split(key, 3)

    N, C_IN, C_OUT, H, W = 2, 4, 8, 16, 16
    D1 = max(C_IN // 16, 32)             # SKConv reduction dim (reduction=16, L=32)
    D2 = max(C_OUT // 16, 32)

    x = jax.random.normal(kx, (N, C_IN, H, W), dtype=jnp.float32)
    raw1 = _make_skconv_raw(kp1, C_IN, C_OUT, D1)
    raw2 = _make_skconv_raw(kp2, C_OUT, C_OUT, D2)
    prep1 = _prep_skconv_params(raw1, C_IN, C_OUT, D1)
    prep2 = _prep_skconv_params(raw2, C_OUT, C_OUT, D2)

    out = double_conv_pallas(x, prep1, prep2, c_out=C_OUT)
    out = jax.block_until_ready(out)
    assert out.shape == (N, C_OUT, H, W)

    ref = _skconv_ref(_skconv_ref(x, raw1), raw2)
    err_max = float(jnp.max(jnp.abs(out - ref)))
    err_mean = float(jnp.mean(jnp.abs(out - ref)))
    # Tolerances cover bf16 MXU operands + bf16 z staging through two stacked SKConv
    # layers vs the HIGHEST-precision f32 reference; structural bugs (tap misalignment,
    # wrong BN/softmax) show up as O(0.2-1) mean error, well above these bounds.
    assert err_max < 1.2e-1 and err_mean < 2.5e-2, (err_max, err_mean)

    print("KERNEL_OK")
</pallas_src>

<mosaic_0001>
module attributes {stable_mosaic.version = 11 : i64} {
  func.func @_sk_fuse_kernel(%arg0: i32, %arg1: memref<256x512xbf16, #tpu.memory_space<vmem>>, %arg2: memref<1x512xf32, #tpu.memory_space<vmem>>, %arg3: memref<1x512xf32, #tpu.memory_space<vmem>>, %arg4: memref<128x128xf32, #tpu.memory_space<vmem>>, %arg5: memref<1x128xf32, #tpu.memory_space<vmem>>, %arg6: memref<128x512xf32, #tpu.memory_space<vmem>>, %arg7: memref<1x512xf32, #tpu.memory_space<vmem>>, %arg8: memref<256x128xf32, #tpu.memory_space<vmem>>) attributes {dimension_semantics = [#tpu.dimension_semantics<parallel>], iteration_bounds = array<i64: 2>, scalar_prefetch = 0 : i64, scratch_operands = 0 : i64, tpu.core_type = #tpu.core_type<tc>, window_params = [{transform_indices = @transform_0, window_bounds = array<i64: 256, 512>}, {pipeline_mode = #tpu.pipeline_mode<synchronous>, transform_indices = @transform_1, window_bounds = array<i64: 1, 512>}, {pipeline_mode = #tpu.pipeline_mode<synchronous>, transform_indices = @transform_2, window_bounds = array<i64: 1, 512>}, {pipeline_mode = #tpu.pipeline_mode<synchronous>, transform_indices = @transform_3, window_bounds = array<i64: 128, 128>}, {pipeline_mode = #tpu.pipeline_mode<synchronous>, transform_indices = @transform_4, window_bounds = array<i64: 1, 128>}, {pipeline_mode = #tpu.pipeline_mode<synchronous>, transform_indices = @transform_5, window_bounds = array<i64: 128, 512>}, {pipeline_mode = #tpu.pipeline_mode<synchronous>, transform_indices = @transform_6, window_bounds = array<i64: 1, 512>}, {transform_indices = @transform_7, window_bounds = array<i64: 256, 128>}]} {
    %c0 = arith.constant 0 : index
    %c0_0 = arith.constant 0 : index
    %0 = vector.load %arg1[%c0, %c0_0] : memref<256x512xbf16, #tpu.memory_space<vmem>>, vector<256x512xbf16>
    %1 = arith.extf %0 : vector<256x512xbf16> to vector<256x512xf32>
    %c0_1 = arith.constant 0 : index
    %c0_2 = arith.constant 0 : index
    %2 = vector.load %arg2[%c0_1, %c0_2] : memref<1x512xf32, #tpu.memory_space<vmem>>, vector<1x512xf32>
    %3 = vector.broadcast %2 : vector<1x512xf32> to vector<256x512xf32>
    %4 = arith.mulf %1, %3 : vector<256x512xf32>
    %c0_3 = arith.constant 0 : index
    %c0_4 = arith.constant 0 : index
    %5 = vector.load %arg3[%c0_3, %c0_4] : memref<1x512xf32, #tpu.memory_space<vmem>>, vector<1x512xf32>
    %6 = vector.broadcast %5 : vector<1x512xf32> to vector<256x512xf32>
    %7 = arith.addf %4, %6 : vector<256x512xf32>
    %cst = arith.constant 0.000000e+00 : f32
    %8 = vector.broadcast %cst : f32 to vector<256x512xf32>
    %9 = arith.maximumf %7, %8 : vector<256x512xf32>
    %10 = vector.extract_strided_slice %9 {offsets = [0, 0], sizes = [256, 128], strides = [1, 1]} : vector<256x512xf32> to vector<256x128xf32>
    %11 = vector.extract_strided_slice %9 {offsets = [0, 128], sizes = [256, 128], strides = [1, 1]} : vector<256x512xf32> to vector<256x128xf32>
    %12 = arith.addf %10, %11 : vector<256x128xf32>
    %13 = vector.extract_strided_slice %9 {offsets = [0, 256], sizes = [256, 128], strides = [1, 1]} : vector<256x512xf32> to vector<256x128xf32>
    %14 = arith.addf %12, %13 : vector<256x128xf32>
    %15 = vector.extract_strided_slice %9 {offsets = [0, 384], sizes = [256, 128], strides = [1, 1]} : vector<256x512xf32> to vector<256x128xf32>
    %16 = arith.addf %14, %15 : vector<256x128xf32>
    %cst_5 = arith.constant dense<0.000000e+00> : vector<128xf32>
    %17 = vector.multi_reduction <add>, %16, %cst_5 [0] : vector<256x128xf32> to vector<128xf32>
    %18 = vector.shape_cast %17 : vector<128xf32> to vector<1x128xf32>
    %cst_6 = arith.constant 3.906250e-03 : f32
    %19 = vector.broadcast %cst_6 : f32 to vector<1x128xf32>
    %20 = arith.mulf %18, %19 : vector<1x128xf32>
    %21 = vector.shape_cast %20 : vector<1x128xf32> to vector<1x128xf32>
    %22 = vector.broadcast %21 : vector<1x128xf32> to vector<8x128xf32>
    %c0_7 = arith.constant 0 : index
    %c0_8 = arith.constant 0 : index
    %23 = vector.load %arg4[%c0_7, %c0_8] : memref<128x128xf32, #tpu.memory_space<vmem>>, vector<128x128xf32>
    %cst_9 = arith.constant dense<0.000000e+00> : vector<8x128xf32>
    %24 = tpu.matmul %22, %23, %cst_9 {dimension_numbers = #tpu.dot_dimension_numbers<[1], [0], [0], [1], [0, 0, 1, 1], [], []>} : vector<8x128xf32>, vector<128x128xf32>, vector<8x128xf32> -> vector<8x128xf32>
    %c0_10 = arith.constant 0 : index
    %c0_11 = arith.constant 0 : index
    %25 = vector.load %arg5[%c0_10, %c0_11] : memref<1x128xf32, #tpu.memory_space<vmem>>, vector<1x128xf32>
    %26 = vector.broadcast %25 : vector<1x128xf32> to vector<8x128xf32>
    %27 = arith.addf %24, %26 : vector<8x128xf32>
    %c0_12 = arith.constant 0 : index
    %c0_13 = arith.constant 0 : index
    %28 = vector.load %arg6[%c0_12, %c0_13] : memref<128x512xf32, #tpu.memory_space<vmem>>, vector<128x512xf32>
    %cst_14 = arith.constant dense<0.000000e+00> : vector<8x512xf32>
    %29 = tpu.matmul %27, %28, %cst_14 {dimension_numbers = #tpu.dot_dimension_numbers<[1], [0], [0], [1], [0, 0, 1, 1], [], []>} : vector<8x128xf32>, vector<128x512xf32>, vector<8x512xf32> -> vector<8x512xf32>
    %c0_15 = arith.constant 0 : index
    %c0_16 = arith.constant 0 : index
    %30 = vector.load %arg7[%c0_15, %c0_16] : memref<1x512xf32, #tpu.memory_space<vmem>>, vector<1x512xf32>
    %31 = vector.broadcast %30 : vector<1x512xf32> to vector<8x512xf32>
    %32 = arith.addf %29, %31 : vector<8x512xf32>
    %33 = vector.extract_strided_slice %32 {offsets = [0, 0], sizes = [1, 128], strides = [1, 1]} : vector<8x512xf32> to vector<1x128xf32>
    %34 = vector.extract_strided_slice %32 {offsets = [0, 128], sizes = [1, 128], strides = [1, 1]} : vector<8x512xf32> to vector<1x128xf32>
    %35 = vector.extract_strided_slice %32 {offsets = [0, 256], sizes = [1, 128], strides = [1, 1]} : vector<8x512xf32> to vector<1x128xf32>
    %36 = vector.extract_strided_slice %32 {offsets = [0, 384], sizes = [1, 128], strides = [1, 1]} : vector<8x512xf32> to vector<1x128xf32>
    %37 = arith.maximumf %33, %34 : vector<1x128xf32>
    %38 = arith.maximumf %37, %35 : vector<1x128xf32>
    %39 = arith.maximumf %38, %36 : vector<1x128xf32>
    %40 = arith.subf %33, %39 : vector<1x128xf32>
    %41 = math.exp %40 : vector<1x128xf32>
    %42 = arith.subf %34, %39 : vector<1x128xf32>
    %43 = math.exp %42 : vector<1x128xf32>
    %44 = arith.subf %35, %39 : vector<1x128xf32>
    %45 = math.exp %44 : vector<1x128xf32>
    %46 = arith.subf %36, %39 : vector<1x128xf32>
    %47 = math.exp %46 : vector<1x128xf32>
    %48 = arith.addf %41, %43 : vector<1x128xf32>
    %49 = arith.addf %48, %45 : vector<1x128xf32>
    %50 = arith.addf %49, %47 : vector<1x128xf32>
    %51 = tpu.reciprocal %50 {approx = true} : vector<1x128xf32> -> vector<1x128xf32>
    %52 = arith.mulf %41, %51 : vector<1x128xf32>
    %53 = vector.extract_strided_slice %9 {offsets = [0, 0], sizes = [256, 128], strides = [1, 1]} : vector<256x512xf32> to vector<256x128xf32>
    %54 = vector.broadcast %52 : vector<1x128xf32> to vector<256x128xf32>
    %55 = arith.mulf %54, %53 : vector<256x128xf32>
    %56 = arith.mulf %43, %51 : vector<1x128xf32>
    %57 = vector.extract_strided_slice %9 {offsets = [0, 128], sizes = [256, 128], strides = [1, 1]} : vector<256x512xf32> to vector<256x128xf32>
    %58 = vector.broadcast %56 : vector<1x128xf32> to vector<256x128xf32>
    %59 = arith.mulf %58, %57 : vector<256x128xf32>
    %60 = arith.addf %55, %59 : vector<256x128xf32>
    %61 = arith.mulf %45, %51 : vector<1x128xf32>
    %62 = vector.extract_strided_slice %9 {offsets = [0, 256], sizes = [256, 128], strides = [1, 1]} : vector<256x512xf32> to vector<256x128xf32>
    %63 = vector.broadcast %61 : vector<1x128xf32> to vector<256x128xf32>
    %64 = arith.mulf %63, %62 : vector<256x128xf32>
    %65 = arith.addf %60, %64 : vector<256x128xf32>
    %66 = arith.mulf %47, %51 : vector<1x128xf32>
    %67 = vector.extract_strided_slice %9 {offsets = [0, 384], sizes = [256, 128], strides = [1, 1]} : vector<256x512xf32> to vector<256x128xf32>
    %68 = vector.broadcast %66 : vector<1x128xf32> to vector<256x128xf32>
    %69 = arith.mulf %68, %67 : vector<256x128xf32>
    %70 = arith.addf %65, %69 : vector<256x128xf32>
    %c0_17 = arith.constant 0 : index
    %c0_18 = arith.constant 0 : index
    %71 = vector.load %arg8[%c0_17, %c0_18] : memref<256x128xf32, #tpu.memory_space<vmem>>, vector<256x128xf32>
    tpu.vector_store %arg8[%c0_17, %c0_18], %70 {strides = array<i32>} : memref<256x128xf32, #tpu.memory_space<vmem>>, vector<256x128xf32>,
    return
  }
  func.func @transform_0(%arg0: i32) -> (i32, i32) {
    %c0_i32 = arith.constant 0 : i32
    %c0_i32_0 = arith.constant 0 : i32
    return %arg0, %c0_i32 : i32, i32
  }
  func.func @transform_1(%arg0: i32) -> (i32, i32) {
    %c0_i32 = arith.constant 0 : i32
    %c0_i32_0 = arith.constant 0 : i32
    %c0_i32_1 = arith.constant 0 : i32
    return %c0_i32, %c0_i32_0 : i32, i32
  }
  func.func @transform_2(%arg0: i32) -> (i32, i32) {
    %c0_i32 = arith.constant 0 : i32
    %c0_i32_0 = arith.constant 0 : i32
    %c0_i32_1 = arith.constant 0 : i32
    return %c0_i32, %c0_i32_0 : i32, i32
  }
  func.func @transform_3(%arg0: i32) -> (i32, i32) {
    %c0_i32 = arith.constant 0 : i32
    %c0_i32_0 = arith.constant 0 : i32
    %c0_i32_1 = arith.constant 0 : i32
    return %c0_i32, %c0_i32_0 : i32, i32
  }
  func.func @transform_4(%arg0: i32) -> (i32, i32) {
    %c0_i32 = arith.constant 0 : i32
    %c0_i32_0 = arith.constant 0 : i32
    %c0_i32_1 = arith.constant 0 : i32
    return %c0_i32, %c0_i32_0 : i32, i32
  }
  func.func @transform_5(%arg0: i32) -> (i32, i32) {
    %c0_i32 = arith.constant 0 : i32
    %c0_i32_0 = arith.constant 0 : i32
    %c0_i32_1 = arith.constant 0 : i32
    return %c0_i32, %c0_i32_0 : i32, i32
  }
  func.func @transform_6(%arg0: i32) -> (i32, i32) {
    %c0_i32 = arith.constant 0 : i32
    %c0_i32_0 = arith.constant 0 : i32
    %c0_i32_1 = arith.constant 0 : i32
    return %c0_i32, %c0_i32_0 : i32, i32
  }
  func.func @transform_7(%arg0: i32) -> (i32, i32) {
    %c0_i32 = arith.constant 0 : i32
    %c0_i32_0 = arith.constant 0 : i32
    return %arg0, %c0_i32 : i32, i32
  }
}

module attributes {stable_mosaic.version = 11 : i64} {
  func.func @_conv_stats_kernel(%arg0: i32, %arg1: memref<256x256xbf16, #tpu.memory_space<vmem>>, %arg2: memref<256x512xbf16, #tpu.memory_space<vmem>>, %arg3: memref<256x512xbf16, #tpu.memory_space<vmem>>, %arg4: memref<1x2x512xf32, #tpu.memory_space<vmem>>) attributes {dimension_semantics = [#tpu.dimension_semantics<parallel>], iteration_bounds = array<i64: 2>, scalar_prefetch = 0 : i64, scratch_operands = 0 : i64, tpu.core_type = #tpu.core_type<tc>, window_params = [{transform_indices = @transform_0, window_bounds = array<i64: 256, 256>}, {pipeline_mode = #tpu.pipeline_mode<synchronous>, transform_indices = @transform_1, window_bounds = array<i64: 256, 512>}, {transform_indices = @transform_2, window_bounds = array<i64: 256, 512>}, {transform_indices = @transform_3, window_bounds = array<i64: 1, 2, 512>}]} {
    %c0 = arith.constant 0 : index
    %c0_0 = arith.constant 0 : index
    %0 = vector.load %arg1[%c0, %c0_0] : memref<256x256xbf16, #tpu.memory_space<vmem>>, vector<256x256xbf16>
    %c0_1 = arith.constant 0 : index
    %c0_2 = arith.constant 0 : index
    %1 = vector.load %arg2[%c0_1, %c0_2] : memref<256x512xbf16, #tpu.memory_space<vmem>>, vector<256x512xbf16>
    %cst = arith.constant dense<0.000000e+00> : vector<256x512xf32>
    %2 = tpu.matmul %0, %1, %cst {dimension_numbers = #tpu.dot_dimension_numbers<[1], [0], [0], [1], [0, 0, 1, 1], [], []>} : vector<256x256xbf16>, vector<256x512xbf16>, vector<256x512xf32> -> vector<256x512xf32>
    %3 = arith.truncf %2 : vector<256x512xf32> to vector<256x512xbf16>
    %c0_3 = arith.constant 0 : index
    %c0_4 = arith.constant 0 : index
    %4 = vector.load %arg3[%c0_3, %c0_4] : memref<256x512xbf16, #tpu.memory_space<vmem>>, vector<256x512xbf16>
    tpu.vector_store %arg3[%c0_3, %c0_4], %3 {strides = array<i32>} : memref<256x512xbf16, #tpu.memory_space<vmem>>, vector<256x512xbf16>,
    %cst_5 = arith.constant dense<0.000000e+00> : vector<512xf32>
    %5 = vector.multi_reduction <add>, %2, %cst_5 [0] : vector<256x512xf32> to vector<512xf32>
    %6 = vector.shape_cast %5 : vector<512xf32> to vector<1x512xf32>
    %c0_6 = arith.constant 0 : index
    %c0_7 = arith.constant 0 : index
    %c0_8 = arith.constant 0 : index
    %7 = vector.load %arg4[%c0_6, %c0_7, %c0_8] : memref<1x2x512xf32, #tpu.memory_space<vmem>>, vector<1x1x512xf32>
    %8 = vector.shape_cast %7 : vector<1x1x512xf32> to vector<1x512xf32>
    %9 = vector.shape_cast %6 : vector<1x512xf32> to vector<1x1x512xf32>
    tpu.vector_store %arg4[%c0_6, %c0_7, %c0_8], %9 {strides = array<i32>} : memref<1x2x512xf32, #tpu.memory_space<vmem>>, vector<1x1x512xf32>,
    %10 = arith.mulf %2, %2 : vector<256x512xf32>
    %cst_9 = arith.constant dense<0.000000e+00> : vector<512xf32>
    %11 = vector.multi_reduction <add>, %10, %cst_9 [0] : vector<256x512xf32> to vector<512xf32>
    %12 = vector.shape_cast %11 : vector<512xf32> to vector<1x512xf32>
    %c0_10 = arith.constant 0 : index
    %c1 = arith.constant 1 : index
    %c0_11 = arith.constant 0 : index
    %13 = vector.load %arg4[%c0_10, %c1, %c0_11] : memref<1x2x512xf32, #tpu.memory_space<vmem>>, vector<1x1x512xf32>
    %14 = vector.shape_cast %13 : vector<1x1x512xf32> to vector<1x512xf32>
    %15 = vector.shape_cast %12 : vector<1x512xf32> to vector<1x1x512xf32>
    tpu.vector_store %arg4[%c0_10, %c1, %c0_11], %15 {strides = array<i32>} : memref<1x2x512xf32, #tpu.memory_space<vmem>>, vector<1x1x512xf32>,
    return
  }
  func.func @transform_0(%arg0: i32) -> (i32, i32) {
    %c0_i32 = arith.constant 0 : i32
    %c0_i32_0 = arith.constant 0 : i32
    return %arg0, %c0_i32 : i32, i32
  }
  func.func @transform_1(%arg0: i32) -> (i32, i32) {
    %c0_i32 = arith.constant 0 : i32
    %c0_i32_0 = arith.constant 0 : i32
    %c0_i32_1 = arith.constant 0 : i32
    return %c0_i32, %c0_i32_0 : i32, i32
  }
  func.func @transform_2(%arg0: i32) -> (i32, i32) {
    %c0_i32 = arith.constant 0 : i32
    %c0_i32_0 = arith.constant 0 : i32
    return %arg0, %c0_i32 : i32, i32
  }
  func.func @transform_3(%arg0: i32) -> (i32, i32, i32) {
    %c0_i32 = arith.constant 0 : i32
    %c0_i32_0 = arith.constant 0 : i32
    %c0_i32_1 = arith.constant 0 : i32
    return %arg0, %c0_i32, %c0_i32_0 : i32, i32, i32
  }
}

module attributes {stable_mosaic.version = 11 : i64} {
  func.func @_conv_stats_kernel(%arg0: i32, %arg1: memref<256x512xbf16, #tpu.memory_space<vmem>>, %arg2: memref<512x512xbf16, #tpu.memory_space<vmem>>, %arg3: memref<256x512xbf16, #tpu.memory_space<vmem>>, %arg4: memref<1x2x512xf32, #tpu.memory_space<vmem>>) attributes {dimension_semantics = [#tpu.dimension_semantics<parallel>], iteration_bounds = array<i64: 2>, scalar_prefetch = 0 : i64, scratch_operands = 0 : i64, tpu.core_type = #tpu.core_type<tc>, window_params = [{transform_indices = @transform_0, window_bounds = array<i64: 256, 512>}, {pipeline_mode = #tpu.pipeline_mode<synchronous>, transform_indices = @transform_1, window_bounds = array<i64: 512, 512>}, {transform_indices = @transform_2, window_bounds = array<i64: 256, 512>}, {transform_indices = @transform_3, window_bounds = array<i64: 1, 2, 512>}]} {
    %c0 = arith.constant 0 : index
    %c0_0 = arith.constant 0 : index
    %0 = vector.load %arg1[%c0, %c0_0] : memref<256x512xbf16, #tpu.memory_space<vmem>>, vector<256x512xbf16>
    %c0_1 = arith.constant 0 : index
    %c0_2 = arith.constant 0 : index
    %1 = vector.load %arg2[%c0_1, %c0_2] : memref<512x512xbf16, #tpu.memory_space<vmem>>, vector<512x512xbf16>
    %cst = arith.constant dense<0.000000e+00> : vector<256x512xf32>
    %2 = tpu.matmul %0, %1, %cst {dimension_numbers = #tpu.dot_dimension_numbers<[1], [0], [0], [1], [0, 0, 1, 1], [], []>} : vector<256x512xbf16>, vector<512x512xbf16>, vector<256x512xf32> -> vector<256x512xf32>
    %3 = arith.truncf %2 : vector<256x512xf32> to vector<256x512xbf16>
    %c0_3 = arith.constant 0 : index
    %c0_4 = arith.constant 0 : index
    %4 = vector.load %arg3[%c0_3, %c0_4] : memref<256x512xbf16, #tpu.memory_space<vmem>>, vector<256x512xbf16>
    tpu.vector_store %arg3[%c0_3, %c0_4], %3 {strides = array<i32>} : memref<256x512xbf16, #tpu.memory_space<vmem>>, vector<256x512xbf16>,
    %cst_5 = arith.constant dense<0.000000e+00> : vector<512xf32>
    %5 = vector.multi_reduction <add>, %2, %cst_5 [0] : vector<256x512xf32> to vector<512xf32>
    %6 = vector.shape_cast %5 : vector<512xf32> to vector<1x512xf32>
    %c0_6 = arith.constant 0 : index
    %c0_7 = arith.constant 0 : index
    %c0_8 = arith.constant 0 : index
    %7 = vector.load %arg4[%c0_6, %c0_7, %c0_8] : memref<1x2x512xf32, #tpu.memory_space<vmem>>, vector<1x1x512xf32>
    %8 = vector.shape_cast %7 : vector<1x1x512xf32> to vector<1x512xf32>
    %9 = vector.shape_cast %6 : vector<1x512xf32> to vector<1x1x512xf32>
    tpu.vector_store %arg4[%c0_6, %c0_7, %c0_8], %9 {strides = array<i32>} : memref<1x2x512xf32, #tpu.memory_space<vmem>>, vector<1x1x512xf32>,
    %10 = arith.mulf %2, %2 : vector<256x512xf32>
    %cst_9 = arith.constant dense<0.000000e+00> : vector<512xf32>
    %11 = vector.multi_reduction <add>, %10, %cst_9 [0] : vector<256x512xf32> to vector<512xf32>
    %12 = vector.shape_cast %11 : vector<512xf32> to vector<1x512xf32>
    %c0_10 = arith.constant 0 : index
    %c1 = arith.constant 1 : index
    %c0_11 = arith.constant 0 : index
    %13 = vector.load %arg4[%c0_10, %c1, %c0_11] : memref<1x2x512xf32, #tpu.memory_space<vmem>>, vector<1x1x512xf32>
    %14 = vector.shape_cast %13 : vector<1x1x512xf32> to vector<1x512xf32>
    %15 = vector.shape_cast %12 : vector<1x512xf32> to vector<1x1x512xf32>
    tpu.vector_store %arg4[%c0_10, %c1, %c0_11], %15 {strides = array<i32>} : memref<1x2x512xf32, #tpu.memory_space<vmem>>, vector<1x1x512xf32>,
    return
  }
  func.func @transform_0(%arg0: i32) -> (i32, i32) {
    %c0_i32 = arith.constant 0 : i32
    %c0_i32_0 = arith.constant 0 : i32
    return %arg0, %c0_i32 : i32, i32
  }
  func.func @transform_1(%arg0: i32) -> (i32, i32) {
    %c0_i32 = arith.constant 0 : i32
    %c0_i32_0 = arith.constant 0 : i32
    %c0_i32_1 = arith.constant 0 : i32
    return %c0_i32, %c0_i32_0 : i32, i32
  }
  func.func @transform_2(%arg0: i32) -> (i32, i32) {
    %c0_i32 = arith.constant 0 : i32
    %c0_i32_0 = arith.constant 0 : i32
    return %arg0, %c0_i32 : i32, i32
  }
  func.func @transform_3(%arg0: i32) -> (i32, i32, i32) {
    %c0_i32 = arith.constant 0 : i32
    %c0_i32_0 = arith.constant 0 : i32
    %c0_i32_1 = arith.constant 0 : i32
    return %arg0, %c0_i32, %c0_i32_0 : i32, i32, i32
  }
}

</mosaic_0001>

<llo_original>
// kernel: double_conv_pallas.5
$region0: #{double_conv_pallas.5}
  #allocation0 [shape = 'u32[]', space=smem, size = 0x4, offset = 0x4, fixed_abs, tag = 'smem constant byte address 0x4 - core index']
  #allocation1 [shape = 'u32[144,128]{1,0:T(1,128)}', space=vmem, size = 0x12000, scoped, tag = 'internal scratch']
  %s0 = inlined_call_operand.vmem [shape: bf16[512,512], index: 0, kind: input, shape index: {}]
  %s1 = inlined_call_operand.vmem [shape: f32[1,512], index: 1, kind: input, shape index: {}]
  %s2 = inlined_call_operand.vmem [shape: f32[1,512], index: 2, kind: input, shape index: {}]
  %s3 = inlined_call_operand.vmem [shape: f32[128,128], index: 3, kind: input, shape index: {}]
  %s4 = inlined_call_operand.vmem [shape: f32[1,128], index: 4, kind: input, shape index: {}]
  %s5 = inlined_call_operand.vmem [shape: f32[128,512], index: 5, kind: input, shape index: {}]
  %s6 = inlined_call_operand.vmem [shape: f32[1,512], index: 6, kind: input, shape index: {}]
  %s7 = inlined_call_operand.vmem [shape: f32[512,128], index: 7, kind: output, shape index: {}]
  %s8 = sld [smem:[#allocation0]]
  $region61: #{double_conv_pallas.5} parent=0
    _
  %s10 = ssub.s32 1, %s8
  %s11 = scalar_select 0, %s10, %s8
  loop: start=0, step=1, limit=4
  $region2: #{double_conv_pallas.5} parent=0 // loop_pre_header
    _
  $region3: #{double_conv_pallas.5} parent=0 // loop_header
    %s13 = sphi 0, %s17
    %p14 = scmp.ge.s32.totalorder %s13, 4
    %s23 = sphi 0, %s25
    %s26 = sphi 0, %s23
    %s27 = sphi 0, %s26
    %s43 = sphi 0, %s27
    %s47 = sphi 0, %s47
    %s49 = sphi 0, %s47
    %s50 = sphi 0, %s49
    %s64 = sphi 0, %s50
    %s68 = sphi 0, %s68
    %s70 = sphi 0, %s68
    %s71 = sphi 0, %s70
    %s85 = sphi 0, %s71
    %s89 = sphi 0, %s89
    %s91 = sphi 0, %s89
    %s92 = sphi 0, %s91
    %s106 = sphi 0, %s92
    %s110 = sphi 0, %s110
    %s112 = sphi 0, %s110
    %s113 = sphi 0, %s112
    %s127 = sphi 0, %s113
    %s131 = sphi 0, %s131
    %s133 = sphi 0, %s131
    %s134 = sphi 0, %s133
    %s148 = sphi 0, %s134
    %s152 = sphi 0, %s152
    %s154 = sphi 0, %s152
    %s155 = sphi 0, %s154
    %s169 = sphi 0, %s155
    %s175 = sphi 0, %s177
    %s178 = sphi 0, %s175
    %s179 = sphi 0, %s178
    %s195 = sphi 0, %s179
  $region4: #{double_conv_pallas.5} parent=0 // loop_header_branch
    %16 = sbr.rel (%p14) target = $region8
  $region5: #{double_conv_pallas.5} parent=0 // loop_body
    %s18 = ssub.s32 %s13, 1
    %s19 = ssub.s32 %s13, 2
    %s20 = sadd.s32 %s13, 1
    %s21 = ssub.s32 %s13, %s20
    %p22 = scmp.eq.s32.totalorder %s21, 0
    %s24 = sadd.s32 %s23, 1
    %s25 = scalar_select %p22, %s23, %s24
    %p28 = pneg %p22
    %p29 = scmp.eq.s32.totalorder %s13, 1
    %p30 = por %p28, %p29
    %p31 = scmp.ne.s32.totalorder %s23, %s26
    %p32 = scmp.eq.s32.totalorder %s13, 0
    %p33 = por %p31, %p32
    %p34 = scmp.ne.s32.totalorder %s23, %s26
    %p35 = scmp.eq.s32.totalorder %s18, 1
    %p36 = por %p34, %p35
    %p37 = scmp.ne.s32.totalorder %s26, %s27
    %p38 = scmp.eq.s32.totalorder %s18, 0
    %p39 = por %p37, %p38
    %p40 = scmp.ne.s32.totalorder %s26, %s27
    %p41 = scmp.eq.s32.totalorder %s19, 1
    %p42 = por %p40, %p41
    %p44 = scmp.ne.s32.totalorder %s27, %s43
    %p45 = scmp.eq.s32.totalorder %s19, 0
    %p46 = por %p44, %p45
    %s48 = sadd.s32 %s47, 1
    %p51 = scmp.eq.s32.totalorder %s13, 1
    %p52 = scmp.ne.s32.totalorder %s47, %s49
    %p53 = scmp.eq.s32.totalorder %s13, 0
    %p54 = por %p52, %p53
    %p55 = scmp.ne.s32.totalorder %s47, %s49
    %p56 = scmp.eq.s32.totalorder %s18, 1
    %p57 = por %p55, %p56
    %p58 = scmp.ne.s32.totalorder %s49, %s50
    %p59 = scmp.eq.s32.totalorder %s18, 0
    %p60 = por %p58, %p59
    %p61 = scmp.ne.s32.totalorder %s49, %s50
    %p62 = scmp.eq.s32.totalorder %s19, 1
    %p63 = por %p61, %p62
    %p65 = scmp.ne.s32.totalorder %s50, %s64
    %p66 = scmp.eq.s32.totalorder %s19, 0
    %p67 = por %p65, %p66
    %s69 = sadd.s32 %s68, 1
    %p72 = scmp.eq.s32.totalorder %s13, 1
    %p73 = scmp.ne.s32.totalorder %s68, %s70
    %p74 = scmp.eq.s32.totalorder %s13, 0
    %p75 = por %p73, %p74
    %p76 = scmp.ne.s32.totalorder %s68, %s70
    %p77 = scmp.eq.s32.totalorder %s18, 1
    %p78 = por %p76, %p77
    %p79 = scmp.ne.s32.totalorder %s70, %s71
    %p80 = scmp.eq.s32.totalorder %s18, 0
    %p81 = por %p79, %p80
    %p82 = scmp.ne.s32.totalorder %s70, %s71
    %p83 = scmp.eq.s32.totalorder %s19, 1
    %p84 = por %p82, %p83
    %p86 = scmp.ne.s32.totalorder %s71, %s85
    %p87 = scmp.eq.s32.totalorder %s19, 0
    %p88 = por %p86, %p87
    %s90 = sadd.s32 %s89, 1
    %p93 = scmp.eq.s32.totalorder %s13, 1
    %p94 = scmp.ne.s32.totalorder %s89, %s91
    %p95 = scmp.eq.s32.totalorder %s13, 0
    %p96 = por %p94, %p95
    %p97 = scmp.ne.s32.totalorder %s89, %s91
    %p98 = scmp.eq.s32.totalorder %s18, 1
    %p99 = por %p97, %p98
    %p100 = scmp.ne.s32.totalorder %s91, %s92
    %p101 = scmp.eq.s32.totalorder %s18, 0
    %p102 = por %p100, %p101
    %p103 = scmp.ne.s32.totalorder %s91, %s92
    %p104 = scmp.eq.s32.totalorder %s19, 1
    %p105 = por %p103, %p104
    %p107 = scmp.ne.s32.totalorder %s92, %s106
    %p108 = scmp.eq.s32.totalorder %s19, 0
    %p109 = por %p107, %p108
    %s111 = sadd.s32 %s110, 1
    %p114 = scmp.eq.s32.totalorder %s13, 1
    %p115 = scmp.ne.s32.totalorder %s110, %s112
    %p116 = scmp.eq.s32.totalorder %s13, 0
    %p117 = por %p115, %p116
    %p118 = scmp.ne.s32.totalorder %s110, %s112
    %p119 = scmp.eq.s32.totalorder %s18, 1
    %p120 = por %p118, %p119
    %p121 = scmp.ne.s32.totalorder %s112, %s113
    %p122 = scmp.eq.s32.totalorder %s18, 0
    %p123 = por %p121, %p122
    %p124 = scmp.ne.s32.totalorder %s112, %s113
    %p125 = scmp.eq.s32.totalorder %s19, 1
    %p126 = por %p124, %p125
    %p128 = scmp.ne.s32.totalorder %s113, %s127
    %p129 = scmp.eq.s32.totalorder %s19, 0
    %p130 = por %p128, %p129
    %s132 = sadd.s32 %s131, 1
    %p135 = scmp.eq.s32.totalorder %s13, 1
    %p136 = scmp.ne.s32.totalorder %s131, %s133
    %p137 = scmp.eq.s32.totalorder %s13, 0
    %p138 = por %p136, %p137
    %p139 = scmp.ne.s32.totalorder %s131, %s133
    %p140 = scmp.eq.s32.totalorder %s18, 1
    %p141 = por %p139, %p140
    %p142 = scmp.ne.s32.totalorder %s133, %s134
    %p143 = scmp.eq.s32.totalorder %s18, 0
    %p144 = por %p142, %p143
    %p145 = scmp.ne.s32.totalorder %s133, %s134
    %p146 = scmp.eq.s32.totalorder %s19, 1
    %p147 = por %p145, %p146
    %p149 = scmp.ne.s32.totalorder %s134, %s148
    %p150 = scmp.eq.s32.totalorder %s19, 0
    %p151 = por %p149, %p150
    %s153 = sadd.s32 %s152, 1
    %p156 = scmp.eq.s32.totalorder %s13, 1
    %p157 = scmp.ne.s32.totalorder %s152, %s154
    %p158 = scmp.eq.s32.totalorder %s13, 0
    %p159 = por %p157, %p158
    %p160 = scmp.ne.s32.totalorder %s152, %s154
    %p161 = scmp.eq.s32.totalorder %s18, 1
    %p162 = por %p160, %p161
    %p163 = scmp.ne.s32.totalorder %s154, %s155
    %p164 = scmp.eq.s32.totalorder %s18, 0
    %p165 = por %p163, %p164
    %p166 = scmp.ne.s32.totalorder %s154, %s155
    %p167 = scmp.eq.s32.totalorder %s19, 1
    %p168 = por %p166, %p167
    %p170 = scmp.ne.s32.totalorder %s155, %s169
    %p171 = scmp.eq.s32.totalorder %s19, 0
    %p172 = por %p170, %p171
    %s173 = ssub.s32 %s13, %s20
    %p174 = scmp.eq.s32.totalorder %s173, 0
    %s176 = sadd.s32 %s175, 1
    %s177 = scalar_select %p174, %s175, %s176
    %p180 = pneg %p174
    %p181 = scmp.eq.s32.totalorder %s13, 1
    %p182 = por %p180, %p181
    %p183 = scmp.ne.s32.totalorder %s175, %s178
    %p184 = scmp.eq.s32.totalorder %s13, 0
    %p185 = por %p183, %p184
    %p186 = scmp.ne.s32.totalorder %s175, %s178
    %p187 = scmp.eq.s32.totalorder %s18, 1
    %p188 = por %p186, %p187
    %p189 = scmp.ne.s32.totalorder %s178, %s179
    %p190 = scmp.eq.s32.totalorder %s18, 0
    %p191 = por %p189, %p190
    %p192 = scmp.ne.s32.totalorder %s178, %s179
    %p193 = scmp.eq.s32.totalorder %s19, 1
    %p194 = por %p192, %p193
    %p196 = scmp.ne.s32.totalorder %s179, %s195
    %p197 = scmp.eq.s32.totalorder %s19, 0
    %p198 = por %p196, %p197
    %p199 = scmp.le.s32.totalorder 1, %s13
    %p200 = scmp.lt.s32.totalorder %s13, 3
    %p201 = pnand %p199, %p200
    %p202 = pneg %p201
    // Predicated region
    $region9: #{double_conv_pallas.5} parent=5 // pred_check
      _
    $region10: #{double_conv_pallas.5} parent=5 // pred_check_branch
      %204 = sbr.rel (%p201) target = $region12
    $region11: #{double_conv_pallas.5} parent=5 // pred_region
      %s205 = ssub.s32 %s13, 1
      // Predicated region
      $region13: #{double_conv_pallas.5} parent=11 // pred_check
        %p206 = pneg %p60
      $region14: #{double_conv_pallas.5} parent=11 // pred_check_branch
        %208 = sbr.rel (%p206) target = $region16
      $region15: #{double_conv_pallas.5} parent=11 // pred_region
        _
      $region16: #{double_conv_pallas.5} parent=11 // pred_fallthru
        _
      // Predicated region
      $region17: #{double_conv_pallas.5} parent=11 // pred_check
        %p209 = pneg %p81
      $region18: #{double_conv_pallas.5} parent=11 // pred_check_branch
        %211 = sbr.rel (%p209) target = $region20
      $region19: #{double_conv_pallas.5} parent=11 // pred_region
        _
      $region20: #{double_conv_pallas.5} parent=11 // pred_fallthru
        _
      // Predicated region
      $region21: #{double_conv_pallas.5} parent=11 // pred_check
        %p212 = pneg %p102
      $region22: #{double_conv_pallas.5} parent=11 // pred_check_branch
        %214 = sbr.rel (%p212) target = $region24
      $region23: #{double_conv_pallas.5} parent=11 // pred_region
        _
      $region24: #{double_conv_pallas.5} parent=11 // pred_fallthru
        _
      // Predicated region
      $region25: #{double_conv_pallas.5} parent=11 // pred_check
        %p215 = pneg %p123
      $region26: #{double_conv_pallas.5} parent=11 // pred_check_branch
        %217 = sbr.rel (%p215) target = $region28
      $region27: #{double_conv_pallas.5} parent=11 // pred_region
        _
      $region28: #{double_conv_pallas.5} parent=11 // pred_fallthru
        _
      // Predicated region
      $region29: #{double_conv_pallas.5} parent=11 // pred_check
        %p218 = pneg %p144
      $region30: #{double_conv_pallas.5} parent=11 // pred_check_branch
        %220 = sbr.rel (%p218) target = $region32
      $region31: #{double_conv_pallas.5} parent=11 // pred_region
        _
      $region32: #{double_conv_pallas.5} parent=11 // pred_fallthru
        _
      // Predicated region
      $region33: #{double_conv_pallas.5} parent=11 // pred_check
        %p221 = pneg %p165
      $region34: #{double_conv_pallas.5} parent=11 // pred_check_branch
        %223 = sbr.rel (%p221) target = $region36
      $region35: #{double_conv_pallas.5} parent=11 // pred_region
        _
      $region36: #{double_conv_pallas.5} parent=11 // pred_fallthru
        _
    $region12: #{double_conv_pallas.5} parent=5 // pred_fallthru
      _
    %p224 = scmp.lt.s32.totalorder %s13, 2
    // Predicated region
    $region37: #{double_conv_pallas.5} parent=5 // pred_check
      %p225 = pneg %p224
    $region38: #{double_conv_pallas.5} parent=5 // pred_check_branch
      %227 = sbr.rel (%p225) target = $region40
    $region39: #{double_conv_pallas.5} parent=5 // pred_region
      // Predicated region
      $region41: #{double_conv_pallas.5} parent=39 // pred_check
        %p228 = pneg %p33
      $region42: #{double_conv_pallas.5} parent=39 // pred_check_branch
        %230 = sbr.rel (%p228) target = $region44
      $region43: #{double_conv_pallas.5} parent=39 // pred_region
        %s231 = smul.u32 32, %s13
        %p232 = scmp.lt.s32.totalorder %s231, 63
        %s233 = scalar_select %p232, %s231, 63
        %s234 = smul.addr %s233, 4
        %s235 = smul.addr %s234, 4
        %s236 = scalar_lea.vmem %s0, %s235
        %s237 = smul.u32 32, %s13
      $region44: #{double_conv_pallas.5} parent=39 // pred_fallthru
        _
    $region40: #{double_conv_pallas.5} parent=5 // pred_fallthru
      _
    %p238 = scmp.le.s32.totalorder 1, %s13
    %p239 = scmp.lt.s32.totalorder %s13, 3
    %p240 = pnand %p238, %p239
    %p241 = pneg %p240
    // Predicated region
    $region45: #{double_conv_pallas.5} parent=5 // pred_check
      _
    $region46: #{double_conv_pallas.5} parent=5 // pred_check_branch
      %243 = sbr.rel (%p240) target = $region48
    $region47: #{double_conv_pallas.5} parent=5 // pred_region
      %s244 = ssub.s32 %s13, 1
      %s245 = smul.u32 32, %s18
      %p246 = scmp.lt.s32.totalorder %s245, 63
      %s247 = scalar_select %p246, %s245, 63
      %s248 = smul.addr %s247, 4
      %s249 = smul.addr %s248, 4
      %s250 = scalar_lea.vmem %s0, %s249
      %p251 = pneg %p39
      %p252 = pneg %p36
      %p253 = pneg %p60
      %p254 = pneg %p57
      %p255 = pneg %p81
      %p256 = pneg %p78
      %p257 = pneg %p102
      %p258 = pneg %p99
      %p259 = pneg %p123
      %p260 = pneg %p120
      %p261 = pneg %p144
      %p262 = pneg %p141
      %p263 = pneg %p165
      %p264 = pneg %p162
      %p265 = pneg %p191
      %p266 = pneg %p188
      %s267 = smul.u32 32, %s18
      %p268 = scmp.lt.s32.totalorder %s267, 63
      %s269 = scalar_select %p268, %s267, 63
      %s270 = smul.addr %s269, 8
      %s271 = scalar_lea.vmem %s7, %s270
      %s272 = smul.u32 32, %s18
      %p273 = scmp.lt.s32.totalorder %s272, 63
      %s274 = scalar_select %p273, %s272, 63
      %s275 = smul.addr %s274, 4
      %s276 = smul.addr %s275, 4
      %s277 = scalar_lea.vmem %s0, %s276
      %s278 = smul.u32 32, %s18
      %s279 = smul.u32 32, %s18
      %p280 = scmp.lt.s32.totalorder %s279, 63
      %s281 = scalar_select %p280, %s279, 63
      %s282 = smul.addr %s281, 8
      %s283 = scalar_lea.vmem %s7, %s282
      %s284 = smul.u32 32, %s18
      %v285 = vld [vmem:[%s277] sm:$0xff]
      %v286 = vld [vmem:[%s277 + $0x8] sm:$0xff]
      %v287 = vld [vmem:[%s277 + $0x10] sm:$0xff]
      %v288 = vld [vmem:[%s277 + $0x18] sm:$0xff]
      %v289 = vld [vmem:[%s277 + $0x20] sm:$0xff]
      %v290 = vld [vmem:[%s277 + $0x28] sm:$0xff]
      %v291 = vld [vmem:[%s277 + $0x30] sm:$0xff]
      %v292 = vld [vmem:[%s277 + $0x38] sm:$0xff]
      %v293 = vld [vmem:[%s277 + $0x40] sm:$0xff]
      %v294 = vld [vmem:[%s277 + $0x48] sm:$0xff]
      %v295 = vld [vmem:[%s277 + $0x50] sm:$0xff]
      %v296 = vld [vmem:[%s277 + $0x58] sm:$0xff]
      %v297 = vld [vmem:[%s277 + $0x60] sm:$0xff]
      %v298 = vld [vmem:[%s277 + $0x68] sm:$0xff]
      %v299 = vld [vmem:[%s277 + $0x70] sm:$0xff]
      %v300 = vld [vmem:[%s277 + $0x78] sm:$0xff]
      %v301 = vld [vmem:[%s277 + $0x80] sm:$0xff]
      %v302 = vld [vmem:[%s277 + $0x88] sm:$0xff]
      %v303 = vld [vmem:[%s277 + $0x90] sm:$0xff]
      %v304 = vld [vmem:[%s277 + $0x98] sm:$0xff]
      %v305 = vld [vmem:[%s277 + $0xa0] sm:$0xff]
      %v306 = vld [vmem:[%s277 + $0xa8] sm:$0xff]
      %v307 = vld [vmem:[%s277 + $0xb0] sm:$0xff]
      %v308 = vld [vmem:[%s277 + $0xb8] sm:$0xff]
      %v309 = vld [vmem:[%s277 + $0xc0] sm:$0xff]
      %v310 = vld [vmem:[%s277 + $0xc8] sm:$0xff]
      %v311 = vld [vmem:[%s277 + $0xd0] sm:$0xff]
      %v312 = vld [vmem:[%s277 + $0xd8] sm:$0xff]
      %v313 = vld [vmem:[%s277 + $0xe0] sm:$0xff]
      %v314 = vld [vmem:[%s277 + $0xe8] sm:$0xff]
      %v315 = vld [vmem:[%s277 + $0xf0] sm:$0xff]
      %v316 = vld [vmem:[%s277 + $0xf8] sm:$0xff]
      %v317 = vld [vmem:[%s277 + $0x100] sm:$0xff]
      %v318 = vld [vmem:[%s277 + $0x108] sm:$0xff]
      %v319 = vld [vmem:[%s277 + $0x110] sm:$0xff]
      %v320 = vld [vmem:[%s277 + $0x118] sm:$0xff]
      %v321 = vld [vmem:[%s277 + $0x120] sm:$0xff]
      %v322 = vld [vmem:[%s277 + $0x128] sm:$0xff]
      %v323 = vld [vmem:[%s277 + $0x130] sm:$0xff]
      %v324 = vld [vmem:[%s277 + $0x138] sm:$0xff]
      %v325 = vld [vmem:[%s277 + $0x140] sm:$0xff]
      %v326 = vld [vmem:[%s277 + $0x148] sm:$0xff]
      %v327 = vld [vmem:[%s277 + $0x150] sm:$0xff]
      %v328 = vld [vmem:[%s277 + $0x158] sm:$0xff]
      %v329 = vld [vmem:[%s277 + $0x160] sm:$0xff]
      %v330 = vld [vmem:[%s277 + $0x168] sm:$0xff]
      %v331 = vld [vmem:[%s277 + $0x170] sm:$0xff]
      %v332 = vld [vmem:[%s277 + $0x178] sm:$0xff]
      %v333 = vld [vmem:[%s277 + $0x180] sm:$0xff]
      %v334 = vld [vmem:[%s277 + $0x188] sm:$0xff]
      %v335 = vld [vmem:[%s277 + $0x190] sm:$0xff]
      %v336 = vld [vmem:[%s277 + $0x198] sm:$0xff]
      %v337 = vld [vmem:[%s277 + $0x1a0] sm:$0xff]
      %v338 = vld [vmem:[%s277 + $0x1a8] sm:$0xff]
      %v339 = vld [vmem:[%s277 + $0x1b0] sm:$0xff]
      %v340 = vld [vmem:[%s277 + $0x1b8] sm:$0xff]
      %v341 = vld [vmem:[%s277 + $0x1c0] sm:$0xff]
      %v342 = vld [vmem:[%s277 + $0x1c8] sm:$0xff]
      %v343 = vld [vmem:[%s277 + $0x1d0] sm:$0xff]
      %v344 = vld [vmem:[%s277 + $0x1d8] sm:$0xff]
      %v345 = vld [vmem:[%s277 + $0x1e0] sm:$0xff]
      %v346 = vld [vmem:[%s277 + $0x1e8] sm:$0xff]
      %v347 = vld [vmem:[%s277 + $0x1f0] sm:$0xff]
      %v348 = vld [vmem:[%s277 + $0x1f8] sm:$0xff]
      %v349 = vunpack.c.l.bf16 %v285
      %v350 = vunpack.c.h.bf16 %v285
      %v351 = vunpack.c.l.bf16 %v286
      %v352 = vunpack.c.h.bf16 %v286
      %v353 = vunpack.c.l.bf16 %v287
      %v354 = vunpack.c.h.bf16 %v287
      %v355 = vunpack.c.l.bf16 %v288
      %v356 = vunpack.c.h.bf16 %v288
      %v357 = vunpack.c.l.bf16 %v289
      %v358 = vunpack.c.h.bf16 %v289
      %v359 = vunpack.c.l.bf16 %v290
      %v360 = vunpack.c.h.bf16 %v290
      %v361 = vunpack.c.l.bf16 %v291
      %v362 = vunpack.c.h.bf16 %v291
      %v363 = vunpack.c.l.bf16 %v292
      %v364 = vunpack.c.h.bf16 %v292
      %v365 = vunpack.c.l.bf16 %v293
      %v366 = vunpack.c.h.bf16 %v293
      %v367 = vunpack.c.l.bf16 %v294
      %v368 = vunpack.c.h.bf16 %v294
      %v369 = vunpack.c.l.bf16 %v295
      %v370 = vunpack.c.h.bf16 %v295
      %v371 = vunpack.c.l.bf16 %v296
      %v372 = vunpack.c.h.bf16 %v296
      %v373 = vunpack.c.l.bf16 %v297
      %v374 = vunpack.c.h.bf16 %v297
      %v375 = vunpack.c.l.bf16 %v298
      %v376 = vunpack.c.h.bf16 %v298
      %v377 = vunpack.c.l.bf16 %v299
      %v378 = vunpack.c.h.bf16 %v299
      %v379 = vunpack.c.l.bf16 %v300
      %v380 = vunpack.c.h.bf16 %v300
      %v381 = vunpack.c.l.bf16 %v301
      %v382 = vunpack.c.h.bf16 %v301
      %v383 = vunpack.c.l.bf16 %v302
      %v384 = vunpack.c.h.bf16 %v302
      %v385 = vunpack.c.l.bf16 %v303
      %v386 = vunpack.c.h.bf16 %v303
      %v387 = vunpack.c.l.bf16 %v304
      %v388 = vunpack.c.h.bf16 %v304
      %v389 = vunpack.c.l.bf16 %v305
      %v390 = vunpack.c.h.bf16 %v305
      %v391 = vunpack.c.l.bf16 %v306
      %v392 = vunpack.c.h.bf16 %v306
      %v393 = vunpack.c.l.bf16 %v307
      %v394 = vunpack.c.h.bf16 %v307
      %v395 = vunpack.c.l.bf16 %v308
      %v396 = vunpack.c.h.bf16 %v308
      %v397 = vunpack.c.l.bf16 %v309
      %v398 = vunpack.c.h.bf16 %v309
      %v399 = vunpack.c.l.bf16 %v310
      %v400 = vunpack.c.h.bf16 %v310
      %v401 = vunpack.c.l.bf16 %v311
      %v402 = vunpack.c.h.bf16 %v311
      %v403 = vunpack.c.l.bf16 %v312
      %v404 = vunpack.c.h.bf16 %v312
      %v405 = vunpack.c.l.bf16 %v313
      %v406 = vunpack.c.h.bf16 %v313
      %v407 = vunpack.c.l.bf16 %v314
      %v408 = vunpack.c.h.bf16 %v314
      %v409 = vunpack.c.l.bf16 %v315
      %v410 = vunpack.c.h.bf16 %v315
      %v411 = vunpack.c.l.bf16 %v316
      %v412 = vunpack.c.h.bf16 %v316
      %v413 = vunpack.c.l.bf16 %v317
      %v414 = vunpack.c.h.bf16 %v317
      %v415 = vunpack.c.l.bf16 %v318
      %v416 = vunpack.c.h.bf16 %v318
      %v417 = vunpack.c.l.bf16 %v319
      %v418 = vunpack.c.h.bf16 %v319
      %v419 = vunpack.c.l.bf16 %v320
      %v420 = vunpack.c.h.bf16 %v320
      %v421 = vunpack.c.l.bf16 %v321
      %v422 = vunpack.c.h.bf16 %v321
      %v423 = vunpack.c.l.bf16 %v322
      %v424 = vunpack.c.h.bf16 %v322
      %v425 = vunpack.c.l.bf16 %v323
      %v426 = vunpack.c.h.bf16 %v323
      %v427 = vunpack.c.l.bf16 %v324
      %v428 = vunpack.c.h.bf16 %v324
      %v429 = vunpack.c.l.bf16 %v325
      %v430 = vunpack.c.h.bf16 %v325
      %v431 = vunpack.c.l.bf16 %v326
      %v432 = vunpack.c.h.bf16 %v326
      %v433 = vunpack.c.l.bf16 %v327
      %v434 = vunpack.c.h.bf16 %v327
      %v435 = vunpack.c.l.bf16 %v328
      %v436 = vunpack.c.h.bf16 %v328
      %v437 = vunpack.c.l.bf16 %v329
      %v438 = vunpack.c.h.bf16 %v329
      %v439 = vunpack.c.l.bf16 %v330
      %v440 = vunpack.c.h.bf16 %v330
      %v441 = vunpack.c.l.bf16 %v331
      %v442 = vunpack.c.h.bf16 %v331
      %v443 = vunpack.c.l.bf16 %v332
      %v444 = vunpack.c.h.bf16 %v332
      %v445 = vunpack.c.l.bf16 %v333
      %v446 = vunpack.c.h.bf16 %v333
      %v447 = vunpack.c.l.bf16 %v334
      %v448 = vunpack.c.h.bf16 %v334
      %v449 = vunpack.c.l.bf16 %v335
      %v450 = vunpack.c.h.bf16 %v335
      %v451 = vunpack.c.l.bf16 %v336
      %v452 = vunpack.c.h.bf16 %v336
      %v453 = vunpack.c.l.bf16 %v337
      %v454 = vunpack.c.h.bf16 %v337
      %v455 = vunpack.c.l.bf16 %v338
      %v456 = vunpack.c.h.bf16 %v338
      %v457 = vunpack.c.l.bf16 %v339
      %v458 = vunpack.c.h.bf16 %v339
      %v459 = vunpack.c.l.bf16 %v340
      %v460 = vunpack.c.h.bf16 %v340
      %v461 = vunpack.c.l.bf16 %v341
      %v462 = vunpack.c.h.bf16 %v341
      %v463 = vunpack.c.l.bf16 %v342
      %v464 = vunpack.c.h.bf16 %v342
      %v465 = vunpack.c.l.bf16 %v343
      %v466 = vunpack.c.h.bf16 %v343
      %v467 = vunpack.c.l.bf16 %v344
      %v468 = vunpack.c.h.bf16 %v344
      %v469 = vunpack.c.l.bf16 %v345
      %v470 = vunpack.c.h.bf16 %v345
      %v471 = vunpack.c.l.bf16 %v346
      %v472 = vunpack.c.h.bf16 %v346
      %v473 = vunpack.c.l.bf16 %v347
      %v474 = vunpack.c.h.bf16 %v347
      %v475 = vunpack.c.l.bf16 %v348
      %v476 = vunpack.c.h.bf16 %v348
      %v477 = vld [vmem:[%s1] sm:$0xf]
      %v479 = vlaneseq
      %v480 = vshrl.u32 %v479, 7
      %v481 = vsub.s32 0, %v480
      %v482 = vrot.slane %v477, %v481
      %v483 = vlaneseq
      %v484 = vshrl.u32 %v483, 7
      %v485 = vsub.s32 1, %v484
      %v486 = vrot.slane %v477, %v485
      %v487 = vlaneseq
      %v488 = vshrl.u32 %v487, 7
      %v489 = vsub.s32 2, %v488
      %v490 = vrot.slane %v477, %v489
      %v491 = vlaneseq
      %v492 = vshrl.u32 %v491, 7
      %v493 = vsub.s32 3, %v492
      %v494 = vrot.slane %v477, %v493
      %v499 = vmul.f32 %v349, %v482
      %v500 = vmul.f32 %v350, %v486
      %v501 = vmul.f32 %v351, %v490
      %v502 = vmul.f32 %v352, %v494
      %v503 = vmul.f32 %v353, %v482
      %v504 = vmul.f32 %v354, %v486
      %v505 = vmul.f32 %v355, %v490
      %v506 = vmul.f32 %v356, %v494
      %v507 = vmul.f32 %v357, %v482
      %v508 = vmul.f32 %v358, %v486
      %v509 = vmul.f32 %v359, %v490
      %v510 = vmul.f32 %v360, %v494
      %v511 = vmul.f32 %v361, %v482
      %v512 = vmul.f32 %v362, %v486
      %v513 = vmul.f32 %v363, %v490
      %v514 = vmul.f32 %v364, %v494
      %v515 = vmul.f32 %v365, %v482
      %v516 = vmul.f32 %v366, %v486
      %v517 = vmul.f32 %v367, %v490
      %v518 = vmul.f32 %v368, %v494
      %v519 = vmul.f32 %v369, %v482
      %v520 = vmul.f32 %v370, %v486
      %v521 = vmul.f32 %v371, %v490
      %v522 = vmul.f32 %v372, %v494
      %v523 = vmul.f32 %v373, %v482
      %v524 = vmul.f32 %v374, %v486
      %v525 = vmul.f32 %v375, %v490
      %v526 = vmul.f32 %v376, %v494
      %v527 = vmul.f32 %v377, %v482
      %v528 = vmul.f32 %v378, %v486
      %v529 = vmul.f32 %v379, %v490
      %v530 = vmul.f32 %v380, %v494
      %v531 = vmul.f32 %v381, %v482
      %v532 = vmul.f32 %v382, %v486
      %v533 = vmul.f32 %v383, %v490
      %v534 = vmul.f32 %v384, %v494
      %v535 = vmul.f32 %v385, %v482
      %v536 = vmul.f32 %v386, %v486
      %v537 = vmul.f32 %v387, %v490
      %v538 = vmul.f32 %v388, %v494
      %v539 = vmul.f32 %v389, %v482
      %v540 = vmul.f32 %v390, %v486
      %v541 = vmul.f32 %v391, %v490
      %v542 = vmul.f32 %v392, %v494
      %v543 = vmul.f32 %v393, %v482
      %v544 = vmul.f32 %v394, %v486
      %v545 = vmul.f32 %v395, %v490
      %v546 = vmul.f32 %v396, %v494
      %v547 = vmul.f32 %v397, %v482
      %v548 = vmul.f32 %v398, %v486
      %v549 = vmul.f32 %v399, %v490
      %v550 = vmul.f32 %v400, %v494
      %v551 = vmul.f32 %v401, %v482
      %v552 = vmul.f32 %v402, %v486
      %v553 = vmul.f32 %v403, %v490
      %v554 = vmul.f32 %v404, %v494
      %v555 = vmul.f32 %v405, %v482
      %v556 = vmul.f32 %v406, %v486
      %v557 = vmul.f32 %v407, %v490
      %v558 = vmul.f32 %v408, %v494
      %v559 = vmul.f32 %v409, %v482
      %v560 = vmul.f32 %v410, %v486
      %v561 = vmul.f32 %v411, %v490
      %v562 = vmul.f32 %v412, %v494
      %v563 = vmul.f32 %v413, %v482
      %v564 = vmul.f32 %v414, %v486
      %v565 = vmul.f32 %v415, %v490
      %v566 = vmul.f32 %v416, %v494
      %v567 = vmul.f32 %v417, %v482
      %v568 = vmul.f32 %v418, %v486
      %v569 = vmul.f32 %v419, %v490
      %v570 = vmul.f32 %v420, %v494
      %v571 = vmul.f32 %v421, %v482
      %v572 = vmul.f32 %v422, %v486
      %v573 = vmul.f32 %v423, %v490
      %v574 = vmul.f32 %v424, %v494
      %v575 = vmul.f32 %v425, %v482
      %v576 = vmul.f32 %v426, %v486
      %v577 = vmul.f32 %v427, %v490
      %v578 = vmul.f32 %v428, %v494
      %v579 = vmul.f32 %v429, %v482
      %v580 = vmul.f32 %v430, %v486
      %v581 = vmul.f32 %v431, %v490
      %v582 = vmul.f32 %v432, %v494
      %v583 = vmul.f32 %v433, %v482
      %v584 = vmul.f32 %v434, %v486
      %v585 = vmul.f32 %v435, %v490
      %v586 = vmul.f32 %v436, %v494
      %v587 = vmul.f32 %v437, %v482
      %v588 = vmul.f32 %v438, %v486
      %v589 = vmul.f32 %v439, %v490
      %v590 = vmul.f32 %v440, %v494
      %v591 = vmul.f32 %v441, %v482
      %v592 = vmul.f32 %v442, %v486
      %v593 = vmul.f32 %v443, %v490
      %v594 = vmul.f32 %v444, %v494
      %v595 = vmul.f32 %v445, %v482
      %v596 = vmul.f32 %v446, %v486
      %v597 = vmul.f32 %v447, %v490
      %v598 = vmul.f32 %v448, %v494
      %v599 = vmul.f32 %v449, %v482
      %v600 = vmul.f32 %v450, %v486
      %v601 = vmul.f32 %v451, %v490
      %v602 = vmul.f32 %v452, %v494
      %v603 = vmul.f32 %v453, %v482
      %v604 = vmul.f32 %v454, %v486
      %v605 = vmul.f32 %v455, %v490
      %v606 = vmul.f32 %v456, %v494
      %v607 = vmul.f32 %v457, %v482
      %v608 = vmul.f32 %v458, %v486
      %v609 = vmul.f32 %v459, %v490
      %v610 = vmul.f32 %v460, %v494
      %v611 = vmul.f32 %v461, %v482
      %v612 = vmul.f32 %v462, %v486
      %v613 = vmul.f32 %v463, %v490
      %v614 = vmul.f32 %v464, %v494
      %v615 = vmul.f32 %v465, %v482
      %v616 = vmul.f32 %v466, %v486
      %v617 = vmul.f32 %v467, %v490
      %v618 = vmul.f32 %v468, %v494
      %v619 = vmul.f32 %v469, %v482
      %v620 = vmul.f32 %v470, %v486
      %v621 = vmul.f32 %v471, %v490
      %v622 = vmul.f32 %v472, %v494
      %v623 = vmul.f32 %v473, %v482
      %v624 = vmul.f32 %v474, %v486
      %v625 = vmul.f32 %v475, %v490
      %v626 = vmul.f32 %v476, %v494
      %v627 = vld [vmem:[%s2] sm:$0xf]
      %v629 = vlaneseq
      %v630 = vshrl.u32 %v629, 7
      %v631 = vsub.s32 0, %v630
      %v632 = vrot.slane %v627, %v631
      %v633 = vlaneseq
      %v634 = vshrl.u32 %v633, 7
      %v635 = vsub.s32 1, %v634
      %v636 = vrot.slane %v627, %v635
      %v637 = vlaneseq
      %v638 = vshrl.u32 %v637, 7
      %v639 = vsub.s32 2, %v638
      %v640 = vrot.slane %v627, %v639
      %v641 = vlaneseq
      %v642 = vshrl.u32 %v641, 7
      %v643 = vsub.s32 3, %v642
      %v644 = vrot.slane %v627, %v643
      %v649 = vadd.f32 %v499, %v632
      %v650 = vadd.f32 %v500, %v636
      %v651 = vadd.f32 %v501, %v640
      %v652 = vadd.f32 %v502, %v644
      %v653 = vadd.f32 %v503, %v632
      %v654 = vadd.f32 %v504, %v636
      %v655 = vadd.f32 %v505, %v640
      %v656 = vadd.f32 %v506, %v644
      %v657 = vadd.f32 %v507, %v632
      %v658 = vadd.f32 %v508, %v636
      %v659 = vadd.f32 %v509, %v640
      %v660 = vadd.f32 %v510, %v644
      %v661 = vadd.f32 %v511, %v632
      %v662 = vadd.f32 %v512, %v636
      %v663 = vadd.f32 %v513, %v640
      %v664 = vadd.f32 %v514, %v644
      %v665 = vadd.f32 %v515, %v632
      %v666 = vadd.f32 %v516, %v636
      %v667 = vadd.f32 %v517, %v640
      %v668 = vadd.f32 %v518, %v644
      %v669 = vadd.f32 %v519, %v632
      %v670 = vadd.f32 %v520, %v636
      %v671 = vadd.f32 %v521, %v640
      %v672 = vadd.f32 %v522, %v644
      %v673 = vadd.f32 %v523, %v632
      %v674 = vadd.f32 %v524, %v636
      %v675 = vadd.f32 %v525, %v640
      %v676 = vadd.f32 %v526, %v644
      %v677 = vadd.f32 %v527, %v632
      %v678 = vadd.f32 %v528, %v636
      %v679 = vadd.f32 %v529, %v640
      %v680 = vadd.f32 %v530, %v644
      %v681 = vadd.f32 %v531, %v632
      %v682 = vadd.f32 %v532, %v636
      %v683 = vadd.f32 %v533, %v640
      %v684 = vadd.f32 %v534, %v644
      %v685 = vadd.f32 %v535, %v632
      %v686 = vadd.f32 %v536, %v636
      %v687 = vadd.f32 %v537, %v640
      %v688 = vadd.f32 %v538, %v644
      %v689 = vadd.f32 %v539, %v632
      %v690 = vadd.f32 %v540, %v636
      %v691 = vadd.f32 %v541, %v640
      %v692 = vadd.f32 %v542, %v644
      %v693 = vadd.f32 %v543, %v632
      %v694 = vadd.f32 %v544, %v636
      %v695 = vadd.f32 %v545, %v640
      %v696 = vadd.f32 %v546, %v644
      %v697 = vadd.f32 %v547, %v632
      %v698 = vadd.f32 %v548, %v636
      %v699 = vadd.f32 %v549, %v640
      %v700 = vadd.f32 %v550, %v644
      %v701 = vadd.f32 %v551, %v632
      %v702 = vadd.f32 %v552, %v636
      %v703 = vadd.f32 %v553, %v640
      %v704 = vadd.f32 %v554, %v644
      %v705 = vadd.f32 %v555, %v632
      %v706 = vadd.f32 %v556, %v636
      %v707 = vadd.f32 %v557, %v640
      %v708 = vadd.f32 %v558, %v644
      %v709 = vadd.f32 %v559, %v632
      %v710 = vadd.f32 %v560, %v636
      %v711 = vadd.f32 %v561, %v640
      %v712 = vadd.f32 %v562, %v644
      %v713 = vadd.f32 %v563, %v632
      %v714 = vadd.f32 %v564, %v636
      %v715 = vadd.f32 %v565, %v640
      %v716 = vadd.f32 %v566, %v644
      %v717 = vadd.f32 %v567, %v632
      %v718 = vadd.f32 %v568, %v636
      %v719 = vadd.f32 %v569, %v640
      %v720 = vadd.f32 %v570, %v644
      %v721 = vadd.f32 %v571, %v632
      %v722 = vadd.f32 %v572, %v636
      %v723 = vadd.f32 %v573, %v640
      %v724 = vadd.f32 %v574, %v644
      %v725 = vadd.f32 %v575, %v632
      %v726 = vadd.f32 %v576, %v636
      %v727 = vadd.f32 %v577, %v640
      %v728 = vadd.f32 %v578, %v644
      %v729 = vadd.f32 %v579, %v632
      %v730 = vadd.f32 %v580, %v636
      %v731 = vadd.f32 %v581, %v640
      %v732 = vadd.f32 %v582, %v644
      %v733 = vadd.f32 %v583, %v632
      %v734 = vadd.f32 %v584, %v636
      %v735 = vadd.f32 %v585, %v640
      %v736 = vadd.f32 %v586, %v644
      %v737 = vadd.f32 %v587, %v632
      %v738 = vadd.f32 %v588, %v636
      %v739 = vadd.f32 %v589, %v640
      %v740 = vadd.f32 %v590, %v644
      %v741 = vadd.f32 %v591, %v632
      %v742 = vadd.f32 %v592, %v636
      %v743 = vadd.f32 %v593, %v640
      %v744 = vadd.f32 %v594, %v644
      %v745 = vadd.f32 %v595, %v632
      %v746 = vadd.f32 %v596, %v636
      %v747 = vadd.f32 %v597, %v640
      %v748 = vadd.f32 %v598, %v644
      %v749 = vadd.f32 %v599, %v632
      %v750 = vadd.f32 %v600, %v636
      %v751 = vadd.f32 %v601, %v640
      %v752 = vadd.f32 %v602, %v644
      %v753 = vadd.f32 %v603, %v632
      %v754 = vadd.f32 %v604, %v636
      %v755 = vadd.f32 %v605, %v640
      %v756 = vadd.f32 %v606, %v644
      %v757 = vadd.f32 %v607, %v632
      %v758 = vadd.f32 %v608, %v636
      %v759 = vadd.f32 %v609, %v640
      %v760 = vadd.f32 %v610, %v644
      %v761 = vadd.f32 %v611, %v632
      %v762 = vadd.f32 %v612, %v636
      %v763 = vadd.f32 %v613, %v640
      %v764 = vadd.f32 %v614, %v644
      %v765 = vadd.f32 %v615, %v632
      %v766 = vadd.f32 %v616, %v636
      %v767 = vadd.f32 %v617, %v640
      %v768 = vadd.f32 %v618, %v644
      %v769 = vadd.f32 %v619, %v632
      %v770 = vadd.f32 %v620, %v636
      %v771 = vadd.f32 %v621, %v640
      %v772 = vadd.f32 %v622, %v644
      %v773 = vadd.f32 %v623, %v632
      %v774 = vadd.f32 %v624, %v636
      %v775 = vadd.f32 %v625, %v640
      %v776 = vadd.f32 %v626, %v644
      %v777 = vmax.f32 %v649, 0.0
      %v778 = vmax.f32 %v650, 0.0
      %v779 = vmax.f32 %v651, 0.0
      %v780 = vmax.f32 %v652, 0.0
      %v781 = vmax.f32 %v653, 0.0
      %v782 = vmax.f32 %v654, 0.0
      %v783 = vmax.f32 %v655, 0.0
      %v784 = vmax.f32 %v656, 0.0
      %v785 = vmax.f32 %v657, 0.0
      %v786 = vmax.f32 %v658, 0.0
      %v787 = vmax.f32 %v659, 0.0
      %v788 = vmax.f32 %v660, 0.0
      %v789 = vmax.f32 %v661, 0.0
      %v790 = vmax.f32 %v662, 0.0
      %v791 = vmax.f32 %v663, 0.0
      %v792 = vmax.f32 %v664, 0.0
      %v793 = vmax.f32 %v665, 0.0
      %v794 = vmax.f32 %v666, 0.0
      %v795 = vmax.f32 %v667, 0.0
      %v796 = vmax.f32 %v668, 0.0
      %v797 = vmax.f32 %v669, 0.0
      %v798 = vmax.f32 %v670, 0.0
      %v799 = vmax.f32 %v671, 0.0
      %v800 = vmax.f32 %v672, 0.0
      %v801 = vmax.f32 %v673, 0.0
      %v802 = vmax.f32 %v674, 0.0
      %v803 = vmax.f32 %v675, 0.0
      %v804 = vmax.f32 %v676, 0.0
      %v805 = vmax.f32 %v677, 0.0
      %v806 = vmax.f32 %v678, 0.0
      %v807 = vmax.f32 %v679, 0.0
      %v808 = vmax.f32 %v680, 0.0
      %v809 = vmax.f32 %v681, 0.0
      %v810 = vmax.f32 %v682, 0.0
      %v811 = vmax.f32 %v683, 0.0
      %v812 = vmax.f32 %v684, 0.0
      %v813 = vmax.f32 %v685, 0.0
      %v814 = vmax.f32 %v686, 0.0
      %v815 = vmax.f32 %v687, 0.0
      %v816 = vmax.f32 %v688, 0.0
      %v817 = vmax.f32 %v689, 0.0
      %v818 = vmax.f32 %v690, 0.0
      %v819 = vmax.f32 %v691, 0.0
      %v820 = vmax.f32 %v692, 0.0
      %v821 = vmax.f32 %v693, 0.0
      %v822 = vmax.f32 %v694, 0.0
      %v823 = vmax.f32 %v695, 0.0
      %v824 = vmax.f32 %v696, 0.0
      %v825 = vmax.f32 %v697, 0.0
      %v826 = vmax.f32 %v698, 0.0
      %v827 = vmax.f32 %v699, 0.0
      %v828 = vmax.f32 %v700, 0.0
      %v829 = vmax.f32 %v701, 0.0
      %v830 = vmax.f32 %v702, 0.0
      %v831 = vmax.f32 %v703, 0.0
      %v832 = vmax.f32 %v704, 0.0
      %v833 = vmax.f32 %v705, 0.0
      %v834 = vmax.f32 %v706, 0.0
      %v835 = vmax.f32 %v707, 0.0
      %v836 = vmax.f32 %v708, 0.0
      %v837 = vmax.f32 %v709, 0.0
      %v838 = vmax.f32 %v710, 0.0
      %v839 = vmax.f32 %v711, 0.0
      %v840 = vmax.f32 %v712, 0.0
      %v841 = vmax.f32 %v713, 0.0
      %v842 = vmax.f32 %v714, 0.0
      %v843 = vmax.f32 %v715, 0.0
      %v844 = vmax.f32 %v716, 0.0
      %v845 = vmax.f32 %v717, 0.0
      %v846 = vmax.f32 %v718, 0.0
      %v847 = vmax.f32 %v719, 0.0
      %v848 = vmax.f32 %v720, 0.0
      %v849 = vmax.f32 %v721, 0.0
      %v850 = vmax.f32 %v722, 0.0
      %v851 = vmax.f32 %v723, 0.0
      %v852 = vmax.f32 %v724, 0.0
      %v853 = vmax.f32 %v725, 0.0
      %v854 = vmax.f32 %v726, 0.0
      %v855 = vmax.f32 %v727, 0.0
      %v856 = vmax.f32 %v728, 0.0
      %v857 = vmax.f32 %v729, 0.0
      %v858 = vmax.f32 %v730, 0.0
      %v859 = vmax.f32 %v731, 0.0
      %v860 = vmax.f32 %v732, 0.0
      %v861 = vmax.f32 %v733, 0.0
      %v862 = vmax.f32 %v734, 0.0
      %v863 = vmax.f32 %v735, 0.0
      %v864 = vmax.f32 %v736, 0.0
      %v865 = vmax.f32 %v737, 0.0
      %v866 = vmax.f32 %v738, 0.0
      %v867 = vmax.f32 %v739, 0.0
      %v868 = vmax.f32 %v740, 0.0
      %v869 = vmax.f32 %v741, 0.0
      %v870 = vmax.f32 %v742, 0.0
      %v871 = vmax.f32 %v743, 0.0
      %v872 = vmax.f32 %v744, 0.0
      %v873 = vmax.f32 %v745, 0.0
      %v874 = vmax.f32 %v746, 0.0
      %v875 = vmax.f32 %v747, 0.0
      %v876 = vmax.f32 %v748, 0.0
      %v877 = vmax.f32 %v749, 0.0
      %v878 = vmax.f32 %v750, 0.0
      %v879 = vmax.f32 %v751, 0.0
      %v880 = vmax.f32 %v752, 0.0
      %v881 = vmax.f32 %v753, 0.0
      %v882 = vmax.f32 %v754, 0.0
      %v883 = vmax.f32 %v755, 0.0
      %v884 = vmax.f32 %v756, 0.0
      %v885 = vmax.f32 %v757, 0.0
      %v886 = vmax.f32 %v758, 0.0
      %v887 = vmax.f32 %v759, 0.0
      %v888 = vmax.f32 %v760, 0.0
      %v889 = vmax.f32 %v761, 0.0
      %v890 = vmax.f32 %v762, 0.0
      %v891 = vmax.f32 %v763, 0.0
      %v892 = vmax.f32 %v764, 0.0
      %v893 = vmax.f32 %v765, 0.0
      %v894 = vmax.f32 %v766, 0.0
      %v895 = vmax.f32 %v767, 0.0
      %v896 = vmax.f32 %v768, 0.0
      %v897 = vmax.f32 %v769, 0.0
      %v898 = vmax.f32 %v770, 0.0
      %v899 = vmax.f32 %v771, 0.0
      %v900 = vmax.f32 %v772, 0.0
      %v901 = vmax.f32 %v773, 0.0
      %v902 = vmax.f32 %v774, 0.0
      %v903 = vmax.f32 %v775, 0.0
      %v904 = vmax.f32 %v776, 0.0
      %v905 = vadd.f32 %v777, %v778
      %v906 = vadd.f32 %v781, %v782
      %v907 = vadd.f32 %v785, %v786
      %v908 = vadd.f32 %v789, %v790
      %v909 = vadd.f32 %v793, %v794
      %v910 = vadd.f32 %v797, %v798
      %v911 = vadd.f32 %v801, %v802
      %v912 = vadd.f32 %v805, %v806
      %v913 = vadd.f32 %v809, %v810
      %v914 = vadd.f32 %v813, %v814
      %v915 = vadd.f32 %v817, %v818
      %v916 = vadd.f32 %v821, %v822
      %v917 = vadd.f32 %v825, %v826
      %v918 = vadd.f32 %v829, %v830
      %v919 = vadd.f32 %v833, %v834
      %v920 = vadd.f32 %v837, %v838
      %v921 = vadd.f32 %v841, %v842
      %v922 = vadd.f32 %v845, %v846
      %v923 = vadd.f32 %v849, %v850
      %v924 = vadd.f32 %v853, %v854
      %v925 = vadd.f32 %v857, %v858
      %v926 = vadd.f32 %v861, %v862
      %v927 = vadd.f32 %v865, %v866
      %v928 = vadd.f32 %v869, %v870
      %v929 = vadd.f32 %v873, %v874
      %v930 = vadd.f32 %v877, %v878
      %v931 = vadd.f32 %v881, %v882
      %v932 = vadd.f32 %v885, %v886
      %v933 = vadd.f32 %v889, %v890
      %v934 = vadd.f32 %v893, %v894
      %v935 = vadd.f32 %v897, %v898
      %v936 = vadd.f32 %v901, %v902
      %v937 = vadd.f32 %v905, %v779
      %v938 = vadd.f32 %v906, %v783
      %v939 = vadd.f32 %v907, %v787
      %v940 = vadd.f32 %v908, %v791
      %v941 = vadd.f32 %v909, %v795
      %v942 = vadd.f32 %v910, %v799
      %v943 = vadd.f32 %v911, %v803
      %v944 = vadd.f32 %v912, %v807
      %v945 = vadd.f32 %v913, %v811
      %v946 = vadd.f32 %v914, %v815
      %v947 = vadd.f32 %v915, %v819
      %v948 = vadd.f32 %v916, %v823
      %v949 = vadd.f32 %v917, %v827
      %v950 = vadd.f32 %v918, %v831
      %v951 = vadd.f32 %v919, %v835
      %v952 = vadd.f32 %v920, %v839
      %v953 = vadd.f32 %v921, %v843
      %v954 = vadd.f32 %v922, %v847
      %v955 = vadd.f32 %v923, %v851
      %v956 = vadd.f32 %v924, %v855
      %v957 = vadd.f32 %v925, %v859
      %v958 = vadd.f32 %v926, %v863
      %v959 = vadd.f32 %v927, %v867
      %v960 = vadd.f32 %v928, %v871
      %v961 = vadd.f32 %v929, %v875
      %v962 = vadd.f32 %v930, %v879
      %v963 = vadd.f32 %v931, %v883
      %v964 = vadd.f32 %v932, %v887
      %v965 = vadd.f32 %v933, %v891
      %v966 = vadd.f32 %v934, %v895
      %v967 = vadd.f32 %v935, %v899
      %v968 = vadd.f32 %v936, %v903
      %v969 = vadd.f32 %v937, %v780
      %v970 = vadd.f32 %v938, %v784
      %v971 = vadd.f32 %v939, %v788
      %v972 = vadd.f32 %v940, %v792
      %v973 = vadd.f32 %v941, %v796
      %v974 = vadd.f32 %v942, %v800
      %v975 = vadd.f32 %v943, %v804
      %v976 = vadd.f32 %v944, %v808
      %v977 = vadd.f32 %v945, %v812
      %v978 = vadd.f32 %v946, %v816
      %v979 = vadd.f32 %v947, %v820
      %v980 = vadd.f32 %v948, %v824
      %v981 = vadd.f32 %v949, %v828
      %v982 = vadd.f32 %v950, %v832
      %v983 = vadd.f32 %v951, %v836
      %v984 = vadd.f32 %v952, %v840
      %v985 = vadd.f32 %v953, %v844
      %v986 = vadd.f32 %v954, %v848
      %v987 = vadd.f32 %v955, %v852
      %v988 = vadd.f32 %v956, %v856
      %v989 = vadd.f32 %v957, %v860
      %v990 = vadd.f32 %v958, %v864
      %v991 = vadd.f32 %v959, %v868
      %v992 = vadd.f32 %v960, %v872
      %v993 = vadd.f32 %v961, %v876
      %v994 = vadd.f32 %v962, %v880
      %v995 = vadd.f32 %v963, %v884
      %v996 = vadd.f32 %v964, %v888
      %v997 = vadd.f32 %v965, %v892
      %v998 = vadd.f32 %v966, %v896
      %v999 = vadd.f32 %v967, %v900
      %v1000 = vadd.f32 %v968, %v904
      %v1001 = vadd.f32 %v969, %v970
      %v1002 = vadd.f32 %v1001, %v971
      %v1003 = vadd.f32 %v1002, %v972
      %v1004 = vadd.f32 %v1003, %v973
      %v1005 = vadd.f32 %v1004, %v974
      %v1006 = vadd.f32 %v1005, %v975
      %v1007 = vadd.f32 %v1006, %v976
      %v1008 = vadd.f32 %v1007, %v977
      %v1009 = vadd.f32 %v1008, %v978
      %v1010 = vadd.f32 %v1009, %v979
      %v1011 = vadd.f32 %v1010, %v980
      %v1012 = vadd.f32 %v1011, %v981
      %v1013 = vadd.f32 %v1012, %v982
      %v1014 = vadd.f32 %v1013, %v983
      %v1015 = vadd.f32 %v1014, %v984
      %v1016 = vadd.f32 %v1015, %v985
      %v1017 = vadd.f32 %v1016, %v986
      %v1018 = vadd.f32 %v1017, %v987
      %v1019 = vadd.f32 %v1018, %v988
      %v1020 = vadd.f32 %v1019, %v989
      %v1021 = vadd.f32 %v1020, %v990
      %v1022 = vadd.f32 %v1021, %v991
      %v1023 = vadd.f32 %v1022, %v992
      %v1024 = vadd.f32 %v1023, %v993
      %v1025 = vadd.f32 %v1024, %v994
      %v1026 = vadd.f32 %v1025, %v995
      %v1027 = vadd.f32 %v1026, %v996
      %v1028 = vadd.f32 %v1027, %v997
      %v1029 = vadd.f32 %v1028, %v998
      %v1030 = vadd.f32 %v1029, %v999
      %v1031 = vadd.f32 %v1030, %v1000
      %v1032 = vrot.slane %v1031, 4
      %v1033 = vadd.f32 %v1031, %v1032
      %v1034 = vrot.slane %v1033, 2
      %v1035 = vadd.f32 %v1033, %v1034
      %v1036 = vrot.slane %v1035, 1
      %v1037 = vadd.f32 %v1035, %v1036
      %v1038 = vmul.f32 %v1037, 0.00390625
      %v1039 = vld [vmem:[%s3] sm:$0xff]
      %v1040 = vld [vmem:[%s3 + $0x8] sm:$0xff]
      %v1041 = vld [vmem:[%s3 + $0x10] sm:$0xff]
      %v1042 = vld [vmem:[%s3 + $0x18] sm:$0xff]
      %v1043 = vld [vmem:[%s3 + $0x20] sm:$0xff]
      %v1044 = vld [vmem:[%s3 + $0x28] sm:$0xff]
      %v1045 = vld [vmem:[%s3 + $0x30] sm:$0xff]
      %v1046 = vld [vmem:[%s3 + $0x38] sm:$0xff]
      %v1047 = vld [vmem:[%s3 + $0x40] sm:$0xff]
      %v1048 = vld [vmem:[%s3 + $0x48] sm:$0xff]
      %v1049 = vld [vmem:[%s3 + $0x50] sm:$0xff]
      %v1050 = vld [vmem:[%s3 + $0x58] sm:$0xff]
      %v1051 = vld [vmem:[%s3 + $0x60] sm:$0xff]
      %v1052 = vld [vmem:[%s3 + $0x68] sm:$0xff]
      %v1053 = vld [vmem:[%s3 + $0x70] sm:$0xff]
      %v1054 = vld [vmem:[%s3 + $0x78] sm:$0xff]
      %v1055 = vld [vmem:[%s4] sm:$0x1]
      %v1057 = vlaneseq
      %v1058 = vshrl.u32 %v1057, 7
      %v1059 = vsub.s32 0, %v1058
      %v1060 = vrot.slane %v1055, %v1059
      %1062 = vmatprep.subr.mxu0 0.0
      %1063 = vmatpush1.msra.mxu0 %v1054
      %1064 = vmatprep.subr.mxu0 0.0
      %1065 = vmatpush1.msra.mxu0 %v1053
      %1066 = vmatprep.subr.mxu0 0.0
      %1067 = vmatpush1.msra.mxu0 %v1052
      %1068 = vmatprep.subr.mxu0 0.0
      %1069 = vmatpush1.msra.mxu0 %v1051
      %1070 = vmatprep.subr.mxu0 0.0
      %1071 = vmatpush1.msra.mxu0 %v1050
      %1072 = vmatprep.subr.mxu0 0.0
      %1073 = vmatpush1.msra.mxu0 %v1049
      %1074 = vmatprep.subr.mxu0 0.0
      %1075 = vmatpush1.msra.mxu0 %v1048
      %1076 = vmatprep.subr.mxu0 0.0
      %1077 = vmatpush1.msra.mxu0 %v1047
      %1078 = vmatprep.subr.mxu0 0.0
      %1079 = vmatpush1.msra.mxu0 %v1046
      %1080 = vmatprep.subr.mxu0 0.0
      %1081 = vmatpush1.msra.mxu0 %v1045
      %1082 = vmatprep.subr.mxu0 0.0
      %1083 = vmatpush1.msra.mxu0 %v1044
      %1084 = vmatprep.subr.mxu0 0.0
      %1085 = vmatpush1.msra.mxu0 %v1043
      %1086 = vmatprep.subr.mxu0 0.0
      %1087 = vmatpush1.msra.mxu0 %v1042
      %1088 = vmatprep.subr.mxu0 0.0
      %1089 = vmatpush1.msra.mxu0 %v1041
      %1090 = vmatprep.subr.mxu0 0.0
      %1091 = vmatpush1.msra.mxu0 %v1040
      %1092 = vmatprep.subr.mxu0 0.0
      %1093 = vmatpush1.msra.mxu0 %v1039
      %1094 = vmatprep.subr.mxu0 0.0
      %1095 = vmatpush2.msra.mxu0 0.0
      %1096 = vmatprep.subr.mxu0 0.0
      %1097 = vmatpush2.msra.mxu0 0.0
      %1098 = vmatprep.subr.mxu0 0.0
      %1099 = vmatpush2.msra.mxu0 0.0
      %1100 = vmatprep.subr.mxu0 0.0
      %1101 = vmatpush2.msra.mxu0 0.0
      %1102 = vmatprep.subr.mxu0 0.0
      %1103 = vmatpush2.msra.mxu0 0.0
      %1104 = vmatprep.subr.mxu0 0.0
      %1105 = vmatpush2.msra.mxu0 0.0
      %1106 = vmatprep.subr.mxu0 0.0
      %1107 = vmatpush2.msra.mxu0 0.0
      %1108 = vmatprep.subr.mxu0 0.0
      %1109 = vmatpush2.msra.mxu0 0.0
      %1110 = vmatprep.subr.mxu0 0.0
      %1111 = vmatpush2.msra.mxu0 0.0
      %1112 = vmatprep.subr.mxu0 0.0
      %1113 = vmatpush2.msra.mxu0 0.0
      %1114 = vmatprep.subr.mxu0 0.0
      %1115 = vmatpush2.msra.mxu0 0.0
      %1116 = vmatprep.subr.mxu0 0.0
      %1117 = vmatpush2.msra.mxu0 0.0
      %1118 = vmatprep.subr.mxu0 0.0
      %1119 = vmatpush2.msra.mxu0 0.0
      %1120 = vmatprep.subr.mxu0 0.0
      %1121 = vmatpush2.msra.mxu0 0.0
      %1122 = vmatprep.subr.mxu0 0.0
      %1123 = vmatpush2.msra.mxu0 0.0
      %1124 = vmatprep.subr.mxu0 0.0
      %1125 = vmatpush2.msra.mxu0 0.0
      %1126 = vmatprep.mubr.f32.mxu0 0.0
      %1127 = vmatmul.mubr.f32.gmra.mxu0 %v1038
      %v1128 = vpop.f32.mrf.mxu0
      %v1129 = vadd.f32 %v1060, %v1128
      %v1130 = vpop.f32.mrf.mxu0
      %1131 = vdwg.mxu0
      %v1132 = vld [vmem:[%s5] sm:$0xff]
      %v1133 = vld [vmem:[%s5 + $0x8] sm:$0xff]
      %v1134 = vld [vmem:[%s5 + $0x10] sm:$0xff]
      %v1135 = vld [vmem:[%s5 + $0x18] sm:$0xff]
      %v1136 = vld [vmem:[%s5 + $0x20] sm:$0xff]
      %v1137 = vld [vmem:[%s5 + $0x28] sm:$0xff]
      %v1138 = vld [vmem:[%s5 + $0x30] sm:$0xff]
      %v1139 = vld [vmem:[%s5 + $0x38] sm:$0xff]
      %v1140 = vld [vmem:[%s5 + $0x40] sm:$0xff]
      %v1141 = vld [vmem:[%s5 + $0x48] sm:$0xff]
      %v1142 = vld [vmem:[%s5 + $0x50] sm:$0xff]
      %v1143 = vld [vmem:[%s5 + $0x58] sm:$0xff]
      %v1144 = vld [vmem:[%s5 + $0x60] sm:$0xff]
      %v1145 = vld [vmem:[%s5 + $0x68] sm:$0xff]
      %v1146 = vld [vmem:[%s5 + $0x70] sm:$0xff]
      %v1147 = vld [vmem:[%s5 + $0x78] sm:$0xff]
      %v1148 = vld [vmem:[%s5 + $0x80] sm:$0xff]
      %v1149 = vld [vmem:[%s5 + $0x88] sm:$0xff]
      %v1150 = vld [vmem:[%s5 + $0x90] sm:$0xff]
      %v1151 = vld [vmem:[%s5 + $0x98] sm:$0xff]
      %v1152 = vld [vmem:[%s5 + $0xa0] sm:$0xff]
      %v1153 = vld [vmem:[%s5 + $0xa8] sm:$0xff]
      %v1154 = vld [vmem:[%s5 + $0xb0] sm:$0xff]
      %v1155 = vld [vmem:[%s5 + $0xb8] sm:$0xff]
      %v1156 = vld [vmem:[%s5 + $0xc0] sm:$0xff]
      %v1157 = vld [vmem:[%s5 + $0xc8] sm:$0xff]
      %v1158 = vld [vmem:[%s5 + $0xd0] sm:$0xff]
      %v1159 = vld [vmem:[%s5 + $0xd8] sm:$0xff]
      %v1160 = vld [vmem:[%s5 + $0xe0] sm:$0xff]
      %v1161 = vld [vmem:[%s5 + $0xe8] sm:$0xff]
      %v1162 = vld [vmem:[%s5 + $0xf0] sm:$0xff]
      %v1163 = vld [vmem:[%s5 + $0xf8] sm:$0xff]
      %v1164 = vld [vmem:[%s5 + $0x100] sm:$0xff]
      %v1165 = vld [vmem:[%s5 + $0x108] sm:$0xff]
      %v1166 = vld [vmem:[%s5 + $0x110] sm:$0xff]
      %v1167 = vld [vmem:[%s5 + $0x118] sm:$0xff]
      %v1168 = vld [vmem:[%s5 + $0x120] sm:$0xff]
      %v1169 = vld [vmem:[%s5 + $0x128] sm:$0xff]
      %v1170 = vld [vmem:[%s5 + $0x130] sm:$0xff]
      %v1171 = vld [vmem:[%s5 + $0x138] sm:$0xff]
      %v1172 = vld [vmem:[%s5 + $0x140] sm:$0xff]
      %v1173 = vld [vmem:[%s5 + $0x148] sm:$0xff]
      %v1174 = vld [vmem:[%s5 + $0x150] sm:$0xff]
      %v1175 = vld [vmem:[%s5 + $0x158] sm:$0xff]
      %v1176 = vld [vmem:[%s5 + $0x160] sm:$0xff]
      %v1177 = vld [vmem:[%s5 + $0x168] sm:$0xff]
      %v1178 = vld [vmem:[%s5 + $0x170] sm:$0xff]
      %v1179 = vld [vmem:[%s5 + $0x178] sm:$0xff]
      %v1180 = vld [vmem:[%s5 + $0x180] sm:$0xff]
      %v1181 = vld [vmem:[%s5 + $0x188] sm:$0xff]
      %v1182 = vld [vmem:[%s5 + $0x190] sm:$0xff]
      %v1183 = vld [vmem:[%s5 + $0x198] sm:$0xff]
      %v1184 = vld [vmem:[%s5 + $0x1a0] sm:$0xff]
      %v1185 = vld [vmem:[%s5 + $0x1a8] sm:$0xff]
      %v1186 = vld [vmem:[%s5 + $0x1b0] sm:$0xff]
      %v1187 = vld [vmem:[%s5 + $0x1b8] sm:$0xff]
      %v1188 = vld [vmem:[%s5 + $0x1c0] sm:$0xff]
      %v1189 = vld [vmem:[%s5 + $0x1c8] sm:$0xff]
      %v1190 = vld [vmem:[%s5 + $0x1d0] sm:$0xff]
      %v1191 = vld [vmem:[%s5 + $0x1d8] sm:$0xff]
      %v1192 = vld [vmem:[%s5 + $0x1e0] sm:$0xff]
      %v1193 = vld [vmem:[%s5 + $0x1e8] sm:$0xff]
      %v1194 = vld [vmem:[%s5 + $0x1f0] sm:$0xff]
      %v1195 = vld [vmem:[%s5 + $0x1f8] sm:$0xff]
      %v1196 = vld [vmem:[%s6] sm:$0xf]
      %v1198 = vlaneseq
      %v1199 = vshrl.u32 %v1198, 7
      %v1200 = vsub.s32 0, %v1199
      %v1201 = vrot.slane %v1196, %v1200
      %v1202 = vlaneseq
      %v1203 = vshrl.u32 %v1202, 7
      %v1204 = vsub.s32 1, %v1203
      %v1205 = vrot.slane %v1196, %v1204
      %v1206 = vlaneseq
      %v1207 = vshrl.u32 %v1206, 7
      %v1208 = vsub.s32 2, %v1207
      %v1209 = vrot.slane %v1196, %v1208
      %v1210 = vlaneseq
      %v1211 = vshrl.u32 %v1210, 7
      %v1212 = vsub.s32 3, %v1211
      %v1213 = vrot.slane %v1196, %v1212
      %1218 = vmatprep.subr.mxu0 %v1193
      %1219 = vmatpush1.msra.mxu0 %v1192
      %1220 = vmatprep.subr.mxu0 %v1189
      %1221 = vmatpush1.msra.mxu0 %v1188
      %1222 = vmatprep.subr.mxu0 %v1185
      %1223 = vmatpush1.msra.mxu0 %v1184
      %1224 = vmatprep.subr.mxu0 %v1181
      %1225 = vmatpush1.msra.mxu0 %v1180
      %1226 = vmatprep.subr.mxu0 %v1177
      %1227 = vmatpush1.msra.mxu0 %v1176
      %1228 = vmatprep.subr.mxu0 %v1173
      %1229 = vmatpush1.msra.mxu0 %v1172
      %1230 = vmatprep.subr.mxu0 %v1169
      %1231 = vmatpush1.msra.mxu0 %v1168
      %1232 = vmatprep.subr.mxu0 %v1165
      %1233 = vmatpush1.msra.mxu0 %v1164
      %1234 = vmatprep.subr.mxu0 %v1161
      %1235 = vmatpush1.msra.mxu0 %v1160
      %1236 = vmatprep.subr.mxu0 %v1157
      %1237 = vmatpush1.msra.mxu0 %v1156
      %1238 = vmatprep.subr.mxu0 %v1153
      %1239 = vmatpush1.msra.mxu0 %v1152
      %1240 = vmatprep.subr.mxu0 %v1149
      %1241 = vmatpush1.msra.mxu0 %v1148
      %1242 = vmatprep.subr.mxu0 %v1145
      %1243 = vmatpush1.msra.mxu0 %v1144
      %1244 = vmatprep.subr.mxu0 %v1141
      %1245 = vmatpush1.msra.mxu0 %v1140
      %1246 = vmatprep.subr.mxu0 %v1137
      %1247 = vmatpush1.msra.mxu0 %v1136
      %1248 = vmatprep.subr.mxu0 %v1133
      %1249 = vmatpush1.msra.mxu0 %v1132
      %1250 = vmatprep.subr.mxu0 0.0
      %1251 = vmatpush2.msra.mxu0 0.0
      %1252 = vmatprep.subr.mxu0 0.0
      %1253 = vmatpush2.msra.mxu0 0.0
      %1254 = vmatprep.subr.mxu0 0.0
      %1255 = vmatpush2.msra.mxu0 0.0
      %1256 = vmatprep.subr.mxu0 0.0
      %1257 = vmatpush2.msra.mxu0 0.0
      %1258 = vmatprep.subr.mxu0 0.0
      %1259 = vmatpush2.msra.mxu0 0.0
      %1260 = vmatprep.subr.mxu0 0.0
      %1261 = vmatpush2.msra.mxu0 0.0
      %1262 = vmatprep.subr.mxu0 0.0
      %1263 = vmatpush2.msra.mxu0 0.0
      %1264 = vmatprep.subr.mxu0 0.0
      %1265 = vmatpush2.msra.mxu0 0.0
      %1266 = vmatprep.subr.mxu0 0.0
      %1267 = vmatpush2.msra.mxu0 0.0
      %1268 = vmatprep.subr.mxu0 0.0
      %1269 = vmatpush2.msra.mxu0 0.0
      %1270 = vmatprep.subr.mxu0 0.0
      %1271 = vmatpush2.msra.mxu0 0.0
      %1272 = vmatprep.subr.mxu0 0.0
      %1273 = vmatpush2.msra.mxu0 0.0
      %1274 = vmatprep.subr.mxu0 0.0
      %1275 = vmatpush2.msra.mxu0 0.0
      %1276 = vmatprep.subr.mxu0 0.0
      %1277 = vmatpush2.msra.mxu0 0.0
      %1278 = vmatprep.subr.mxu0 0.0
      %1279 = vmatpush2.msra.mxu0 0.0
      %1280 = vmatprep.subr.mxu0 0.0
      %1281 = vmatpush2.msra.mxu0 0.0
      %1282 = vmatprep.mubr.f32.mxu0 0.0
      %1283 = vmatmul.mubr.f32.gmra.mxu0 %v1129
      %v1284 = vpop.f32.mrf.mxu0
      %v1285 = vadd.f32 %v1201, %v1284
      %v1286 = vpop.f32.mrf.mxu0
      %v1287 = vadd.f32 %v1205, %v1286
      %1288 = vdwg.mxu0
      %1289 = vmatprep.subr.mxu0 %v1195
      %1290 = vmatpush1.msra.mxu0 %v1194
      %1291 = vmatprep.subr.mxu0 %v1191
      %1292 = vmatpush1.msra.mxu0 %v1190
      %1293 = vmatprep.subr.mxu0 %v1187
      %1294 = vmatpush1.msra.mxu0 %v1186
      %1295 = vmatprep.subr.mxu0 %v1183
      %1296 = vmatpush1.msra.mxu0 %v1182
      %1297 = vmatprep.subr.mxu0 %v1179
      %1298 = vmatpush1.msra.mxu0 %v1178
      %1299 = vmatprep.subr.mxu0 %v1175
      %1300 = vmatpush1.msra.mxu0 %v1174
      %1301 = vmatprep.subr.mxu0 %v1171
      %1302 = vmatpush1.msra.mxu0 %v1170
      %1303 = vmatprep.subr.mxu0 %v1167
      %1304 = vmatpush1.msra.mxu0 %v1166
      %1305 = vmatprep.subr.mxu0 %v1163
      %1306 = vmatpush1.msra.mxu0 %v1162
      %1307 = vmatprep.subr.mxu0 %v1159
      %1308 = vmatpush1.msra.mxu0 %v1158
      %1309 = vmatprep.subr.mxu0 %v1155
      %1310 = vmatpush1.msra.mxu0 %v1154
      %1311 = vmatprep.subr.mxu0 %v1151
      %1312 = vmatpush1.msra.mxu0 %v1150
      %1313 = vmatprep.subr.mxu0 %v1147
      %1314 = vmatpush1.msra.mxu0 %v1146
      %1315 = vmatprep.subr.mxu0 %v1143
      %1316 = vmatpush1.msra.mxu0 %v1142
      %1317 = vmatprep.subr.mxu0 %v1139
      %1318 = vmatpush1.msra.mxu0 %v1138
      %1319 = vmatprep.subr.mxu0 %v1135
      %1320 = vmatpush1.msra.mxu0 %v1134
      %1321 = vmatprep.subr.mxu0 0.0
      %1322 = vmatpush2.msra.mxu0 0.0
      %1323 = vmatprep.subr.mxu0 0.0
      %1324 = vmatpush2.msra.mxu0 0.0
      %1325 = vmatprep.subr.mxu0 0.0
      %1326 = vmatpush2.msra.mxu0 0.0
      %1327 = vmatprep.subr.mxu0 0.0
      %1328 = vmatpush2.msra.mxu0 0.0
      %1329 = vmatprep.subr.mxu0 0.0
      %1330 = vmatpush2.msra.mxu0 0.0
      %1331 = vmatprep.subr.mxu0 0.0
      %1332 = vmatpush2.msra.mxu0 0.0
      %1333 = vmatprep.subr.mxu0 0.0
      %1334 = vmatpush2.msra.mxu0 0.0
      %1335 = vmatprep.subr.mxu0 0.0
      %1336 = vmatpush2.msra.mxu0 0.0
      %1337 = vmatprep.subr.mxu0 0.0
      %1338 = vmatpush2.msra.mxu0 0.0
      %1339 = vmatprep.subr.mxu0 0.0
      %1340 = vmatpush2.msra.mxu0 0.0
      %1341 = vmatprep.subr.mxu0 0.0
      %1342 = vmatpush2.msra.mxu0 0.0
      %1343 = vmatprep.subr.mxu0 0.0
      %1344 = vmatpush2.msra.mxu0 0.0
      %1345 = vmatprep.subr.mxu0 0.0
      %1346 = vmatpush2.msra.mxu0 0.0
      %1347 = vmatprep.subr.mxu0 0.0
      %1348 = vmatpush2.msra.mxu0 0.0
      %1349 = vmatprep.subr.mxu0 0.0
      %1350 = vmatpush2.msra.mxu0 0.0
      %1351 = vmatprep.subr.mxu0 0.0
      %1352 = vmatpush2.msra.mxu0 0.0
      %1353 = vmatprep.mubr.f32.mxu0 0.0
      %1354 = vmatmul.mubr.f32.gmra.mxu0 %v1129
      %v1355 = vpop.f32.mrf.mxu0
      %v1356 = vadd.f32 %v1209, %v1355
      %v1357 = vpop.f32.mrf.mxu0
      %v1358 = vadd.f32 %v1213, %v1357
      %1359 = vdwg.mxu0
      %v1360 = vmax.f32 %v1285, %v1287
      %v1361 = vmax.f32 %v1360, %v1356
      %v1362 = vmax.f32 %v1361, %v1358
      %v1363 = vsub.f32 %v1285, %v1362
      %v1364 = vmul.f32 %v1363, 1.442695
      %v1365 = vpow.pop %v1364
      %v1366 = vsub.f32 %v1287, %v1362
      %v1367 = vmul.f32 %v1366, 1.442695
      %v1368 = vpow.pop %v1367
      %v1369 = vsub.f32 %v1356, %v1362
      %v1370 = vmul.f32 %v1369, 1.442695
      %v1371 = vpow.pop %v1370
      %v1372 = vsub.f32 %v1358, %v1362
      %v1373 = vmul.f32 %v1372, 1.442695
      %v1374 = vpow.pop %v1373
      %v1375 = vadd.f32 %v1365, %v1368
      %v1376 = vadd.f32 %v1375, %v1371
      %v1377 = vadd.f32 %v1376, %v1374
      %v1378 = vrcp.pop %v1377
      %v1379 = vmul.f32 %v1365, %v1378
      %v1380 = vlaneseq
      %v1381 = vshrl.u32 %v1380, 7
      %v1382 = vsub.s32 0, %v1381
      %v1383 = vrot.slane %v1379, %v1382
      %v1384 = vmul.f32 %v1383, %v777
      %v1385 = vmul.f32 %v1383, %v781
      %v1386 = vmul.f32 %v1383, %v785
      %v1387 = vmul.f32 %v1383, %v789
      %v1388 = vmul.f32 %v1383, %v793
      %v1389 = vmul.f32 %v1383, %v797
      %v1390 = vmul.f32 %v1383, %v801
      %v1391 = vmul.f32 %v1383, %v805
      %v1392 = vmul.f32 %v1383, %v809
      %v1393 = vmul.f32 %v1383, %v813
      %v1394 = vmul.f32 %v1383, %v817
      %v1395 = vmul.f32 %v1383, %v821
      %v1396 = vmul.f32 %v1383, %v825
      %v1397 = vmul.f32 %v1383, %v829
      %v1398 = vmul.f32 %v1383, %v833
      %v1399 = vmul.f32 %v1383, %v837
      %v1400 = vmul.f32 %v1383, %v841
      %v1401 = vmul.f32 %v1383, %v845
      %v1402 = vmul.f32 %v1383, %v849
      %v1403 = vmul.f32 %v1383, %v853
      %v1404 = vmul.f32 %v1383, %v857
      %v1405 = vmul.f32 %v1383, %v861
      %v1406 = vmul.f32 %v1383, %v865
      %v1407 = vmul.f32 %v1383, %v869
      %v1408 = vmul.f32 %v1383, %v873
      %v1409 = vmul.f32 %v1383, %v877
      %v1410 = vmul.f32 %v1383, %v881
      %v1411 = vmul.f32 %v1383, %v885
      %v1412 = vmul.f32 %v1383, %v889
      %v1413 = vmul.f32 %v1383, %v893
      %v1414 = vmul.f32 %v1383, %v897
      %v1415 = vmul.f32 %v1383, %v901
      %v1416 = vmul.f32 %v1368, %v1378
      %v1417 = vlaneseq
      %v1418 = vshrl.u32 %v1417, 7
      %v1419 = vsub.s32 0, %v1418
      %v1420 = vrot.slane %v1416, %v1419
      %v1421 = vmul.f32 %v1420, %v778
      %v1422 = vmul.f32 %v1420, %v782
      %v1423 = vmul.f32 %v1420, %v786
      %v1424 = vmul.f32 %v1420, %v790
      %v1425 = vmul.f32 %v1420, %v794
      %v1426 = vmul.f32 %v1420, %v798
      %v1427 = vmul.f32 %v1420, %v802
      %v1428 = vmul.f32 %v1420, %v806
      %v1429 = vmul.f32 %v1420, %v810
      %v1430 = vmul.f32 %v1420, %v814
      %v1431 = vmul.f32 %v1420, %v818
      %v1432 = vmul.f32 %v1420, %v822
      %v1433 = vmul.f32 %v1420, %v826
      %v1434 = vmul.f32 %v1420, %v830
      %v1435 = vmul.f32 %v1420, %v834
      %v1436 = vmul.f32 %v1420, %v838
      %v1437 = vmul.f32 %v1420, %v842
      %v1438 = vmul.f32 %v1420, %v846
      %v1439 = vmul.f32 %v1420, %v850
      %v1440 = vmul.f32 %v1420, %v854
      %v1441 = vmul.f32 %v1420, %v858
      %v1442 = vmul.f32 %v1420, %v862
      %v1443 = vmul.f32 %v1420, %v866
      %v1444 = vmul.f32 %v1420, %v870
      %v1445 = vmul.f32 %v1420, %v874
      %v1446 = vmul.f32 %v1420, %v878
      %v1447 = vmul.f32 %v1420, %v882
      %v1448 = vmul.f32 %v1420, %v886
      %v1449 = vmul.f32 %v1420, %v890
      %v1450 = vmul.f32 %v1420, %v894
      %v1451 = vmul.f32 %v1420, %v898
      %v1452 = vmul.f32 %v1420, %v902
      %v1453 = vadd.f32 %v1384, %v1421
      %v1454 = vadd.f32 %v1385, %v1422
      %v1455 = vadd.f32 %v1386, %v1423
      %v1456 = vadd.f32 %v1387, %v1424
      %v1457 = vadd.f32 %v1388, %v1425
      %v1458 = vadd.f32 %v1389, %v1426
      %v1459 = vadd.f32 %v1390, %v1427
      %v1460 = vadd.f32 %v1391, %v1428
      %v1461 = vadd.f32 %v1392, %v1429
      %v1462 = vadd.f32 %v1393, %v1430
      %v1463 = vadd.f32 %v1394, %v1431
      %v1464 = vadd.f32 %v1395, %v1432
      %v1465 = vadd.f32 %v1396, %v1433
      %v1466 = vadd.f32 %v1397, %v1434
      %v1467 = vadd.f32 %v1398, %v1435
      %v1468 = vadd.f32 %v1399, %v1436
      %v1469 = vadd.f32 %v1400, %v1437
      %v1470 = vadd.f32 %v1401, %v1438
      %v1471 = vadd.f32 %v1402, %v1439
      %v1472 = vadd.f32 %v1403, %v1440
      %v1473 = vadd.f32 %v1404, %v1441
      %v1474 = vadd.f32 %v1405, %v1442
      %v1475 = vadd.f32 %v1406, %v1443
      %v1476 = vadd.f32 %v1407, %v1444
      %v1477 = vadd.f32 %v1408, %v1445
      %v1478 = vadd.f32 %v1409, %v1446
      %v1479 = vadd.f32 %v1410, %v1447
      %v1480 = vadd.f32 %v1411, %v1448
      %v1481 = vadd.f32 %v1412, %v1449
      %v1482 = vadd.f32 %v1413, %v1450
      %v1483 = vadd.f32 %v1414, %v1451
      %v1484 = vadd.f32 %v1415, %v1452
      %v1485 = vmul.f32 %v1371, %v1378
      %v1486 = vlaneseq
      %v1487 = vshrl.u32 %v1486, 7
      %v1488 = vsub.s32 0, %v1487
      %v1489 = vrot.slane %v1485, %v1488
      %v1490 = vmul.f32 %v1489, %v779
      %v1491 = vmul.f32 %v1489, %v783
      %v1492 = vmul.f32 %v1489, %v787
      %v1493 = vmul.f32 %v1489, %v791
      %v1494 = vmul.f32 %v1489, %v795
      %v1495 = vmul.f32 %v1489, %v799
      %v1496 = vmul.f32 %v1489, %v803
      %v1497 = vmul.f32 %v1489, %v807
      %v1498 = vmul.f32 %v1489, %v811
      %v1499 = vmul.f32 %v1489, %v815
      %v1500 = vmul.f32 %v1489, %v819
      %v1501 = vmul.f32 %v1489, %v823
      %v1502 = vmul.f32 %v1489, %v827
      %v1503 = vmul.f32 %v1489, %v831
      %v1504 = vmul.f32 %v1489, %v835
      %v1505 = vmul.f32 %v1489, %v839
      %v1506 = vmul.f32 %v1489, %v843
      %v1507 = vmul.f32 %v1489, %v847
      %v1508 = vmul.f32 %v1489, %v851
      %v1509 = vmul.f32 %v1489, %v855
      %v1510 = vmul.f32 %v1489, %v859
      %v1511 = vmul.f32 %v1489, %v863
      %v1512 = vmul.f32 %v1489, %v867
      %v1513 = vmul.f32 %v1489, %v871
      %v1514 = vmul.f32 %v1489, %v875
      %v1515 = vmul.f32 %v1489, %v879
      %v1516 = vmul.f32 %v1489, %v883
      %v1517 = vmul.f32 %v1489, %v887
      %v1518 = vmul.f32 %v1489, %v891
      %v1519 = vmul.f32 %v1489, %v895
      %v1520 = vmul.f32 %v1489, %v899
      %v1521 = vmul.f32 %v1489, %v903
      %v1522 = vadd.f32 %v1453, %v1490
      %v1523 = vadd.f32 %v1454, %v1491
      %v1524 = vadd.f32 %v1455, %v1492
      %v1525 = vadd.f32 %v1456, %v1493
      %v1526 = vadd.f32 %v1457, %v1494
      %v1527 = vadd.f32 %v1458, %v1495
      %v1528 = vadd.f32 %v1459, %v1496
      %v1529 = vadd.f32 %v1460, %v1497
      %v1530 = vadd.f32 %v1461, %v1498
      %v1531 = vadd.f32 %v1462, %v1499
      %v1532 = vadd.f32 %v1463, %v1500
      %v1533 = vadd.f32 %v1464, %v1501
      %v1534 = vadd.f32 %v1465, %v1502
      %v1535 = vadd.f32 %v1466, %v1503
      %v1536 = vadd.f32 %v1467, %v1504
      %v1537 = vadd.f32 %v1468, %v1505
      %v1538 = vadd.f32 %v1469, %v1506
      %v1539 = vadd.f32 %v1470, %v1507
      %v1540 = vadd.f32 %v1471, %v1508
      %v1541 = vadd.f32 %v1472, %v1509
      %v1542 = vadd.f32 %v1473, %v1510
      %v1543 = vadd.f32 %v1474, %v1511
      %v1544 = vadd.f32 %v1475, %v1512
      %v1545 = vadd.f32 %v1476, %v1513
      %v1546 = vadd.f32 %v1477, %v1514
      %v1547 = vadd.f32 %v1478, %v1515
      %v1548 = vadd.f32 %v1479, %v1516
      %v1549 = vadd.f32 %v1480, %v1517
      %v1550 = vadd.f32 %v1481, %v1518
      %v1551 = vadd.f32 %v1482, %v1519
      %v1552 = vadd.f32 %v1483, %v1520
      %v1553 = vadd.f32 %v1484, %v1521
      %v1554 = vmul.f32 %v1374, %v1378
      %v1555 = vlaneseq
      %v1556 = vshrl.u32 %v1555, 7
      %v1557 = vsub.s32 0, %v1556
      %v1558 = vrot.slane %v1554, %v1557
      %v1559 = vmul.f32 %v1558, %v780
      %v1560 = vmul.f32 %v1558, %v784
      %v1561 = vmul.f32 %v1558, %v788
      %v1562 = vmul.f32 %v1558, %v792
      %v1563 = vmul.f32 %v1558, %v796
      %v1564 = vmul.f32 %v1558, %v800
      %v1565 = vmul.f32 %v1558, %v804
      %v1566 = vmul.f32 %v1558, %v808
      %v1567 = vmul.f32 %v1558, %v812
      %v1568 = vmul.f32 %v1558, %v816
      %v1569 = vmul.f32 %v1558, %v820
      %v1570 = vmul.f32 %v1558, %v824
      %v1571 = vmul.f32 %v1558, %v828
      %v1572 = vmul.f32 %v1558, %v832
      %v1573 = vmul.f32 %v1558, %v836
      %v1574 = vmul.f32 %v1558, %v840
      %v1575 = vmul.f32 %v1558, %v844
      %v1576 = vmul.f32 %v1558, %v848
      %v1577 = vmul.f32 %v1558, %v852
      %v1578 = vmul.f32 %v1558, %v856
      %v1579 = vmul.f32 %v1558, %v860
      %v1580 = vmul.f32 %v1558, %v864
      %v1581 = vmul.f32 %v1558, %v868
      %v1582 = vmul.f32 %v1558, %v872
      %v1583 = vmul.f32 %v1558, %v876
      %v1584 = vmul.f32 %v1558, %v880
      %v1585 = vmul.f32 %v1558, %v884
      %v1586 = vmul.f32 %v1558, %v888
      %v1587 = vmul.f32 %v1558, %v892
      %v1588 = vmul.f32 %v1558, %v896
      %v1589 = vmul.f32 %v1558, %v900
      %v1590 = vmul.f32 %v1558, %v904
      %v1591 = vadd.f32 %v1522, %v1559
      %v1592 = vadd.f32 %v1523, %v1560
      %v1593 = vadd.f32 %v1524, %v1561
      %v1594 = vadd.f32 %v1525, %v1562
      %v1595 = vadd.f32 %v1526, %v1563
      %v1596 = vadd.f32 %v1527, %v1564
      %v1597 = vadd.f32 %v1528, %v1565
      %v1598 = vadd.f32 %v1529, %v1566
      %v1599 = vadd.f32 %v1530, %v1567
      %v1600 = vadd.f32 %v1531, %v1568
      %v1601 = vadd.f32 %v1532, %v1569
      %v1602 = vadd.f32 %v1533, %v1570
      %v1603 = vadd.f32 %v1534, %v1571
      %v1604 = vadd.f32 %v1535, %v1572
      %v1605 = vadd.f32 %v1536, %v1573
      %v1606 = vadd.f32 %v1537, %v1574
      %v1607 = vadd.f32 %v1538, %v1575
      %v1608 = vadd.f32 %v1539, %v1576
      %v1609 = vadd.f32 %v1540, %v1577
      %v1610 = vadd.f32 %v1541, %v1578
      %v1611 = vadd.f32 %v1542, %v1579
      %v1612 = vadd.f32 %v1543, %v1580
      %v1613 = vadd.f32 %v1544, %v1581
      %v1614 = vadd.f32 %v1545, %v1582
      %v1615 = vadd.f32 %v1546, %v1583
      %v1616 = vadd.f32 %v1547, %v1584
      %v1617 = vadd.f32 %v1548, %v1585
      %v1618 = vadd.f32 %v1549, %v1586
      %v1619 = vadd.f32 %v1550, %v1587
      %v1620 = vadd.f32 %v1551, %v1588
      %v1621 = vadd.f32 %v1552, %v1589
      %v1622 = vadd.f32 %v1553, %v1590
      %1623 = vst [vmem:[%s283] sm:$0xff] %v1591
      %1624 = vst [vmem:[%s283 + $0x8] sm:$0xff] %v1592
      %1625 = vst [vmem:[%s283 + $0x10] sm:$0xff] %v1593
      %1626 = vst [vmem:[%s283 + $0x18] sm:$0xff] %v1594
      %1627 = vst [vmem:[%s283 + $0x20] sm:$0xff] %v1595
      %1628 = vst [vmem:[%s283 + $0x28] sm:$0xff] %v1596
      %1629 = vst [vmem:[%s283 + $0x30] sm:$0xff] %v1597
      %1630 = vst [vmem:[%s283 + $0x38] sm:$0xff] %v1598
      %1631 = vst [vmem:[%s283 + $0x40] sm:$0xff] %v1599
      %1632 = vst [vmem:[%s283 + $0x48] sm:$0xff] %v1600
      %1633 = vst [vmem:[%s283 + $0x50] sm:$0xff] %v1601
      %1634 = vst [vmem:[%s283 + $0x58] sm:$0xff] %v1602
      %1635 = vst [vmem:[%s283 + $0x60] sm:$0xff] %v1603
      %1636 = vst [vmem:[%s283 + $0x68] sm:$0xff] %v1604
      %1637 = vst [vmem:[%s283 + $0x70] sm:$0xff] %v1605
      %1638 = vst [vmem:[%s283 + $0x78] sm:$0xff] %v1606
      %1639 = vst [vmem:[%s283 + $0x80] sm:$0xff] %v1607
      %1640 = vst [vmem:[%s283 + $0x88] sm:$0xff] %v1608
      %1641 = vst [vmem:[%s283 + $0x90] sm:$0xff] %v1609
      %1642 = vst [vmem:[%s283 + $0x98] sm:$0xff] %v1610
      %1643 = vst [vmem:[%s283 + $0xa0] sm:$0xff] %v1611
      %1644 = vst [vmem:[%s283 + $0xa8] sm:$0xff] %v1612
      %1645 = vst [vmem:[%s283 + $0xb0] sm:$0xff] %v1613
      %1646 = vst [vmem:[%s283 + $0xb8] sm:$0xff] %v1614
      %1647 = vst [vmem:[%s283 + $0xc0] sm:$0xff] %v1615
      %1648 = vst [vmem:[%s283 + $0xc8] sm:$0xff] %v1616
      %1649 = vst [vmem:[%s283 + $0xd0] sm:$0xff] %v1617
      %1650 = vst [vmem:[%s283 + $0xd8] sm:$0xff] %v1618
      %1651 = vst [vmem:[%s283 + $0xe0] sm:$0xff] %v1619
      %1652 = vst [vmem:[%s283 + $0xe8] sm:$0xff] %v1620
      %1653 = vst [vmem:[%s283 + $0xf0] sm:$0xff] %v1621
      %1654 = vst [vmem:[%s283 + $0xf8] sm:$0xff] %v1622
      %s1655 = smul.u32 32, %s18
      %p1656 = scmp.lt.s32.totalorder %s1655, 63
      %s1657 = scalar_select %p1656, %s1655, 63
      %s1658 = smul.addr %s1657, 8
      %s1659 = scalar_lea.vmem %s7, %s1658
      // Predicated region
      $region49: #{double_conv_pallas.5} parent=47 // pred_check
        %p1660 = pneg %p188
      $region50: #{double_conv_pallas.5} parent=47 // pred_check_branch
        %1662 = sbr.rel (%p1660) target = $region52
      $region51: #{double_conv_pallas.5} parent=47 // pred_region
        %s1663 = smul.u32 32, %s18
      $region52: #{double_conv_pallas.5} parent=47 // pred_fallthru
        _
    $region48: #{double_conv_pallas.5} parent=5 // pred_fallthru
      _
    %p1664 = scmp.le.s32.totalorder 2, %s13
    // Predicated region
    $region53: #{double_conv_pallas.5} parent=5 // pred_check
      %p1665 = pneg %p1664
    $region54: #{double_conv_pallas.5} parent=5 // pred_check_branch
      %1667 = sbr.rel (%p1665) target = $region56
    $region55: #{double_conv_pallas.5} parent=5 // pred_region
      %s1668 = ssub.s32 %s13, 2
      // Predicated region
      $region57: #{double_conv_pallas.5} parent=55 // pred_check
        %p1669 = pneg %p194
      $region58: #{double_conv_pallas.5} parent=55 // pred_check_branch
        %1671 = sbr.rel (%p1669) target = $region60
      $region59: #{double_conv_pallas.5} parent=55 // pred_region
        %s1672 = smul.u32 32, %s19
        %p1673 = scmp.lt.s32.totalorder %s1672, 63
        %s1674 = scalar_select %p1673, %s1672, 63
        %s1675 = smul.addr %s1674, 8
        %s1676 = scalar_lea.vmem %s7, %s1675
      $region60: #{double_conv_pallas.5} parent=55 // pred_fallthru
        _
    $region56: #{double_conv_pallas.5} parent=5 // pred_fallthru
      _
  $region6: #{double_conv_pallas.5} parent=0 // loop_footer
    %s17 = sadd.s32 1, %s13
  $region7: #{double_conv_pallas.5} parent=0 // loop_footer_branch
    %12 = sbr.rel target = $region3
  $region8: #{double_conv_pallas.5} parent=0 // loop_exit
    _

// kernel: double_conv_pallas.4
$region0: #{double_conv_pallas.4}
  #allocation0 [shape = 'u32[]', space=smem, size = 0x4, offset = 0x4, fixed_abs, tag = 'smem constant byte address 0x4 - core index']
  #allocation1 [shape = 'u32[144,128]{1,0:T(1,128)}', space=vmem, size = 0x12000, scoped, tag = 'internal scratch']
  %s0 = inlined_call_operand.vmem [shape: bf16[512,256], index: 0, kind: input, shape index: {}]
  %s1 = inlined_call_operand.vmem [shape: bf16[256,512], index: 1, kind: input, shape index: {}]
  %s2 = inlined_call_operand.vmem [shape: bf16[512,512], index: 2, kind: output, shape index: {0}]
  %s3 = inlined_call_operand.vmem [shape: f32[2,2,512], index: 3, kind: output, shape index: {1}]
  %4 = xla_tuple %s2, %s3
  %s5 = sld [smem:[#allocation0]]
  $region49: #{double_conv_pallas.4} parent=0
    _
  %s7 = ssub.s32 1, %s5
  %s8 = scalar_select 0, %s7, %s5
  loop: start=0, step=1, limit=4
  $region2: #{double_conv_pallas.4} parent=0 // loop_pre_header
    _
  $region3: #{double_conv_pallas.4} parent=0 // loop_header
    %s10 = sphi 0, %s14
    %p11 = scmp.ge.s32.totalorder %s10, 4
    %s20 = sphi 0, %s22
    %s23 = sphi 0, %s20
    %s24 = sphi 0, %s23
    %s40 = sphi 0, %s24
    %s44 = sphi 0, %s44
    %s46 = sphi 0, %s44
    %s47 = sphi 0, %s46
    %s61 = sphi 0, %s47
    %s67 = sphi 0, %s69
    %s70 = sphi 0, %s67
    %s71 = sphi 0, %s70
    %s87 = sphi 0, %s71
    %s93 = sphi 0, %s95
    %s96 = sphi 0, %s93
    %s97 = sphi 0, %s96
    %s113 = sphi 0, %s97
  $region4: #{double_conv_pallas.4} parent=0 // loop_header_branch
    %13 = sbr.rel (%p11) target = $region8
  $region5: #{double_conv_pallas.4} parent=0 // loop_body
    %s15 = ssub.s32 %s10, 1
    %s16 = ssub.s32 %s10, 2
    %s17 = sadd.s32 %s10, 1
    %s18 = ssub.s32 %s10, %s17
    %p19 = scmp.eq.s32.totalorder %s18, 0
    %s21 = sadd.s32 %s20, 1
    %s22 = scalar_select %p19, %s20, %s21
    %p25 = pneg %p19
    %p26 = scmp.eq.s32.totalorder %s10, 1
    %p27 = por %p25, %p26
    %p28 = scmp.ne.s32.totalorder %s20, %s23
    %p29 = scmp.eq.s32.totalorder %s10, 0
    %p30 = por %p28, %p29
    %p31 = scmp.ne.s32.totalorder %s20, %s23
    %p32 = scmp.eq.s32.totalorder %s15, 1
    %p33 = por %p31, %p32
    %p34 = scmp.ne.s32.totalorder %s23, %s24
    %p35 = scmp.eq.s32.totalorder %s15, 0
    %p36 = por %p34, %p35
    %p37 = scmp.ne.s32.totalorder %s23, %s24
    %p38 = scmp.eq.s32.totalorder %s16, 1
    %p39 = por %p37, %p38
    %p41 = scmp.ne.s32.totalorder %s24, %s40
    %p42 = scmp.eq.s32.totalorder %s16, 0
    %p43 = por %p41, %p42
    %s45 = sadd.s32 %s44, 1
    %p48 = scmp.eq.s32.totalorder %s10, 1
    %p49 = scmp.ne.s32.totalorder %s44, %s46
    %p50 = scmp.eq.s32.totalorder %s10, 0
    %p51 = por %p49, %p50
    %p52 = scmp.ne.s32.totalorder %s44, %s46
    %p53 = scmp.eq.s32.totalorder %s15, 1
    %p54 = por %p52, %p53
    %p55 = scmp.ne.s32.totalorder %s46, %s47
    %p56 = scmp.eq.s32.totalorder %s15, 0
    %p57 = por %p55, %p56
    %p58 = scmp.ne.s32.totalorder %s46, %s47
    %p59 = scmp.eq.s32.totalorder %s16, 1
    %p60 = por %p58, %p59
    %p62 = scmp.ne.s32.totalorder %s47, %s61
    %p63 = scmp.eq.s32.totalorder %s16, 0
    %p64 = por %p62, %p63
    %s65 = ssub.s32 %s10, %s17
    %p66 = scmp.eq.s32.totalorder %s65, 0
    %s68 = sadd.s32 %s67, 1
    %s69 = scalar_select %p66, %s67, %s68
    %p72 = pneg %p66
    %p73 = scmp.eq.s32.totalorder %s10, 1
    %p74 = por %p72, %p73
    %p75 = scmp.ne.s32.totalorder %s67, %s70
    %p76 = scmp.eq.s32.totalorder %s10, 0
    %p77 = por %p75, %p76
    %p78 = scmp.ne.s32.totalorder %s67, %s70
    %p79 = scmp.eq.s32.totalorder %s15, 1
    %p80 = por %p78, %p79
    %p81 = scmp.ne.s32.totalorder %s70, %s71
    %p82 = scmp.eq.s32.totalorder %s15, 0
    %p83 = por %p81, %p82
    %p84 = scmp.ne.s32.totalorder %s70, %s71
    %p85 = scmp.eq.s32.totalorder %s16, 1
    %p86 = por %p84, %p85
    %p88 = scmp.ne.s32.totalorder %s71, %s87
    %p89 = scmp.eq.s32.totalorder %s16, 0
    %p90 = por %p88, %p89
    %s91 = ssub.s32 %s10, %s17
    %p92 = scmp.eq.s32.totalorder %s91, 0
    %s94 = sadd.s32 %s93, 1
    %s95 = scalar_select %p92, %s93, %s94
    %p98 = pneg %p92
    %p99 = scmp.eq.s32.totalorder %s10, 1
    %p100 = por %p98, %p99
    %p101 = scmp.ne.s32.totalorder %s93, %s96
    %p102 = scmp.eq.s32.totalorder %s10, 0
    %p103 = por %p101, %p102
    %p104 = scmp.ne.s32.totalorder %s93, %s96
    %p105 = scmp.eq.s32.totalorder %s15, 1
    %p106 = por %p104, %p105
    %p107 = scmp.ne.s32.totalorder %s96, %s97
    %p108 = scmp.eq.s32.totalorder %s15, 0
    %p109 = por %p107, %p108
    %p110 = scmp.ne.s32.totalorder %s96, %s97
    %p111 = scmp.eq.s32.totalorder %s16, 1
    %p112 = por %p110, %p111
    %p114 = scmp.ne.s32.totalorder %s97, %s113
    %p115 = scmp.eq.s32.totalorder %s16, 0
    %p116 = por %p114, %p115
    %p117 = scmp.le.s32.totalorder 1, %s10
    %p118 = scmp.lt.s32.totalorder %s10, 3
    %p119 = pnand %p117, %p118
    %p120 = pneg %p119
    // Predicated region
    $region9: #{double_conv_pallas.4} parent=5 // pred_check
      _
    $region10: #{double_conv_pallas.4} parent=5 // pred_check_branch
      %122 = sbr.rel (%p119) target = $region12
    $region11: #{double_conv_pallas.4} parent=5 // pred_region
      %s123 = ssub.s32 %s10, 1
      // Predicated region
      $region13: #{double_conv_pallas.4} parent=11 // pred_check
        %p124 = pneg %p57
      $region14: #{double_conv_pallas.4} parent=11 // pred_check_branch
        %126 = sbr.rel (%p124) target = $region16
      $region15: #{double_conv_pallas.4} parent=11 // pred_region
        _
      $region16: #{double_conv_pallas.4} parent=11 // pred_fallthru
        _
    $region12: #{double_conv_pallas.4} parent=5 // pred_fallthru
      _
    %p127 = scmp.lt.s32.totalorder %s10, 2
    // Predicated region
    $region17: #{double_conv_pallas.4} parent=5 // pred_check
      %p128 = pneg %p127
    $region18: #{double_conv_pallas.4} parent=5 // pred_check_branch
      %130 = sbr.rel (%p128) target = $region20
    $region19: #{double_conv_pallas.4} parent=5 // pred_region
      // Predicated region
      $region21: #{double_conv_pallas.4} parent=19 // pred_check
        %p131 = pneg %p30
      $region22: #{double_conv_pallas.4} parent=19 // pred_check_branch
        %133 = sbr.rel (%p131) target = $region24
      $region23: #{double_conv_pallas.4} parent=19 // pred_region
        %s134 = smul.u32 32, %s10
        %p135 = scmp.lt.s32.totalorder %s134, 63
        %s136 = scalar_select %p135, %s134, 63
        %s137 = smul.addr %s136, 2
        %s138 = smul.addr %s137, 4
        %s139 = scalar_lea.vmem %s0, %s138
        %s140 = smul.u32 32, %s10
      $region24: #{double_conv_pallas.4} parent=19 // pred_fallthru
        _
    $region20: #{double_conv_pallas.4} parent=5 // pred_fallthru
      _
    %p141 = scmp.le.s32.totalorder 1, %s10
    %p142 = scmp.lt.s32.totalorder %s10, 3
    %p143 = pnand %p141, %p142
    %p144 = pneg %p143
    // Predicated region
    $region25: #{double_conv_pallas.4} parent=5 // pred_check
      _
    $region26: #{double_conv_pallas.4} parent=5 // pred_check_branch
      %146 = sbr.rel (%p143) target = $region28
    $region27: #{double_conv_pallas.4} parent=5 // pred_region
      %s147 = ssub.s32 %s10, 1
      %s148 = smul.u32 32, %s15
      %p149 = scmp.lt.s32.totalorder %s148, 63
      %s150 = scalar_select %p149, %s148, 63
      %s151 = smul.addr %s150, 2
      %s152 = smul.addr %s151, 4
      %s153 = scalar_lea.vmem %s0, %s152
      %p154 = pneg %p36
      %p155 = pneg %p33
      %p156 = pneg %p57
      %p157 = pneg %p54
      %p158 = pneg %p83
      %p159 = pneg %p80
      %s160 = smul.u32 32, %s15
      %p161 = scmp.lt.s32.totalorder %s160, 63
      %s162 = scalar_select %p161, %s160, 63
      %s163 = smul.addr %s162, 4
      %s164 = smul.addr %s163, 4
      %s165 = scalar_lea.vmem %s2, %s164
      %p166 = pneg %p109
      %p167 = pneg %p106
      %p168 = scmp.lt.s32.totalorder %s15, 1
      %s169 = scalar_select %p168, %s15, 1
      %s170 = smul.addr %s169, 4
      %s171 = smul.addr %s170, 2
      %s172 = scalar_lea.vmem %s3, %s171
      %s173 = smul.u32 32, %s15
      %p174 = scmp.lt.s32.totalorder %s173, 63
      %s175 = scalar_select %p174, %s173, 63
      %s176 = smul.addr %s175, 2
      %s177 = smul.addr %s176, 4
      %s178 = scalar_lea.vmem %s0, %s177
      %s179 = smul.u32 32, %s15
      %s180 = smul.u32 32, %s15
      %p181 = scmp.lt.s32.totalorder %s180, 63
      %s182 = scalar_select %p181, %s180, 63
      %s183 = smul.addr %s182, 4
      %s184 = smul.addr %s183, 4
      %s185 = scalar_lea.vmem %s2, %s184
      %s186 = smul.u32 32, %s15
      %p187 = scmp.lt.s32.totalorder %s15, 1
      %s188 = scalar_select %p187, %s15, 1
      %s189 = smul.addr %s188, 4
      %s190 = smul.addr %s189, 2
      %s191 = scalar_lea.vmem %s3, %s190
      %v192 = vld [vmem:[%s178] sm:$0xff]
      %v193 = vld [vmem:[%s178 + $0x8] sm:$0xff]
      %v194 = vld [vmem:[%s178 + $0x10] sm:$0xff]
      %v195 = vld [vmem:[%s178 + $0x18] sm:$0xff]
      %v196 = vld [vmem:[%s178 + $0x20] sm:$0xff]
      %v197 = vld [vmem:[%s178 + $0x28] sm:$0xff]
      %v198 = vld [vmem:[%s178 + $0x30] sm:$0xff]
      %v199 = vld [vmem:[%s178 + $0x38] sm:$0xff]
      %v200 = vld [vmem:[%s178 + $0x40] sm:$0xff]
      %v201 = vld [vmem:[%s178 + $0x48] sm:$0xff]
      %v202 = vld [vmem:[%s178 + $0x50] sm:$0xff]
      %v203 = vld [vmem:[%s178 + $0x58] sm:$0xff]
      %v204 = vld [vmem:[%s178 + $0x60] sm:$0xff]
      %v205 = vld [vmem:[%s178 + $0x68] sm:$0xff]
      %v206 = vld [vmem:[%s178 + $0x70] sm:$0xff]
      %v207 = vld [vmem:[%s178 + $0x78] sm:$0xff]
      %v208 = vld [vmem:[%s178 + $0x80] sm:$0xff]
      %v209 = vld [vmem:[%s178 + $0x88] sm:$0xff]
      %v210 = vld [vmem:[%s178 + $0x90] sm:$0xff]
      %v211 = vld [vmem:[%s178 + $0x98] sm:$0xff]
      %v212 = vld [vmem:[%s178 + $0xa0] sm:$0xff]
      %v213 = vld [vmem:[%s178 + $0xa8] sm:$0xff]
      %v214 = vld [vmem:[%s178 + $0xb0] sm:$0xff]
      %v215 = vld [vmem:[%s178 + $0xb8] sm:$0xff]
      %v216 = vld [vmem:[%s178 + $0xc0] sm:$0xff]
      %v217 = vld [vmem:[%s178 + $0xc8] sm:$0xff]
      %v218 = vld [vmem:[%s178 + $0xd0] sm:$0xff]
      %v219 = vld [vmem:[%s178 + $0xd8] sm:$0xff]
      %v220 = vld [vmem:[%s178 + $0xe0] sm:$0xff]
      %v221 = vld [vmem:[%s178 + $0xe8] sm:$0xff]
      %v222 = vld [vmem:[%s178 + $0xf0] sm:$0xff]
      %v223 = vld [vmem:[%s178 + $0xf8] sm:$0xff]
      %v224 = vld [vmem:[%s1] sm:$0xff]
      %v225 = vld [vmem:[%s1 + $0x8] sm:$0xff]
      %v226 = vld [vmem:[%s1 + $0x10] sm:$0xff]
      %v227 = vld [vmem:[%s1 + $0x18] sm:$0xff]
      %v228 = vld [vmem:[%s1 + $0x20] sm:$0xff]
      %v229 = vld [vmem:[%s1 + $0x28] sm:$0xff]
      %v230 = vld [vmem:[%s1 + $0x30] sm:$0xff]
      %v231 = vld [vmem:[%s1 + $0x38] sm:$0xff]
      %v232 = vld [vmem:[%s1 + $0x40] sm:$0xff]
      %v233 = vld [vmem:[%s1 + $0x48] sm:$0xff]
      %v234 = vld [vmem:[%s1 + $0x50] sm:$0xff]
      %v235 = vld [vmem:[%s1 + $0x58] sm:$0xff]
      %v236 = vld [vmem:[%s1 + $0x60] sm:$0xff]
      %v237 = vld [vmem:[%s1 + $0x68] sm:$0xff]
      %v238 = vld [vmem:[%s1 + $0x70] sm:$0xff]
      %v239 = vld [vmem:[%s1 + $0x78] sm:$0xff]
      %v240 = vld [vmem:[%s1 + $0x80] sm:$0xff]
      %v241 = vld [vmem:[%s1 + $0x88] sm:$0xff]
      %v242 = vld [vmem:[%s1 + $0x90] sm:$0xff]
      %v243 = vld [vmem:[%s1 + $0x98] sm:$0xff]
      %v244 = vld [vmem:[%s1 + $0xa0] sm:$0xff]
      %v245 = vld [vmem:[%s1 + $0xa8] sm:$0xff]
      %v246 = vld [vmem:[%s1 + $0xb0] sm:$0xff]
      %v247 = vld [vmem:[%s1 + $0xb8] sm:$0xff]
      %v248 = vld [vmem:[%s1 + $0xc0] sm:$0xff]
      %v249 = vld [vmem:[%s1 + $0xc8] sm:$0xff]
      %v250 = vld [vmem:[%s1 + $0xd0] sm:$0xff]
      %v251 = vld [vmem:[%s1 + $0xd8] sm:$0xff]
      %v252 = vld [vmem:[%s1 + $0xe0] sm:$0xff]
      %v253 = vld [vmem:[%s1 + $0xe8] sm:$0xff]
      %v254 = vld [vmem:[%s1 + $0xf0] sm:$0xff]
      %v255 = vld [vmem:[%s1 + $0xf8] sm:$0xff]
      %v256 = vld [vmem:[%s1 + $0x100] sm:$0xff]
      %v257 = vld [vmem:[%s1 + $0x108] sm:$0xff]
      %v258 = vld [vmem:[%s1 + $0x110] sm:$0xff]
      %v259 = vld [vmem:[%s1 + $0x118] sm:$0xff]
      %v260 = vld [vmem:[%s1 + $0x120] sm:$0xff]
      %v261 = vld [vmem:[%s1 + $0x128] sm:$0xff]
      %v262 = vld [vmem:[%s1 + $0x130] sm:$0xff]
      %v263 = vld [vmem:[%s1 + $0x138] sm:$0xff]
      %v264 = vld [vmem:[%s1 + $0x140] sm:$0xff]
      %v265 = vld [vmem:[%s1 + $0x148] sm:$0xff]
      %v266 = vld [vmem:[%s1 + $0x150] sm:$0xff]
      %v267 = vld [vmem:[%s1 + $0x158] sm:$0xff]
      %v268 = vld [vmem:[%s1 + $0x160] sm:$0xff]
      %v269 = vld [vmem:[%s1 + $0x168] sm:$0xff]
      %v270 = vld [vmem:[%s1 + $0x170] sm:$0xff]
      %v271 = vld [vmem:[%s1 + $0x178] sm:$0xff]
      %v272 = vld [vmem:[%s1 + $0x180] sm:$0xff]
      %v273 = vld [vmem:[%s1 + $0x188] sm:$0xff]
      %v274 = vld [vmem:[%s1 + $0x190] sm:$0xff]
      %v275 = vld [vmem:[%s1 + $0x198] sm:$0xff]
      %v276 = vld [vmem:[%s1 + $0x1a0] sm:$0xff]
      %v277 = vld [vmem:[%s1 + $0x1a8] sm:$0xff]
      %v278 = vld [vmem:[%s1 + $0x1b0] sm:$0xff]
      %v279 = vld [vmem:[%s1 + $0x1b8] sm:$0xff]
      %v280 = vld [vmem:[%s1 + $0x1c0] sm:$0xff]
      %v281 = vld [vmem:[%s1 + $0x1c8] sm:$0xff]
      %v282 = vld [vmem:[%s1 + $0x1d0] sm:$0xff]
      %v283 = vld [vmem:[%s1 + $0x1d8] sm:$0xff]
      %v284 = vld [vmem:[%s1 + $0x1e0] sm:$0xff]
      %v285 = vld [vmem:[%s1 + $0x1e8] sm:$0xff]
      %v286 = vld [vmem:[%s1 + $0x1f0] sm:$0xff]
      %v287 = vld [vmem:[%s1 + $0x1f8] sm:$0xff]
      %v320 = vunpack.c.l.b16 %v192
      %v321 = vunpack.c.h.b16 %v192
      %v322 = vunpack.c.l.b16 %v193
      %v323 = vunpack.c.h.b16 %v193
      %v324 = vunpack.c.l.b16 %v194
      %v325 = vunpack.c.h.b16 %v194
      %v326 = vunpack.c.l.b16 %v195
      %v327 = vunpack.c.h.b16 %v195
      %v328 = vunpack.c.l.b16 %v196
      %v329 = vunpack.c.h.b16 %v196
      %v330 = vunpack.c.l.b16 %v197
      %v331 = vunpack.c.h.b16 %v197
      %v332 = vunpack.c.l.b16 %v198
      %v333 = vunpack.c.h.b16 %v198
      %v334 = vunpack.c.l.b16 %v199
      %v335 = vunpack.c.h.b16 %v199
      %v336 = vunpack.c.l.b16 %v200
      %v337 = vunpack.c.h.b16 %v200
      %v338 = vunpack.c.l.b16 %v201
      %v339 = vunpack.c.h.b16 %v201
      %v340 = vunpack.c.l.b16 %v202
      %v341 = vunpack.c.h.b16 %v202
      %v342 = vunpack.c.l.b16 %v203
      %v343 = vunpack.c.h.b16 %v203
      %v344 = vunpack.c.l.b16 %v204
      %v345 = vunpack.c.h.b16 %v204
      %v346 = vunpack.c.l.b16 %v205
      %v347 = vunpack.c.h.b16 %v205
      %v348 = vunpack.c.l.b16 %v206
      %v349 = vunpack.c.h.b16 %v206
      %v350 = vunpack.c.l.b16 %v207
      %v351 = vunpack.c.h.b16 %v207
      %v352 = vunpack.c.l.b16 %v208
      %v353 = vunpack.c.h.b16 %v208
      %v354 = vunpack.c.l.b16 %v209
      %v355 = vunpack.c.h.b16 %v209
      %v356 = vunpack.c.l.b16 %v210
      %v357 = vunpack.c.h.b16 %v210
      %v358 = vunpack.c.l.b16 %v211
      %v359 = vunpack.c.h.b16 %v211
      %v360 = vunpack.c.l.b16 %v212
      %v361 = vunpack.c.h.b16 %v212
      %v362 = vunpack.c.l.b16 %v213
      %v363 = vunpack.c.h.b16 %v213
      %v364 = vunpack.c.l.b16 %v214
      %v365 = vunpack.c.h.b16 %v214
      %v366 = vunpack.c.l.b16 %v215
      %v367 = vunpack.c.h.b16 %v215
      %v368 = vunpack.c.l.b16 %v216
      %v369 = vunpack.c.h.b16 %v216
      %v370 = vunpack.c.l.b16 %v217
      %v371 = vunpack.c.h.b16 %v217
      %v372 = vunpack.c.l.b16 %v218
      %v373 = vunpack.c.h.b16 %v218
      %v374 = vunpack.c.l.b16 %v219
      %v375 = vunpack.c.h.b16 %v219
      %v376 = vunpack.c.l.b16 %v220
      %v377 = vunpack.c.h.b16 %v220
      %v378 = vunpack.c.l.b16 %v221
      %v379 = vunpack.c.h.b16 %v221
      %v380 = vunpack.c.l.b16 %v222
      %v381 = vunpack.c.h.b16 %v222
      %v382 = vunpack.c.l.b16 %v223
      %v383 = vunpack.c.h.b16 %v223
      %v384 = vpack.c.b16 %v322, %v320
      %v385 = vpack.c.b16 %v323, %v321
      %v386 = vpack.c.b16 %v326, %v324
      %v387 = vpack.c.b16 %v327, %v325
      %v388 = vpack.c.b16 %v330, %v328
      %v389 = vpack.c.b16 %v331, %v329
      %v390 = vpack.c.b16 %v334, %v332
      %v391 = vpack.c.b16 %v335, %v333
      %v392 = vpack.c.b16 %v338, %v336
      %v393 = vpack.c.b16 %v339, %v337
      %v394 = vpack.c.b16 %v342, %v340
      %v395 = vpack.c.b16 %v343, %v341
      %v396 = vpack.c.b16 %v346, %v344
      %v397 = vpack.c.b16 %v347, %v345
      %v398 = vpack.c.b16 %v350, %v348
      %v399 = vpack.c.b16 %v351, %v349
      %v400 = vpack.c.b16 %v354, %v352
      %v401 = vpack.c.b16 %v355, %v353
      %v402 = vpack.c.b16 %v358, %v356
      %v403 = vpack.c.b16 %v359, %v357
      %v404 = vpack.c.b16 %v362, %v360
      %v405 = vpack.c.b16 %v363, %v361
      %v406 = vpack.c.b16 %v366, %v364
      %v407 = vpack.c.b16 %v367, %v365
      %v408 = vpack.c.b16 %v370, %v368
      %v409 = vpack.c.b16 %v371, %v369
      %v410 = vpack.c.b16 %v374, %v372
      %v411 = vpack.c.b16 %v375, %v373
      %v412 = vpack.c.b16 %v378, %v376
      %v413 = vpack.c.b16 %v379, %v377
      %v414 = vpack.c.b16 %v382, %v380
      %v415 = vpack.c.b16 %v383, %v381
      %v512 = vunpack.c.l.b16 %v224
      %v513 = vunpack.c.h.b16 %v224
      %v514 = vunpack.c.l.b16 %v225
      %v515 = vunpack.c.h.b16 %v225
      %v516 = vunpack.c.l.b16 %v226
      %v517 = vunpack.c.h.b16 %v226
      %v518 = vunpack.c.l.b16 %v227
      %v519 = vunpack.c.h.b16 %v227
      %v520 = vunpack.c.l.b16 %v228
      %v521 = vunpack.c.h.b16 %v228
      %v522 = vunpack.c.l.b16 %v229
      %v523 = vunpack.c.h.b16 %v229
      %v524 = vunpack.c.l.b16 %v230
      %v525 = vunpack.c.h.b16 %v230
      %v526 = vunpack.c.l.b16 %v231
      %v527 = vunpack.c.h.b16 %v231
      %v528 = vunpack.c.l.b16 %v232
      %v529 = vunpack.c.h.b16 %v232
      %v530 = vunpack.c.l.b16 %v233
      %v531 = vunpack.c.h.b16 %v233
      %v532 = vunpack.c.l.b16 %v234
      %v533 = vunpack.c.h.b16 %v234
      %v534 = vunpack.c.l.b16 %v235
      %v535 = vunpack.c.h.b16 %v235
      %v536 = vunpack.c.l.b16 %v236
      %v537 = vunpack.c.h.b16 %v236
      %v538 = vunpack.c.l.b16 %v237
      %v539 = vunpack.c.h.b16 %v237
      %v540 = vunpack.c.l.b16 %v238
      %v541 = vunpack.c.h.b16 %v238
      %v542 = vunpack.c.l.b16 %v239
      %v543 = vunpack.c.h.b16 %v239
      %v544 = vunpack.c.l.b16 %v240
      %v545 = vunpack.c.h.b16 %v240
      %v546 = vunpack.c.l.b16 %v241
      %v547 = vunpack.c.h.b16 %v241
      %v548 = vunpack.c.l.b16 %v242
      %v549 = vunpack.c.h.b16 %v242
      %v550 = vunpack.c.l.b16 %v243
      %v551 = vunpack.c.h.b16 %v243
      %v552 = vunpack.c.l.b16 %v244
      %v553 = vunpack.c.h.b16 %v244
      %v554 = vunpack.c.l.b16 %v245
      %v555 = vunpack.c.h.b16 %v245
      %v556 = vunpack.c.l.b16 %v246
      %v557 = vunpack.c.h.b16 %v246
      %v558 = vunpack.c.l.b16 %v247
      %v559 = vunpack.c.h.b16 %v247
      %v560 = vunpack.c.l.b16 %v248
      %v561 = vunpack.c.h.b16 %v248
      %v562 = vunpack.c.l.b16 %v249
      %v563 = vunpack.c.h.b16 %v249
      %v564 = vunpack.c.l.b16 %v250
      %v565 = vunpack.c.h.b16 %v250
      %v566 = vunpack.c.l.b16 %v251
      %v567 = vunpack.c.h.b16 %v251
      %v568 = vunpack.c.l.b16 %v252
      %v569 = vunpack.c.h.b16 %v252
      %v570 = vunpack.c.l.b16 %v253
      %v571 = vunpack.c.h.b16 %v253
      %v572 = vunpack.c.l.b16 %v254
      %v573 = vunpack.c.h.b16 %v254
      %v574 = vunpack.c.l.b16 %v255
      %v575 = vunpack.c.h.b16 %v255
      %v576 = vunpack.c.l.b16 %v256
      %v577 = vunpack.c.h.b16 %v256
      %v578 = vunpack.c.l.b16 %v257
      %v579 = vunpack.c.h.b16 %v257
      %v580 = vunpack.c.l.b16 %v258
      %v581 = vunpack.c.h.b16 %v258
      %v582 = vunpack.c.l.b16 %v259
      %v583 = vunpack.c.h.b16 %v259
      %v584 = vunpack.c.l.b16 %v260
      %v585 = vunpack.c.h.b16 %v260
      %v586 = vunpack.c.l.b16 %v261
      %v587 = vunpack.c.h.b16 %v261
      %v588 = vunpack.c.l.b16 %v262
      %v589 = vunpack.c.h.b16 %v262
      %v590 = vunpack.c.l.b16 %v263
      %v591 = vunpack.c.h.b16 %v263
      %v592 = vunpack.c.l.b16 %v264
      %v593 = vunpack.c.h.b16 %v264
      %v594 = vunpack.c.l.b16 %v265
      %v595 = vunpack.c.h.b16 %v265
      %v596 = vunpack.c.l.b16 %v266
      %v597 = vunpack.c.h.b16 %v266
      %v598 = vunpack.c.l.b16 %v267
      %v599 = vunpack.c.h.b16 %v267
      %v600 = vunpack.c.l.b16 %v268
      %v601 = vunpack.c.h.b16 %v268
      %v602 = vunpack.c.l.b16 %v269
      %v603 = vunpack.c.h.b16 %v269
      %v604 = vunpack.c.l.b16 %v270
      %v605 = vunpack.c.h.b16 %v270
      %v606 = vunpack.c.l.b16 %v271
      %v607 = vunpack.c.h.b16 %v271
      %v608 = vunpack.c.l.b16 %v272
      %v609 = vunpack.c.h.b16 %v272
      %v610 = vunpack.c.l.b16 %v273
      %v611 = vunpack.c.h.b16 %v273
      %v612 = vunpack.c.l.b16 %v274
      %v613 = vunpack.c.h.b16 %v274
      %v614 = vunpack.c.l.b16 %v275
      %v615 = vunpack.c.h.b16 %v275
      %v616 = vunpack.c.l.b16 %v276
      %v617 = vunpack.c.h.b16 %v276
      %v618 = vunpack.c.l.b16 %v277
      %v619 = vunpack.c.h.b16 %v277
      %v620 = vunpack.c.l.b16 %v278
      %v621 = vunpack.c.h.b16 %v278
      %v622 = vunpack.c.l.b16 %v279
      %v623 = vunpack.c.h.b16 %v279
      %v624 = vunpack.c.l.b16 %v280
      %v625 = vunpack.c.h.b16 %v280
      %v626 = vunpack.c.l.b16 %v281
      %v627 = vunpack.c.h.b16 %v281
      %v628 = vunpack.c.l.b16 %v282
      %v629 = vunpack.c.h.b16 %v282
      %v630 = vunpack.c.l.b16 %v283
      %v631 = vunpack.c.h.b16 %v283
      %v632 = vunpack.c.l.b16 %v284
      %v633 = vunpack.c.h.b16 %v284
      %v634 = vunpack.c.l.b16 %v285
      %v635 = vunpack.c.h.b16 %v285
      %v636 = vunpack.c.l.b16 %v286
      %v637 = vunpack.c.h.b16 %v286
      %v638 = vunpack.c.l.b16 %v287
      %v639 = vunpack.c.h.b16 %v287
      %v640 = vpack.c.b16 %v516, %v512
      %v641 = vpack.c.b16 %v517, %v513
      %v642 = vpack.c.b16 %v518, %v514
      %v643 = vpack.c.b16 %v519, %v515
      %v644 = vpack.c.b16 %v524, %v520
      %v645 = vpack.c.b16 %v525, %v521
      %v646 = vpack.c.b16 %v526, %v522
      %v647 = vpack.c.b16 %v527, %v523
      %v648 = vpack.c.b16 %v532, %v528
      %v649 = vpack.c.b16 %v533, %v529
      %v650 = vpack.c.b16 %v534, %v530
      %v651 = vpack.c.b16 %v535, %v531
      %v652 = vpack.c.b16 %v540, %v536
      %v653 = vpack.c.b16 %v541, %v537
      %v654 = vpack.c.b16 %v542, %v538
      %v655 = vpack.c.b16 %v543, %v539
      %v656 = vpack.c.b16 %v548, %v544
      %v657 = vpack.c.b16 %v549, %v545
      %v658 = vpack.c.b16 %v550, %v546
      %v659 = vpack.c.b16 %v551, %v547
      %v660 = vpack.c.b16 %v556, %v552
      %v661 = vpack.c.b16 %v557, %v553
      %v662 = vpack.c.b16 %v558, %v554
      %v663 = vpack.c.b16 %v559, %v555
      %v664 = vpack.c.b16 %v564, %v560
      %v665 = vpack.c.b16 %v565, %v561
      %v666 = vpack.c.b16 %v566, %v562
      %v667 = vpack.c.b16 %v567, %v563
      %v668 = vpack.c.b16 %v572, %v568
      %v669 = vpack.c.b16 %v573, %v569
      %v670 = vpack.c.b16 %v574, %v570
      %v671 = vpack.c.b16 %v575, %v571
      %v672 = vpack.c.b16 %v580, %v576
      %v673 = vpack.c.b16 %v581, %v577
      %v674 = vpack.c.b16 %v582, %v578
      %v675 = vpack.c.b16 %v583, %v579
      %v676 = vpack.c.b16 %v588, %v584
      %v677 = vpack.c.b16 %v589, %v585
      %v678 = vpack.c.b16 %v590, %v586
      %v679 = vpack.c.b16 %v591, %v587
      %v680 = vpack.c.b16 %v596, %v592
      %v681 = vpack.c.b16 %v597, %v593
      %v682 = vpack.c.b16 %v598, %v594
      %v683 = vpack.c.b16 %v599, %v595
      %v684 = vpack.c.b16 %v604, %v600
      %v685 = vpack.c.b16 %v605, %v601
      %v686 = vpack.c.b16 %v606, %v602
      %v687 = vpack.c.b16 %v607, %v603
      %v688 = vpack.c.b16 %v612, %v608
      %v689 = vpack.c.b16 %v613, %v609
      %v690 = vpack.c.b16 %v614, %v610
      %v691 = vpack.c.b16 %v615, %v611
      %v692 = vpack.c.b16 %v620, %v616
      %v693 = vpack.c.b16 %v621, %v617
      %v694 = vpack.c.b16 %v622, %v618
      %v695 = vpack.c.b16 %v623, %v619
      %v696 = vpack.c.b16 %v628, %v624
      %v697 = vpack.c.b16 %v629, %v625
      %v698 = vpack.c.b16 %v630, %v626
      %v699 = vpack.c.b16 %v631, %v627
      %v700 = vpack.c.b16 %v636, %v632
      %v701 = vpack.c.b16 %v637, %v633
      %v702 = vpack.c.b16 %v638, %v634
      %v703 = vpack.c.b16 %v639, %v635
      %768 = vmatprep.subr.bf16.mxu0 %v669
      %769 = vmatpush1.bf16.msra.mxu0 %v668
      %770 = vmatprep.subr.bf16.mxu0 %v665
      %771 = vmatpush1.bf16.msra.mxu0 %v664
      %772 = vmatprep.subr.bf16.mxu0 %v661
      %773 = vmatpush1.bf16.msra.mxu0 %v660
      %774 = vmatprep.subr.bf16.mxu0 %v657
      %775 = vmatpush1.bf16.msra.mxu0 %v656
      %776 = vmatprep.subr.bf16.mxu0 %v653
      %777 = vmatpush1.bf16.msra.mxu0 %v652
      %778 = vmatprep.subr.bf16.mxu0 %v649
      %779 = vmatpush1.bf16.msra.mxu0 %v648
      %780 = vmatprep.subr.bf16.mxu0 %v645
      %781 = vmatpush1.bf16.msra.mxu0 %v644
      %782 = vmatprep.subr.bf16.mxu0 %v641
      %783 = vmatpush1.bf16.msra.mxu0 %v640
      %784 = vmatprep.subr.bf16.mxu0 %v701
      %785 = vmatpush2.bf16.msra.mxu0 %v700
      %786 = vmatprep.subr.bf16.mxu0 %v697
      %787 = vmatpush2.bf16.msra.mxu0 %v696
      %788 = vmatprep.subr.bf16.mxu0 %v693
      %789 = vmatpush2.bf16.msra.mxu0 %v692
      %790 = vmatprep.subr.bf16.mxu0 %v689
      %791 = vmatpush2.bf16.msra.mxu0 %v688
      %792 = vmatprep.subr.bf16.mxu0 %v685
      %793 = vmatpush2.bf16.msra.mxu0 %v684
      %794 = vmatprep.subr.bf16.mxu0 %v681
      %795 = vmatpush2.bf16.msra.mxu0 %v680
      %796 = vmatprep.subr.bf16.mxu0 %v677
      %797 = vmatpush2.bf16.msra.mxu0 %v676
      %798 = vmatprep.subr.bf16.mxu0 %v673
      %799 = vmatpush2.bf16.msra.mxu0 %v672
      %800 = vmatprep.mubr.bf16.mxu0 %v385
      %801 = vmatmul.mubr.bf16.gmra.mxu0 %v384
      %v802 = vpop.f32.mrf.mxu0
      %v803 = vadd.f32 0.0, %v802
      %v804 = vpop.f32.mrf.mxu0
      %v805 = vadd.f32 0.0, %v804
      %v806 = vpop.f32.mrf.mxu0
      %v807 = vadd.f32 0.0, %v806
      %v808 = vpop.f32.mrf.mxu0
      %v809 = vadd.f32 0.0, %v808
      %810 = vmatprep.mubr.bf16.mxu0 %v387
      %811 = vmatmul.mubr.bf16.gmra.mxu0 %v386
      %v812 = vpop.f32.mrf.mxu0
      %v813 = vadd.f32 0.0, %v812
      %v814 = vpop.f32.mrf.mxu0
      %v815 = vadd.f32 0.0, %v814
      %v816 = vpop.f32.mrf.mxu0
      %v817 = vadd.f32 0.0, %v816
      %v818 = vpop.f32.mrf.mxu0
      %v819 = vadd.f32 0.0, %v818
      %820 = vmatprep.mubr.bf16.mxu0 %v389
      %821 = vmatmul.mubr.bf16.gmra.mxu0 %v388
      %v822 = vpop.f32.mrf.mxu0
      %v823 = vadd.f32 0.0, %v822
      %v824 = vpop.f32.mrf.mxu0
      %v825 = vadd.f32 0.0, %v824
      %v826 = vpop.f32.mrf.mxu0
      %v827 = vadd.f32 0.0, %v826
      %v828 = vpop.f32.mrf.mxu0
      %v829 = vadd.f32 0.0, %v828
      %830 = vmatprep.mubr.bf16.mxu0 %v391
      %831 = vmatmul.mubr.bf16.gmra.mxu0 %v390
      %v832 = vpop.f32.mrf.mxu0
      %v833 = vadd.f32 0.0, %v832
      %v834 = vpop.f32.mrf.mxu0
      %v835 = vadd.f32 0.0, %v834
      %v836 = vpop.f32.mrf.mxu0
      %v837 = vadd.f32 0.0, %v836
      %v838 = vpop.f32.mrf.mxu0
      %v839 = vadd.f32 0.0, %v838
      %840 = vmatprep.mubr.bf16.mxu0 %v393
      %841 = vmatmul.mubr.bf16.gmra.mxu0 %v392
      %v842 = vpop.f32.mrf.mxu0
      %v843 = vadd.f32 0.0, %v842
      %v844 = vpop.f32.mrf.mxu0
      %v845 = vadd.f32 0.0, %v844
      %v846 = vpop.f32.mrf.mxu0
      %v847 = vadd.f32 0.0, %v846
      %v848 = vpop.f32.mrf.mxu0
      %v849 = vadd.f32 0.0, %v848
      %850 = vmatprep.mubr.bf16.mxu0 %v395
      %851 = vmatmul.mubr.bf16.gmra.mxu0 %v394
      %v852 = vpop.f32.mrf.mxu0
      %v853 = vadd.f32 0.0, %v852
      %v854 = vpop.f32.mrf.mxu0
      %v855 = vadd.f32 0.0, %v854
      %v856 = vpop.f32.mrf.mxu0
      %v857 = vadd.f32 0.0, %v856
      %v858 = vpop.f32.mrf.mxu0
      %v859 = vadd.f32 0.0, %v858
      %860 = vmatprep.mubr.bf16.mxu0 %v397
      %861 = vmatmul.mubr.bf16.gmra.mxu0 %v396
      %v862 = vpop.f32.mrf.mxu0
      %v863 = vadd.f32 0.0, %v862
      %v864 = vpop.f32.mrf.mxu0
      %v865 = vadd.f32 0.0, %v864
      %v866 = vpop.f32.mrf.mxu0
      %v867 = vadd.f32 0.0, %v866
      %v868 = vpop.f32.mrf.mxu0
      %v869 = vadd.f32 0.0, %v868
      %870 = vmatprep.mubr.bf16.mxu0 %v399
      %871 = vmatmul.mubr.bf16.gmra.mxu0 %v398
      %v872 = vpop.f32.mrf.mxu0
      %v873 = vadd.f32 0.0, %v872
      %v874 = vpop.f32.mrf.mxu0
      %v875 = vadd.f32 0.0, %v874
      %v876 = vpop.f32.mrf.mxu0
      %v877 = vadd.f32 0.0, %v876
      %v878 = vpop.f32.mrf.mxu0
      %v879 = vadd.f32 0.0, %v878
      %880 = vmatprep.mubr.bf16.mxu0 %v401
      %881 = vmatmul.mubr.bf16.gmra.mxu0 %v400
      %v882 = vpop.f32.mrf.mxu0
      %v883 = vadd.f32 0.0, %v882
      %v884 = vpop.f32.mrf.mxu0
      %v885 = vadd.f32 0.0, %v884
      %v886 = vpop.f32.mrf.mxu0
      %v887 = vadd.f32 0.0, %v886
      %v888 = vpop.f32.mrf.mxu0
      %v889 = vadd.f32 0.0, %v888
      %890 = vmatprep.mubr.bf16.mxu0 %v403
      %891 = vmatmul.mubr.bf16.gmra.mxu0 %v402
      %v892 = vpop.f32.mrf.mxu0
      %v893 = vadd.f32 0.0, %v892
      %v894 = vpop.f32.mrf.mxu0
      %v895 = vadd.f32 0.0, %v894
      %v896 = vpop.f32.mrf.mxu0
      %v897 = vadd.f32 0.0, %v896
      %v898 = vpop.f32.mrf.mxu0
      %v899 = vadd.f32 0.0, %v898
      %900 = vmatprep.mubr.bf16.mxu0 %v405
      %901 = vmatmul.mubr.bf16.gmra.mxu0 %v404
      %v902 = vpop.f32.mrf.mxu0
      %v903 = vadd.f32 0.0, %v902
      %v904 = vpop.f32.mrf.mxu0
      %v905 = vadd.f32 0.0, %v904
      %v906 = vpop.f32.mrf.mxu0
      %v907 = vadd.f32 0.0, %v906
      %v908 = vpop.f32.mrf.mxu0
      %v909 = vadd.f32 0.0, %v908
      %910 = vmatprep.mubr.bf16.mxu0 %v407
      %911 = vmatmul.mubr.bf16.gmra.mxu0 %v406
      %v912 = vpop.f32.mrf.mxu0
      %v913 = vadd.f32 0.0, %v912
      %v914 = vpop.f32.mrf.mxu0
      %v915 = vadd.f32 0.0, %v914
      %v916 = vpop.f32.mrf.mxu0
      %v917 = vadd.f32 0.0, %v916
      %v918 = vpop.f32.mrf.mxu0
      %v919 = vadd.f32 0.0, %v918
      %920 = vmatprep.mubr.bf16.mxu0 %v409
      %921 = vmatmul.mubr.bf16.gmra.mxu0 %v408
      %v922 = vpop.f32.mrf.mxu0
      %v923 = vadd.f32 0.0, %v922
      %v924 = vpop.f32.mrf.mxu0
      %v925 = vadd.f32 0.0, %v924
      %v926 = vpop.f32.mrf.mxu0
      %v927 = vadd.f32 0.0, %v926
      %v928 = vpop.f32.mrf.mxu0
      %v929 = vadd.f32 0.0, %v928
      %930 = vmatprep.mubr.bf16.mxu0 %v411
      %931 = vmatmul.mubr.bf16.gmra.mxu0 %v410
      %v932 = vpop.f32.mrf.mxu0
      %v933 = vadd.f32 0.0, %v932
      %v934 = vpop.f32.mrf.mxu0
      %v935 = vadd.f32 0.0, %v934
      %v936 = vpop.f32.mrf.mxu0
      %v937 = vadd.f32 0.0, %v936
      %v938 = vpop.f32.mrf.mxu0
      %v939 = vadd.f32 0.0, %v938
      %940 = vmatprep.mubr.bf16.mxu0 %v413
      %941 = vmatmul.mubr.bf16.gmra.mxu0 %v412
      %v942 = vpop.f32.mrf.mxu0
      %v943 = vadd.f32 0.0, %v942
      %v944 = vpop.f32.mrf.mxu0
      %v945 = vadd.f32 0.0, %v944
      %v946 = vpop.f32.mrf.mxu0
      %v947 = vadd.f32 0.0, %v946
      %v948 = vpop.f32.mrf.mxu0
      %v949 = vadd.f32 0.0, %v948
      %950 = vmatprep.mubr.bf16.mxu0 %v415
      %951 = vmatmul.mubr.bf16.gmra.mxu0 %v414
      %v952 = vpop.f32.mrf.mxu0
      %v953 = vadd.f32 0.0, %v952
      %v954 = vpop.f32.mrf.mxu0
      %v955 = vadd.f32 0.0, %v954
      %v956 = vpop.f32.mrf.mxu0
      %v957 = vadd.f32 0.0, %v956
      %v958 = vpop.f32.mrf.mxu0
      %v959 = vadd.f32 0.0, %v958
      %960 = vdwg.mxu0
      %961 = vmatprep.subr.bf16.mxu0 %v671
      %962 = vmatpush1.bf16.msra.mxu0 %v670
      %963 = vmatprep.subr.bf16.mxu0 %v667
      %964 = vmatpush1.bf16.msra.mxu0 %v666
      %965 = vmatprep.subr.bf16.mxu0 %v663
      %966 = vmatpush1.bf16.msra.mxu0 %v662
      %967 = vmatprep.subr.bf16.mxu0 %v659
      %968 = vmatpush1.bf16.msra.mxu0 %v658
      %969 = vmatprep.subr.bf16.mxu0 %v655
      %970 = vmatpush1.bf16.msra.mxu0 %v654
      %971 = vmatprep.subr.bf16.mxu0 %v651
      %972 = vmatpush1.bf16.msra.mxu0 %v650
      %973 = vmatprep.subr.bf16.mxu0 %v647
      %974 = vmatpush1.bf16.msra.mxu0 %v646
      %975 = vmatprep.subr.bf16.mxu0 %v643
      %976 = vmatpush1.bf16.msra.mxu0 %v642
      %977 = vmatprep.subr.bf16.mxu0 %v703
      %978 = vmatpush2.bf16.msra.mxu0 %v702
      %979 = vmatprep.subr.bf16.mxu0 %v699
      %980 = vmatpush2.bf16.msra.mxu0 %v698
      %981 = vmatprep.subr.bf16.mxu0 %v695
      %982 = vmatpush2.bf16.msra.mxu0 %v694
      %983 = vmatprep.subr.bf16.mxu0 %v691
      %984 = vmatpush2.bf16.msra.mxu0 %v690
      %985 = vmatprep.subr.bf16.mxu0 %v687
      %986 = vmatpush2.bf16.msra.mxu0 %v686
      %987 = vmatprep.subr.bf16.mxu0 %v683
      %988 = vmatpush2.bf16.msra.mxu0 %v682
      %989 = vmatprep.subr.bf16.mxu0 %v679
      %990 = vmatpush2.bf16.msra.mxu0 %v678
      %991 = vmatprep.subr.bf16.mxu0 %v675
      %992 = vmatpush2.bf16.msra.mxu0 %v674
      %993 = vmatprep.mubr.bf16.mxu0 %v385
      %994 = vmatmul.mubr.bf16.gmra.mxu0 %v384
      %v995 = vpop.f32.mrf.mxu0
      %v996 = vadd.f32 0.0, %v995
      %v997 = vpop.f32.mrf.mxu0
      %v998 = vadd.f32 0.0, %v997
      %v999 = vpop.f32.mrf.mxu0
      %v1000 = vadd.f32 0.0, %v999
      %v1001 = vpop.f32.mrf.mxu0
      %v1002 = vadd.f32 0.0, %v1001
      %1003 = vmatprep.mubr.bf16.mxu0 %v387
      %1004 = vmatmul.mubr.bf16.gmra.mxu0 %v386
      %v1005 = vpop.f32.mrf.mxu0
      %v1006 = vadd.f32 0.0, %v1005
      %v1007 = vpop.f32.mrf.mxu0
      %v1008 = vadd.f32 0.0, %v1007
      %v1009 = vpop.f32.mrf.mxu0
      %v1010 = vadd.f32 0.0, %v1009
      %v1011 = vpop.f32.mrf.mxu0
      %v1012 = vadd.f32 0.0, %v1011
      %1013 = vmatprep.mubr.bf16.mxu0 %v389
      %1014 = vmatmul.mubr.bf16.gmra.mxu0 %v388
      %v1015 = vpop.f32.mrf.mxu0
      %v1016 = vadd.f32 0.0, %v1015
      %v1017 = vpop.f32.mrf.mxu0
      %v1018 = vadd.f32 0.0, %v1017
      %v1019 = vpop.f32.mrf.mxu0
      %v1020 = vadd.f32 0.0, %v1019
      %v1021 = vpop.f32.mrf.mxu0
      %v1022 = vadd.f32 0.0, %v1021
      %1023 = vmatprep.mubr.bf16.mxu0 %v391
      %1024 = vmatmul.mubr.bf16.gmra.mxu0 %v390
      %v1025 = vpop.f32.mrf.mxu0
      %v1026 = vadd.f32 0.0, %v1025
      %v1027 = vpop.f32.mrf.mxu0
      %v1028 = vadd.f32 0.0, %v1027
      %v1029 = vpop.f32.mrf.mxu0
      %v1030 = vadd.f32 0.0, %v1029
      %v1031 = vpop.f32.mrf.mxu0
      %v1032 = vadd.f32 0.0, %v1031
      %1033 = vmatprep.mubr.bf16.mxu0 %v393
      %1034 = vmatmul.mubr.bf16.gmra.mxu0 %v392
      %v1035 = vpop.f32.mrf.mxu0
      %v1036 = vadd.f32 0.0, %v1035
      %v1037 = vpop.f32.mrf.mxu0
      %v1038 = vadd.f32 0.0, %v1037
      %v1039 = vpop.f32.mrf.mxu0
      %v1040 = vadd.f32 0.0, %v1039
      %v1041 = vpop.f32.mrf.mxu0
      %v1042 = vadd.f32 0.0, %v1041
      %1043 = vmatprep.mubr.bf16.mxu0 %v395
      %1044 = vmatmul.mubr.bf16.gmra.mxu0 %v394
      %v1045 = vpop.f32.mrf.mxu0
      %v1046 = vadd.f32 0.0, %v1045
      %v1047 = vpop.f32.mrf.mxu0
      %v1048 = vadd.f32 0.0, %v1047
      %v1049 = vpop.f32.mrf.mxu0
      %v1050 = vadd.f32 0.0, %v1049
      %v1051 = vpop.f32.mrf.mxu0
      %v1052 = vadd.f32 0.0, %v1051
      %1053 = vmatprep.mubr.bf16.mxu0 %v397
      %1054 = vmatmul.mubr.bf16.gmra.mxu0 %v396
      %v1055 = vpop.f32.mrf.mxu0
      %v1056 = vadd.f32 0.0, %v1055
      %v1057 = vpop.f32.mrf.mxu0
      %v1058 = vadd.f32 0.0, %v1057
      %v1059 = vpop.f32.mrf.mxu0
      %v1060 = vadd.f32 0.0, %v1059
      %v1061 = vpop.f32.mrf.mxu0
      %v1062 = vadd.f32 0.0, %v1061
      %1063 = vmatprep.mubr.bf16.mxu0 %v399
      %1064 = vmatmul.mubr.bf16.gmra.mxu0 %v398
      %v1065 = vpop.f32.mrf.mxu0
      %v1066 = vadd.f32 0.0, %v1065
      %v1067 = vpop.f32.mrf.mxu0
      %v1068 = vadd.f32 0.0, %v1067
      %v1069 = vpop.f32.mrf.mxu0
      %v1070 = vadd.f32 0.0, %v1069
      %v1071 = vpop.f32.mrf.mxu0
      %v1072 = vadd.f32 0.0, %v1071
      %1073 = vmatprep.mubr.bf16.mxu0 %v401
      %1074 = vmatmul.mubr.bf16.gmra.mxu0 %v400
      %v1075 = vpop.f32.mrf.mxu0
      %v1076 = vadd.f32 0.0, %v1075
      %v1077 = vpop.f32.mrf.mxu0
      %v1078 = vadd.f32 0.0, %v1077
      %v1079 = vpop.f32.mrf.mxu0
      %v1080 = vadd.f32 0.0, %v1079
      %v1081 = vpop.f32.mrf.mxu0
      %v1082 = vadd.f32 0.0, %v1081
      %1083 = vmatprep.mubr.bf16.mxu0 %v403
      %1084 = vmatmul.mubr.bf16.gmra.mxu0 %v402
      %v1085 = vpop.f32.mrf.mxu0
      %v1086 = vadd.f32 0.0, %v1085
      %v1087 = vpop.f32.mrf.mxu0
      %v1088 = vadd.f32 0.0, %v1087
      %v1089 = vpop.f32.mrf.mxu0
      %v1090 = vadd.f32 0.0, %v1089
      %v1091 = vpop.f32.mrf.mxu0
      %v1092 = vadd.f32 0.0, %v1091
      %1093 = vmatprep.mubr.bf16.mxu0 %v405
      %1094 = vmatmul.mubr.bf16.gmra.mxu0 %v404
      %v1095 = vpop.f32.mrf.mxu0
      %v1096 = vadd.f32 0.0, %v1095
      %v1097 = vpop.f32.mrf.mxu0
      %v1098 = vadd.f32 0.0, %v1097
      %v1099 = vpop.f32.mrf.mxu0
      %v1100 = vadd.f32 0.0, %v1099
      %v1101 = vpop.f32.mrf.mxu0
      %v1102 = vadd.f32 0.0, %v1101
      %1103 = vmatprep.mubr.bf16.mxu0 %v407
      %1104 = vmatmul.mubr.bf16.gmra.mxu0 %v406
      %v1105 = vpop.f32.mrf.mxu0
      %v1106 = vadd.f32 0.0, %v1105
      %v1107 = vpop.f32.mrf.mxu0
      %v1108 = vadd.f32 0.0, %v1107
      %v1109 = vpop.f32.mrf.mxu0
      %v1110 = vadd.f32 0.0, %v1109
      %v1111 = vpop.f32.mrf.mxu0
      %v1112 = vadd.f32 0.0, %v1111
      %1113 = vmatprep.mubr.bf16.mxu0 %v409
      %1114 = vmatmul.mubr.bf16.gmra.mxu0 %v408
      %v1115 = vpop.f32.mrf.mxu0
      %v1116 = vadd.f32 0.0, %v1115
      %v1117 = vpop.f32.mrf.mxu0
      %v1118 = vadd.f32 0.0, %v1117
      %v1119 = vpop.f32.mrf.mxu0
      %v1120 = vadd.f32 0.0, %v1119
      %v1121 = vpop.f32.mrf.mxu0
      %v1122 = vadd.f32 0.0, %v1121
      %1123 = vmatprep.mubr.bf16.mxu0 %v411
      %1124 = vmatmul.mubr.bf16.gmra.mxu0 %v410
      %v1125 = vpop.f32.mrf.mxu0
      %v1126 = vadd.f32 0.0, %v1125
      %v1127 = vpop.f32.mrf.mxu0
      %v1128 = vadd.f32 0.0, %v1127
      %v1129 = vpop.f32.mrf.mxu0
      %v1130 = vadd.f32 0.0, %v1129
      %v1131 = vpop.f32.mrf.mxu0
      %v1132 = vadd.f32 0.0, %v1131
      %1133 = vmatprep.mubr.bf16.mxu0 %v413
      %1134 = vmatmul.mubr.bf16.gmra.mxu0 %v412
      %v1135 = vpop.f32.mrf.mxu0
      %v1136 = vadd.f32 0.0, %v1135
      %v1137 = vpop.f32.mrf.mxu0
      %v1138 = vadd.f32 0.0, %v1137
      %v1139 = vpop.f32.mrf.mxu0
      %v1140 = vadd.f32 0.0, %v1139
      %v1141 = vpop.f32.mrf.mxu0
      %v1142 = vadd.f32 0.0, %v1141
      %1143 = vmatprep.mubr.bf16.mxu0 %v415
      %1144 = vmatmul.mubr.bf16.gmra.mxu0 %v414
      %v1145 = vpop.f32.mrf.mxu0
      %v1146 = vadd.f32 0.0, %v1145
      %v1147 = vpop.f32.mrf.mxu0
      %v1148 = vadd.f32 0.0, %v1147
      %v1149 = vpop.f32.mrf.mxu0
      %v1150 = vadd.f32 0.0, %v1149
      %v1151 = vpop.f32.mrf.mxu0
      %v1152 = vadd.f32 0.0, %v1151
      %1153 = vdwg.mxu0
      %v1154 = vpack.c.bf16 %v807, %v803
      %v1155 = vpack.c.bf16 %v809, %v805
      %v1156 = vpack.c.bf16 %v1000, %v996
      %v1157 = vpack.c.bf16 %v1002, %v998
      %v1158 = vpack.c.bf16 %v817, %v813
      %v1159 = vpack.c.bf16 %v819, %v815
      %v1160 = vpack.c.bf16 %v1010, %v1006
      %v1161 = vpack.c.bf16 %v1012, %v1008
      %v1162 = vpack.c.bf16 %v827, %v823
      %v1163 = vpack.c.bf16 %v829, %v825
      %v1164 = vpack.c.bf16 %v1020, %v1016
      %v1165 = vpack.c.bf16 %v1022, %v1018
      %v1166 = vpack.c.bf16 %v837, %v833
      %v1167 = vpack.c.bf16 %v839, %v835
      %v1168 = vpack.c.bf16 %v1030, %v1026
      %v1169 = vpack.c.bf16 %v1032, %v1028
      %v1170 = vpack.c.bf16 %v847, %v843
      %v1171 = vpack.c.bf16 %v849, %v845
      %v1172 = vpack.c.bf16 %v1040, %v1036
      %v1173 = vpack.c.bf16 %v1042, %v1038
      %v1174 = vpack.c.bf16 %v857, %v853
      %v1175 = vpack.c.bf16 %v859, %v855
      %v1176 = vpack.c.bf16 %v1050, %v1046
      %v1177 = vpack.c.bf16 %v1052, %v1048
      %v1178 = vpack.c.bf16 %v867, %v863
      %v1179 = vpack.c.bf16 %v869, %v865
      %v1180 = vpack.c.bf16 %v1060, %v1056
      %v1181 = vpack.c.bf16 %v1062, %v1058
      %v1182 = vpack.c.bf16 %v877, %v873
      %v1183 = vpack.c.bf16 %v879, %v875
      %v1184 = vpack.c.bf16 %v1070, %v1066
      %v1185 = vpack.c.bf16 %v1072, %v1068
      %v1186 = vpack.c.bf16 %v887, %v883
      %v1187 = vpack.c.bf16 %v889, %v885
      %v1188 = vpack.c.bf16 %v1080, %v1076
      %v1189 = vpack.c.bf16 %v1082, %v1078
      %v1190 = vpack.c.bf16 %v897, %v893
      %v1191 = vpack.c.bf16 %v899, %v895
      %v1192 = vpack.c.bf16 %v1090, %v1086
      %v1193 = vpack.c.bf16 %v1092, %v1088
      %v1194 = vpack.c.bf16 %v907, %v903
      %v1195 = vpack.c.bf16 %v909, %v905
      %v1196 = vpack.c.bf16 %v1100, %v1096
      %v1197 = vpack.c.bf16 %v1102, %v1098
      %v1198 = vpack.c.bf16 %v917, %v913
      %v1199 = vpack.c.bf16 %v919, %v915
      %v1200 = vpack.c.bf16 %v1110, %v1106
      %v1201 = vpack.c.bf16 %v1112, %v1108
      %v1202 = vpack.c.bf16 %v927, %v923
      %v1203 = vpack.c.bf16 %v929, %v925
      %v1204 = vpack.c.bf16 %v1120, %v1116
      %v1205 = vpack.c.bf16 %v1122, %v1118
      %v1206 = vpack.c.bf16 %v937, %v933
      %v1207 = vpack.c.bf16 %v939, %v935
      %v1208 = vpack.c.bf16 %v1130, %v1126
      %v1209 = vpack.c.bf16 %v1132, %v1128
      %v1210 = vpack.c.bf16 %v947, %v943
      %v1211 = vpack.c.bf16 %v949, %v945
      %v1212 = vpack.c.bf16 %v1140, %v1136
      %v1213 = vpack.c.bf16 %v1142, %v1138
      %v1214 = vpack.c.bf16 %v957, %v953
      %v1215 = vpack.c.bf16 %v959, %v955
      %v1216 = vpack.c.bf16 %v1150, %v1146
      %v1217 = vpack.c.bf16 %v1152, %v1148
      %v1282 = vunpack.c.l.b16 %v1154
      %v1283 = vunpack.c.l.b16 %v1155
      %v1284 = vunpack.c.l.b16 %v1156
      %v1285 = vunpack.c.l.b16 %v1157
      %v1286 = vunpack.c.h.b16 %v1154
      %v1287 = vunpack.c.h.b16 %v1155
      %v1288 = vunpack.c.h.b16 %v1156
      %v1289 = vunpack.c.h.b16 %v1157
      %v1290 = vunpack.c.l.b16 %v1158
      %v1291 = vunpack.c.l.b16 %v1159
      %v1292 = vunpack.c.l.b16 %v1160
      %v1293 = vunpack.c.l.b16 %v1161
      %v1294 = vunpack.c.h.b16 %v1158
      %v1295 = vunpack.c.h.b16 %v1159
      %v1296 = vunpack.c.h.b16 %v1160
      %v1297 = vunpack.c.h.b16 %v1161
      %v1298 = vunpack.c.l.b16 %v1162
      %v1299 = vunpack.c.l.b16 %v1163
      %v1300 = vunpack.c.l.b16 %v1164
      %v1301 = vunpack.c.l.b16 %v1165
      %v1302 = vunpack.c.h.b16 %v1162
      %v1303 = vunpack.c.h.b16 %v1163
      %v1304 = vunpack.c.h.b16 %v1164
      %v1305 = vunpack.c.h.b16 %v1165
      %v1306 = vunpack.c.l.b16 %v1166
      %v1307 = vunpack.c.l.b16 %v1167
      %v1308 = vunpack.c.l.b16 %v1168
      %v1309 = vunpack.c.l.b16 %v1169
      %v1310 = vunpack.c.h.b16 %v1166
      %v1311 = vunpack.c.h.b16 %v1167
      %v1312 = vunpack.c.h.b16 %v1168
      %v1313 = vunpack.c.h.b16 %v1169
      %v1314 = vunpack.c.l.b16 %v1170
      %v1315 = vunpack.c.l.b16 %v1171
      %v1316 = vunpack.c.l.b16 %v1172
      %v1317 = vunpack.c.l.b16 %v1173
      %v1318 = vunpack.c.h.b16 %v1170
      %v1319 = vunpack.c.h.b16 %v1171
      %v1320 = vunpack.c.h.b16 %v1172
      %v1321 = vunpack.c.h.b16 %v1173
      %v1322 = vunpack.c.l.b16 %v1174
      %v1323 = vunpack.c.l.b16 %v1175
      %v1324 = vunpack.c.l.b16 %v1176
      %v1325 = vunpack.c.l.b16 %v1177
      %v1326 = vunpack.c.h.b16 %v1174
      %v1327 = vunpack.c.h.b16 %v1175
      %v1328 = vunpack.c.h.b16 %v1176
      %v1329 = vunpack.c.h.b16 %v1177
      %v1330 = vunpack.c.l.b16 %v1178
      %v1331 = vunpack.c.l.b16 %v1179
      %v1332 = vunpack.c.l.b16 %v1180
      %v1333 = vunpack.c.l.b16 %v1181
      %v1334 = vunpack.c.h.b16 %v1178
      %v1335 = vunpack.c.h.b16 %v1179
      %v1336 = vunpack.c.h.b16 %v1180
      %v1337 = vunpack.c.h.b16 %v1181
      %v1338 = vunpack.c.l.b16 %v1182
      %v1339 = vunpack.c.l.b16 %v1183
      %v1340 = vunpack.c.l.b16 %v1184
      %v1341 = vunpack.c.l.b16 %v1185
      %v1342 = vunpack.c.h.b16 %v1182
      %v1343 = vunpack.c.h.b16 %v1183
      %v1344 = vunpack.c.h.b16 %v1184
      %v1345 = vunpack.c.h.b16 %v1185
      %v1346 = vunpack.c.l.b16 %v1186
      %v1347 = vunpack.c.l.b16 %v1187
      %v1348 = vunpack.c.l.b16 %v1188
      %v1349 = vunpack.c.l.b16 %v1189
      %v1350 = vunpack.c.h.b16 %v1186
      %v1351 = vunpack.c.h.b16 %v1187
      %v1352 = vunpack.c.h.b16 %v1188
      %v1353 = vunpack.c.h.b16 %v1189
      %v1354 = vunpack.c.l.b16 %v1190
      %v1355 = vunpack.c.l.b16 %v1191
      %v1356 = vunpack.c.l.b16 %v1192
      %v1357 = vunpack.c.l.b16 %v1193
      %v1358 = vunpack.c.h.b16 %v1190
      %v1359 = vunpack.c.h.b16 %v1191
      %v1360 = vunpack.c.h.b16 %v1192
      %v1361 = vunpack.c.h.b16 %v1193
      %v1362 = vunpack.c.l.b16 %v1194
      %v1363 = vunpack.c.l.b16 %v1195
      %v1364 = vunpack.c.l.b16 %v1196
      %v1365 = vunpack.c.l.b16 %v1197
      %v1366 = vunpack.c.h.b16 %v1194
      %v1367 = vunpack.c.h.b16 %v1195
      %v1368 = vunpack.c.h.b16 %v1196
      %v1369 = vunpack.c.h.b16 %v1197
      %v1370 = vunpack.c.l.b16 %v1198
      %v1371 = vunpack.c.l.b16 %v1199
      %v1372 = vunpack.c.l.b16 %v1200
      %v1373 = vunpack.c.l.b16 %v1201
      %v1374 = vunpack.c.h.b16 %v1198
      %v1375 = vunpack.c.h.b16 %v1199
      %v1376 = vunpack.c.h.b16 %v1200
      %v1377 = vunpack.c.h.b16 %v1201
      %v1378 = vunpack.c.l.b16 %v1202
      %v1379 = vunpack.c.l.b16 %v1203
      %v1380 = vunpack.c.l.b16 %v1204
      %v1381 = vunpack.c.l.b16 %v1205
      %v1382 = vunpack.c.h.b16 %v1202
      %v1383 = vunpack.c.h.b16 %v1203
      %v1384 = vunpack.c.h.b16 %v1204
      %v1385 = vunpack.c.h.b16 %v1205
      %v1386 = vunpack.c.l.b16 %v1206
      %v1387 = vunpack.c.l.b16 %v1207
      %v1388 = vunpack.c.l.b16 %v1208
      %v1389 = vunpack.c.l.b16 %v1209
      %v1390 = vunpack.c.h.b16 %v1206
      %v1391 = vunpack.c.h.b16 %v1207
      %v1392 = vunpack.c.h.b16 %v1208
      %v1393 = vunpack.c.h.b16 %v1209
      %v1394 = vunpack.c.l.b16 %v1210
      %v1395 = vunpack.c.l.b16 %v1211
      %v1396 = vunpack.c.l.b16 %v1212
      %v1397 = vunpack.c.l.b16 %v1213
      %v1398 = vunpack.c.h.b16 %v1210
      %v1399 = vunpack.c.h.b16 %v1211
      %v1400 = vunpack.c.h.b16 %v1212
      %v1401 = vunpack.c.h.b16 %v1213
      %v1402 = vunpack.c.l.b16 %v1214
      %v1403 = vunpack.c.l.b16 %v1215
      %v1404 = vunpack.c.l.b16 %v1216
      %v1405 = vunpack.c.l.b16 %v1217
      %v1406 = vunpack.c.h.b16 %v1214
      %v1407 = vunpack.c.h.b16 %v1215
      %v1408 = vunpack.c.h.b16 %v1216
      %v1409 = vunpack.c.h.b16 %v1217
      %v1410 = vpack.c.b16 %v1283, %v1282
      %v1411 = vpack.c.b16 %v1285, %v1284
      %v1412 = vpack.c.b16 %v1287, %v1286
      %v1413 = vpack.c.b16 %v1289, %v1288
      %v1414 = vpack.c.b16 %v1291, %v1290
      %v1415 = vpack.c.b16 %v1293, %v1292
      %v1416 = vpack.c.b16 %v1295, %v1294
      %v1417 = vpack.c.b16 %v1297, %v1296
      %v1418 = vpack.c.b16 %v1299, %v1298
      %v1419 = vpack.c.b16 %v1301, %v1300
      %v1420 = vpack.c.b16 %v1303, %v1302
      %v1421 = vpack.c.b16 %v1305, %v1304
      %v1422 = vpack.c.b16 %v1307, %v1306
      %v1423 = vpack.c.b16 %v1309, %v1308
      %v1424 = vpack.c.b16 %v1311, %v1310
      %v1425 = vpack.c.b16 %v1313, %v1312
      %v1426 = vpack.c.b16 %v1315, %v1314
      %v1427 = vpack.c.b16 %v1317, %v1316
      %v1428 = vpack.c.b16 %v1319, %v1318
      %v1429 = vpack.c.b16 %v1321, %v1320
      %v1430 = vpack.c.b16 %v1323, %v1322
      %v1431 = vpack.c.b16 %v1325, %v1324
      %v1432 = vpack.c.b16 %v1327, %v1326
      %v1433 = vpack.c.b16 %v1329, %v1328
      %v1434 = vpack.c.b16 %v1331, %v1330
      %v1435 = vpack.c.b16 %v1333, %v1332
      %v1436 = vpack.c.b16 %v1335, %v1334
      %v1437 = vpack.c.b16 %v1337, %v1336
      %v1438 = vpack.c.b16 %v1339, %v1338
      %v1439 = vpack.c.b16 %v1341, %v1340
      %v1440 = vpack.c.b16 %v1343, %v1342
      %v1441 = vpack.c.b16 %v1345, %v1344
      %v1442 = vpack.c.b16 %v1347, %v1346
      %v1443 = vpack.c.b16 %v1349, %v1348
      %v1444 = vpack.c.b16 %v1351, %v1350
      %v1445 = vpack.c.b16 %v1353, %v1352
      %v1446 = vpack.c.b16 %v1355, %v1354
      %v1447 = vpack.c.b16 %v1357, %v1356
      %v1448 = vpack.c.b16 %v1359, %v1358
      %v1449 = vpack.c.b16 %v1361, %v1360
      %v1450 = vpack.c.b16 %v1363, %v1362
      %v1451 = vpack.c.b16 %v1365, %v1364
      %v1452 = vpack.c.b16 %v1367, %v1366
      %v1453 = vpack.c.b16 %v1369, %v1368
      %v1454 = vpack.c.b16 %v1371, %v1370
      %v1455 = vpack.c.b16 %v1373, %v1372
      %v1456 = vpack.c.b16 %v1375, %v1374
      %v1457 = vpack.c.b16 %v1377, %v1376
      %v1458 = vpack.c.b16 %v1379, %v1378
      %v1459 = vpack.c.b16 %v1381, %v1380
      %v1460 = vpack.c.b16 %v1383, %v1382
      %v1461 = vpack.c.b16 %v1385, %v1384
      %v1462 = vpack.c.b16 %v1387, %v1386
      %v1463 = vpack.c.b16 %v1389, %v1388
      %v1464 = vpack.c.b16 %v1391, %v1390
      %v1465 = vpack.c.b16 %v1393, %v1392
      %v1466 = vpack.c.b16 %v1395, %v1394
      %v1467 = vpack.c.b16 %v1397, %v1396
      %v1468 = vpack.c.b16 %v1399, %v1398
      %v1469 = vpack.c.b16 %v1401, %v1400
      %v1470 = vpack.c.b16 %v1403, %v1402
      %v1471 = vpack.c.b16 %v1405, %v1404
      %v1472 = vpack.c.b16 %v1407, %v1406
      %v1473 = vpack.c.b16 %v1409, %v1408
      %1538 = vst [vmem:[%s185] sm:$0xff] %v1410
      %1539 = vst [vmem:[%s185 + $0x8] sm:$0xff] %v1411
      %1540 = vst [vmem:[%s185 + $0x10] sm:$0xff] %v1412
      %1541 = vst [vmem:[%s185 + $0x18] sm:$0xff] %v1413
      %1542 = vst [vmem:[%s185 + $0x20] sm:$0xff] %v1414
      %1543 = vst [vmem:[%s185 + $0x28] sm:$0xff] %v1415
      %1544 = vst [vmem:[%s185 + $0x30] sm:$0xff] %v1416
      %1545 = vst [vmem:[%s185 + $0x38] sm:$0xff] %v1417
      %1546 = vst [vmem:[%s185 + $0x40] sm:$0xff] %v1418
      %1547 = vst [vmem:[%s185 + $0x48] sm:$0xff] %v1419
      %1548 = vst [vmem:[%s185 + $0x50] sm:$0xff] %v1420
      %1549 = vst [vmem:[%s185 + $0x58] sm:$0xff] %v1421
      %1550 = vst [vmem:[%s185 + $0x60] sm:$0xff] %v1422
      %1551 = vst [vmem:[%s185 + $0x68] sm:$0xff] %v1423
      %1552 = vst [vmem:[%s185 + $0x70] sm:$0xff] %v1424
      %1553 = vst [vmem:[%s185 + $0x78] sm:$0xff] %v1425
      %1554 = vst [vmem:[%s185 + $0x80] sm:$0xff] %v1426
      %1555 = vst [vmem:[%s185 + $0x88] sm:$0xff] %v1427
      %1556 = vst [vmem:[%s185 + $0x90] sm:$0xff] %v1428
      %1557 = vst [vmem:[%s185 + $0x98] sm:$0xff] %v1429
      %1558 = vst [vmem:[%s185 + $0xa0] sm:$0xff] %v1430
      %1559 = vst [vmem:[%s185 + $0xa8] sm:$0xff] %v1431
      %1560 = vst [vmem:[%s185 + $0xb0] sm:$0xff] %v1432
      %1561 = vst [vmem:[%s185 + $0xb8] sm:$0xff] %v1433
      %1562 = vst [vmem:[%s185 + $0xc0] sm:$0xff] %v1434
      %1563 = vst [vmem:[%s185 + $0xc8] sm:$0xff] %v1435
      %1564 = vst [vmem:[%s185 + $0xd0] sm:$0xff] %v1436
      %1565 = vst [vmem:[%s185 + $0xd8] sm:$0xff] %v1437
      %1566 = vst [vmem:[%s185 + $0xe0] sm:$0xff] %v1438
      %1567 = vst [vmem:[%s185 + $0xe8] sm:$0xff] %v1439
      %1568 = vst [vmem:[%s185 + $0xf0] sm:$0xff] %v1440
      %1569 = vst [vmem:[%s185 + $0xf8] sm:$0xff] %v1441
      %1570 = vst [vmem:[%s185 + $0x100] sm:$0xff] %v1442
      %1571 = vst [vmem:[%s185 + $0x108] sm:$0xff] %v1443
      %1572 = vst [vmem:[%s185 + $0x110] sm:$0xff] %v1444
      %1573 = vst [vmem:[%s185 + $0x118] sm:$0xff] %v1445
      %1574 = vst [vmem:[%s185 + $0x120] sm:$0xff] %v1446
      %1575 = vst [vmem:[%s185 + $0x128] sm:$0xff] %v1447
      %1576 = vst [vmem:[%s185 + $0x130] sm:$0xff] %v1448
      %1577 = vst [vmem:[%s185 + $0x138] sm:$0xff] %v1449
      %1578 = vst [vmem:[%s185 + $0x140] sm:$0xff] %v1450
      %1579 = vst [vmem:[%s185 + $0x148] sm:$0xff] %v1451
      %1580 = vst [vmem:[%s185 + $0x150] sm:$0xff] %v1452
      %1581 = vst [vmem:[%s185 + $0x158] sm:$0xff] %v1453
      %1582 = vst [vmem:[%s185 + $0x160] sm:$0xff] %v1454
      %1583 = vst [vmem:[%s185 + $0x168] sm:$0xff] %v1455
      %1584 = vst [vmem:[%s185 + $0x170] sm:$0xff] %v1456
      %1585 = vst [vmem:[%s185 + $0x178] sm:$0xff] %v1457
      %1586 = vst [vmem:[%s185 + $0x180] sm:$0xff] %v1458
      %1587 = vst [vmem:[%s185 + $0x188] sm:$0xff] %v1459
      %1588 = vst [vmem:[%s185 + $0x190] sm:$0xff] %v1460
      %1589 = vst [vmem:[%s185 + $0x198] sm:$0xff] %v1461
      %1590 = vst [vmem:[%s185 + $0x1a0] sm:$0xff] %v1462
      %1591 = vst [vmem:[%s185 + $0x1a8] sm:$0xff] %v1463
      %1592 = vst [vmem:[%s185 + $0x1b0] sm:$0xff] %v1464
      %1593 = vst [vmem:[%s185 + $0x1b8] sm:$0xff] %v1465
      %1594 = vst [vmem:[%s185 + $0x1c0] sm:$0xff] %v1466
      %1595 = vst [vmem:[%s185 + $0x1c8] sm:$0xff] %v1467
      %1596 = vst [vmem:[%s185 + $0x1d0] sm:$0xff] %v1468
      %1597 = vst [vmem:[%s185 + $0x1d8] sm:$0xff] %v1469
      %1598 = vst [vmem:[%s185 + $0x1e0] sm:$0xff] %v1470
      %1599 = vst [vmem:[%s185 + $0x1e8] sm:$0xff] %v1471
      %1600 = vst [vmem:[%s185 + $0x1f0] sm:$0xff] %v1472
      %1601 = vst [vmem:[%s185 + $0x1f8] sm:$0xff] %v1473
      %v1602 = vadd.f32 %v803, %v807
      %v1603 = vadd.f32 %v1602, %v813
      %v1604 = vadd.f32 %v1603, %v817
      %v1605 = vadd.f32 %v1604, %v823
      %v1606 = vadd.f32 %v1605, %v827
      %v1607 = vadd.f32 %v1606, %v833
      %v1608 = vadd.f32 %v1607, %v837
      %v1609 = vadd.f32 %v1608, %v843
      %v1610 = vadd.f32 %v1609, %v847
      %v1611 = vadd.f32 %v1610, %v853
      %v1612 = vadd.f32 %v1611, %v857
      %v1613 = vadd.f32 %v1612, %v863
      %v1614 = vadd.f32 %v1613, %v867
      %v1615 = vadd.f32 %v1614, %v873
      %v1616 = vadd.f32 %v1615, %v877
      %v1617 = vadd.f32 %v1616, %v883
      %v1618 = vadd.f32 %v1617, %v887
      %v1619 = vadd.f32 %v1618, %v893
      %v1620 = vadd.f32 %v1619, %v897
      %v1621 = vadd.f32 %v1620, %v903
      %v1622 = vadd.f32 %v1621, %v907
      %v1623 = vadd.f32 %v1622, %v913
      %v1624 = vadd.f32 %v1623, %v917
      %v1625 = vadd.f32 %v1624, %v923
      %v1626 = vadd.f32 %v1625, %v927
      %v1627 = vadd.f32 %v1626, %v933
      %v1628 = vadd.f32 %v1627, %v937
      %v1629 = vadd.f32 %v1628, %v943
      %v1630 = vadd.f32 %v1629, %v947
      %v1631 = vadd.f32 %v1630, %v953
      %v1632 = vadd.f32 %v1631, %v957
      %v1633 = vrot.slane %v1632, 4
      %v1634 = vadd.f32 %v1632, %v1633
      %v1635 = vrot.slane %v1634, 2
      %v1636 = vadd.f32 %v1634, %v1635
      %v1637 = vrot.slane %v1636, 1
      %v1638 = vadd.f32 %v1636, %v1637
      %v1639 = vadd.f32 %v805, %v809
      %v1640 = vadd.f32 %v1639, %v815
      %v1641 = vadd.f32 %v1640, %v819
      %v1642 = vadd.f32 %v1641, %v825
      %v1643 = vadd.f32 %v1642, %v829
      %v1644 = vadd.f32 %v1643, %v835
      %v1645 = vadd.f32 %v1644, %v839
      %v1646 = vadd.f32 %v1645, %v845
      %v1647 = vadd.f32 %v1646, %v849
      %v1648 = vadd.f32 %v1647, %v855
      %v1649 = vadd.f32 %v1648, %v859
      %v1650 = vadd.f32 %v1649, %v865
      %v1651 = vadd.f32 %v1650, %v869
      %v1652 = vadd.f32 %v1651, %v875
      %v1653 = vadd.f32 %v1652, %v879
      %v1654 = vadd.f32 %v1653, %v885
      %v1655 = vadd.f32 %v1654, %v889
      %v1656 = vadd.f32 %v1655, %v895
      %v1657 = vadd.f32 %v1656, %v899
      %v1658 = vadd.f32 %v1657, %v905
      %v1659 = vadd.f32 %v1658, %v909
      %v1660 = vadd.f32 %v1659, %v915
      %v1661 = vadd.f32 %v1660, %v919
      %v1662 = vadd.f32 %v1661, %v925
      %v1663 = vadd.f32 %v1662, %v929
      %v1664 = vadd.f32 %v1663, %v935
      %v1665 = vadd.f32 %v1664, %v939
      %v1666 = vadd.f32 %v1665, %v945
      %v1667 = vadd.f32 %v1666, %v949
      %v1668 = vadd.f32 %v1667, %v955
      %v1669 = vadd.f32 %v1668, %v959
      %v1670 = vrot.slane %v1669, 4
      %v1671 = vadd.f32 %v1669, %v1670
      %v1672 = vrot.slane %v1671, 2
      %v1673 = vadd.f32 %v1671, %v1672
      %v1674 = vrot.slane %v1673, 1
      %v1675 = vadd.f32 %v1673, %v1674
      %v1676 = vadd.f32 %v996, %v1000
      %v1677 = vadd.f32 %v1676, %v1006
      %v1678 = vadd.f32 %v1677, %v1010
      %v1679 = vadd.f32 %v1678, %v1016
      %v1680 = vadd.f32 %v1679, %v1020
      %v1681 = vadd.f32 %v1680, %v1026
      %v1682 = vadd.f32 %v1681, %v1030
      %v1683 = vadd.f32 %v1682, %v1036
      %v1684 = vadd.f32 %v1683, %v1040
      %v1685 = vadd.f32 %v1684, %v1046
      %v1686 = vadd.f32 %v1685, %v1050
      %v1687 = vadd.f32 %v1686, %v1056
      %v1688 = vadd.f32 %v1687, %v1060
      %v1689 = vadd.f32 %v1688, %v1066
      %v1690 = vadd.f32 %v1689, %v1070
      %v1691 = vadd.f32 %v1690, %v1076
      %v1692 = vadd.f32 %v1691, %v1080
      %v1693 = vadd.f32 %v1692, %v1086
      %v1694 = vadd.f32 %v1693, %v1090
      %v1695 = vadd.f32 %v1694, %v1096
      %v1696 = vadd.f32 %v1695, %v1100
      %v1697 = vadd.f32 %v1696, %v1106
      %v1698 = vadd.f32 %v1697, %v1110
      %v1699 = vadd.f32 %v1698, %v1116
      %v1700 = vadd.f32 %v1699, %v1120
      %v1701 = vadd.f32 %v1700, %v1126
      %v1702 = vadd.f32 %v1701, %v1130
      %v1703 = vadd.f32 %v1702, %v1136
      %v1704 = vadd.f32 %v1703, %v1140
      %v1705 = vadd.f32 %v1704, %v1146
      %v1706 = vadd.f32 %v1705, %v1150
      %v1707 = vrot.slane %v1706, 4
      %v1708 = vadd.f32 %v1706, %v1707
      %v1709 = vrot.slane %v1708, 2
      %v1710 = vadd.f32 %v1708, %v1709
      %v1711 = vrot.slane %v1710, 1
      %v1712 = vadd.f32 %v1710, %v1711
      %v1713 = vadd.f32 %v998, %v1002
      %v1714 = vadd.f32 %v1713, %v1008
      %v1715 = vadd.f32 %v1714, %v1012
      %v1716 = vadd.f32 %v1715, %v1018
      %v1717 = vadd.f32 %v1716, %v1022
      %v1718 = vadd.f32 %v1717, %v1028
      %v1719 = vadd.f32 %v1718, %v1032
      %v1720 = vadd.f32 %v1719, %v1038
      %v1721 = vadd.f32 %v1720, %v1042
      %v1722 = vadd.f32 %v1721, %v1048
      %v1723 = vadd.f32 %v1722, %v1052
      %v1724 = vadd.f32 %v1723, %v1058
      %v1725 = vadd.f32 %v1724, %v1062
      %v1726 = vadd.f32 %v1725, %v1068
      %v1727 = vadd.f32 %v1726, %v1072
      %v1728 = vadd.f32 %v1727, %v1078
      %v1729 = vadd.f32 %v1728, %v1082
      %v1730 = vadd.f32 %v1729, %v1088
      %v1731 = vadd.f32 %v1730, %v1092
      %v1732 = vadd.f32 %v1731, %v1098
      %v1733 = vadd.f32 %v1732, %v1102
      %v1734 = vadd.f32 %v1733, %v1108
      %v1735 = vadd.f32 %v1734, %v1112
      %v1736 = vadd.f32 %v1735, %v1118
      %v1737 = vadd.f32 %v1736, %v1122
      %v1738 = vadd.f32 %v1737, %v1128
      %v1739 = vadd.f32 %v1738, %v1132
      %v1740 = vadd.f32 %v1739, %v1138
      %v1741 = vadd.f32 %v1740, %v1142
      %v1742 = vadd.f32 %v1741, %v1148
      %v1743 = vadd.f32 %v1742, %v1152
      %v1744 = vrot.slane %v1743, 4
      %v1745 = vadd.f32 %v1743, %v1744
      %v1746 = vrot.slane %v1745, 2
      %v1747 = vadd.f32 %v1745, %v1746
      %v1748 = vrot.slane %v1747, 1
      %v1749 = vadd.f32 %v1747, %v1748
      %v1754 = vcombine.low %v1638, %v1675
      %v1755 = vcombine.low %v1712, %v1749
      %v1757 = vunpack.c.l.s4 1966171168
      %v1758 = vunpack.c.0.s8 %v1757
      %v1759 = vlaneseq
      %v1760 = vshrl.u32 %v1759, 7
      %v1761 = vsub.s32 %v1758, %v1760
      %v1762 = vrot.slane %v1754, %v1761
      %v1764 = vunpack.c.l.s4 1966171168
      %v1765 = vunpack.c.0.s8 %v1764
      %v1766 = vlaneseq
      %v1767 = vshrl.u32 %v1766, 7
      %v1768 = vsub.s32 %v1765, %v1767
      %v1769 = vrot.slane %v1755, %v1768
      %v1770 = vcombine.low %v1762, %v1769
      %v1772 = vunpack.c.l.s4 1966171168
      %v1773 = vunpack.c.0.s8 %v1772
      %v1774 = vlaneseq
      %v1775 = vshrl.u32 %v1774, 7
      %v1776 = vsub.s32 %v1773, %v1775
      %v1777 = vrot.slane %v1770, %v1776
      %v1779 = vlaneseq
      %vm1780 = vcmp.ge.s32.totalorder %v1779, 0
      %vm1781 = vcmp.lt.s32.totalorder %v1779, 512
      %vm1782 = vmand %vm1780, %vm1781
      %1783 = vst.msk [vmem:[%s191] ss:$2 sm:$0xf] %vm1782, %v1777
      %v1784 = vmul.f32 %v803, %v803
      %v1785 = vmul.f32 %v805, %v805
      %v1786 = vmul.f32 %v996, %v996
      %v1787 = vmul.f32 %v998, %v998
      %v1788 = vmul.f32 %v807, %v807
      %v1789 = vmul.f32 %v809, %v809
      %v1790 = vmul.f32 %v1000, %v1000
      %v1791 = vmul.f32 %v1002, %v1002
      %v1792 = vmul.f32 %v813, %v813
      %v1793 = vmul.f32 %v815, %v815
      %v1794 = vmul.f32 %v1006, %v1006
      %v1795 = vmul.f32 %v1008, %v1008
      %v1796 = vmul.f32 %v817, %v817
      %v1797 = vmul.f32 %v819, %v819
      %v1798 = vmul.f32 %v1010, %v1010
      %v1799 = vmul.f32 %v1012, %v1012
      %v1800 = vmul.f32 %v823, %v823
      %v1801 = vmul.f32 %v825, %v825
      %v1802 = vmul.f32 %v1016, %v1016
      %v1803 = vmul.f32 %v1018, %v1018
      %v1804 = vmul.f32 %v827, %v827
      %v1805 = vmul.f32 %v829, %v829
      %v1806 = vmul.f32 %v1020, %v1020
      %v1807 = vmul.f32 %v1022, %v1022
      %v1808 = vmul.f32 %v833, %v833
      %v1809 = vmul.f32 %v835, %v835
      %v1810 = vmul.f32 %v1026, %v1026
      %v1811 = vmul.f32 %v1028, %v1028
      %v1812 = vmul.f32 %v837, %v837
      %v1813 = vmul.f32 %v839, %v839
      %v1814 = vmul.f32 %v1030, %v1030
      %v1815 = vmul.f32 %v1032, %v1032
      %v1816 = vmul.f32 %v843, %v843
      %v1817 = vmul.f32 %v845, %v845
      %v1818 = vmul.f32 %v1036, %v1036
      %v1819 = vmul.f32 %v1038, %v1038
      %v1820 = vmul.f32 %v847, %v847
      %v1821 = vmul.f32 %v849, %v849
      %v1822 = vmul.f32 %v1040, %v1040
      %v1823 = vmul.f32 %v1042, %v1042
      %v1824 = vmul.f32 %v853, %v853
      %v1825 = vmul.f32 %v855, %v855
      %v1826 = vmul.f32 %v1046, %v1046
      %v1827 = vmul.f32 %v1048, %v1048
      %v1828 = vmul.f32 %v857, %v857
      %v1829 = vmul.f32 %v859, %v859
      %v1830 = vmul.f32 %v1050, %v1050
      %v1831 = vmul.f32 %v1052, %v1052
      %v1832 = vmul.f32 %v863, %v863
      %v1833 = vmul.f32 %v865, %v865
      %v1834 = vmul.f32 %v1056, %v1056
      %v1835 = vmul.f32 %v1058, %v1058
      %v1836 = vmul.f32 %v867, %v867
      %v1837 = vmul.f32 %v869, %v869
      %v1838 = vmul.f32 %v1060, %v1060
      %v1839 = vmul.f32 %v1062, %v1062
      %v1840 = vmul.f32 %v873, %v873
      %v1841 = vmul.f32 %v875, %v875
      %v1842 = vmul.f32 %v1066, %v1066
      %v1843 = vmul.f32 %v1068, %v1068
      %v1844 = vmul.f32 %v877, %v877
      %v1845 = vmul.f32 %v879, %v879
      %v1846 = vmul.f32 %v1070, %v1070
      %v1847 = vmul.f32 %v1072, %v1072
      %v1848 = vmul.f32 %v883, %v883
      %v1849 = vmul.f32 %v885, %v885
      %v1850 = vmul.f32 %v1076, %v1076
      %v1851 = vmul.f32 %v1078, %v1078
      %v1852 = vmul.f32 %v887, %v887
      %v1853 = vmul.f32 %v889, %v889
      %v1854 = vmul.f32 %v1080, %v1080
      %v1855 = vmul.f32 %v1082, %v1082
      %v1856 = vmul.f32 %v893, %v893
      %v1857 = vmul.f32 %v895, %v895
      %v1858 = vmul.f32 %v1086, %v1086
      %v1859 = vmul.f32 %v1088, %v1088
      %v1860 = vmul.f32 %v897, %v897
      %v1861 = vmul.f32 %v899, %v899
      %v1862 = vmul.f32 %v1090, %v1090
      %v1863 = vmul.f32 %v1092, %v1092
      %v1864 = vmul.f32 %v903, %v903
      %v1865 = vmul.f32 %v905, %v905
      %v1866 = vmul.f32 %v1096, %v1096
      %v1867 = vmul.f32 %v1098, %v1098
      %v1868 = vmul.f32 %v907, %v907
      %v1869 = vmul.f32 %v909, %v909
      %v1870 = vmul.f32 %v1100, %v1100
      %v1871 = vmul.f32 %v1102, %v1102
      %v1872 = vmul.f32 %v913, %v913
      %v1873 = vmul.f32 %v915, %v915
      %v1874 = vmul.f32 %v1106, %v1106
      %v1875 = vmul.f32 %v1108, %v1108
      %v1876 = vmul.f32 %v917, %v917
      %v1877 = vmul.f32 %v919, %v919
      %v1878 = vmul.f32 %v1110, %v1110
      %v1879 = vmul.f32 %v1112, %v1112
      %v1880 = vmul.f32 %v923, %v923
      %v1881 = vmul.f32 %v925, %v925
      %v1882 = vmul.f32 %v1116, %v1116
      %v1883 = vmul.f32 %v1118, %v1118
      %v1884 = vmul.f32 %v927, %v927
      %v1885 = vmul.f32 %v929, %v929
      %v1886 = vmul.f32 %v1120, %v1120
      %v1887 = vmul.f32 %v1122, %v1122
      %v1888 = vmul.f32 %v933, %v933
      %v1889 = vmul.f32 %v935, %v935
      %v1890 = vmul.f32 %v1126, %v1126
      %v1891 = vmul.f32 %v1128, %v1128
      %v1892 = vmul.f32 %v937, %v937
      %v1893 = vmul.f32 %v939, %v939
      %v1894 = vmul.f32 %v1130, %v1130
      %v1895 = vmul.f32 %v1132, %v1132
      %v1896 = vmul.f32 %v943, %v943
      %v1897 = vmul.f32 %v945, %v945
      %v1898 = vmul.f32 %v1136, %v1136
      %v1899 = vmul.f32 %v1138, %v1138
      %v1900 = vmul.f32 %v947, %v947
      %v1901 = vmul.f32 %v949, %v949
      %v1902 = vmul.f32 %v1140, %v1140
      %v1903 = vmul.f32 %v1142, %v1142
      %v1904 = vmul.f32 %v953, %v953
      %v1905 = vmul.f32 %v955, %v955
      %v1906 = vmul.f32 %v1146, %v1146
      %v1907 = vmul.f32 %v1148, %v1148
      %v1908 = vmul.f32 %v957, %v957
      %v1909 = vmul.f32 %v959, %v959
      %v1910 = vmul.f32 %v1150, %v1150
      %v1911 = vmul.f32 %v1152, %v1152
      %v1912 = vadd.f32 %v1784, %v1788
      %v1913 = vadd.f32 %v1912, %v1792
      %v1914 = vadd.f32 %v1913, %v1796
      %v1915 = vadd.f32 %v1914, %v1800
      %v1916 = vadd.f32 %v1915, %v1804
      %v1917 = vadd.f32 %v1916, %v1808
      %v1918 = vadd.f32 %v1917, %v1812
      %v1919 = vadd.f32 %v1918, %v1816
      %v1920 = vadd.f32 %v1919, %v1820
      %v1921 = vadd.f32 %v1920, %v1824
      %v1922 = vadd.f32 %v1921, %v1828
      %v1923 = vadd.f32 %v1922, %v1832
      %v1924 = vadd.f32 %v1923, %v1836
      %v1925 = vadd.f32 %v1924, %v1840
      %v1926 = vadd.f32 %v1925, %v1844
      %v1927 = vadd.f32 %v1926, %v1848
      %v1928 = vadd.f32 %v1927, %v1852
      %v1929 = vadd.f32 %v1928, %v1856
      %v1930 = vadd.f32 %v1929, %v1860
      %v1931 = vadd.f32 %v1930, %v1864
      %v1932 = vadd.f32 %v1931, %v1868
      %v1933 = vadd.f32 %v1932, %v1872
      %v1934 = vadd.f32 %v1933, %v1876
      %v1935 = vadd.f32 %v1934, %v1880
      %v1936 = vadd.f32 %v1935, %v1884
      %v1937 = vadd.f32 %v1936, %v1888
      %v1938 = vadd.f32 %v1937, %v1892
      %v1939 = vadd.f32 %v1938, %v1896
      %v1940 = vadd.f32 %v1939, %v1900
      %v1941 = vadd.f32 %v1940, %v1904
      %v1942 = vadd.f32 %v1941, %v1908
      %v1943 = vrot.slane %v1942, 4
      %v1944 = vadd.f32 %v1942, %v1943
      %v1945 = vrot.slane %v1944, 2
      %v1946 = vadd.f32 %v1944, %v1945
      %v1947 = vrot.slane %v1946, 1
      %v1948 = vadd.f32 %v1946, %v1947
      %v1949 = vadd.f32 %v1785, %v1789
      %v1950 = vadd.f32 %v1949, %v1793
      %v1951 = vadd.f32 %v1950, %v1797
      %v1952 = vadd.f32 %v1951, %v1801
      %v1953 = vadd.f32 %v1952, %v1805
      %v1954 = vadd.f32 %v1953, %v1809
      %v1955 = vadd.f32 %v1954, %v1813
      %v1956 = vadd.f32 %v1955, %v1817
      %v1957 = vadd.f32 %v1956, %v1821
      %v1958 = vadd.f32 %v1957, %v1825
      %v1959 = vadd.f32 %v1958, %v1829
      %v1960 = vadd.f32 %v1959, %v1833
      %v1961 = vadd.f32 %v1960, %v1837
      %v1962 = vadd.f32 %v1961, %v1841
      %v1963 = vadd.f32 %v1962, %v1845
      %v1964 = vadd.f32 %v1963, %v1849
      %v1965 = vadd.f32 %v1964, %v1853
      %v1966 = vadd.f32 %v1965, %v1857
      %v1967 = vadd.f32 %v1966, %v1861
      %v1968 = vadd.f32 %v1967, %v1865
      %v1969 = vadd.f32 %v1968, %v1869
      %v1970 = vadd.f32 %v1969, %v1873
      %v1971 = vadd.f32 %v1970, %v1877
      %v1972 = vadd.f32 %v1971, %v1881
      %v1973 = vadd.f32 %v1972, %v1885
      %v1974 = vadd.f32 %v1973, %v1889
      %v1975 = vadd.f32 %v1974, %v1893
      %v1976 = vadd.f32 %v1975, %v1897
      %v1977 = vadd.f32 %v1976, %v1901
      %v1978 = vadd.f32 %v1977, %v1905
      %v1979 = vadd.f32 %v1978, %v1909
      %v1980 = vrot.slane %v1979, 4
      %v1981 = vadd.f32 %v1979, %v1980
      %v1982 = vrot.slane %v1981, 2
      %v1983 = vadd.f32 %v1981, %v1982
      %v1984 = vrot.slane %v1983, 1
      %v1985 = vadd.f32 %v1983, %v1984
      %v1986 = vadd.f32 %v1786, %v1790
      %v1987 = vadd.f32 %v1986, %v1794
      %v1988 = vadd.f32 %v1987, %v1798
      %v1989 = vadd.f32 %v1988, %v1802
      %v1990 = vadd.f32 %v1989, %v1806
      %v1991 = vadd.f32 %v1990, %v1810
      %v1992 = vadd.f32 %v1991, %v1814
      %v1993 = vadd.f32 %v1992, %v1818
      %v1994 = vadd.f32 %v1993, %v1822
      %v1995 = vadd.f32 %v1994, %v1826
      %v1996 = vadd.f32 %v1995, %v1830
      %v1997 = vadd.f32 %v1996, %v1834
      %v1998 = vadd.f32 %v1997, %v1838
      %v1999 = vadd.f32 %v1998, %v1842
      %v2000 = vadd.f32 %v1999, %v1846
      %v2001 = vadd.f32 %v2000, %v1850
      %v2002 = vadd.f32 %v2001, %v1854
      %v2003 = vadd.f32 %v2002, %v1858
      %v2004 = vadd.f32 %v2003, %v1862
      %v2005 = vadd.f32 %v2004, %v1866
      %v2006 = vadd.f32 %v2005, %v1870
      %v2007 = vadd.f32 %v2006, %v1874
      %v2008 = vadd.f32 %v2007, %v1878
      %v2009 = vadd.f32 %v2008, %v1882
      %v2010 = vadd.f32 %v2009, %v1886
      %v2011 = vadd.f32 %v2010, %v1890
      %v2012 = vadd.f32 %v2011, %v1894
      %v2013 = vadd.f32 %v2012, %v1898
      %v2014 = vadd.f32 %v2013, %v1902
      %v2015 = vadd.f32 %v2014, %v1906
      %v2016 = vadd.f32 %v2015, %v1910
      %v2017 = vrot.slane %v2016, 4
      %v2018 = vadd.f32 %v2016, %v2017
      %v2019 = vrot.slane %v2018, 2
      %v2020 = vadd.f32 %v2018, %v2019
      %v2021 = vrot.slane %v2020, 1
      %v2022 = vadd.f32 %v2020, %v2021
      %v2023 = vadd.f32 %v1787, %v1791
      %v2024 = vadd.f32 %v2023, %v1795
      %v2025 = vadd.f32 %v2024, %v1799
      %v2026 = vadd.f32 %v2025, %v1803
      %v2027 = vadd.f32 %v2026, %v1807
      %v2028 = vadd.f32 %v2027, %v1811
      %v2029 = vadd.f32 %v2028, %v1815
      %v2030 = vadd.f32 %v2029, %v1819
      %v2031 = vadd.f32 %v2030, %v1823
      %v2032 = vadd.f32 %v2031, %v1827
      %v2033 = vadd.f32 %v2032, %v1831
      %v2034 = vadd.f32 %v2033, %v1835
      %v2035 = vadd.f32 %v2034, %v1839
      %v2036 = vadd.f32 %v2035, %v1843
      %v2037 = vadd.f32 %v2036, %v1847
      %v2038 = vadd.f32 %v2037, %v1851
      %v2039 = vadd.f32 %v2038, %v1855
      %v2040 = vadd.f32 %v2039, %v1859
      %v2041 = vadd.f32 %v2040, %v1863
      %v2042 = vadd.f32 %v2041, %v1867
      %v2043 = vadd.f32 %v2042, %v1871
      %v2044 = vadd.f32 %v2043, %v1875
      %v2045 = vadd.f32 %v2044, %v1879
      %v2046 = vadd.f32 %v2045, %v1883
      %v2047 = vadd.f32 %v2046, %v1887
      %v2048 = vadd.f32 %v2047, %v1891
      %v2049 = vadd.f32 %v2048, %v1895
      %v2050 = vadd.f32 %v2049, %v1899
      %v2051 = vadd.f32 %v2050, %v1903
      %v2052 = vadd.f32 %v2051, %v1907
      %v2053 = vadd.f32 %v2052, %v1911
      %v2054 = vrot.slane %v2053, 4
      %v2055 = vadd.f32 %v2053, %v2054
      %v2056 = vrot.slane %v2055, 2
      %v2057 = vadd.f32 %v2055, %v2056
      %v2058 = vrot.slane %v2057, 1
      %v2059 = vadd.f32 %v2057, %v2058
      %v2064 = vcombine.low %v1948, %v1985
      %v2065 = vcombine.low %v2022, %v2059
      %v2067 = vunpack.c.l.s4 1966171168
      %v2068 = vunpack.c.0.s8 %v2067
      %v2069 = vlaneseq
      %v2070 = vshrl.u32 %v2069, 7
      %v2071 = vsub.s32 %v2068, %v2070
      %v2072 = vrot.slane %v2064, %v2071
      %v2074 = vunpack.c.l.s4 1966171168
      %v2075 = vunpack.c.0.s8 %v2074
      %v2076 = vlaneseq
      %v2077 = vshrl.u32 %v2076, 7
      %v2078 = vsub.s32 %v2075, %v2077
      %v2079 = vrot.slane %v2065, %v2078
      %v2080 = vcombine.low %v2072, %v2079
      %v2082 = vunpack.c.l.s4 1966171168
      %v2083 = vunpack.c.0.s8 %v2082
      %v2084 = vlaneseq
      %v2085 = vshrl.u32 %v2084, 7
      %v2086 = vsub.s32 %v2083, %v2085
      %v2087 = vrot.slane %v2080, %v2086
      %s2089 = scalar_lea.vmem %s191, 1
      %2090 = vst.msk [vmem:[%s2089] ss:$2 sm:$0xf] %vm1782, %v2087
      %s2091 = smul.u32 32, %s15
      %p2092 = scmp.lt.s32.totalorder %s2091, 63
      %s2093 = scalar_select %p2092, %s2091, 63
      %s2094 = smul.addr %s2093, 4
      %s2095 = smul.addr %s2094, 4
      %s2096 = scalar_lea.vmem %s2, %s2095
      %p2097 = scmp.lt.s32.totalorder %s15, 1
      %s2098 = scalar_select %p2097, %s15, 1
      %s2099 = smul.addr %s2098, 4
      %s2100 = smul.addr %s2099, 2
      %s2101 = scalar_lea.vmem %s3, %s2100
      // Predicated region
      $region29: #{double_conv_pallas.4} parent=27 // pred_check
        %p2102 = pneg %p80
      $region30: #{double_conv_pallas.4} parent=27 // pred_check_branch
        %2104 = sbr.rel (%p2102) target = $region32
      $region31: #{double_conv_pallas.4} parent=27 // pred_region
        %s2105 = smul.u32 32, %s15
      $region32: #{double_conv_pallas.4} parent=27 // pred_fallthru
        _
      // Predicated region
      $region33: #{double_conv_pallas.4} parent=27 // pred_check
        %p2106 = pneg %p106
      $region34: #{double_conv_pallas.4} parent=27 // pred_check_branch
        %2108 = sbr.rel (%p2106) target = $region36
      $region35: #{double_conv_pallas.4} parent=27 // pred_region
        _
      $region36: #{double_conv_pallas.4} parent=27 // pred_fallthru
        _
    $region28: #{double_conv_pallas.4} parent=5 // pred_fallthru
      _
    %p2109 = scmp.le.s32.totalorder 2, %s10
    // Predicated region
    $region37: #{double_conv_pallas.4} parent=5 // pred_check
      %p2110 = pneg %p2109
    $region38: #{double_conv_pallas.4} parent=5 // pred_check_branch
      %2112 = sbr.rel (%p2110) target = $region40
    $region39: #{double_conv_pallas.4} parent=5 // pred_region
      %s2113 = ssub.s32 %s10, 2
      // Predicated region
      $region41: #{double_conv_pallas.4} parent=39 // pred_check
        %p2114 = pneg %p86
      $region42: #{double_conv_pallas.4} parent=39 // pred_check_branch
        %2116 = sbr.rel (%p2114) target = $region44
      $region43: #{double_conv_pallas.4} parent=39 // pred_region
        %s2117 = smul.u32 32, %s16
        %p2118 = scmp.lt.s32.totalorder %s2117, 63
        %s2119 = scalar_select %p2118, %s2117, 63
        %s2120 = smul.addr %s2119, 4
        %s2121 = smul.addr %s2120, 4
        %s2122 = scalar_lea.vmem %s2, %s2121
      $region44: #{double_conv_pallas.4} parent=39 // pred_fallthru
        _
      // Predicated region
      $region45: #{double_conv_pallas.4} parent=39 // pred_check
        %p2123 = pneg %p112
      $region46: #{double_conv_pallas.4} parent=39 // pred_check_branch
        %2125 = sbr.rel (%p2123) target = $region48
      $region47: #{double_conv_pallas.4} parent=39 // pred_region
        %p2126 = scmp.lt.s32.totalorder %s16, 1
        %s2127 = scalar_select %p2126, %s16, 1
        %s2128 = smul.addr %s2127, 4
        %s2129 = smul.addr %s2128, 2
        %s2130 = scalar_lea.vmem %s3, %s2129
      $region48: #{double_conv_pallas.4} parent=39 // pred_fallthru
        _
    $region40: #{double_conv_pallas.4} parent=5 // pred_fallthru
      _
  $region6: #{double_conv_pallas.4} parent=0 // loop_footer
    %s14 = sadd.s32 1, %s10
  $region7: #{double_conv_pallas.4} parent=0 // loop_footer_branch
    %9 = sbr.rel target = $region3
  $region8: #{double_conv_pallas.4} parent=0 // loop_exit
    _

// kernel: double_conv_pallas.6
$region0: #{double_conv_pallas.6}
  #allocation0 [shape = 'u32[]', space=smem, size = 0x4, offset = 0x4, fixed_abs, tag = 'smem constant byte address 0x4 - core index']
  #allocation1 [shape = 'u32[144,128]{1,0:T(1,128)}', space=vmem, size = 0x12000, scoped, tag = 'internal scratch']
  %s0 = inlined_call_operand.vmem [shape: bf16[512,512], index: 0, kind: input, shape index: {}]
  %s1 = inlined_call_operand.vmem [shape: bf16[512,512], index: 1, kind: input, shape index: {}]
  %s2 = inlined_call_operand.vmem [shape: bf16[512,512], index: 2, kind: output, shape index: {0}]
  %s3 = inlined_call_operand.vmem [shape: f32[2,2,512], index: 3, kind: output, shape index: {1}]
  %4 = xla_tuple %s2, %s3
  %s5 = sld [smem:[#allocation0]]
  $region49: #{double_conv_pallas.6} parent=0
    _
  %s7 = ssub.s32 1, %s5
  %s8 = scalar_select 0, %s7, %s5
  loop: start=0, step=1, limit=4
  $region2: #{double_conv_pallas.6} parent=0 // loop_pre_header
    _
  $region3: #{double_conv_pallas.6} parent=0 // loop_header
    %s10 = sphi 0, %s14
    %p11 = scmp.ge.s32.totalorder %s10, 4
    %s20 = sphi 0, %s22
    %s23 = sphi 0, %s20
    %s24 = sphi 0, %s23
    %s40 = sphi 0, %s24
    %s44 = sphi 0, %s44
    %s46 = sphi 0, %s44
    %s47 = sphi 0, %s46
    %s61 = sphi 0, %s47
    %s67 = sphi 0, %s69
    %s70 = sphi 0, %s67
    %s71 = sphi 0, %s70
    %s87 = sphi 0, %s71
    %s93 = sphi 0, %s95
    %s96 = sphi 0, %s93
    %s97 = sphi 0, %s96
    %s113 = sphi 0, %s97
  $region4: #{double_conv_pallas.6} parent=0 // loop_header_branch
    %13 = sbr.rel (%p11) target = $region8
  $region5: #{double_conv_pallas.6} parent=0 // loop_body
    %s15 = ssub.s32 %s10, 1
    %s16 = ssub.s32 %s10, 2
    %s17 = sadd.s32 %s10, 1
    %s18 = ssub.s32 %s10, %s17
    %p19 = scmp.eq.s32.totalorder %s18, 0
    %s21 = sadd.s32 %s20, 1
    %s22 = scalar_select %p19, %s20, %s21
    %p25 = pneg %p19
    %p26 = scmp.eq.s32.totalorder %s10, 1
    %p27 = por %p25, %p26
    %p28 = scmp.ne.s32.totalorder %s20, %s23
    %p29 = scmp.eq.s32.totalorder %s10, 0
    %p30 = por %p28, %p29
    %p31 = scmp.ne.s32.totalorder %s20, %s23
    %p32 = scmp.eq.s32.totalorder %s15, 1
    %p33 = por %p31, %p32
    %p34 = scmp.ne.s32.totalorder %s23, %s24
    %p35 = scmp.eq.s32.totalorder %s15, 0
    %p36 = por %p34, %p35
    %p37 = scmp.ne.s32.totalorder %s23, %s24
    %p38 = scmp.eq.s32.totalorder %s16, 1
    %p39 = por %p37, %p38
    %p41 = scmp.ne.s32.totalorder %s24, %s40
    %p42 = scmp.eq.s32.totalorder %s16, 0
    %p43 = por %p41, %p42
    %s45 = sadd.s32 %s44, 1
    %p48 = scmp.eq.s32.totalorder %s10, 1
    %p49 = scmp.ne.s32.totalorder %s44, %s46
    %p50 = scmp.eq.s32.totalorder %s10, 0
    %p51 = por %p49, %p50
    %p52 = scmp.ne.s32.totalorder %s44, %s46
    %p53 = scmp.eq.s32.totalorder %s15, 1
    %p54 = por %p52, %p53
    %p55 = scmp.ne.s32.totalorder %s46, %s47
    %p56 = scmp.eq.s32.totalorder %s15, 0
    %p57 = por %p55, %p56
    %p58 = scmp.ne.s32.totalorder %s46, %s47
    %p59 = scmp.eq.s32.totalorder %s16, 1
    %p60 = por %p58, %p59
    %p62 = scmp.ne.s32.totalorder %s47, %s61
    %p63 = scmp.eq.s32.totalorder %s16, 0
    %p64 = por %p62, %p63
    %s65 = ssub.s32 %s10, %s17
    %p66 = scmp.eq.s32.totalorder %s65, 0
    %s68 = sadd.s32 %s67, 1
    %s69 = scalar_select %p66, %s67, %s68
    %p72 = pneg %p66
    %p73 = scmp.eq.s32.totalorder %s10, 1
    %p74 = por %p72, %p73
    %p75 = scmp.ne.s32.totalorder %s67, %s70
    %p76 = scmp.eq.s32.totalorder %s10, 0
    %p77 = por %p75, %p76
    %p78 = scmp.ne.s32.totalorder %s67, %s70
    %p79 = scmp.eq.s32.totalorder %s15, 1
    %p80 = por %p78, %p79
    %p81 = scmp.ne.s32.totalorder %s70, %s71
    %p82 = scmp.eq.s32.totalorder %s15, 0
    %p83 = por %p81, %p82
    %p84 = scmp.ne.s32.totalorder %s70, %s71
    %p85 = scmp.eq.s32.totalorder %s16, 1
    %p86 = por %p84, %p85
    %p88 = scmp.ne.s32.totalorder %s71, %s87
    %p89 = scmp.eq.s32.totalorder %s16, 0
    %p90 = por %p88, %p89
    %s91 = ssub.s32 %s10, %s17
    %p92 = scmp.eq.s32.totalorder %s91, 0
    %s94 = sadd.s32 %s93, 1
    %s95 = scalar_select %p92, %s93, %s94
    %p98 = pneg %p92
    %p99 = scmp.eq.s32.totalorder %s10, 1
    %p100 = por %p98, %p99
    %p101 = scmp.ne.s32.totalorder %s93, %s96
    %p102 = scmp.eq.s32.totalorder %s10, 0
    %p103 = por %p101, %p102
    %p104 = scmp.ne.s32.totalorder %s93, %s96
    %p105 = scmp.eq.s32.totalorder %s15, 1
    %p106 = por %p104, %p105
    %p107 = scmp.ne.s32.totalorder %s96, %s97
    %p108 = scmp.eq.s32.totalorder %s15, 0
    %p109 = por %p107, %p108
    %p110 = scmp.ne.s32.totalorder %s96, %s97
    %p111 = scmp.eq.s32.totalorder %s16, 1
    %p112 = por %p110, %p111
    %p114 = scmp.ne.s32.totalorder %s97, %s113
    %p115 = scmp.eq.s32.totalorder %s16, 0
    %p116 = por %p114, %p115
    %p117 = scmp.le.s32.totalorder 1, %s10
    %p118 = scmp.lt.s32.totalorder %s10, 3
    %p119 = pnand %p117, %p118
    %p120 = pneg %p119
    // Predicated region
    $region9: #{double_conv_pallas.6} parent=5 // pred_check
      _
    $region10: #{double_conv_pallas.6} parent=5 // pred_check_branch
      %122 = sbr.rel (%p119) target = $region12
    $region11: #{double_conv_pallas.6} parent=5 // pred_region
      %s123 = ssub.s32 %s10, 1
      // Predicated region
      $region13: #{double_conv_pallas.6} parent=11 // pred_check
        %p124 = pneg %p57
      $region14: #{double_conv_pallas.6} parent=11 // pred_check_branch
        %126 = sbr.rel (%p124) target = $region16
      $region15: #{double_conv_pallas.6} parent=11 // pred_region
        _
      $region16: #{double_conv_pallas.6} parent=11 // pred_fallthru
        _
    $region12: #{double_conv_pallas.6} parent=5 // pred_fallthru
      _
    %p127 = scmp.lt.s32.totalorder %s10, 2
    // Predicated region
    $region17: #{double_conv_pallas.6} parent=5 // pred_check
      %p128 = pneg %p127
    $region18: #{double_conv_pallas.6} parent=5 // pred_check_branch
      %130 = sbr.rel (%p128) target = $region20
    $region19: #{double_conv_pallas.6} parent=5 // pred_region
      // Predicated region
      $region21: #{double_conv_pallas.6} parent=19 // pred_check
        %p131 = pneg %p30
      $region22: #{double_conv_pallas.6} parent=19 // pred_check_branch
        %133 = sbr.rel (%p131) target = $region24
      $region23: #{double_conv_pallas.6} parent=19 // pred_region
        %s134 = smul.u32 32, %s10
        %p135 = scmp.lt.s32.totalorder %s134, 63
        %s136 = scalar_select %p135, %s134, 63
        %s137 = smul.addr %s136, 4
        %s138 = smul.addr %s137, 4
        %s139 = scalar_lea.vmem %s0, %s138
        %s140 = smul.u32 32, %s10
      $region24: #{double_conv_pallas.6} parent=19 // pred_fallthru
        _
    $region20: #{double_conv_pallas.6} parent=5 // pred_fallthru
      _
    %p141 = scmp.le.s32.totalorder 1, %s10
    %p142 = scmp.lt.s32.totalorder %s10, 3
    %p143 = pnand %p141, %p142
    %p144 = pneg %p143
    // Predicated region
    $region25: #{double_conv_pallas.6} parent=5 // pred_check
      _
    $region26: #{double_conv_pallas.6} parent=5 // pred_check_branch
      %146 = sbr.rel (%p143) target = $region28
    $region27: #{double_conv_pallas.6} parent=5 // pred_region
      %s147 = ssub.s32 %s10, 1
      %s148 = smul.u32 32, %s15
      %p149 = scmp.lt.s32.totalorder %s148, 63
      %s150 = scalar_select %p149, %s148, 63
      %s151 = smul.addr %s150, 4
      %s152 = smul.addr %s151, 4
      %s153 = scalar_lea.vmem %s0, %s152
      %p154 = pneg %p36
      %p155 = pneg %p33
      %p156 = pneg %p57
      %p157 = pneg %p54
      %p158 = pneg %p83
      %p159 = pneg %p80
      %s160 = smul.u32 32, %s15
      %p161 = scmp.lt.s32.totalorder %s160, 63
      %s162 = scalar_select %p161, %s160, 63
      %s163 = smul.addr %s162, 4
      %s164 = smul.addr %s163, 4
      %s165 = scalar_lea.vmem %s2, %s164
      %p166 = pneg %p109
      %p167 = pneg %p106
      %p168 = scmp.lt.s32.totalorder %s15, 1
      %s169 = scalar_select %p168, %s15, 1
      %s170 = smul.addr %s169, 4
      %s171 = smul.addr %s170, 2
      %s172 = scalar_lea.vmem %s3, %s171
      %s173 = smul.u32 32, %s15
      %p174 = scmp.lt.s32.totalorder %s173, 63
      %s175 = scalar_select %p174, %s173, 63
      %s176 = smul.addr %s175, 4
      %s177 = smul.addr %s176, 4
      %s178 = scalar_lea.vmem %s0, %s177
      %s179 = smul.u32 32, %s15
      %s180 = smul.u32 32, %s15
      %p181 = scmp.lt.s32.totalorder %s180, 63
      %s182 = scalar_select %p181, %s180, 63
      %s183 = smul.addr %s182, 4
      %s184 = smul.addr %s183, 4
      %s185 = scalar_lea.vmem %s2, %s184
      %s186 = smul.u32 32, %s15
      %p187 = scmp.lt.s32.totalorder %s15, 1
      %s188 = scalar_select %p187, %s15, 1
      %s189 = smul.addr %s188, 4
      %s190 = smul.addr %s189, 2
      %s191 = scalar_lea.vmem %s3, %s190
      %v192 = vld [vmem:[%s178] sm:$0xff]
      %v193 = vld [vmem:[%s178 + $0x8] sm:$0xff]
      %v194 = vld [vmem:[%s178 + $0x10] sm:$0xff]
      %v195 = vld [vmem:[%s178 + $0x18] sm:$0xff]
      %v196 = vld [vmem:[%s178 + $0x20] sm:$0xff]
      %v197 = vld [vmem:[%s178 + $0x28] sm:$0xff]
      %v198 = vld [vmem:[%s178 + $0x30] sm:$0xff]
      %v199 = vld [vmem:[%s178 + $0x38] sm:$0xff]
      %v200 = vld [vmem:[%s178 + $0x40] sm:$0xff]
      %v201 = vld [vmem:[%s178 + $0x48] sm:$0xff]
      %v202 = vld [vmem:[%s178 + $0x50] sm:$0xff]
      %v203 = vld [vmem:[%s178 + $0x58] sm:$0xff]
      %v204 = vld [vmem:[%s178 + $0x60] sm:$0xff]
      %v205 = vld [vmem:[%s178 + $0x68] sm:$0xff]
      %v206 = vld [vmem:[%s178 + $0x70] sm:$0xff]
      %v207 = vld [vmem:[%s178 + $0x78] sm:$0xff]
      %v208 = vld [vmem:[%s178 + $0x80] sm:$0xff]
      %v209 = vld [vmem:[%s178 + $0x88] sm:$0xff]
      %v210 = vld [vmem:[%s178 + $0x90] sm:$0xff]
      %v211 = vld [vmem:[%s178 + $0x98] sm:$0xff]
      %v212 = vld [vmem:[%s178 + $0xa0] sm:$0xff]
      %v213 = vld [vmem:[%s178 + $0xa8] sm:$0xff]
      %v214 = vld [vmem:[%s178 + $0xb0] sm:$0xff]
      %v215 = vld [vmem:[%s178 + $0xb8] sm:$0xff]
      %v216 = vld [vmem:[%s178 + $0xc0] sm:$0xff]
      %v217 = vld [vmem:[%s178 + $0xc8] sm:$0xff]
      %v218 = vld [vmem:[%s178 + $0xd0] sm:$0xff]
      %v219 = vld [vmem:[%s178 + $0xd8] sm:$0xff]
      %v220 = vld [vmem:[%s178 + $0xe0] sm:$0xff]
      %v221 = vld [vmem:[%s178 + $0xe8] sm:$0xff]
      %v222 = vld [vmem:[%s178 + $0xf0] sm:$0xff]
      %v223 = vld [vmem:[%s178 + $0xf8] sm:$0xff]
      %v224 = vld [vmem:[%s178 + $0x100] sm:$0xff]
      %v225 = vld [vmem:[%s178 + $0x108] sm:$0xff]
      %v226 = vld [vmem:[%s178 + $0x110] sm:$0xff]
      %v227 = vld [vmem:[%s178 + $0x118] sm:$0xff]
      %v228 = vld [vmem:[%s178 + $0x120] sm:$0xff]
      %v229 = vld [vmem:[%s178 + $0x128] sm:$0xff]
      %v230 = vld [vmem:[%s178 + $0x130] sm:$0xff]
      %v231 = vld [vmem:[%s178 + $0x138] sm:$0xff]
      %v232 = vld [vmem:[%s178 + $0x140] sm:$0xff]
      %v233 = vld [vmem:[%s178 + $0x148] sm:$0xff]
      %v234 = vld [vmem:[%s178 + $0x150] sm:$0xff]
      %v235 = vld [vmem:[%s178 + $0x158] sm:$0xff]
      %v236 = vld [vmem:[%s178 + $0x160] sm:$0xff]
      %v237 = vld [vmem:[%s178 + $0x168] sm:$0xff]
      %v238 = vld [vmem:[%s178 + $0x170] sm:$0xff]
      %v239 = vld [vmem:[%s178 + $0x178] sm:$0xff]
      %v240 = vld [vmem:[%s178 + $0x180] sm:$0xff]
      %v241 = vld [vmem:[%s178 + $0x188] sm:$0xff]
      %v242 = vld [vmem:[%s178 + $0x190] sm:$0xff]
      %v243 = vld [vmem:[%s178 + $0x198] sm:$0xff]
      %v244 = vld [vmem:[%s178 + $0x1a0] sm:$0xff]
      %v245 = vld [vmem:[%s178 + $0x1a8] sm:$0xff]
      %v246 = vld [vmem:[%s178 + $0x1b0] sm:$0xff]
      %v247 = vld [vmem:[%s178 + $0x1b8] sm:$0xff]
      %v248 = vld [vmem:[%s178 + $0x1c0] sm:$0xff]
      %v249 = vld [vmem:[%s178 + $0x1c8] sm:$0xff]
      %v250 = vld [vmem:[%s178 + $0x1d0] sm:$0xff]
      %v251 = vld [vmem:[%s178 + $0x1d8] sm:$0xff]
      %v252 = vld [vmem:[%s178 + $0x1e0] sm:$0xff]
      %v253 = vld [vmem:[%s178 + $0x1e8] sm:$0xff]
      %v254 = vld [vmem:[%s178 + $0x1f0] sm:$0xff]
      %v255 = vld [vmem:[%s178 + $0x1f8] sm:$0xff]
      %v256 = vld [vmem:[%s1] sm:$0xff]
      %v257 = vld [vmem:[%s1 + $0x8] sm:$0xff]
      %v258 = vld [vmem:[%s1 + $0x10] sm:$0xff]
      %v259 = vld [vmem:[%s1 + $0x18] sm:$0xff]
      %v260 = vld [vmem:[%s1 + $0x20] sm:$0xff]
      %v261 = vld [vmem:[%s1 + $0x28] sm:$0xff]
      %v262 = vld [vmem:[%s1 + $0x30] sm:$0xff]
      %v263 = vld [vmem:[%s1 + $0x38] sm:$0xff]
      %v264 = vld [vmem:[%s1 + $0x40] sm:$0xff]
      %v265 = vld [vmem:[%s1 + $0x48] sm:$0xff]
      %v266 = vld [vmem:[%s1 + $0x50] sm:$0xff]
      %v267 = vld [vmem:[%s1 + $0x58] sm:$0xff]
      %v268 = vld [vmem:[%s1 + $0x60] sm:$0xff]
      %v269 = vld [vmem:[%s1 + $0x68] sm:$0xff]
      %v270 = vld [vmem:[%s1 + $0x70] sm:$0xff]
      %v271 = vld [vmem:[%s1 + $0x78] sm:$0xff]
      %v272 = vld [vmem:[%s1 + $0x80] sm:$0xff]
      %v273 = vld [vmem:[%s1 + $0x88] sm:$0xff]
      %v274 = vld [vmem:[%s1 + $0x90] sm:$0xff]
      %v275 = vld [vmem:[%s1 + $0x98] sm:$0xff]
      %v276 = vld [vmem:[%s1 + $0xa0] sm:$0xff]
      %v277 = vld [vmem:[%s1 + $0xa8] sm:$0xff]
      %v278 = vld [vmem:[%s1 + $0xb0] sm:$0xff]
      %v279 = vld [vmem:[%s1 + $0xb8] sm:$0xff]
      %v280 = vld [vmem:[%s1 + $0xc0] sm:$0xff]
      %v281 = vld [vmem:[%s1 + $0xc8] sm:$0xff]
      %v282 = vld [vmem:[%s1 + $0xd0] sm:$0xff]
      %v283 = vld [vmem:[%s1 + $0xd8] sm:$0xff]
      %v284 = vld [vmem:[%s1 + $0xe0] sm:$0xff]
      %v285 = vld [vmem:[%s1 + $0xe8] sm:$0xff]
      %v286 = vld [vmem:[%s1 + $0xf0] sm:$0xff]
      %v287 = vld [vmem:[%s1 + $0xf8] sm:$0xff]
      %v288 = vld [vmem:[%s1 + $0x100] sm:$0xff]
      %v289 = vld [vmem:[%s1 + $0x108] sm:$0xff]
      %v290 = vld [vmem:[%s1 + $0x110] sm:$0xff]
      %v291 = vld [vmem:[%s1 + $0x118] sm:$0xff]
      %v292 = vld [vmem:[%s1 + $0x120] sm:$0xff]
      %v293 = vld [vmem:[%s1 + $0x128] sm:$0xff]
      %v294 = vld [vmem:[%s1 + $0x130] sm:$0xff]
      %v295 = vld [vmem:[%s1 + $0x138] sm:$0xff]
      %v296 = vld [vmem:[%s1 + $0x140] sm:$0xff]
      %v297 = vld [vmem:[%s1 + $0x148] sm:$0xff]
      %v298 = vld [vmem:[%s1 + $0x150] sm:$0xff]
      %v299 = vld [vmem:[%s1 + $0x158] sm:$0xff]
      %v300 = vld [vmem:[%s1 + $0x160] sm:$0xff]
      %v301 = vld [vmem:[%s1 + $0x168] sm:$0xff]
      %v302 = vld [vmem:[%s1 + $0x170] sm:$0xff]
      %v303 = vld [vmem:[%s1 + $0x178] sm:$0xff]
      %v304 = vld [vmem:[%s1 + $0x180] sm:$0xff]
      %v305 = vld [vmem:[%s1 + $0x188] sm:$0xff]
      %v306 = vld [vmem:[%s1 + $0x190] sm:$0xff]
      %v307 = vld [vmem:[%s1 + $0x198] sm:$0xff]
      %v308 = vld [vmem:[%s1 + $0x1a0] sm:$0xff]
      %v309 = vld [vmem:[%s1 + $0x1a8] sm:$0xff]
      %v310 = vld [vmem:[%s1 + $0x1b0] sm:$0xff]
      %v311 = vld [vmem:[%s1 + $0x1b8] sm:$0xff]
      %v312 = vld [vmem:[%s1 + $0x1c0] sm:$0xff]
      %v313 = vld [vmem:[%s1 + $0x1c8] sm:$0xff]
      %v314 = vld [vmem:[%s1 + $0x1d0] sm:$0xff]
      %v315 = vld [vmem:[%s1 + $0x1d8] sm:$0xff]
      %v316 = vld [vmem:[%s1 + $0x1e0] sm:$0xff]
      %v317 = vld [vmem:[%s1 + $0x1e8] sm:$0xff]
      %v318 = vld [vmem:[%s1 + $0x1f0] sm:$0xff]
      %v319 = vld [vmem:[%s1 + $0x1f8] sm:$0xff]
      %v320 = vld [vmem:[%s1 + $0x200] sm:$0xff]
      %v321 = vld [vmem:[%s1 + $0x208] sm:$0xff]
      %v322 = vld [vmem:[%s1 + $0x210] sm:$0xff]
      %v323 = vld [vmem:[%s1 + $0x218] sm:$0xff]
      %v324 = vld [vmem:[%s1 + $0x220] sm:$0xff]
      %v325 = vld [vmem:[%s1 + $0x228] sm:$0xff]
      %v326 = vld [vmem:[%s1 + $0x230] sm:$0xff]
      %v327 = vld [vmem:[%s1 + $0x238] sm:$0xff]
      %v328 = vld [vmem:[%s1 + $0x240] sm:$0xff]
      %v329 = vld [vmem:[%s1 + $0x248] sm:$0xff]
      %v330 = vld [vmem:[%s1 + $0x250] sm:$0xff]
      %v331 = vld [vmem:[%s1 + $0x258] sm:$0xff]
      %v332 = vld [vmem:[%s1 + $0x260] sm:$0xff]
      %v333 = vld [vmem:[%s1 + $0x268] sm:$0xff]
      %v334 = vld [vmem:[%s1 + $0x270] sm:$0xff]
      %v335 = vld [vmem:[%s1 + $0x278] sm:$0xff]
      %v336 = vld [vmem:[%s1 + $0x280] sm:$0xff]
      %v337 = vld [vmem:[%s1 + $0x288] sm:$0xff]
      %v338 = vld [vmem:[%s1 + $0x290] sm:$0xff]
      %v339 = vld [vmem:[%s1 + $0x298] sm:$0xff]
      %v340 = vld [vmem:[%s1 + $0x2a0] sm:$0xff]
      %v341 = vld [vmem:[%s1 + $0x2a8] sm:$0xff]
      %v342 = vld [vmem:[%s1 + $0x2b0] sm:$0xff]
      %v343 = vld [vmem:[%s1 + $0x2b8] sm:$0xff]
      %v344 = vld [vmem:[%s1 + $0x2c0] sm:$0xff]
      %v345 = vld [vmem:[%s1 + $0x2c8] sm:$0xff]
      %v346 = vld [vmem:[%s1 + $0x2d0] sm:$0xff]
      %v347 = vld [vmem:[%s1 + $0x2d8] sm:$0xff]
      %v348 = vld [vmem:[%s1 + $0x2e0] sm:$0xff]
      %v349 = vld [vmem:[%s1 + $0x2e8] sm:$0xff]
      %v350 = vld [vmem:[%s1 + $0x2f0] sm:$0xff]
      %v351 = vld [vmem:[%s1 + $0x2f8] sm:$0xff]
      %v352 = vld [vmem:[%s1 + $0x300] sm:$0xff]
      %v353 = vld [vmem:[%s1 + $0x308] sm:$0xff]
      %v354 = vld [vmem:[%s1 + $0x310] sm:$0xff]
      %v355 = vld [vmem:[%s1 + $0x318] sm:$0xff]
      %v356 = vld [vmem:[%s1 + $0x320] sm:$0xff]
      %v357 = vld [vmem:[%s1 + $0x328] sm:$0xff]
      %v358 = vld [vmem:[%s1 + $0x330] sm:$0xff]
      %v359 = vld [vmem:[%s1 + $0x338] sm:$0xff]
      %v360 = vld [vmem:[%s1 + $0x340] sm:$0xff]
      %v361 = vld [vmem:[%s1 + $0x348] sm:$0xff]
      %v362 = vld [vmem:[%s1 + $0x350] sm:$0xff]
      %v363 = vld [vmem:[%s1 + $0x358] sm:$0xff]
      %v364 = vld [vmem:[%s1 + $0x360] sm:$0xff]
      %v365 = vld [vmem:[%s1 + $0x368] sm:$0xff]
      %v366 = vld [vmem:[%s1 + $0x370] sm:$0xff]
      %v367 = vld [vmem:[%s1 + $0x378] sm:$0xff]
      %v368 = vld [vmem:[%s1 + $0x380] sm:$0xff]
      %v369 = vld [vmem:[%s1 + $0x388] sm:$0xff]
      %v370 = vld [vmem:[%s1 + $0x390] sm:$0xff]
      %v371 = vld [vmem:[%s1 + $0x398] sm:$0xff]
      %v372 = vld [vmem:[%s1 + $0x3a0] sm:$0xff]
      %v373 = vld [vmem:[%s1 + $0x3a8] sm:$0xff]
      %v374 = vld [vmem:[%s1 + $0x3b0] sm:$0xff]
      %v375 = vld [vmem:[%s1 + $0x3b8] sm:$0xff]
      %v376 = vld [vmem:[%s1 + $0x3c0] sm:$0xff]
      %v377 = vld [vmem:[%s1 + $0x3c8] sm:$0xff]
      %v378 = vld [vmem:[%s1 + $0x3d0] sm:$0xff]
      %v379 = vld [vmem:[%s1 + $0x3d8] sm:$0xff]
      %v380 = vld [vmem:[%s1 + $0x3e0] sm:$0xff]
      %v381 = vld [vmem:[%s1 + $0x3e8] sm:$0xff]
      %v382 = vld [vmem:[%s1 + $0x3f0] sm:$0xff]
      %v383 = vld [vmem:[%s1 + $0x3f8] sm:$0xff]
      %v448 = vunpack.c.l.b16 %v192
      %v449 = vunpack.c.h.b16 %v192
      %v450 = vunpack.c.l.b16 %v193
      %v451 = vunpack.c.h.b16 %v193
      %v452 = vunpack.c.l.b16 %v194
      %v453 = vunpack.c.h.b16 %v194
      %v454 = vunpack.c.l.b16 %v195
      %v455 = vunpack.c.h.b16 %v195
      %v456 = vunpack.c.l.b16 %v196
      %v457 = vunpack.c.h.b16 %v196
      %v458 = vunpack.c.l.b16 %v197
      %v459 = vunpack.c.h.b16 %v197
      %v460 = vunpack.c.l.b16 %v198
      %v461 = vunpack.c.h.b16 %v198
      %v462 = vunpack.c.l.b16 %v199
      %v463 = vunpack.c.h.b16 %v199
      %v464 = vunpack.c.l.b16 %v200
      %v465 = vunpack.c.h.b16 %v200
      %v466 = vunpack.c.l.b16 %v201
      %v467 = vunpack.c.h.b16 %v201
      %v468 = vunpack.c.l.b16 %v202
      %v469 = vunpack.c.h.b16 %v202
      %v470 = vunpack.c.l.b16 %v203
      %v471 = vunpack.c.h.b16 %v203
      %v472 = vunpack.c.l.b16 %v204
      %v473 = vunpack.c.h.b16 %v204
      %v474 = vunpack.c.l.b16 %v205
      %v475 = vunpack.c.h.b16 %v205
      %v476 = vunpack.c.l.b16 %v206
      %v477 = vunpack.c.h.b16 %v206
      %v478 = vunpack.c.l.b16 %v207
      %v479 = vunpack.c.h.b16 %v207
      %v480 = vunpack.c.l.b16 %v208
      %v481 = vunpack.c.h.b16 %v208
      %v482 = vunpack.c.l.b16 %v209
      %v483 = vunpack.c.h.b16 %v209
      %v484 = vunpack.c.l.b16 %v210
      %v485 = vunpack.c.h.b16 %v210
      %v486 = vunpack.c.l.b16 %v211
      %v487 = vunpack.c.h.b16 %v211
      %v488 = vunpack.c.l.b16 %v212
      %v489 = vunpack.c.h.b16 %v212
      %v490 = vunpack.c.l.b16 %v213
      %v491 = vunpack.c.h.b16 %v213
      %v492 = vunpack.c.l.b16 %v214
      %v493 = vunpack.c.h.b16 %v214
      %v494 = vunpack.c.l.b16 %v215
      %v495 = vunpack.c.h.b16 %v215
      %v496 = vunpack.c.l.b16 %v216
      %v497 = vunpack.c.h.b16 %v216
      %v498 = vunpack.c.l.b16 %v217
      %v499 = vunpack.c.h.b16 %v217
      %v500 = vunpack.c.l.b16 %v218
      %v501 = vunpack.c.h.b16 %v218
      %v502 = vunpack.c.l.b16 %v219
      %v503 = vunpack.c.h.b16 %v219
      %v504 = vunpack.c.l.b16 %v220
      %v505 = vunpack.c.h.b16 %v220
      %v506 = vunpack.c.l.b16 %v221
      %v507 = vunpack.c.h.b16 %v221
      %v508 = vunpack.c.l.b16 %v222
      %v509 = vunpack.c.h.b16 %v222
      %v510 = vunpack.c.l.b16 %v223
      %v511 = vunpack.c.h.b16 %v223
      %v512 = vunpack.c.l.b16 %v224
      %v513 = vunpack.c.h.b16 %v224
      %v514 = vunpack.c.l.b16 %v225
      %v515 = vunpack.c.h.b16 %v225
      %v516 = vunpack.c.l.b16 %v226
      %v517 = vunpack.c.h.b16 %v226
      %v518 = vunpack.c.l.b16 %v227
      %v519 = vunpack.c.h.b16 %v227
      %v520 = vunpack.c.l.b16 %v228
      %v521 = vunpack.c.h.b16 %v228
      %v522 = vunpack.c.l.b16 %v229
      %v523 = vunpack.c.h.b16 %v229
      %v524 = vunpack.c.l.b16 %v230
      %v525 = vunpack.c.h.b16 %v230
      %v526 = vunpack.c.l.b16 %v231
      %v527 = vunpack.c.h.b16 %v231
      %v528 = vunpack.c.l.b16 %v232
      %v529 = vunpack.c.h.b16 %v232
      %v530 = vunpack.c.l.b16 %v233
      %v531 = vunpack.c.h.b16 %v233
      %v532 = vunpack.c.l.b16 %v234
      %v533 = vunpack.c.h.b16 %v234
      %v534 = vunpack.c.l.b16 %v235
      %v535 = vunpack.c.h.b16 %v235
      %v536 = vunpack.c.l.b16 %v236
      %v537 = vunpack.c.h.b16 %v236
      %v538 = vunpack.c.l.b16 %v237
      %v539 = vunpack.c.h.b16 %v237
      %v540 = vunpack.c.l.b16 %v238
      %v541 = vunpack.c.h.b16 %v238
      %v542 = vunpack.c.l.b16 %v239
      %v543 = vunpack.c.h.b16 %v239
      %v544 = vunpack.c.l.b16 %v240
      %v545 = vunpack.c.h.b16 %v240
      %v546 = vunpack.c.l.b16 %v241
      %v547 = vunpack.c.h.b16 %v241
      %v548 = vunpack.c.l.b16 %v242
      %v549 = vunpack.c.h.b16 %v242
      %v550 = vunpack.c.l.b16 %v243
      %v551 = vunpack.c.h.b16 %v243
      %v552 = vunpack.c.l.b16 %v244
      %v553 = vunpack.c.h.b16 %v244
      %v554 = vunpack.c.l.b16 %v245
      %v555 = vunpack.c.h.b16 %v245
      %v556 = vunpack.c.l.b16 %v246
      %v557 = vunpack.c.h.b16 %v246
      %v558 = vunpack.c.l.b16 %v247
      %v559 = vunpack.c.h.b16 %v247
      %v560 = vunpack.c.l.b16 %v248
      %v561 = vunpack.c.h.b16 %v248
      %v562 = vunpack.c.l.b16 %v249
      %v563 = vunpack.c.h.b16 %v249
      %v564 = vunpack.c.l.b16 %v250
      %v565 = vunpack.c.h.b16 %v250
      %v566 = vunpack.c.l.b16 %v251
      %v567 = vunpack.c.h.b16 %v251
      %v568 = vunpack.c.l.b16 %v252
      %v569 = vunpack.c.h.b16 %v252
      %v570 = vunpack.c.l.b16 %v253
      %v571 = vunpack.c.h.b16 %v253
      %v572 = vunpack.c.l.b16 %v254
      %v573 = vunpack.c.h.b16 %v254
      %v574 = vunpack.c.l.b16 %v255
      %v575 = vunpack.c.h.b16 %v255
      %v576 = vpack.c.b16 %v452, %v448
      %v577 = vpack.c.b16 %v453, %v449
      %v578 = vpack.c.b16 %v454, %v450
      %v579 = vpack.c.b16 %v455, %v451
      %v580 = vpack.c.b16 %v460, %v456
      %v581 = vpack.c.b16 %v461, %v457
      %v582 = vpack.c.b16 %v462, %v458
      %v583 = vpack.c.b16 %v463, %v459
      %v584 = vpack.c.b16 %v468, %v464
      %v585 = vpack.c.b16 %v469, %v465
      %v586 = vpack.c.b16 %v470, %v466
      %v587 = vpack.c.b16 %v471, %v467
      %v588 = vpack.c.b16 %v476, %v472
      %v589 = vpack.c.b16 %v477, %v473
      %v590 = vpack.c.b16 %v478, %v474
      %v591 = vpack.c.b16 %v479, %v475
      %v592 = vpack.c.b16 %v484, %v480
      %v593 = vpack.c.b16 %v485, %v481
      %v594 = vpack.c.b16 %v486, %v482
      %v595 = vpack.c.b16 %v487, %v483
      %v596 = vpack.c.b16 %v492, %v488
      %v597 = vpack.c.b16 %v493, %v489
      %v598 = vpack.c.b16 %v494, %v490
      %v599 = vpack.c.b16 %v495, %v491
      %v600 = vpack.c.b16 %v500, %v496
      %v601 = vpack.c.b16 %v501, %v497
      %v602 = vpack.c.b16 %v502, %v498
      %v603 = vpack.c.b16 %v503, %v499
      %v604 = vpack.c.b16 %v508, %v504
      %v605 = vpack.c.b16 %v509, %v505
      %v606 = vpack.c.b16 %v510, %v506
      %v607 = vpack.c.b16 %v511, %v507
      %v608 = vpack.c.b16 %v516, %v512
      %v609 = vpack.c.b16 %v517, %v513
      %v610 = vpack.c.b16 %v518, %v514
      %v611 = vpack.c.b16 %v519, %v515
      %v612 = vpack.c.b16 %v524, %v520
      %v613 = vpack.c.b16 %v525, %v521
      %v614 = vpack.c.b16 %v526, %v522
      %v615 = vpack.c.b16 %v527, %v523
      %v616 = vpack.c.b16 %v532, %v528
      %v617 = vpack.c.b16 %v533, %v529
      %v618 = vpack.c.b16 %v534, %v530
      %v619 = vpack.c.b16 %v535, %v531
      %v620 = vpack.c.b16 %v540, %v536
      %v621 = vpack.c.b16 %v541, %v537
      %v622 = vpack.c.b16 %v542, %v538
      %v623 = vpack.c.b16 %v543, %v539
      %v624 = vpack.c.b16 %v548, %v544
      %v625 = vpack.c.b16 %v549, %v545
      %v626 = vpack.c.b16 %v550, %v546
      %v627 = vpack.c.b16 %v551, %v547
      %v628 = vpack.c.b16 %v556, %v552
      %v629 = vpack.c.b16 %v557, %v553
      %v630 = vpack.c.b16 %v558, %v554
      %v631 = vpack.c.b16 %v559, %v555
      %v632 = vpack.c.b16 %v564, %v560
      %v633 = vpack.c.b16 %v565, %v561
      %v634 = vpack.c.b16 %v566, %v562
      %v635 = vpack.c.b16 %v567, %v563
      %v636 = vpack.c.b16 %v572, %v568
      %v637 = vpack.c.b16 %v573, %v569
      %v638 = vpack.c.b16 %v574, %v570
      %v639 = vpack.c.b16 %v575, %v571
      %v832 = vunpack.c.l.b16 %v256
      %v833 = vunpack.c.h.b16 %v256
      %v834 = vunpack.c.l.b16 %v257
      %v835 = vunpack.c.h.b16 %v257
      %v836 = vunpack.c.l.b16 %v258
      %v837 = vunpack.c.h.b16 %v258
      %v838 = vunpack.c.l.b16 %v259
      %v839 = vunpack.c.h.b16 %v259
      %v840 = vunpack.c.l.b16 %v260
      %v841 = vunpack.c.h.b16 %v260
      %v842 = vunpack.c.l.b16 %v261
      %v843 = vunpack.c.h.b16 %v261
      %v844 = vunpack.c.l.b16 %v262
      %v845 = vunpack.c.h.b16 %v262
      %v846 = vunpack.c.l.b16 %v263
      %v847 = vunpack.c.h.b16 %v263
      %v848 = vunpack.c.l.b16 %v264
      %v849 = vunpack.c.h.b16 %v264
      %v850 = vunpack.c.l.b16 %v265
      %v851 = vunpack.c.h.b16 %v265
      %v852 = vunpack.c.l.b16 %v266
      %v853 = vunpack.c.h.b16 %v266
      %v854 = vunpack.c.l.b16 %v267
      %v855 = vunpack.c.h.b16 %v267
      %v856 = vunpack.c.l.b16 %v268
      %v857 = vunpack.c.h.b16 %v268
      %v858 = vunpack.c.l.b16 %v269
      %v859 = vunpack.c.h.b16 %v269
      %v860 = vunpack.c.l.b16 %v270
      %v861 = vunpack.c.h.b16 %v270
      %v862 = vunpack.c.l.b16 %v271
      %v863 = vunpack.c.h.b16 %v271
      %v864 = vunpack.c.l.b16 %v272
      %v865 = vunpack.c.h.b16 %v272
      %v866 = vunpack.c.l.b16 %v273
      %v867 = vunpack.c.h.b16 %v273
      %v868 = vunpack.c.l.b16 %v274
      %v869 = vunpack.c.h.b16 %v274
      %v870 = vunpack.c.l.b16 %v275
      %v871 = vunpack.c.h.b16 %v275
      %v872 = vunpack.c.l.b16 %v276
      %v873 = vunpack.c.h.b16 %v276
      %v874 = vunpack.c.l.b16 %v277
      %v875 = vunpack.c.h.b16 %v277
      %v876 = vunpack.c.l.b16 %v278
      %v877 = vunpack.c.h.b16 %v278
      %v878 = vunpack.c.l.b16 %v279
      %v879 = vunpack.c.h.b16 %v279
      %v880 = vunpack.c.l.b16 %v280
      %v881 = vunpack.c.h.b16 %v280
      %v882 = vunpack.c.l.b16 %v281
      %v883 = vunpack.c.h.b16 %v281
      %v884 = vunpack.c.l.b16 %v282
      %v885 = vunpack.c.h.b16 %v282
      %v886 = vunpack.c.l.b16 %v283
      %v887 = vunpack.c.h.b16 %v283
      %v888 = vunpack.c.l.b16 %v284
      %v889 = vunpack.c.h.b16 %v284
      %v890 = vunpack.c.l.b16 %v285
      %v891 = vunpack.c.h.b16 %v285
      %v892 = vunpack.c.l.b16 %v286
      %v893 = vunpack.c.h.b16 %v286
      %v894 = vunpack.c.l.b16 %v287
      %v895 = vunpack.c.h.b16 %v287
      %v896 = vunpack.c.l.b16 %v288
      %v897 = vunpack.c.h.b16 %v288
      %v898 = vunpack.c.l.b16 %v289
      %v899 = vunpack.c.h.b16 %v289
      %v900 = vunpack.c.l.b16 %v290
      %v901 = vunpack.c.h.b16 %v290
      %v902 = vunpack.c.l.b16 %v291
      %v903 = vunpack.c.h.b16 %v291
      %v904 = vunpack.c.l.b16 %v292
      %v905 = vunpack.c.h.b16 %v292
      %v906 = vunpack.c.l.b16 %v293
      %v907 = vunpack.c.h.b16 %v293
      %v908 = vunpack.c.l.b16 %v294
      %v909 = vunpack.c.h.b16 %v294
      %v910 = vunpack.c.l.b16 %v295
      %v911 = vunpack.c.h.b16 %v295
      %v912 = vunpack.c.l.b16 %v296
      %v913 = vunpack.c.h.b16 %v296
      %v914 = vunpack.c.l.b16 %v297
      %v915 = vunpack.c.h.b16 %v297
      %v916 = vunpack.c.l.b16 %v298
      %v917 = vunpack.c.h.b16 %v298
      %v918 = vunpack.c.l.b16 %v299
      %v919 = vunpack.c.h.b16 %v299
      %v920 = vunpack.c.l.b16 %v300
      %v921 = vunpack.c.h.b16 %v300
      %v922 = vunpack.c.l.b16 %v301
      %v923 = vunpack.c.h.b16 %v301
      %v924 = vunpack.c.l.b16 %v302
      %v925 = vunpack.c.h.b16 %v302
      %v926 = vunpack.c.l.b16 %v303
      %v927 = vunpack.c.h.b16 %v303
      %v928 = vunpack.c.l.b16 %v304
      %v929 = vunpack.c.h.b16 %v304
      %v930 = vunpack.c.l.b16 %v305
      %v931 = vunpack.c.h.b16 %v305
      %v932 = vunpack.c.l.b16 %v306
      %v933 = vunpack.c.h.b16 %v306
      %v934 = vunpack.c.l.b16 %v307
      %v935 = vunpack.c.h.b16 %v307
      %v936 = vunpack.c.l.b16 %v308
      %v937 = vunpack.c.h.b16 %v308
      %v938 = vunpack.c.l.b16 %v309
      %v939 = vunpack.c.h.b16 %v309
      %v940 = vunpack.c.l.b16 %v310
      %v941 = vunpack.c.h.b16 %v310
      %v942 = vunpack.c.l.b16 %v311
      %v943 = vunpack.c.h.b16 %v311
      %v944 = vunpack.c.l.b16 %v312
      %v945 = vunpack.c.h.b16 %v312
      %v946 = vunpack.c.l.b16 %v313
      %v947 = vunpack.c.h.b16 %v313
      %v948 = vunpack.c.l.b16 %v314
      %v949 = vunpack.c.h.b16 %v314
      %v950 = vunpack.c.l.b16 %v315
      %v951 = vunpack.c.h.b16 %v315
      %v952 = vunpack.c.l.b16 %v316
      %v953 = vunpack.c.h.b16 %v316
      %v954 = vunpack.c.l.b16 %v317
      %v955 = vunpack.c.h.b16 %v317
      %v956 = vunpack.c.l.b16 %v318
      %v957 = vunpack.c.h.b16 %v318
      %v958 = vunpack.c.l.b16 %v319
      %v959 = vunpack.c.h.b16 %v319
      %v960 = vunpack.c.l.b16 %v320
      %v961 = vunpack.c.h.b16 %v320
      %v962 = vunpack.c.l.b16 %v321
      %v963 = vunpack.c.h.b16 %v321
      %v964 = vunpack.c.l.b16 %v322
      %v965 = vunpack.c.h.b16 %v322
      %v966 = vunpack.c.l.b16 %v323
      %v967 = vunpack.c.h.b16 %v323
      %v968 = vunpack.c.l.b16 %v324
      %v969 = vunpack.c.h.b16 %v324
      %v970 = vunpack.c.l.b16 %v325
      %v971 = vunpack.c.h.b16 %v325
      %v972 = vunpack.c.l.b16 %v326
      %v973 = vunpack.c.h.b16 %v326
      %v974 = vunpack.c.l.b16 %v327
      %v975 = vunpack.c.h.b16 %v327
      %v976 = vunpack.c.l.b16 %v328
      %v977 = vunpack.c.h.b16 %v328
      %v978 = vunpack.c.l.b16 %v329
      %v979 = vunpack.c.h.b16 %v329
      %v980 = vunpack.c.l.b16 %v330
      %v981 = vunpack.c.h.b16 %v330
      %v982 = vunpack.c.l.b16 %v331
      %v983 = vunpack.c.h.b16 %v331
      %v984 = vunpack.c.l.b16 %v332
      %v985 = vunpack.c.h.b16 %v332
      %v986 = vunpack.c.l.b16 %v333
      %v987 = vunpack.c.h.b16 %v333
      %v988 = vunpack.c.l.b16 %v334
      %v989 = vunpack.c.h.b16 %v334
      %v990 = vunpack.c.l.b16 %v335
      %v991 = vunpack.c.h.b16 %v335
      %v992 = vunpack.c.l.b16 %v336
      %v993 = vunpack.c.h.b16 %v336
      %v994 = vunpack.c.l.b16 %v337
      %v995 = vunpack.c.h.b16 %v337
      %v996 = vunpack.c.l.b16 %v338
      %v997 = vunpack.c.h.b16 %v338
      %v998 = vunpack.c.l.b16 %v339
      %v999 = vunpack.c.h.b16 %v339
      %v1000 = vunpack.c.l.b16 %v340
      %v1001 = vunpack.c.h.b16 %v340
      %v1002 = vunpack.c.l.b16 %v341
      %v1003 = vunpack.c.h.b16 %v341
      %v1004 = vunpack.c.l.b16 %v342
      %v1005 = vunpack.c.h.b16 %v342
      %v1006 = vunpack.c.l.b16 %v343
      %v1007 = vunpack.c.h.b16 %v343
      %v1008 = vunpack.c.l.b16 %v344
      %v1009 = vunpack.c.h.b16 %v344
      %v1010 = vunpack.c.l.b16 %v345
      %v1011 = vunpack.c.h.b16 %v345
      %v1012 = vunpack.c.l.b16 %v346
      %v1013 = vunpack.c.h.b16 %v346
      %v1014 = vunpack.c.l.b16 %v347
      %v1015 = vunpack.c.h.b16 %v347
      %v1016 = vunpack.c.l.b16 %v348
      %v1017 = vunpack.c.h.b16 %v348
      %v1018 = vunpack.c.l.b16 %v349
      %v1019 = vunpack.c.h.b16 %v349
      %v1020 = vunpack.c.l.b16 %v350
      %v1021 = vunpack.c.h.b16 %v350
      %v1022 = vunpack.c.l.b16 %v351
      %v1023 = vunpack.c.h.b16 %v351
      %v1024 = vunpack.c.l.b16 %v352
      %v1025 = vunpack.c.h.b16 %v352
      %v1026 = vunpack.c.l.b16 %v353
      %v1027 = vunpack.c.h.b16 %v353
      %v1028 = vunpack.c.l.b16 %v354
      %v1029 = vunpack.c.h.b16 %v354
      %v1030 = vunpack.c.l.b16 %v355
      %v1031 = vunpack.c.h.b16 %v355
      %v1032 = vunpack.c.l.b16 %v356
      %v1033 = vunpack.c.h.b16 %v356
      %v1034 = vunpack.c.l.b16 %v357
      %v1035 = vunpack.c.h.b16 %v357
      %v1036 = vunpack.c.l.b16 %v358
      %v1037 = vunpack.c.h.b16 %v358
      %v1038 = vunpack.c.l.b16 %v359
      %v1039 = vunpack.c.h.b16 %v359
      %v1040 = vunpack.c.l.b16 %v360
      %v1041 = vunpack.c.h.b16 %v360
      %v1042 = vunpack.c.l.b16 %v361
      %v1043 = vunpack.c.h.b16 %v361
      %v1044 = vunpack.c.l.b16 %v362
      %v1045 = vunpack.c.h.b16 %v362
      %v1046 = vunpack.c.l.b16 %v363
      %v1047 = vunpack.c.h.b16 %v363
      %v1048 = vunpack.c.l.b16 %v364
      %v1049 = vunpack.c.h.b16 %v364
      %v1050 = vunpack.c.l.b16 %v365
      %v1051 = vunpack.c.h.b16 %v365
      %v1052 = vunpack.c.l.b16 %v366
      %v1053 = vunpack.c.h.b16 %v366
      %v1054 = vunpack.c.l.b16 %v367
      %v1055 = vunpack.c.h.b16 %v367
      %v1056 = vunpack.c.l.b16 %v368
      %v1057 = vunpack.c.h.b16 %v368
      %v1058 = vunpack.c.l.b16 %v369
      %v1059 = vunpack.c.h.b16 %v369
      %v1060 = vunpack.c.l.b16 %v370
      %v1061 = vunpack.c.h.b16 %v370
      %v1062 = vunpack.c.l.b16 %v371
      %v1063 = vunpack.c.h.b16 %v371
      %v1064 = vunpack.c.l.b16 %v372
      %v1065 = vunpack.c.h.b16 %v372
      %v1066 = vunpack.c.l.b16 %v373
      %v1067 = vunpack.c.h.b16 %v373
      %v1068 = vunpack.c.l.b16 %v374
      %v1069 = vunpack.c.h.b16 %v374
      %v1070 = vunpack.c.l.b16 %v375
      %v1071 = vunpack.c.h.b16 %v375
      %v1072 = vunpack.c.l.b16 %v376
      %v1073 = vunpack.c.h.b16 %v376
      %v1074 = vunpack.c.l.b16 %v377
      %v1075 = vunpack.c.h.b16 %v377
      %v1076 = vunpack.c.l.b16 %v378
      %v1077 = vunpack.c.h.b16 %v378
      %v1078 = vunpack.c.l.b16 %v379
      %v1079 = vunpack.c.h.b16 %v379
      %v1080 = vunpack.c.l.b16 %v380
      %v1081 = vunpack.c.h.b16 %v380
      %v1082 = vunpack.c.l.b16 %v381
      %v1083 = vunpack.c.h.b16 %v381
      %v1084 = vunpack.c.l.b16 %v382
      %v1085 = vunpack.c.h.b16 %v382
      %v1086 = vunpack.c.l.b16 %v383
      %v1087 = vunpack.c.h.b16 %v383
      %v1088 = vpack.c.b16 %v836, %v832
      %v1089 = vpack.c.b16 %v837, %v833
      %v1090 = vpack.c.b16 %v838, %v834
      %v1091 = vpack.c.b16 %v839, %v835
      %v1092 = vpack.c.b16 %v844, %v840
      %v1093 = vpack.c.b16 %v845, %v841
      %v1094 = vpack.c.b16 %v846, %v842
      %v1095 = vpack.c.b16 %v847, %v843
      %v1096 = vpack.c.b16 %v852, %v848
      %v1097 = vpack.c.b16 %v853, %v849
      %v1098 = vpack.c.b16 %v854, %v850
      %v1099 = vpack.c.b16 %v855, %v851
      %v1100 = vpack.c.b16 %v860, %v856
      %v1101 = vpack.c.b16 %v861, %v857
      %v1102 = vpack.c.b16 %v862, %v858
      %v1103 = vpack.c.b16 %v863, %v859
      %v1104 = vpack.c.b16 %v868, %v864
      %v1105 = vpack.c.b16 %v869, %v865
      %v1106 = vpack.c.b16 %v870, %v866
      %v1107 = vpack.c.b16 %v871, %v867
      %v1108 = vpack.c.b16 %v876, %v872
      %v1109 = vpack.c.b16 %v877, %v873
      %v1110 = vpack.c.b16 %v878, %v874
      %v1111 = vpack.c.b16 %v879, %v875
      %v1112 = vpack.c.b16 %v884, %v880
      %v1113 = vpack.c.b16 %v885, %v881
      %v1114 = vpack.c.b16 %v886, %v882
      %v1115 = vpack.c.b16 %v887, %v883
      %v1116 = vpack.c.b16 %v892, %v888
      %v1117 = vpack.c.b16 %v893, %v889
      %v1118 = vpack.c.b16 %v894, %v890
      %v1119 = vpack.c.b16 %v895, %v891
      %v1120 = vpack.c.b16 %v900, %v896
      %v1121 = vpack.c.b16 %v901, %v897
      %v1122 = vpack.c.b16 %v902, %v898
      %v1123 = vpack.c.b16 %v903, %v899
      %v1124 = vpack.c.b16 %v908, %v904
      %v1125 = vpack.c.b16 %v909, %v905
      %v1126 = vpack.c.b16 %v910, %v906
      %v1127 = vpack.c.b16 %v911, %v907
      %v1128 = vpack.c.b16 %v916, %v912
      %v1129 = vpack.c.b16 %v917, %v913
      %v1130 = vpack.c.b16 %v918, %v914
      %v1131 = vpack.c.b16 %v919, %v915
      %v1132 = vpack.c.b16 %v924, %v920
      %v1133 = vpack.c.b16 %v925, %v921
      %v1134 = vpack.c.b16 %v926, %v922
      %v1135 = vpack.c.b16 %v927, %v923
      %v1136 = vpack.c.b16 %v932, %v928
      %v1137 = vpack.c.b16 %v933, %v929
      %v1138 = vpack.c.b16 %v934, %v930
      %v1139 = vpack.c.b16 %v935, %v931
      %v1140 = vpack.c.b16 %v940, %v936
      %v1141 = vpack.c.b16 %v941, %v937
      %v1142 = vpack.c.b16 %v942, %v938
      %v1143 = vpack.c.b16 %v943, %v939
      %v1144 = vpack.c.b16 %v948, %v944
      %v1145 = vpack.c.b16 %v949, %v945
      %v1146 = vpack.c.b16 %v950, %v946
      %v1147 = vpack.c.b16 %v951, %v947
      %v1148 = vpack.c.b16 %v956, %v952
      %v1149 = vpack.c.b16 %v957, %v953
      %v1150 = vpack.c.b16 %v958, %v954
      %v1151 = vpack.c.b16 %v959, %v955
      %v1152 = vpack.c.b16 %v964, %v960
      %v1153 = vpack.c.b16 %v965, %v961
      %v1154 = vpack.c.b16 %v966, %v962
      %v1155 = vpack.c.b16 %v967, %v963
      %v1156 = vpack.c.b16 %v972, %v968
      %v1157 = vpack.c.b16 %v973, %v969
      %v1158 = vpack.c.b16 %v974, %v970
      %v1159 = vpack.c.b16 %v975, %v971
      %v1160 = vpack.c.b16 %v980, %v976
      %v1161 = vpack.c.b16 %v981, %v977
      %v1162 = vpack.c.b16 %v982, %v978
      %v1163 = vpack.c.b16 %v983, %v979
      %v1164 = vpack.c.b16 %v988, %v984
      %v1165 = vpack.c.b16 %v989, %v985
      %v1166 = vpack.c.b16 %v990, %v986
      %v1167 = vpack.c.b16 %v991, %v987
      %v1168 = vpack.c.b16 %v996, %v992
      %v1169 = vpack.c.b16 %v997, %v993
      %v1170 = vpack.c.b16 %v998, %v994
      %v1171 = vpack.c.b16 %v999, %v995
      %v1172 = vpack.c.b16 %v1004, %v1000
      %v1173 = vpack.c.b16 %v1005, %v1001
      %v1174 = vpack.c.b16 %v1006, %v1002
      %v1175 = vpack.c.b16 %v1007, %v1003
      %v1176 = vpack.c.b16 %v1012, %v1008
      %v1177 = vpack.c.b16 %v1013, %v1009
      %v1178 = vpack.c.b16 %v1014, %v1010
      %v1179 = vpack.c.b16 %v1015, %v1011
      %v1180 = vpack.c.b16 %v1020, %v1016
      %v1181 = vpack.c.b16 %v1021, %v1017
      %v1182 = vpack.c.b16 %v1022, %v1018
      %v1183 = vpack.c.b16 %v1023, %v1019
      %v1184 = vpack.c.b16 %v1028, %v1024
      %v1185 = vpack.c.b16 %v1029, %v1025
      %v1186 = vpack.c.b16 %v1030, %v1026
      %v1187 = vpack.c.b16 %v1031, %v1027
      %v1188 = vpack.c.b16 %v1036, %v1032
      %v1189 = vpack.c.b16 %v1037, %v1033
      %v1190 = vpack.c.b16 %v1038, %v1034
      %v1191 = vpack.c.b16 %v1039, %v1035
      %v1192 = vpack.c.b16 %v1044, %v1040
      %v1193 = vpack.c.b16 %v1045, %v1041
      %v1194 = vpack.c.b16 %v1046, %v1042
      %v1195 = vpack.c.b16 %v1047, %v1043
      %v1196 = vpack.c.b16 %v1052, %v1048
      %v1197 = vpack.c.b16 %v1053, %v1049
      %v1198 = vpack.c.b16 %v1054, %v1050
      %v1199 = vpack.c.b16 %v1055, %v1051
      %v1200 = vpack.c.b16 %v1060, %v1056
      %v1201 = vpack.c.b16 %v1061, %v1057
      %v1202 = vpack.c.b16 %v1062, %v1058
      %v1203 = vpack.c.b16 %v1063, %v1059
      %v1204 = vpack.c.b16 %v1068, %v1064
      %v1205 = vpack.c.b16 %v1069, %v1065
      %v1206 = vpack.c.b16 %v1070, %v1066
      %v1207 = vpack.c.b16 %v1071, %v1067
      %v1208 = vpack.c.b16 %v1076, %v1072
      %v1209 = vpack.c.b16 %v1077, %v1073
      %v1210 = vpack.c.b16 %v1078, %v1074
      %v1211 = vpack.c.b16 %v1079, %v1075
      %v1212 = vpack.c.b16 %v1084, %v1080
      %v1213 = vpack.c.b16 %v1085, %v1081
      %v1214 = vpack.c.b16 %v1086, %v1082
      %v1215 = vpack.c.b16 %v1087, %v1083
      %1344 = vmatprep.subr.bf16.mxu0 %v1117
      %1345 = vmatpush1.bf16.msra.mxu0 %v1116
      %1346 = vmatprep.subr.bf16.mxu0 %v1113
      %1347 = vmatpush1.bf16.msra.mxu0 %v1112
      %1348 = vmatprep.subr.bf16.mxu0 %v1109
      %1349 = vmatpush1.bf16.msra.mxu0 %v1108
      %1350 = vmatprep.subr.bf16.mxu0 %v1105
      %1351 = vmatpush1.bf16.msra.mxu0 %v1104
      %1352 = vmatprep.subr.bf16.mxu0 %v1101
      %1353 = vmatpush1.bf16.msra.mxu0 %v1100
      %1354 = vmatprep.subr.bf16.mxu0 %v1097
      %1355 = vmatpush1.bf16.msra.mxu0 %v1096
      %1356 = vmatprep.subr.bf16.mxu0 %v1093
      %1357 = vmatpush1.bf16.msra.mxu0 %v1092
      %1358 = vmatprep.subr.bf16.mxu0 %v1089
      %1359 = vmatpush1.bf16.msra.mxu0 %v1088
      %1360 = vmatprep.subr.bf16.mxu0 %v1149
      %1361 = vmatpush2.bf16.msra.mxu0 %v1148
      %1362 = vmatprep.subr.bf16.mxu0 %v1145
      %1363 = vmatpush2.bf16.msra.mxu0 %v1144
      %1364 = vmatprep.subr.bf16.mxu0 %v1141
      %1365 = vmatpush2.bf16.msra.mxu0 %v1140
      %1366 = vmatprep.subr.bf16.mxu0 %v1137
      %1367 = vmatpush2.bf16.msra.mxu0 %v1136
      %1368 = vmatprep.subr.bf16.mxu0 %v1133
      %1369 = vmatpush2.bf16.msra.mxu0 %v1132
      %1370 = vmatprep.subr.bf16.mxu0 %v1129
      %1371 = vmatpush2.bf16.msra.mxu0 %v1128
      %1372 = vmatprep.subr.bf16.mxu0 %v1125
      %1373 = vmatpush2.bf16.msra.mxu0 %v1124
      %1374 = vmatprep.subr.bf16.mxu0 %v1121
      %1375 = vmatpush2.bf16.msra.mxu0 %v1120
      %1376 = vmatprep.mubr.bf16.mxu0 %v577
      %1377 = vmatmul.mubr.bf16.gmra.mxu0 %v576
      %v1378 = vpop.f32.mrf.mxu0
      %v1379 = vadd.f32 0.0, %v1378
      %v1380 = vpop.f32.mrf.mxu0
      %v1381 = vadd.f32 0.0, %v1380
      %v1382 = vpop.f32.mrf.mxu0
      %v1383 = vadd.f32 0.0, %v1382
      %v1384 = vpop.f32.mrf.mxu0
      %v1385 = vadd.f32 0.0, %v1384
      %1386 = vmatprep.mubr.bf16.mxu0 %v581
      %1387 = vmatmul.mubr.bf16.gmra.mxu0 %v580
      %v1388 = vpop.f32.mrf.mxu0
      %v1389 = vadd.f32 0.0, %v1388
      %v1390 = vpop.f32.mrf.mxu0
      %v1391 = vadd.f32 0.0, %v1390
      %v1392 = vpop.f32.mrf.mxu0
      %v1393 = vadd.f32 0.0, %v1392
      %v1394 = vpop.f32.mrf.mxu0
      %v1395 = vadd.f32 0.0, %v1394
      %1396 = vmatprep.mubr.bf16.mxu0 %v585
      %1397 = vmatmul.mubr.bf16.gmra.mxu0 %v584
      %v1398 = vpop.f32.mrf.mxu0
      %v1399 = vadd.f32 0.0, %v1398
      %v1400 = vpop.f32.mrf.mxu0
      %v1401 = vadd.f32 0.0, %v1400
      %v1402 = vpop.f32.mrf.mxu0
      %v1403 = vadd.f32 0.0, %v1402
      %v1404 = vpop.f32.mrf.mxu0
      %v1405 = vadd.f32 0.0, %v1404
      %1406 = vmatprep.mubr.bf16.mxu0 %v589
      %1407 = vmatmul.mubr.bf16.gmra.mxu0 %v588
      %v1408 = vpop.f32.mrf.mxu0
      %v1409 = vadd.f32 0.0, %v1408
      %v1410 = vpop.f32.mrf.mxu0
      %v1411 = vadd.f32 0.0, %v1410
      %v1412 = vpop.f32.mrf.mxu0
      %v1413 = vadd.f32 0.0, %v1412
      %v1414 = vpop.f32.mrf.mxu0
      %v1415 = vadd.f32 0.0, %v1414
      %1416 = vmatprep.mubr.bf16.mxu0 %v593
      %1417 = vmatmul.mubr.bf16.gmra.mxu0 %v592
      %v1418 = vpop.f32.mrf.mxu0
      %v1419 = vadd.f32 0.0, %v1418
      %v1420 = vpop.f32.mrf.mxu0
      %v1421 = vadd.f32 0.0, %v1420
      %v1422 = vpop.f32.mrf.mxu0
      %v1423 = vadd.f32 0.0, %v1422
      %v1424 = vpop.f32.mrf.mxu0
      %v1425 = vadd.f32 0.0, %v1424
      %1426 = vmatprep.mubr.bf16.mxu0 %v597
      %1427 = vmatmul.mubr.bf16.gmra.mxu0 %v596
      %v1428 = vpop.f32.mrf.mxu0
      %v1429 = vadd.f32 0.0, %v1428
      %v1430 = vpop.f32.mrf.mxu0
      %v1431 = vadd.f32 0.0, %v1430
      %v1432 = vpop.f32.mrf.mxu0
      %v1433 = vadd.f32 0.0, %v1432
      %v1434 = vpop.f32.mrf.mxu0
      %v1435 = vadd.f32 0.0, %v1434
      %1436 = vmatprep.mubr.bf16.mxu0 %v601
      %1437 = vmatmul.mubr.bf16.gmra.mxu0 %v600
      %v1438 = vpop.f32.mrf.mxu0
      %v1439 = vadd.f32 0.0, %v1438
      %v1440 = vpop.f32.mrf.mxu0
      %v1441 = vadd.f32 0.0, %v1440
      %v1442 = vpop.f32.mrf.mxu0
      %v1443 = vadd.f32 0.0, %v1442
      %v1444 = vpop.f32.mrf.mxu0
      %v1445 = vadd.f32 0.0, %v1444
      %1446 = vmatprep.mubr.bf16.mxu0 %v605
      %1447 = vmatmul.mubr.bf16.gmra.mxu0 %v604
      %v1448 = vpop.f32.mrf.mxu0
      %v1449 = vadd.f32 0.0, %v1448
      %v1450 = vpop.f32.mrf.mxu0
      %v1451 = vadd.f32 0.0, %v1450
      %v1452 = vpop.f32.mrf.mxu0
      %v1453 = vadd.f32 0.0, %v1452
      %v1454 = vpop.f32.mrf.mxu0
      %v1455 = vadd.f32 0.0, %v1454
      %1456 = vmatprep.mubr.bf16.mxu0 %v609
      %1457 = vmatmul.mubr.bf16.gmra.mxu0 %v608
      %v1458 = vpop.f32.mrf.mxu0
      %v1459 = vadd.f32 0.0, %v1458
      %v1460 = vpop.f32.mrf.mxu0
      %v1461 = vadd.f32 0.0, %v1460
      %v1462 = vpop.f32.mrf.mxu0
      %v1463 = vadd.f32 0.0, %v1462
      %v1464 = vpop.f32.mrf.mxu0
      %v1465 = vadd.f32 0.0, %v1464
      %1466 = vmatprep.mubr.bf16.mxu0 %v613
      %1467 = vmatmul.mubr.bf16.gmra.mxu0 %v612
      %v1468 = vpop.f32.mrf.mxu0
      %v1469 = vadd.f32 0.0, %v1468
      %v1470 = vpop.f32.mrf.mxu0
      %v1471 = vadd.f32 0.0, %v1470
      %v1472 = vpop.f32.mrf.mxu0
      %v1473 = vadd.f32 0.0, %v1472
      %v1474 = vpop.f32.mrf.mxu0
      %v1475 = vadd.f32 0.0, %v1474
      %1476 = vmatprep.mubr.bf16.mxu0 %v617
      %1477 = vmatmul.mubr.bf16.gmra.mxu0 %v616
      %v1478 = vpop.f32.mrf.mxu0
      %v1479 = vadd.f32 0.0, %v1478
      %v1480 = vpop.f32.mrf.mxu0
      %v1481 = vadd.f32 0.0, %v1480
      %v1482 = vpop.f32.mrf.mxu0
      %v1483 = vadd.f32 0.0, %v1482
      %v1484 = vpop.f32.mrf.mxu0
      %v1485 = vadd.f32 0.0, %v1484
      %1486 = vmatprep.mubr.bf16.mxu0 %v621
      %1487 = vmatmul.mubr.bf16.gmra.mxu0 %v620
      %v1488 = vpop.f32.mrf.mxu0
      %v1489 = vadd.f32 0.0, %v1488
      %v1490 = vpop.f32.mrf.mxu0
      %v1491 = vadd.f32 0.0, %v1490
      %v1492 = vpop.f32.mrf.mxu0
      %v1493 = vadd.f32 0.0, %v1492
      %v1494 = vpop.f32.mrf.mxu0
      %v1495 = vadd.f32 0.0, %v1494
      %1496 = vmatprep.mubr.bf16.mxu0 %v625
      %1497 = vmatmul.mubr.bf16.gmra.mxu0 %v624
      %v1498 = vpop.f32.mrf.mxu0
      %v1499 = vadd.f32 0.0, %v1498
      %v1500 = vpop.f32.mrf.mxu0
      %v1501 = vadd.f32 0.0, %v1500
      %v1502 = vpop.f32.mrf.mxu0
      %v1503 = vadd.f32 0.0, %v1502
      %v1504 = vpop.f32.mrf.mxu0
      %v1505 = vadd.f32 0.0, %v1504
      %1506 = vmatprep.mubr.bf16.mxu0 %v629
      %1507 = vmatmul.mubr.bf16.gmra.mxu0 %v628
      %v1508 = vpop.f32.mrf.mxu0
      %v1509 = vadd.f32 0.0, %v1508
      %v1510 = vpop.f32.mrf.mxu0
      %v1511 = vadd.f32 0.0, %v1510
      %v1512 = vpop.f32.mrf.mxu0
      %v1513 = vadd.f32 0.0, %v1512
      %v1514 = vpop.f32.mrf.mxu0
      %v1515 = vadd.f32 0.0, %v1514
      %1516 = vmatprep.mubr.bf16.mxu0 %v633
      %1517 = vmatmul.mubr.bf16.gmra.mxu0 %v632
      %v1518 = vpop.f32.mrf.mxu0
      %v1519 = vadd.f32 0.0, %v1518
      %v1520 = vpop.f32.mrf.mxu0
      %v1521 = vadd.f32 0.0, %v1520
      %v1522 = vpop.f32.mrf.mxu0
      %v1523 = vadd.f32 0.0, %v1522
      %v1524 = vpop.f32.mrf.mxu0
      %v1525 = vadd.f32 0.0, %v1524
      %1526 = vmatprep.mubr.bf16.mxu0 %v637
      %1527 = vmatmul.mubr.bf16.gmra.mxu0 %v636
      %v1528 = vpop.f32.mrf.mxu0
      %v1529 = vadd.f32 0.0, %v1528
      %v1530 = vpop.f32.mrf.mxu0
      %v1531 = vadd.f32 0.0, %v1530
      %v1532 = vpop.f32.mrf.mxu0
      %v1533 = vadd.f32 0.0, %v1532
      %v1534 = vpop.f32.mrf.mxu0
      %v1535 = vadd.f32 0.0, %v1534
      %1536 = vdwg.mxu0
      %1537 = vmatprep.subr.bf16.mxu0 %v1181
      %1538 = vmatpush1.bf16.msra.mxu0 %v1180
      %1539 = vmatprep.subr.bf16.mxu0 %v1177
      %1540 = vmatpush1.bf16.msra.mxu0 %v1176
      %1541 = vmatprep.subr.bf16.mxu0 %v1173
      %1542 = vmatpush1.bf16.msra.mxu0 %v1172
      %1543 = vmatprep.subr.bf16.mxu0 %v1169
      %1544 = vmatpush1.bf16.msra.mxu0 %v1168
      %1545 = vmatprep.subr.bf16.mxu0 %v1165
      %1546 = vmatpush1.bf16.msra.mxu0 %v1164
      %1547 = vmatprep.subr.bf16.mxu0 %v1161
      %1548 = vmatpush1.bf16.msra.mxu0 %v1160
      %1549 = vmatprep.subr.bf16.mxu0 %v1157
      %1550 = vmatpush1.bf16.msra.mxu0 %v1156
      %1551 = vmatprep.subr.bf16.mxu0 %v1153
      %1552 = vmatpush1.bf16.msra.mxu0 %v1152
      %1553 = vmatprep.subr.bf16.mxu0 %v1213
      %1554 = vmatpush2.bf16.msra.mxu0 %v1212
      %1555 = vmatprep.subr.bf16.mxu0 %v1209
      %1556 = vmatpush2.bf16.msra.mxu0 %v1208
      %1557 = vmatprep.subr.bf16.mxu0 %v1205
      %1558 = vmatpush2.bf16.msra.mxu0 %v1204
      %1559 = vmatprep.subr.bf16.mxu0 %v1201
      %1560 = vmatpush2.bf16.msra.mxu0 %v1200
      %1561 = vmatprep.subr.bf16.mxu0 %v1197
      %1562 = vmatpush2.bf16.msra.mxu0 %v1196
      %1563 = vmatprep.subr.bf16.mxu0 %v1193
      %1564 = vmatpush2.bf16.msra.mxu0 %v1192
      %1565 = vmatprep.subr.bf16.mxu0 %v1189
      %1566 = vmatpush2.bf16.msra.mxu0 %v1188
      %1567 = vmatprep.subr.bf16.mxu0 %v1185
      %1568 = vmatpush2.bf16.msra.mxu0 %v1184
      %1569 = vmatprep.mubr.bf16.mxu0 %v579
      %1570 = vmatmul.mubr.bf16.gmra.mxu0 %v578
      %v1571 = vpop.f32.mrf.mxu0
      %v1572 = vadd.f32 %v1379, %v1571
      %v1573 = vpop.f32.mrf.mxu0
      %v1574 = vadd.f32 %v1381, %v1573
      %v1575 = vpop.f32.mrf.mxu0
      %v1576 = vadd.f32 %v1383, %v1575
      %v1577 = vpop.f32.mrf.mxu0
      %v1578 = vadd.f32 %v1385, %v1577
      %1579 = vmatprep.mubr.bf16.mxu0 %v583
      %1580 = vmatmul.mubr.bf16.gmra.mxu0 %v582
      %v1581 = vpop.f32.mrf.mxu0
      %v1582 = vadd.f32 %v1389, %v1581
      %v1583 = vpop.f32.mrf.mxu0
      %v1584 = vadd.f32 %v1391, %v1583
      %v1585 = vpop.f32.mrf.mxu0
      %v1586 = vadd.f32 %v1393, %v1585
      %v1587 = vpop.f32.mrf.mxu0
      %v1588 = vadd.f32 %v1395, %v1587
      %1589 = vmatprep.mubr.bf16.mxu0 %v587
      %1590 = vmatmul.mubr.bf16.gmra.mxu0 %v586
      %v1591 = vpop.f32.mrf.mxu0
      %v1592 = vadd.f32 %v1399, %v1591
      %v1593 = vpop.f32.mrf.mxu0
      %v1594 = vadd.f32 %v1401, %v1593
      %v1595 = vpop.f32.mrf.mxu0
      %v1596 = vadd.f32 %v1403, %v1595
      %v1597 = vpop.f32.mrf.mxu0
      %v1598 = vadd.f32 %v1405, %v1597
      %1599 = vmatprep.mubr.bf16.mxu0 %v591
      %1600 = vmatmul.mubr.bf16.gmra.mxu0 %v590
      %v1601 = vpop.f32.mrf.mxu0
      %v1602 = vadd.f32 %v1409, %v1601
      %v1603 = vpop.f32.mrf.mxu0
      %v1604 = vadd.f32 %v1411, %v1603
      %v1605 = vpop.f32.mrf.mxu0
      %v1606 = vadd.f32 %v1413, %v1605
      %v1607 = vpop.f32.mrf.mxu0
      %v1608 = vadd.f32 %v1415, %v1607
      %1609 = vmatprep.mubr.bf16.mxu0 %v595
      %1610 = vmatmul.mubr.bf16.gmra.mxu0 %v594
      %v1611 = vpop.f32.mrf.mxu0
      %v1612 = vadd.f32 %v1419, %v1611
      %v1613 = vpop.f32.mrf.mxu0
      %v1614 = vadd.f32 %v1421, %v1613
      %v1615 = vpop.f32.mrf.mxu0
      %v1616 = vadd.f32 %v1423, %v1615
      %v1617 = vpop.f32.mrf.mxu0
      %v1618 = vadd.f32 %v1425, %v1617
      %1619 = vmatprep.mubr.bf16.mxu0 %v599
      %1620 = vmatmul.mubr.bf16.gmra.mxu0 %v598
      %v1621 = vpop.f32.mrf.mxu0
      %v1622 = vadd.f32 %v1429, %v1621
      %v1623 = vpop.f32.mrf.mxu0
      %v1624 = vadd.f32 %v1431, %v1623
      %v1625 = vpop.f32.mrf.mxu0
      %v1626 = vadd.f32 %v1433, %v1625
      %v1627 = vpop.f32.mrf.mxu0
      %v1628 = vadd.f32 %v1435, %v1627
      %1629 = vmatprep.mubr.bf16.mxu0 %v603
      %1630 = vmatmul.mubr.bf16.gmra.mxu0 %v602
      %v1631 = vpop.f32.mrf.mxu0
      %v1632 = vadd.f32 %v1439, %v1631
      %v1633 = vpop.f32.mrf.mxu0
      %v1634 = vadd.f32 %v1441, %v1633
      %v1635 = vpop.f32.mrf.mxu0
      %v1636 = vadd.f32 %v1443, %v1635
      %v1637 = vpop.f32.mrf.mxu0
      %v1638 = vadd.f32 %v1445, %v1637
      %1639 = vmatprep.mubr.bf16.mxu0 %v607
      %1640 = vmatmul.mubr.bf16.gmra.mxu0 %v606
      %v1641 = vpop.f32.mrf.mxu0
      %v1642 = vadd.f32 %v1449, %v1641
      %v1643 = vpop.f32.mrf.mxu0
      %v1644 = vadd.f32 %v1451, %v1643
      %v1645 = vpop.f32.mrf.mxu0
      %v1646 = vadd.f32 %v1453, %v1645
      %v1647 = vpop.f32.mrf.mxu0
      %v1648 = vadd.f32 %v1455, %v1647
      %1649 = vmatprep.mubr.bf16.mxu0 %v611
      %1650 = vmatmul.mubr.bf16.gmra.mxu0 %v610
      %v1651 = vpop.f32.mrf.mxu0
      %v1652 = vadd.f32 %v1459, %v1651
      %v1653 = vpop.f32.mrf.mxu0
      %v1654 = vadd.f32 %v1461, %v1653
      %v1655 = vpop.f32.mrf.mxu0
      %v1656 = vadd.f32 %v1463, %v1655
      %v1657 = vpop.f32.mrf.mxu0
      %v1658 = vadd.f32 %v1465, %v1657
      %1659 = vmatprep.mubr.bf16.mxu0 %v615
      %1660 = vmatmul.mubr.bf16.gmra.mxu0 %v614
      %v1661 = vpop.f32.mrf.mxu0
      %v1662 = vadd.f32 %v1469, %v1661
      %v1663 = vpop.f32.mrf.mxu0
      %v1664 = vadd.f32 %v1471, %v1663
      %v1665 = vpop.f32.mrf.mxu0
      %v1666 = vadd.f32 %v1473, %v1665
      %v1667 = vpop.f32.mrf.mxu0
      %v1668 = vadd.f32 %v1475, %v1667
      %1669 = vmatprep.mubr.bf16.mxu0 %v619
      %1670 = vmatmul.mubr.bf16.gmra.mxu0 %v618
      %v1671 = vpop.f32.mrf.mxu0
      %v1672 = vadd.f32 %v1479, %v1671
      %v1673 = vpop.f32.mrf.mxu0
      %v1674 = vadd.f32 %v1481, %v1673
      %v1675 = vpop.f32.mrf.mxu0
      %v1676 = vadd.f32 %v1483, %v1675
      %v1677 = vpop.f32.mrf.mxu0
      %v1678 = vadd.f32 %v1485, %v1677
      %1679 = vmatprep.mubr.bf16.mxu0 %v623
      %1680 = vmatmul.mubr.bf16.gmra.mxu0 %v622
      %v1681 = vpop.f32.mrf.mxu0
      %v1682 = vadd.f32 %v1489, %v1681
      %v1683 = vpop.f32.mrf.mxu0
      %v1684 = vadd.f32 %v1491, %v1683
      %v1685 = vpop.f32.mrf.mxu0
      %v1686 = vadd.f32 %v1493, %v1685
      %v1687 = vpop.f32.mrf.mxu0
      %v1688 = vadd.f32 %v1495, %v1687
      %1689 = vmatprep.mubr.bf16.mxu0 %v627
      %1690 = vmatmul.mubr.bf16.gmra.mxu0 %v626
      %v1691 = vpop.f32.mrf.mxu0
      %v1692 = vadd.f32 %v1499, %v1691
      %v1693 = vpop.f32.mrf.mxu0
      %v1694 = vadd.f32 %v1501, %v1693
      %v1695 = vpop.f32.mrf.mxu0
      %v1696 = vadd.f32 %v1503, %v1695
      %v1697 = vpop.f32.mrf.mxu0
      %v1698 = vadd.f32 %v1505, %v1697
      %1699 = vmatprep.mubr.bf16.mxu0 %v631
      %1700 = vmatmul.mubr.bf16.gmra.mxu0 %v630
      %v1701 = vpop.f32.mrf.mxu0
      %v1702 = vadd.f32 %v1509, %v1701
      %v1703 = vpop.f32.mrf.mxu0
      %v1704 = vadd.f32 %v1511, %v1703
      %v1705 = vpop.f32.mrf.mxu0
      %v1706 = vadd.f32 %v1513, %v1705
      %v1707 = vpop.f32.mrf.mxu0
      %v1708 = vadd.f32 %v1515, %v1707
      %1709 = vmatprep.mubr.bf16.mxu0 %v635
      %1710 = vmatmul.mubr.bf16.gmra.mxu0 %v634
      %v1711 = vpop.f32.mrf.mxu0
      %v1712 = vadd.f32 %v1519, %v1711
      %v1713 = vpop.f32.mrf.mxu0
      %v1714 = vadd.f32 %v1521, %v1713
      %v1715 = vpop.f32.mrf.mxu0
      %v1716 = vadd.f32 %v1523, %v1715
      %v1717 = vpop.f32.mrf.mxu0
      %v1718 = vadd.f32 %v1525, %v1717
      %1719 = vmatprep.mubr.bf16.mxu0 %v639
      %1720 = vmatmul.mubr.bf16.gmra.mxu0 %v638
      %v1721 = vpop.f32.mrf.mxu0
      %v1722 = vadd.f32 %v1529, %v1721
      %v1723 = vpop.f32.mrf.mxu0
      %v1724 = vadd.f32 %v1531, %v1723
      %v1725 = vpop.f32.mrf.mxu0
      %v1726 = vadd.f32 %v1533, %v1725
      %v1727 = vpop.f32.mrf.mxu0
      %v1728 = vadd.f32 %v1535, %v1727
      %1729 = vdwg.mxu0
      %1730 = vmatprep.subr.bf16.mxu0 %v1119
      %1731 = vmatpush1.bf16.msra.mxu0 %v1118
      %1732 = vmatprep.subr.bf16.mxu0 %v1115
      %1733 = vmatpush1.bf16.msra.mxu0 %v1114
      %1734 = vmatprep.subr.bf16.mxu0 %v1111
      %1735 = vmatpush1.bf16.msra.mxu0 %v1110
      %1736 = vmatprep.subr.bf16.mxu0 %v1107
      %1737 = vmatpush1.bf16.msra.mxu0 %v1106
      %1738 = vmatprep.subr.bf16.mxu0 %v1103
      %1739 = vmatpush1.bf16.msra.mxu0 %v1102
      %1740 = vmatprep.subr.bf16.mxu0 %v1099
      %1741 = vmatpush1.bf16.msra.mxu0 %v1098
      %1742 = vmatprep.subr.bf16.mxu0 %v1095
      %1743 = vmatpush1.bf16.msra.mxu0 %v1094
      %1744 = vmatprep.subr.bf16.mxu0 %v1091
      %1745 = vmatpush1.bf16.msra.mxu0 %v1090
      %1746 = vmatprep.subr.bf16.mxu0 %v1151
      %1747 = vmatpush2.bf16.msra.mxu0 %v1150
      %1748 = vmatprep.subr.bf16.mxu0 %v1147
      %1749 = vmatpush2.bf16.msra.mxu0 %v1146
      %1750 = vmatprep.subr.bf16.mxu0 %v1143
      %1751 = vmatpush2.bf16.msra.mxu0 %v1142
      %1752 = vmatprep.subr.bf16.mxu0 %v1139
      %1753 = vmatpush2.bf16.msra.mxu0 %v1138
      %1754 = vmatprep.subr.bf16.mxu0 %v1135
      %1755 = vmatpush2.bf16.msra.mxu0 %v1134
      %1756 = vmatprep.subr.bf16.mxu0 %v1131
      %1757 = vmatpush2.bf16.msra.mxu0 %v1130
      %1758 = vmatprep.subr.bf16.mxu0 %v1127
      %1759 = vmatpush2.bf16.msra.mxu0 %v1126
      %1760 = vmatprep.subr.bf16.mxu0 %v1123
      %1761 = vmatpush2.bf16.msra.mxu0 %v1122
      %1762 = vmatprep.mubr.bf16.mxu0 %v577
      %1763 = vmatmul.mubr.bf16.gmra.mxu0 %v576
      %v1764 = vpop.f32.mrf.mxu0
      %v1765 = vadd.f32 0.0, %v1764
      %v1766 = vpop.f32.mrf.mxu0
      %v1767 = vadd.f32 0.0, %v1766
      %v1768 = vpop.f32.mrf.mxu0
      %v1769 = vadd.f32 0.0, %v1768
      %v1770 = vpop.f32.mrf.mxu0
      %v1771 = vadd.f32 0.0, %v1770
      %1772 = vmatprep.mubr.bf16.mxu0 %v581
      %1773 = vmatmul.mubr.bf16.gmra.mxu0 %v580
      %v1774 = vpop.f32.mrf.mxu0
      %v1775 = vadd.f32 0.0, %v1774
      %v1776 = vpop.f32.mrf.mxu0
      %v1777 = vadd.f32 0.0, %v1776
      %v1778 = vpop.f32.mrf.mxu0
      %v1779 = vadd.f32 0.0, %v1778
      %v1780 = vpop.f32.mrf.mxu0
      %v1781 = vadd.f32 0.0, %v1780
      %1782 = vmatprep.mubr.bf16.mxu0 %v585
      %1783 = vmatmul.mubr.bf16.gmra.mxu0 %v584
      %v1784 = vpop.f32.mrf.mxu0
      %v1785 = vadd.f32 0.0, %v1784
      %v1786 = vpop.f32.mrf.mxu0
      %v1787 = vadd.f32 0.0, %v1786
      %v1788 = vpop.f32.mrf.mxu0
      %v1789 = vadd.f32 0.0, %v1788
      %v1790 = vpop.f32.mrf.mxu0
      %v1791 = vadd.f32 0.0, %v1790
      %1792 = vmatprep.mubr.bf16.mxu0 %v589
      %1793 = vmatmul.mubr.bf16.gmra.mxu0 %v588
      %v1794 = vpop.f32.mrf.mxu0
      %v1795 = vadd.f32 0.0, %v1794
      %v1796 = vpop.f32.mrf.mxu0
      %v1797 = vadd.f32 0.0, %v1796
      %v1798 = vpop.f32.mrf.mxu0
      %v1799 = vadd.f32 0.0, %v1798
      %v1800 = vpop.f32.mrf.mxu0
      %v1801 = vadd.f32 0.0, %v1800
      %1802 = vmatprep.mubr.bf16.mxu0 %v593
      %1803 = vmatmul.mubr.bf16.gmra.mxu0 %v592
      %v1804 = vpop.f32.mrf.mxu0
      %v1805 = vadd.f32 0.0, %v1804
      %v1806 = vpop.f32.mrf.mxu0
      %v1807 = vadd.f32 0.0, %v1806
      %v1808 = vpop.f32.mrf.mxu0
      %v1809 = vadd.f32 0.0, %v1808
      %v1810 = vpop.f32.mrf.mxu0
      %v1811 = vadd.f32 0.0, %v1810
      %1812 = vmatprep.mubr.bf16.mxu0 %v597
      %1813 = vmatmul.mubr.bf16.gmra.mxu0 %v596
      %v1814 = vpop.f32.mrf.mxu0
      %v1815 = vadd.f32 0.0, %v1814
      %v1816 = vpop.f32.mrf.mxu0
      %v1817 = vadd.f32 0.0, %v1816
      %v1818 = vpop.f32.mrf.mxu0
      %v1819 = vadd.f32 0.0, %v1818
      %v1820 = vpop.f32.mrf.mxu0
      %v1821 = vadd.f32 0.0, %v1820
      %1822 = vmatprep.mubr.bf16.mxu0 %v601
      %1823 = vmatmul.mubr.bf16.gmra.mxu0 %v600
      %v1824 = vpop.f32.mrf.mxu0
      %v1825 = vadd.f32 0.0, %v1824
      %v1826 = vpop.f32.mrf.mxu0
      %v1827 = vadd.f32 0.0, %v1826
      %v1828 = vpop.f32.mrf.mxu0
      %v1829 = vadd.f32 0.0, %v1828
      %v1830 = vpop.f32.mrf.mxu0
      %v1831 = vadd.f32 0.0, %v1830
      %1832 = vmatprep.mubr.bf16.mxu0 %v605
      %1833 = vmatmul.mubr.bf16.gmra.mxu0 %v604
      %v1834 = vpop.f32.mrf.mxu0
      %v1835 = vadd.f32 0.0, %v1834
      %v1836 = vpop.f32.mrf.mxu0
      %v1837 = vadd.f32 0.0, %v1836
      %v1838 = vpop.f32.mrf.mxu0
      %v1839 = vadd.f32 0.0, %v1838
      %v1840 = vpop.f32.mrf.mxu0
      %v1841 = vadd.f32 0.0, %v1840
      %1842 = vmatprep.mubr.bf16.mxu0 %v609
      %1843 = vmatmul.mubr.bf16.gmra.mxu0 %v608
      %v1844 = vpop.f32.mrf.mxu0
      %v1845 = vadd.f32 0.0, %v1844
      %v1846 = vpop.f32.mrf.mxu0
      %v1847 = vadd.f32 0.0, %v1846
      %v1848 = vpop.f32.mrf.mxu0
      %v1849 = vadd.f32 0.0, %v1848
      %v1850 = vpop.f32.mrf.mxu0
      %v1851 = vadd.f32 0.0, %v1850
      %1852 = vmatprep.mubr.bf16.mxu0 %v613
      %1853 = vmatmul.mubr.bf16.gmra.mxu0 %v612
      %v1854 = vpop.f32.mrf.mxu0
      %v1855 = vadd.f32 0.0, %v1854
      %v1856 = vpop.f32.mrf.mxu0
      %v1857 = vadd.f32 0.0, %v1856
      %v1858 = vpop.f32.mrf.mxu0
      %v1859 = vadd.f32 0.0, %v1858
      %v1860 = vpop.f32.mrf.mxu0
      %v1861 = vadd.f32 0.0, %v1860
      %1862 = vmatprep.mubr.bf16.mxu0 %v617
      %1863 = vmatmul.mubr.bf16.gmra.mxu0 %v616
      %v1864 = vpop.f32.mrf.mxu0
      %v1865 = vadd.f32 0.0, %v1864
      %v1866 = vpop.f32.mrf.mxu0
      %v1867 = vadd.f32 0.0, %v1866
      %v1868 = vpop.f32.mrf.mxu0
      %v1869 = vadd.f32 0.0, %v1868
      %v1870 = vpop.f32.mrf.mxu0
      %v1871 = vadd.f32 0.0, %v1870
      %1872 = vmatprep.mubr.bf16.mxu0 %v621
      %1873 = vmatmul.mubr.bf16.gmra.mxu0 %v620
      %v1874 = vpop.f32.mrf.mxu0
      %v1875 = vadd.f32 0.0, %v1874
      %v1876 = vpop.f32.mrf.mxu0
      %v1877 = vadd.f32 0.0, %v1876
      %v1878 = vpop.f32.mrf.mxu0
      %v1879 = vadd.f32 0.0, %v1878
      %v1880 = vpop.f32.mrf.mxu0
      %v1881 = vadd.f32 0.0, %v1880
      %1882 = vmatprep.mubr.bf16.mxu0 %v625
      %1883 = vmatmul.mubr.bf16.gmra.mxu0 %v624
      %v1884 = vpop.f32.mrf.mxu0
      %v1885 = vadd.f32 0.0, %v1884
      %v1886 = vpop.f32.mrf.mxu0
      %v1887 = vadd.f32 0.0, %v1886
      %v1888 = vpop.f32.mrf.mxu0
      %v1889 = vadd.f32 0.0, %v1888
      %v1890 = vpop.f32.mrf.mxu0
      %v1891 = vadd.f32 0.0, %v1890
      %1892 = vmatprep.mubr.bf16.mxu0 %v629
      %1893 = vmatmul.mubr.bf16.gmra.mxu0 %v628
      %v1894 = vpop.f32.mrf.mxu0
      %v1895 = vadd.f32 0.0, %v1894
      %v1896 = vpop.f32.mrf.mxu0
      %v1897 = vadd.f32 0.0, %v1896
      %v1898 = vpop.f32.mrf.mxu0
      %v1899 = vadd.f32 0.0, %v1898
      %v1900 = vpop.f32.mrf.mxu0
      %v1901 = vadd.f32 0.0, %v1900
      %1902 = vmatprep.mubr.bf16.mxu0 %v633
      %1903 = vmatmul.mubr.bf16.gmra.mxu0 %v632
      %v1904 = vpop.f32.mrf.mxu0
      %v1905 = vadd.f32 0.0, %v1904
      %v1906 = vpop.f32.mrf.mxu0
      %v1907 = vadd.f32 0.0, %v1906
      %v1908 = vpop.f32.mrf.mxu0
      %v1909 = vadd.f32 0.0, %v1908
      %v1910 = vpop.f32.mrf.mxu0
      %v1911 = vadd.f32 0.0, %v1910
      %1912 = vmatprep.mubr.bf16.mxu0 %v637
      %1913 = vmatmul.mubr.bf16.gmra.mxu0 %v636
      %v1914 = vpop.f32.mrf.mxu0
      %v1915 = vadd.f32 0.0, %v1914
      %v1916 = vpop.f32.mrf.mxu0
      %v1917 = vadd.f32 0.0, %v1916
      %v1918 = vpop.f32.mrf.mxu0
      %v1919 = vadd.f32 0.0, %v1918
      %v1920 = vpop.f32.mrf.mxu0
      %v1921 = vadd.f32 0.0, %v1920
      %1922 = vdwg.mxu0
      %1923 = vmatprep.subr.bf16.mxu0 %v1183
      %1924 = vmatpush1.bf16.msra.mxu0 %v1182
      %1925 = vmatprep.subr.bf16.mxu0 %v1179
      %1926 = vmatpush1.bf16.msra.mxu0 %v1178
      %1927 = vmatprep.subr.bf16.mxu0 %v1175
      %1928 = vmatpush1.bf16.msra.mxu0 %v1174
      %1929 = vmatprep.subr.bf16.mxu0 %v1171
      %1930 = vmatpush1.bf16.msra.mxu0 %v1170
      %1931 = vmatprep.subr.bf16.mxu0 %v1167
      %1932 = vmatpush1.bf16.msra.mxu0 %v1166
      %1933 = vmatprep.subr.bf16.mxu0 %v1163
      %1934 = vmatpush1.bf16.msra.mxu0 %v1162
      %1935 = vmatprep.subr.bf16.mxu0 %v1159
      %1936 = vmatpush1.bf16.msra.mxu0 %v1158
      %1937 = vmatprep.subr.bf16.mxu0 %v1155
      %1938 = vmatpush1.bf16.msra.mxu0 %v1154
      %1939 = vmatprep.subr.bf16.mxu0 %v1215
      %1940 = vmatpush2.bf16.msra.mxu0 %v1214
      %1941 = vmatprep.subr.bf16.mxu0 %v1211
      %1942 = vmatpush2.bf16.msra.mxu0 %v1210
      %1943 = vmatprep.subr.bf16.mxu0 %v1207
      %1944 = vmatpush2.bf16.msra.mxu0 %v1206
      %1945 = vmatprep.subr.bf16.mxu0 %v1203
      %1946 = vmatpush2.bf16.msra.mxu0 %v1202
      %1947 = vmatprep.subr.bf16.mxu0 %v1199
      %1948 = vmatpush2.bf16.msra.mxu0 %v1198
      %1949 = vmatprep.subr.bf16.mxu0 %v1195
      %1950 = vmatpush2.bf16.msra.mxu0 %v1194
      %1951 = vmatprep.subr.bf16.mxu0 %v1191
      %1952 = vmatpush2.bf16.msra.mxu0 %v1190
      %1953 = vmatprep.subr.bf16.mxu0 %v1187
      %1954 = vmatpush2.bf16.msra.mxu0 %v1186
      %1955 = vmatprep.mubr.bf16.mxu0 %v579
      %1956 = vmatmul.mubr.bf16.gmra.mxu0 %v578
      %v1957 = vpop.f32.mrf.mxu0
      %v1958 = vadd.f32 %v1765, %v1957
      %v1959 = vpop.f32.mrf.mxu0
      %v1960 = vadd.f32 %v1767, %v1959
      %v1961 = vpop.f32.mrf.mxu0
      %v1962 = vadd.f32 %v1769, %v1961
      %v1963 = vpop.f32.mrf.mxu0
      %v1964 = vadd.f32 %v1771, %v1963
      %1965 = vmatprep.mubr.bf16.mxu0 %v583
      %1966 = vmatmul.mubr.bf16.gmra.mxu0 %v582
      %v1967 = vpop.f32.mrf.mxu0
      %v1968 = vadd.f32 %v1775, %v1967
      %v1969 = vpop.f32.mrf.mxu0
      %v1970 = vadd.f32 %v1777, %v1969
      %v1971 = vpop.f32.mrf.mxu0
      %v1972 = vadd.f32 %v1779, %v1971
      %v1973 = vpop.f32.mrf.mxu0
      %v1974 = vadd.f32 %v1781, %v1973
      %1975 = vmatprep.mubr.bf16.mxu0 %v587
      %1976 = vmatmul.mubr.bf16.gmra.mxu0 %v586
      %v1977 = vpop.f32.mrf.mxu0
      %v1978 = vadd.f32 %v1785, %v1977
      %v1979 = vpop.f32.mrf.mxu0
      %v1980 = vadd.f32 %v1787, %v1979
      %v1981 = vpop.f32.mrf.mxu0
      %v1982 = vadd.f32 %v1789, %v1981
      %v1983 = vpop.f32.mrf.mxu0
      %v1984 = vadd.f32 %v1791, %v1983
      %1985 = vmatprep.mubr.bf16.mxu0 %v591
      %1986 = vmatmul.mubr.bf16.gmra.mxu0 %v590
      %v1987 = vpop.f32.mrf.mxu0
      %v1988 = vadd.f32 %v1795, %v1987
      %v1989 = vpop.f32.mrf.mxu0
      %v1990 = vadd.f32 %v1797, %v1989
      %v1991 = vpop.f32.mrf.mxu0
      %v1992 = vadd.f32 %v1799, %v1991
      %v1993 = vpop.f32.mrf.mxu0
      %v1994 = vadd.f32 %v1801, %v1993
      %1995 = vmatprep.mubr.bf16.mxu0 %v595
      %1996 = vmatmul.mubr.bf16.gmra.mxu0 %v594
      %v1997 = vpop.f32.mrf.mxu0
      %v1998 = vadd.f32 %v1805, %v1997
      %v1999 = vpop.f32.mrf.mxu0
      %v2000 = vadd.f32 %v1807, %v1999
      %v2001 = vpop.f32.mrf.mxu0
      %v2002 = vadd.f32 %v1809, %v2001
      %v2003 = vpop.f32.mrf.mxu0
      %v2004 = vadd.f32 %v1811, %v2003
      %2005 = vmatprep.mubr.bf16.mxu0 %v599
      %2006 = vmatmul.mubr.bf16.gmra.mxu0 %v598
      %v2007 = vpop.f32.mrf.mxu0
      %v2008 = vadd.f32 %v1815, %v2007
      %v2009 = vpop.f32.mrf.mxu0
      %v2010 = vadd.f32 %v1817, %v2009
      %v2011 = vpop.f32.mrf.mxu0
      %v2012 = vadd.f32 %v1819, %v2011
      %v2013 = vpop.f32.mrf.mxu0
      %v2014 = vadd.f32 %v1821, %v2013
      %2015 = vmatprep.mubr.bf16.mxu0 %v603
      %2016 = vmatmul.mubr.bf16.gmra.mxu0 %v602
      %v2017 = vpop.f32.mrf.mxu0
      %v2018 = vadd.f32 %v1825, %v2017
      %v2019 = vpop.f32.mrf.mxu0
      %v2020 = vadd.f32 %v1827, %v2019
      %v2021 = vpop.f32.mrf.mxu0
      %v2022 = vadd.f32 %v1829, %v2021
      %v2023 = vpop.f32.mrf.mxu0
      %v2024 = vadd.f32 %v1831, %v2023
      %2025 = vmatprep.mubr.bf16.mxu0 %v607
      %2026 = vmatmul.mubr.bf16.gmra.mxu0 %v606
      %v2027 = vpop.f32.mrf.mxu0
      %v2028 = vadd.f32 %v1835, %v2027
      %v2029 = vpop.f32.mrf.mxu0
      %v2030 = vadd.f32 %v1837, %v2029
      %v2031 = vpop.f32.mrf.mxu0
      %v2032 = vadd.f32 %v1839, %v2031
      %v2033 = vpop.f32.mrf.mxu0
      %v2034 = vadd.f32 %v1841, %v2033
      %2035 = vmatprep.mubr.bf16.mxu0 %v611
      %2036 = vmatmul.mubr.bf16.gmra.mxu0 %v610
      %v2037 = vpop.f32.mrf.mxu0
      %v2038 = vadd.f32 %v1845, %v2037
      %v2039 = vpop.f32.mrf.mxu0
      %v2040 = vadd.f32 %v1847, %v2039
      %v2041 = vpop.f32.mrf.mxu0
      %v2042 = vadd.f32 %v1849, %v2041
      %v2043 = vpop.f32.mrf.mxu0
      %v2044 = vadd.f32 %v1851, %v2043
      %2045 = vmatprep.mubr.bf16.mxu0 %v615
      %2046 = vmatmul.mubr.bf16.gmra.mxu0 %v614
      %v2047 = vpop.f32.mrf.mxu0
      %v2048 = vadd.f32 %v1855, %v2047
      %v2049 = vpop.f32.mrf.mxu0
      %v2050 = vadd.f32 %v1857, %v2049
      %v2051 = vpop.f32.mrf.mxu0
      %v2052 = vadd.f32 %v1859, %v2051
      %v2053 = vpop.f32.mrf.mxu0
      %v2054 = vadd.f32 %v1861, %v2053
      %2055 = vmatprep.mubr.bf16.mxu0 %v619
      %2056 = vmatmul.mubr.bf16.gmra.mxu0 %v618
      %v2057 = vpop.f32.mrf.mxu0
      %v2058 = vadd.f32 %v1865, %v2057
      %v2059 = vpop.f32.mrf.mxu0
      %v2060 = vadd.f32 %v1867, %v2059
      %v2061 = vpop.f32.mrf.mxu0
      %v2062 = vadd.f32 %v1869, %v2061
      %v2063 = vpop.f32.mrf.mxu0
      %v2064 = vadd.f32 %v1871, %v2063
      %2065 = vmatprep.mubr.bf16.mxu0 %v623
      %2066 = vmatmul.mubr.bf16.gmra.mxu0 %v622
      %v2067 = vpop.f32.mrf.mxu0
      %v2068 = vadd.f32 %v1875, %v2067
      %v2069 = vpop.f32.mrf.mxu0
      %v2070 = vadd.f32 %v1877, %v2069
      %v2071 = vpop.f32.mrf.mxu0
      %v2072 = vadd.f32 %v1879, %v2071
      %v2073 = vpop.f32.mrf.mxu0
      %v2074 = vadd.f32 %v1881, %v2073
      %2075 = vmatprep.mubr.bf16.mxu0 %v627
      %2076 = vmatmul.mubr.bf16.gmra.mxu0 %v626
      %v2077 = vpop.f32.mrf.mxu0
      %v2078 = vadd.f32 %v1885, %v2077
      %v2079 = vpop.f32.mrf.mxu0
      %v2080 = vadd.f32 %v1887, %v2079
      %v2081 = vpop.f32.mrf.mxu0
      %v2082 = vadd.f32 %v1889, %v2081
      %v2083 = vpop.f32.mrf.mxu0
      %v2084 = vadd.f32 %v1891, %v2083
      %2085 = vmatprep.mubr.bf16.mxu0 %v631
      %2086 = vmatmul.mubr.bf16.gmra.mxu0 %v630
      %v2087 = vpop.f32.mrf.mxu0
      %v2088 = vadd.f32 %v1895, %v2087
      %v2089 = vpop.f32.mrf.mxu0
      %v2090 = vadd.f32 %v1897, %v2089
      %v2091 = vpop.f32.mrf.mxu0
      %v2092 = vadd.f32 %v1899, %v2091
      %v2093 = vpop.f32.mrf.mxu0
      %v2094 = vadd.f32 %v1901, %v2093
      %2095 = vmatprep.mubr.bf16.mxu0 %v635
      %2096 = vmatmul.mubr.bf16.gmra.mxu0 %v634
      %v2097 = vpop.f32.mrf.mxu0
      %v2098 = vadd.f32 %v1905, %v2097
      %v2099 = vpop.f32.mrf.mxu0
      %v2100 = vadd.f32 %v1907, %v2099
      %v2101 = vpop.f32.mrf.mxu0
      %v2102 = vadd.f32 %v1909, %v2101
      %v2103 = vpop.f32.mrf.mxu0
      %v2104 = vadd.f32 %v1911, %v2103
      %2105 = vmatprep.mubr.bf16.mxu0 %v639
      %2106 = vmatmul.mubr.bf16.gmra.mxu0 %v638
      %v2107 = vpop.f32.mrf.mxu0
      %v2108 = vadd.f32 %v1915, %v2107
      %v2109 = vpop.f32.mrf.mxu0
      %v2110 = vadd.f32 %v1917, %v2109
      %v2111 = vpop.f32.mrf.mxu0
      %v2112 = vadd.f32 %v1919, %v2111
      %v2113 = vpop.f32.mrf.mxu0
      %v2114 = vadd.f32 %v1921, %v2113
      %2115 = vdwg.mxu0
      %v2116 = vpack.c.bf16 %v1576, %v1572
      %v2117 = vpack.c.bf16 %v1578, %v1574
      %v2118 = vpack.c.bf16 %v1962, %v1958
      %v2119 = vpack.c.bf16 %v1964, %v1960
      %v2120 = vpack.c.bf16 %v1586, %v1582
      %v2121 = vpack.c.bf16 %v1588, %v1584
      %v2122 = vpack.c.bf16 %v1972, %v1968
      %v2123 = vpack.c.bf16 %v1974, %v1970
      %v2124 = vpack.c.bf16 %v1596, %v1592
      %v2125 = vpack.c.bf16 %v1598, %v1594
      %v2126 = vpack.c.bf16 %v1982, %v1978
      %v2127 = vpack.c.bf16 %v1984, %v1980
      %v2128 = vpack.c.bf16 %v1606, %v1602
      %v2129 = vpack.c.bf16 %v1608, %v1604
      %v2130 = vpack.c.bf16 %v1992, %v1988
      %v2131 = vpack.c.bf16 %v1994, %v1990
      %v2132 = vpack.c.bf16 %v1616, %v1612
      %v2133 = vpack.c.bf16 %v1618, %v1614
      %v2134 = vpack.c.bf16 %v2002, %v1998
      %v2135 = vpack.c.bf16 %v2004, %v2000
      %v2136 = vpack.c.bf16 %v1626, %v1622
      %v2137 = vpack.c.bf16 %v1628, %v1624
      %v2138 = vpack.c.bf16 %v2012, %v2008
      %v2139 = vpack.c.bf16 %v2014, %v2010
      %v2140 = vpack.c.bf16 %v1636, %v1632
      %v2141 = vpack.c.bf16 %v1638, %v1634
      %v2142 = vpack.c.bf16 %v2022, %v2018
      %v2143 = vpack.c.bf16 %v2024, %v2020
      %v2144 = vpack.c.bf16 %v1646, %v1642
      %v2145 = vpack.c.bf16 %v1648, %v1644
      %v2146 = vpack.c.bf16 %v2032, %v2028
      %v2147 = vpack.c.bf16 %v2034, %v2030
      %v2148 = vpack.c.bf16 %v1656, %v1652
      %v2149 = vpack.c.bf16 %v1658, %v1654
      %v2150 = vpack.c.bf16 %v2042, %v2038
      %v2151 = vpack.c.bf16 %v2044, %v2040
      %v2152 = vpack.c.bf16 %v1666, %v1662
      %v2153 = vpack.c.bf16 %v1668, %v1664
      %v2154 = vpack.c.bf16 %v2052, %v2048
      %v2155 = vpack.c.bf16 %v2054, %v2050
      %v2156 = vpack.c.bf16 %v1676, %v1672
      %v2157 = vpack.c.bf16 %v1678, %v1674
      %v2158 = vpack.c.bf16 %v2062, %v2058
      %v2159 = vpack.c.bf16 %v2064, %v2060
      %v2160 = vpack.c.bf16 %v1686, %v1682
      %v2161 = vpack.c.bf16 %v1688, %v1684
      %v2162 = vpack.c.bf16 %v2072, %v2068
      %v2163 = vpack.c.bf16 %v2074, %v2070
      %v2164 = vpack.c.bf16 %v1696, %v1692
      %v2165 = vpack.c.bf16 %v1698, %v1694
      %v2166 = vpack.c.bf16 %v2082, %v2078
      %v2167 = vpack.c.bf16 %v2084, %v2080
      %v2168 = vpack.c.bf16 %v1706, %v1702
      %v2169 = vpack.c.bf16 %v1708, %v1704
      %v2170 = vpack.c.bf16 %v2092, %v2088
      %v2171 = vpack.c.bf16 %v2094, %v2090
      %v2172 = vpack.c.bf16 %v1716, %v1712
      %v2173 = vpack.c.bf16 %v1718, %v1714
      %v2174 = vpack.c.bf16 %v2102, %v2098
      %v2175 = vpack.c.bf16 %v2104, %v2100
      %v2176 = vpack.c.bf16 %v1726, %v1722
      %v2177 = vpack.c.bf16 %v1728, %v1724
      %v2178 = vpack.c.bf16 %v2112, %v2108
      %v2179 = vpack.c.bf16 %v2114, %v2110
      %v2244 = vunpack.c.l.b16 %v2116
      %v2245 = vunpack.c.l.b16 %v2117
      %v2246 = vunpack.c.l.b16 %v2118
      %v2247 = vunpack.c.l.b16 %v2119
      %v2248 = vunpack.c.h.b16 %v2116
      %v2249 = vunpack.c.h.b16 %v2117
      %v2250 = vunpack.c.h.b16 %v2118
      %v2251 = vunpack.c.h.b16 %v2119
      %v2252 = vunpack.c.l.b16 %v2120
      %v2253 = vunpack.c.l.b16 %v2121
      %v2254 = vunpack.c.l.b16 %v2122
      %v2255 = vunpack.c.l.b16 %v2123
      %v2256 = vunpack.c.h.b16 %v2120
      %v2257 = vunpack.c.h.b16 %v2121
      %v2258 = vunpack.c.h.b16 %v2122
      %v2259 = vunpack.c.h.b16 %v2123
      %v2260 = vunpack.c.l.b16 %v2124
      %v2261 = vunpack.c.l.b16 %v2125
      %v2262 = vunpack.c.l.b16 %v2126
      %v2263 = vunpack.c.l.b16 %v2127
      %v2264 = vunpack.c.h.b16 %v2124
      %v2265 = vunpack.c.h.b16 %v2125
      %v2266 = vunpack.c.h.b16 %v2126
      %v2267 = vunpack.c.h.b16 %v2127
      %v2268 = vunpack.c.l.b16 %v2128
      %v2269 = vunpack.c.l.b16 %v2129
      %v2270 = vunpack.c.l.b16 %v2130
      %v2271 = vunpack.c.l.b16 %v2131
      %v2272 = vunpack.c.h.b16 %v2128
      %v2273 = vunpack.c.h.b16 %v2129
      %v2274 = vunpack.c.h.b16 %v2130
      %v2275 = vunpack.c.h.b16 %v2131
      %v2276 = vunpack.c.l.b16 %v2132
      %v2277 = vunpack.c.l.b16 %v2133
      %v2278 = vunpack.c.l.b16 %v2134
      %v2279 = vunpack.c.l.b16 %v2135
      %v2280 = vunpack.c.h.b16 %v2132
      %v2281 = vunpack.c.h.b16 %v2133
      %v2282 = vunpack.c.h.b16 %v2134
      %v2283 = vunpack.c.h.b16 %v2135
      %v2284 = vunpack.c.l.b16 %v2136
      %v2285 = vunpack.c.l.b16 %v2137
      %v2286 = vunpack.c.l.b16 %v2138
      %v2287 = vunpack.c.l.b16 %v2139
      %v2288 = vunpack.c.h.b16 %v2136
      %v2289 = vunpack.c.h.b16 %v2137
      %v2290 = vunpack.c.h.b16 %v2138
      %v2291 = vunpack.c.h.b16 %v2139
      %v2292 = vunpack.c.l.b16 %v2140
      %v2293 = vunpack.c.l.b16 %v2141
      %v2294 = vunpack.c.l.b16 %v2142
      %v2295 = vunpack.c.l.b16 %v2143
      %v2296 = vunpack.c.h.b16 %v2140
      %v2297 = vunpack.c.h.b16 %v2141
      %v2298 = vunpack.c.h.b16 %v2142
      %v2299 = vunpack.c.h.b16 %v2143
      %v2300 = vunpack.c.l.b16 %v2144
      %v2301 = vunpack.c.l.b16 %v2145
      %v2302 = vunpack.c.l.b16 %v2146
      %v2303 = vunpack.c.l.b16 %v2147
      %v2304 = vunpack.c.h.b16 %v2144
      %v2305 = vunpack.c.h.b16 %v2145
      %v2306 = vunpack.c.h.b16 %v2146
      %v2307 = vunpack.c.h.b16 %v2147
      %v2308 = vunpack.c.l.b16 %v2148
      %v2309 = vunpack.c.l.b16 %v2149
      %v2310 = vunpack.c.l.b16 %v2150
      %v2311 = vunpack.c.l.b16 %v2151
      %v2312 = vunpack.c.h.b16 %v2148
      %v2313 = vunpack.c.h.b16 %v2149
      %v2314 = vunpack.c.h.b16 %v2150
      %v2315 = vunpack.c.h.b16 %v2151
      %v2316 = vunpack.c.l.b16 %v2152
      %v2317 = vunpack.c.l.b16 %v2153
      %v2318 = vunpack.c.l.b16 %v2154
      %v2319 = vunpack.c.l.b16 %v2155
      %v2320 = vunpack.c.h.b16 %v2152
      %v2321 = vunpack.c.h.b16 %v2153
      %v2322 = vunpack.c.h.b16 %v2154
      %v2323 = vunpack.c.h.b16 %v2155
      %v2324 = vunpack.c.l.b16 %v2156
      %v2325 = vunpack.c.l.b16 %v2157
      %v2326 = vunpack.c.l.b16 %v2158
      %v2327 = vunpack.c.l.b16 %v2159
      %v2328 = vunpack.c.h.b16 %v2156
      %v2329 = vunpack.c.h.b16 %v2157
      %v2330 = vunpack.c.h.b16 %v2158
      %v2331 = vunpack.c.h.b16 %v2159
      %v2332 = vunpack.c.l.b16 %v2160
      %v2333 = vunpack.c.l.b16 %v2161
      %v2334 = vunpack.c.l.b16 %v2162
      %v2335 = vunpack.c.l.b16 %v2163
      %v2336 = vunpack.c.h.b16 %v2160
      %v2337 = vunpack.c.h.b16 %v2161
      %v2338 = vunpack.c.h.b16 %v2162
      %v2339 = vunpack.c.h.b16 %v2163
      %v2340 = vunpack.c.l.b16 %v2164
      %v2341 = vunpack.c.l.b16 %v2165
      %v2342 = vunpack.c.l.b16 %v2166
      %v2343 = vunpack.c.l.b16 %v2167
      %v2344 = vunpack.c.h.b16 %v2164
      %v2345 = vunpack.c.h.b16 %v2165
      %v2346 = vunpack.c.h.b16 %v2166
      %v2347 = vunpack.c.h.b16 %v2167
      %v2348 = vunpack.c.l.b16 %v2168
      %v2349 = vunpack.c.l.b16 %v2169
      %v2350 = vunpack.c.l.b16 %v2170
      %v2351 = vunpack.c.l.b16 %v2171
      %v2352 = vunpack.c.h.b16 %v2168
      %v2353 = vunpack.c.h.b16 %v2169
      %v2354 = vunpack.c.h.b16 %v2170
      %v2355 = vunpack.c.h.b16 %v2171
      %v2356 = vunpack.c.l.b16 %v2172
      %v2357 = vunpack.c.l.b16 %v2173
      %v2358 = vunpack.c.l.b16 %v2174
      %v2359 = vunpack.c.l.b16 %v2175
      %v2360 = vunpack.c.h.b16 %v2172
      %v2361 = vunpack.c.h.b16 %v2173
      %v2362 = vunpack.c.h.b16 %v2174
      %v2363 = vunpack.c.h.b16 %v2175
      %v2364 = vunpack.c.l.b16 %v2176
      %v2365 = vunpack.c.l.b16 %v2177
      %v2366 = vunpack.c.l.b16 %v2178
      %v2367 = vunpack.c.l.b16 %v2179
      %v2368 = vunpack.c.h.b16 %v2176
      %v2369 = vunpack.c.h.b16 %v2177
      %v2370 = vunpack.c.h.b16 %v2178
      %v2371 = vunpack.c.h.b16 %v2179
      %v2372 = vpack.c.b16 %v2245, %v2244
      %v2373 = vpack.c.b16 %v2247, %v2246
      %v2374 = vpack.c.b16 %v2249, %v2248
      %v2375 = vpack.c.b16 %v2251, %v2250
      %v2376 = vpack.c.b16 %v2253, %v2252
      %v2377 = vpack.c.b16 %v2255, %v2254
      %v2378 = vpack.c.b16 %v2257, %v2256
      %v2379 = vpack.c.b16 %v2259, %v2258
      %v2380 = vpack.c.b16 %v2261, %v2260
      %v2381 = vpack.c.b16 %v2263, %v2262
      %v2382 = vpack.c.b16 %v2265, %v2264
      %v2383 = vpack.c.b16 %v2267, %v2266
      %v2384 = vpack.c.b16 %v2269, %v2268
      %v2385 = vpack.c.b16 %v2271, %v2270
      %v2386 = vpack.c.b16 %v2273, %v2272
      %v2387 = vpack.c.b16 %v2275, %v2274
      %v2388 = vpack.c.b16 %v2277, %v2276
      %v2389 = vpack.c.b16 %v2279, %v2278
      %v2390 = vpack.c.b16 %v2281, %v2280
      %v2391 = vpack.c.b16 %v2283, %v2282
      %v2392 = vpack.c.b16 %v2285, %v2284
      %v2393 = vpack.c.b16 %v2287, %v2286
      %v2394 = vpack.c.b16 %v2289, %v2288
      %v2395 = vpack.c.b16 %v2291, %v2290
      %v2396 = vpack.c.b16 %v2293, %v2292
      %v2397 = vpack.c.b16 %v2295, %v2294
      %v2398 = vpack.c.b16 %v2297, %v2296
      %v2399 = vpack.c.b16 %v2299, %v2298
      %v2400 = vpack.c.b16 %v2301, %v2300
      %v2401 = vpack.c.b16 %v2303, %v2302
      %v2402 = vpack.c.b16 %v2305, %v2304
      %v2403 = vpack.c.b16 %v2307, %v2306
      %v2404 = vpack.c.b16 %v2309, %v2308
      %v2405 = vpack.c.b16 %v2311, %v2310
      %v2406 = vpack.c.b16 %v2313, %v2312
      %v2407 = vpack.c.b16 %v2315, %v2314
      %v2408 = vpack.c.b16 %v2317, %v2316
      %v2409 = vpack.c.b16 %v2319, %v2318
      %v2410 = vpack.c.b16 %v2321, %v2320
      %v2411 = vpack.c.b16 %v2323, %v2322
      %v2412 = vpack.c.b16 %v2325, %v2324
      %v2413 = vpack.c.b16 %v2327, %v2326
      %v2414 = vpack.c.b16 %v2329, %v2328
      %v2415 = vpack.c.b16 %v2331, %v2330
      %v2416 = vpack.c.b16 %v2333, %v2332
      %v2417 = vpack.c.b16 %v2335, %v2334
      %v2418 = vpack.c.b16 %v2337, %v2336
      %v2419 = vpack.c.b16 %v2339, %v2338
      %v2420 = vpack.c.b16 %v2341, %v2340
      %v2421 = vpack.c.b16 %v2343, %v2342
      %v2422 = vpack.c.b16 %v2345, %v2344
      %v2423 = vpack.c.b16 %v2347, %v2346
      %v2424 = vpack.c.b16 %v2349, %v2348
      %v2425 = vpack.c.b16 %v2351, %v2350
      %v2426 = vpack.c.b16 %v2353, %v2352
      %v2427 = vpack.c.b16 %v2355, %v2354
      %v2428 = vpack.c.b16 %v2357, %v2356
      %v2429 = vpack.c.b16 %v2359, %v2358
      %v2430 = vpack.c.b16 %v2361, %v2360
      %v2431 = vpack.c.b16 %v2363, %v2362
      %v2432 = vpack.c.b16 %v2365, %v2364
      %v2433 = vpack.c.b16 %v2367, %v2366
      %v2434 = vpack.c.b16 %v2369, %v2368
      %v2435 = vpack.c.b16 %v2371, %v2370
      %2500 = vst [vmem:[%s185] sm:$0xff] %v2372
      %2501 = vst [vmem:[%s185 + $0x8] sm:$0xff] %v2373
      %2502 = vst [vmem:[%s185 + $0x10] sm:$0xff] %v2374
      %2503 = vst [vmem:[%s185 + $0x18] sm:$0xff] %v2375
      %2504 = vst [vmem:[%s185 + $0x20] sm:$0xff] %v2376
      %2505 = vst [vmem:[%s185 + $0x28] sm:$0xff] %v2377
      %2506 = vst [vmem:[%s185 + $0x30] sm:$0xff] %v2378
      %2507 = vst [vmem:[%s185 + $0x38] sm:$0xff] %v2379
      %2508 = vst [vmem:[%s185 + $0x40] sm:$0xff] %v2380
      %2509 = vst [vmem:[%s185 + $0x48] sm:$0xff] %v2381
      %2510 = vst [vmem:[%s185 + $0x50] sm:$0xff] %v2382
      %2511 = vst [vmem:[%s185 + $0x58] sm:$0xff] %v2383
      %2512 = vst [vmem:[%s185 + $0x60] sm:$0xff] %v2384
      %2513 = vst [vmem:[%s185 + $0x68] sm:$0xff] %v2385
      %2514 = vst [vmem:[%s185 + $0x70] sm:$0xff] %v2386
      %2515 = vst [vmem:[%s185 + $0x78] sm:$0xff] %v2387
      %2516 = vst [vmem:[%s185 + $0x80] sm:$0xff] %v2388
      %2517 = vst [vmem:[%s185 + $0x88] sm:$0xff] %v2389
      %2518 = vst [vmem:[%s185 + $0x90] sm:$0xff] %v2390
      %2519 = vst [vmem:[%s185 + $0x98] sm:$0xff] %v2391
      %2520 = vst [vmem:[%s185 + $0xa0] sm:$0xff] %v2392
      %2521 = vst [vmem:[%s185 + $0xa8] sm:$0xff] %v2393
      %2522 = vst [vmem:[%s185 + $0xb0] sm:$0xff] %v2394
      %2523 = vst [vmem:[%s185 + $0xb8] sm:$0xff] %v2395
      %2524 = vst [vmem:[%s185 + $0xc0] sm:$0xff] %v2396
      %2525 = vst [vmem:[%s185 + $0xc8] sm:$0xff] %v2397
      %2526 = vst [vmem:[%s185 + $0xd0] sm:$0xff] %v2398
      %2527 = vst [vmem:[%s185 + $0xd8] sm:$0xff] %v2399
      %2528 = vst [vmem:[%s185 + $0xe0] sm:$0xff] %v2400
      %2529 = vst [vmem:[%s185 + $0xe8] sm:$0xff] %v2401
      %2530 = vst [vmem:[%s185 + $0xf0] sm:$0xff] %v2402
      %2531 = vst [vmem:[%s185 + $0xf8] sm:$0xff] %v2403
      %2532 = vst [vmem:[%s185 + $0x100] sm:$0xff] %v2404
      %2533 = vst [vmem:[%s185 + $0x108] sm:$0xff] %v2405
      %2534 = vst [vmem:[%s185 + $0x110] sm:$0xff] %v2406
      %2535 = vst [vmem:[%s185 + $0x118] sm:$0xff] %v2407
      %2536 = vst [vmem:[%s185 + $0x120] sm:$0xff] %v2408
      %2537 = vst [vmem:[%s185 + $0x128] sm:$0xff] %v2409
      %2538 = vst [vmem:[%s185 + $0x130] sm:$0xff] %v2410
      %2539 = vst [vmem:[%s185 + $0x138] sm:$0xff] %v2411
      %2540 = vst [vmem:[%s185 + $0x140] sm:$0xff] %v2412
      %2541 = vst [vmem:[%s185 + $0x148] sm:$0xff] %v2413
      %2542 = vst [vmem:[%s185 + $0x150] sm:$0xff] %v2414
      %2543 = vst [vmem:[%s185 + $0x158] sm:$0xff] %v2415
      %2544 = vst [vmem:[%s185 + $0x160] sm:$0xff] %v2416
      %2545 = vst [vmem:[%s185 + $0x168] sm:$0xff] %v2417
      %2546 = vst [vmem:[%s185 + $0x170] sm:$0xff] %v2418
      %2547 = vst [vmem:[%s185 + $0x178] sm:$0xff] %v2419
      %2548 = vst [vmem:[%s185 + $0x180] sm:$0xff] %v2420
      %2549 = vst [vmem:[%s185 + $0x188] sm:$0xff] %v2421
      %2550 = vst [vmem:[%s185 + $0x190] sm:$0xff] %v2422
      %2551 = vst [vmem:[%s185 + $0x198] sm:$0xff] %v2423
      %2552 = vst [vmem:[%s185 + $0x1a0] sm:$0xff] %v2424
      %2553 = vst [vmem:[%s185 + $0x1a8] sm:$0xff] %v2425
      %2554 = vst [vmem:[%s185 + $0x1b0] sm:$0xff] %v2426
      %2555 = vst [vmem:[%s185 + $0x1b8] sm:$0xff] %v2427
      %2556 = vst [vmem:[%s185 + $0x1c0] sm:$0xff] %v2428
      %2557 = vst [vmem:[%s185 + $0x1c8] sm:$0xff] %v2429
      %2558 = vst [vmem:[%s185 + $0x1d0] sm:$0xff] %v2430
      %2559 = vst [vmem:[%s185 + $0x1d8] sm:$0xff] %v2431
      %2560 = vst [vmem:[%s185 + $0x1e0] sm:$0xff] %v2432
      %2561 = vst [vmem:[%s185 + $0x1e8] sm:$0xff] %v2433
      %2562 = vst [vmem:[%s185 + $0x1f0] sm:$0xff] %v2434
      %2563 = vst [vmem:[%s185 + $0x1f8] sm:$0xff] %v2435
      %v2564 = vadd.f32 %v1572, %v1576
      %v2565 = vadd.f32 %v2564, %v1582
      %v2566 = vadd.f32 %v2565, %v1586
      %v2567 = vadd.f32 %v2566, %v1592
      %v2568 = vadd.f32 %v2567, %v1596
      %v2569 = vadd.f32 %v2568, %v1602
      %v2570 = vadd.f32 %v2569, %v1606
      %v2571 = vadd.f32 %v2570, %v1612
      %v2572 = vadd.f32 %v2571, %v1616
      %v2573 = vadd.f32 %v2572, %v1622
      %v2574 = vadd.f32 %v2573, %v1626
      %v2575 = vadd.f32 %v2574, %v1632
      %v2576 = vadd.f32 %v2575, %v1636
      %v2577 = vadd.f32 %v2576, %v1642
      %v2578 = vadd.f32 %v2577, %v1646
      %v2579 = vadd.f32 %v2578, %v1652
      %v2580 = vadd.f32 %v2579, %v1656
      %v2581 = vadd.f32 %v2580, %v1662
      %v2582 = vadd.f32 %v2581, %v1666
      %v2583 = vadd.f32 %v2582, %v1672
      %v2584 = vadd.f32 %v2583, %v1676
      %v2585 = vadd.f32 %v2584, %v1682
      %v2586 = vadd.f32 %v2585, %v1686
      %v2587 = vadd.f32 %v2586, %v1692
      %v2588 = vadd.f32 %v2587, %v1696
      %v2589 = vadd.f32 %v2588, %v1702
      %v2590 = vadd.f32 %v2589, %v1706
      %v2591 = vadd.f32 %v2590, %v1712
      %v2592 = vadd.f32 %v2591, %v1716
      %v2593 = vadd.f32 %v2592, %v1722
      %v2594 = vadd.f32 %v2593, %v1726
      %v2595 = vrot.slane %v2594, 4
      %v2596 = vadd.f32 %v2594, %v2595
      %v2597 = vrot.slane %v2596, 2
      %v2598 = vadd.f32 %v2596, %v2597
      %v2599 = vrot.slane %v2598, 1
      %v2600 = vadd.f32 %v2598, %v2599
      %v2601 = vadd.f32 %v1574, %v1578
      %v2602 = vadd.f32 %v2601, %v1584
      %v2603 = vadd.f32 %v2602, %v1588
      %v2604 = vadd.f32 %v2603, %v1594
      %v2605 = vadd.f32 %v2604, %v1598
      %v2606 = vadd.f32 %v2605, %v1604
      %v2607 = vadd.f32 %v2606, %v1608
      %v2608 = vadd.f32 %v2607, %v1614
      %v2609 = vadd.f32 %v2608, %v1618
      %v2610 = vadd.f32 %v2609, %v1624
      %v2611 = vadd.f32 %v2610, %v1628
      %v2612 = vadd.f32 %v2611, %v1634
      %v2613 = vadd.f32 %v2612, %v1638
      %v2614 = vadd.f32 %v2613, %v1644
      %v2615 = vadd.f32 %v2614, %v1648
      %v2616 = vadd.f32 %v2615, %v1654
      %v2617 = vadd.f32 %v2616, %v1658
      %v2618 = vadd.f32 %v2617, %v1664
      %v2619 = vadd.f32 %v2618, %v1668
      %v2620 = vadd.f32 %v2619, %v1674
      %v2621 = vadd.f32 %v2620, %v1678
      %v2622 = vadd.f32 %v2621, %v1684
      %v2623 = vadd.f32 %v2622, %v1688
      %v2624 = vadd.f32 %v2623, %v1694
      %v2625 = vadd.f32 %v2624, %v1698
      %v2626 = vadd.f32 %v2625, %v1704
      %v2627 = vadd.f32 %v2626, %v1708
      %v2628 = vadd.f32 %v2627, %v1714
      %v2629 = vadd.f32 %v2628, %v1718
      %v2630 = vadd.f32 %v2629, %v1724
      %v2631 = vadd.f32 %v2630, %v1728
      %v2632 = vrot.slane %v2631, 4
      %v2633 = vadd.f32 %v2631, %v2632
      %v2634 = vrot.slane %v2633, 2
      %v2635 = vadd.f32 %v2633, %v2634
      %v2636 = vrot.slane %v2635, 1
      %v2637 = vadd.f32 %v2635, %v2636
      %v2638 = vadd.f32 %v1958, %v1962
      %v2639 = vadd.f32 %v2638, %v1968
      %v2640 = vadd.f32 %v2639, %v1972
      %v2641 = vadd.f32 %v2640, %v1978
      %v2642 = vadd.f32 %v2641, %v1982
      %v2643 = vadd.f32 %v2642, %v1988
      %v2644 = vadd.f32 %v2643, %v1992
      %v2645 = vadd.f32 %v2644, %v1998
      %v2646 = vadd.f32 %v2645, %v2002
      %v2647 = vadd.f32 %v2646, %v2008
      %v2648 = vadd.f32 %v2647, %v2012
      %v2649 = vadd.f32 %v2648, %v2018
      %v2650 = vadd.f32 %v2649, %v2022
      %v2651 = vadd.f32 %v2650, %v2028
      %v2652 = vadd.f32 %v2651, %v2032
      %v2653 = vadd.f32 %v2652, %v2038
      %v2654 = vadd.f32 %v2653, %v2042
      %v2655 = vadd.f32 %v2654, %v2048
      %v2656 = vadd.f32 %v2655, %v2052
      %v2657 = vadd.f32 %v2656, %v2058
      %v2658 = vadd.f32 %v2657, %v2062
      %v2659 = vadd.f32 %v2658, %v2068
      %v2660 = vadd.f32 %v2659, %v2072
      %v2661 = vadd.f32 %v2660, %v2078
      %v2662 = vadd.f32 %v2661, %v2082
      %v2663 = vadd.f32 %v2662, %v2088
      %v2664 = vadd.f32 %v2663, %v2092
      %v2665 = vadd.f32 %v2664, %v2098
      %v2666 = vadd.f32 %v2665, %v2102
      %v2667 = vadd.f32 %v2666, %v2108
      %v2668 = vadd.f32 %v2667, %v2112
      %v2669 = vrot.slane %v2668, 4
      %v2670 = vadd.f32 %v2668, %v2669
      %v2671 = vrot.slane %v2670, 2
      %v2672 = vadd.f32 %v2670, %v2671
      %v2673 = vrot.slane %v2672, 1
      %v2674 = vadd.f32 %v2672, %v2673
      %v2675 = vadd.f32 %v1960, %v1964
      %v2676 = vadd.f32 %v2675, %v1970
      %v2677 = vadd.f32 %v2676, %v1974
      %v2678 = vadd.f32 %v2677, %v1980
      %v2679 = vadd.f32 %v2678, %v1984
      %v2680 = vadd.f32 %v2679, %v1990
      %v2681 = vadd.f32 %v2680, %v1994
      %v2682 = vadd.f32 %v2681, %v2000
      %v2683 = vadd.f32 %v2682, %v2004
      %v2684 = vadd.f32 %v2683, %v2010
      %v2685 = vadd.f32 %v2684, %v2014
      %v2686 = vadd.f32 %v2685, %v2020
      %v2687 = vadd.f32 %v2686, %v2024
      %v2688 = vadd.f32 %v2687, %v2030
      %v2689 = vadd.f32 %v2688, %v2034
      %v2690 = vadd.f32 %v2689, %v2040
      %v2691 = vadd.f32 %v2690, %v2044
      %v2692 = vadd.f32 %v2691, %v2050
      %v2693 = vadd.f32 %v2692, %v2054
      %v2694 = vadd.f32 %v2693, %v2060
      %v2695 = vadd.f32 %v2694, %v2064
      %v2696 = vadd.f32 %v2695, %v2070
      %v2697 = vadd.f32 %v2696, %v2074
      %v2698 = vadd.f32 %v2697, %v2080
      %v2699 = vadd.f32 %v2698, %v2084
      %v2700 = vadd.f32 %v2699, %v2090
      %v2701 = vadd.f32 %v2700, %v2094
      %v2702 = vadd.f32 %v2701, %v2100
      %v2703 = vadd.f32 %v2702, %v2104
      %v2704 = vadd.f32 %v2703, %v2110
      %v2705 = vadd.f32 %v2704, %v2114
      %v2706 = vrot.slane %v2705, 4
      %v2707 = vadd.f32 %v2705, %v2706
      %v2708 = vrot.slane %v2707, 2
      %v2709 = vadd.f32 %v2707, %v2708
      %v2710 = vrot.slane %v2709, 1
      %v2711 = vadd.f32 %v2709, %v2710
      %v2716 = vcombine.low %v2600, %v2637
      %v2717 = vcombine.low %v2674, %v2711
      %v2719 = vunpack.c.l.s4 1966171168
      %v2720 = vunpack.c.0.s8 %v2719
      %v2721 = vlaneseq
      %v2722 = vshrl.u32 %v2721, 7
      %v2723 = vsub.s32 %v2720, %v2722
      %v2724 = vrot.slane %v2716, %v2723
      %v2726 = vunpack.c.l.s4 1966171168
      %v2727 = vunpack.c.0.s8 %v2726
      %v2728 = vlaneseq
      %v2729 = vshrl.u32 %v2728, 7
      %v2730 = vsub.s32 %v2727, %v2729
      %v2731 = vrot.slane %v2717, %v2730
      %v2732 = vcombine.low %v2724, %v2731
      %v2734 = vunpack.c.l.s4 1966171168
      %v2735 = vunpack.c.0.s8 %v2734
      %v2736 = vlaneseq
      %v2737 = vshrl.u32 %v2736, 7
      %v2738 = vsub.s32 %v2735, %v2737
      %v2739 = vrot.slane %v2732, %v2738
      %v2741 = vlaneseq
      %vm2742 = vcmp.ge.s32.totalorder %v2741, 0
      %vm2743 = vcmp.lt.s32.totalorder %v2741, 512
      %vm2744 = vmand %vm2742, %vm2743
      %2745 = vst.msk [vmem:[%s191] ss:$2 sm:$0xf] %vm2744, %v2739
      %v2746 = vmul.f32 %v1572, %v1572
      %v2747 = vmul.f32 %v1574, %v1574
      %v2748 = vmul.f32 %v1958, %v1958
      %v2749 = vmul.f32 %v1960, %v1960
      %v2750 = vmul.f32 %v1576, %v1576
      %v2751 = vmul.f32 %v1578, %v1578
      %v2752 = vmul.f32 %v1962, %v1962
      %v2753 = vmul.f32 %v1964, %v1964
      %v2754 = vmul.f32 %v1582, %v1582
      %v2755 = vmul.f32 %v1584, %v1584
      %v2756 = vmul.f32 %v1968, %v1968
      %v2757 = vmul.f32 %v1970, %v1970
      %v2758 = vmul.f32 %v1586, %v1586
      %v2759 = vmul.f32 %v1588, %v1588
      %v2760 = vmul.f32 %v1972, %v1972
      %v2761 = vmul.f32 %v1974, %v1974
      %v2762 = vmul.f32 %v1592, %v1592
      %v2763 = vmul.f32 %v1594, %v1594
      %v2764 = vmul.f32 %v1978, %v1978
      %v2765 = vmul.f32 %v1980, %v1980
      %v2766 = vmul.f32 %v1596, %v1596
      %v2767 = vmul.f32 %v1598, %v1598
      %v2768 = vmul.f32 %v1982, %v1982
      %v2769 = vmul.f32 %v1984, %v1984
      %v2770 = vmul.f32 %v1602, %v1602
      %v2771 = vmul.f32 %v1604, %v1604
      %v2772 = vmul.f32 %v1988, %v1988
      %v2773 = vmul.f32 %v1990, %v1990
      %v2774 = vmul.f32 %v1606, %v1606
      %v2775 = vmul.f32 %v1608, %v1608
      %v2776 = vmul.f32 %v1992, %v1992
      %v2777 = vmul.f32 %v1994, %v1994
      %v2778 = vmul.f32 %v1612, %v1612
      %v2779 = vmul.f32 %v1614, %v1614
      %v2780 = vmul.f32 %v1998, %v1998
      %v2781 = vmul.f32 %v2000, %v2000
      %v2782 = vmul.f32 %v1616, %v1616
      %v2783 = vmul.f32 %v1618, %v1618
      %v2784 = vmul.f32 %v2002, %v2002
      %v2785 = vmul.f32 %v2004, %v2004
      %v2786 = vmul.f32 %v1622, %v1622
      %v2787 = vmul.f32 %v1624, %v1624
      %v2788 = vmul.f32 %v2008, %v2008
      %v2789 = vmul.f32 %v2010, %v2010
      %v2790 = vmul.f32 %v1626, %v1626
      %v2791 = vmul.f32 %v1628, %v1628
      %v2792 = vmul.f32 %v2012, %v2012
      %v2793 = vmul.f32 %v2014, %v2014
      %v2794 = vmul.f32 %v1632, %v1632
      %v2795 = vmul.f32 %v1634, %v1634
      %v2796 = vmul.f32 %v2018, %v2018
      %v2797 = vmul.f32 %v2020, %v2020
      %v2798 = vmul.f32 %v1636, %v1636
      %v2799 = vmul.f32 %v1638, %v1638
      %v2800 = vmul.f32 %v2022, %v2022
      %v2801 = vmul.f32 %v2024, %v2024
      %v2802 = vmul.f32 %v1642, %v1642
      %v2803 = vmul.f32 %v1644, %v1644
      %v2804 = vmul.f32 %v2028, %v2028
      %v2805 = vmul.f32 %v2030, %v2030
      %v2806 = vmul.f32 %v1646, %v1646
      %v2807 = vmul.f32 %v1648, %v1648
      %v2808 = vmul.f32 %v2032, %v2032
      %v2809 = vmul.f32 %v2034, %v2034
      %v2810 = vmul.f32 %v1652, %v1652
      %v2811 = vmul.f32 %v1654, %v1654
      %v2812 = vmul.f32 %v2038, %v2038
      %v2813 = vmul.f32 %v2040, %v2040
      %v2814 = vmul.f32 %v1656, %v1656
      %v2815 = vmul.f32 %v1658, %v1658
      %v2816 = vmul.f32 %v2042, %v2042
      %v2817 = vmul.f32 %v2044, %v2044
      %v2818 = vmul.f32 %v1662, %v1662
      %v2819 = vmul.f32 %v1664, %v1664
      %v2820 = vmul.f32 %v2048, %v2048
      %v2821 = vmul.f32 %v2050, %v2050
      %v2822 = vmul.f32 %v1666, %v1666
      %v2823 = vmul.f32 %v1668, %v1668
      %v2824 = vmul.f32 %v2052, %v2052
      %v2825 = vmul.f32 %v2054, %v2054
      %v2826 = vmul.f32 %v1672, %v1672
      %v2827 = vmul.f32 %v1674, %v1674
      %v2828 = vmul.f32 %v2058, %v2058
      %v2829 = vmul.f32 %v2060, %v2060
      %v2830 = vmul.f32 %v1676, %v1676
      %v2831 = vmul.f32 %v1678, %v1678
      %v2832 = vmul.f32 %v2062, %v2062
      %v2833 = vmul.f32 %v2064, %v2064
      %v2834 = vmul.f32 %v1682, %v1682
      %v2835 = vmul.f32 %v1684, %v1684
      %v2836 = vmul.f32 %v2068, %v2068
      %v2837 = vmul.f32 %v2070, %v2070
      %v2838 = vmul.f32 %v1686, %v1686
      %v2839 = vmul.f32 %v1688, %v1688
      %v2840 = vmul.f32 %v2072, %v2072
      %v2841 = vmul.f32 %v2074, %v2074
      %v2842 = vmul.f32 %v1692, %v1692
      %v2843 = vmul.f32 %v1694, %v1694
      %v2844 = vmul.f32 %v2078, %v2078
      %v2845 = vmul.f32 %v2080, %v2080
      %v2846 = vmul.f32 %v1696, %v1696
      %v2847 = vmul.f32 %v1698, %v1698
      %v2848 = vmul.f32 %v2082, %v2082
      %v2849 = vmul.f32 %v2084, %v2084
      %v2850 = vmul.f32 %v1702, %v1702
      %v2851 = vmul.f32 %v1704, %v1704
      %v2852 = vmul.f32 %v2088, %v2088
      %v2853 = vmul.f32 %v2090, %v2090
      %v2854 = vmul.f32 %v1706, %v1706
      %v2855 = vmul.f32 %v1708, %v1708
      %v2856 = vmul.f32 %v2092, %v2092
      %v2857 = vmul.f32 %v2094, %v2094
      %v2858 = vmul.f32 %v1712, %v1712
      %v2859 = vmul.f32 %v1714, %v1714
      %v2860 = vmul.f32 %v2098, %v2098
      %v2861 = vmul.f32 %v2100, %v2100
      %v2862 = vmul.f32 %v1716, %v1716
      %v2863 = vmul.f32 %v1718, %v1718
      %v2864 = vmul.f32 %v2102, %v2102
      %v2865 = vmul.f32 %v2104, %v2104
      %v2866 = vmul.f32 %v1722, %v1722
      %v2867 = vmul.f32 %v1724, %v1724
      %v2868 = vmul.f32 %v2108, %v2108
      %v2869 = vmul.f32 %v2110, %v2110
      %v2870 = vmul.f32 %v1726, %v1726
      %v2871 = vmul.f32 %v1728, %v1728
      %v2872 = vmul.f32 %v2112, %v2112
      %v2873 = vmul.f32 %v2114, %v2114
      %v2874 = vadd.f32 %v2746, %v2750
      %v2875 = vadd.f32 %v2874, %v2754
      %v2876 = vadd.f32 %v2875, %v2758
      %v2877 = vadd.f32 %v2876, %v2762
      %v2878 = vadd.f32 %v2877, %v2766
      %v2879 = vadd.f32 %v2878, %v2770
      %v2880 = vadd.f32 %v2879, %v2774
      %v2881 = vadd.f32 %v2880, %v2778
      %v2882 = vadd.f32 %v2881, %v2782
      %v2883 = vadd.f32 %v2882, %v2786
      %v2884 = vadd.f32 %v2883, %v2790
      %v2885 = vadd.f32 %v2884, %v2794
      %v2886 = vadd.f32 %v2885, %v2798
      %v2887 = vadd.f32 %v2886, %v2802
      %v2888 = vadd.f32 %v2887, %v2806
      %v2889 = vadd.f32 %v2888, %v2810
      %v2890 = vadd.f32 %v2889, %v2814
      %v2891 = vadd.f32 %v2890, %v2818
      %v2892 = vadd.f32 %v2891, %v2822
      %v2893 = vadd.f32 %v2892, %v2826
      %v2894 = vadd.f32 %v2893, %v2830
      %v2895 = vadd.f32 %v2894, %v2834
      %v2896 = vadd.f32 %v2895, %v2838
      %v2897 = vadd.f32 %v2896, %v2842
      %v2898 = vadd.f32 %v2897, %v2846
      %v2899 = vadd.f32 %v2898, %v2850
      %v2900 = vadd.f32 %v2899, %v2854
      %v2901 = vadd.f32 %v2900, %v2858
      %v2902 = vadd.f32 %v2901, %v2862
      %v2903 = vadd.f32 %v2902, %v2866
      %v2904 = vadd.f32 %v2903, %v2870
      %v2905 = vrot.slane %v2904, 4
      %v2906 = vadd.f32 %v2904, %v2905
      %v2907 = vrot.slane %v2906, 2
      %v2908 = vadd.f32 %v2906, %v2907
      %v2909 = vrot.slane %v2908, 1
      %v2910 = vadd.f32 %v2908, %v2909
      %v2911 = vadd.f32 %v2747, %v2751
      %v2912 = vadd.f32 %v2911, %v2755
      %v2913 = vadd.f32 %v2912, %v2759
      %v2914 = vadd.f32 %v2913, %v2763
      %v2915 = vadd.f32 %v2914, %v2767
      %v2916 = vadd.f32 %v2915, %v2771
      %v2917 = vadd.f32 %v2916, %v2775
      %v2918 = vadd.f32 %v2917, %v2779
      %v2919 = vadd.f32 %v2918, %v2783
      %v2920 = vadd.f32 %v2919, %v2787
      %v2921 = vadd.f32 %v2920, %v2791
      %v2922 = vadd.f32 %v2921, %v2795
      %v2923 = vadd.f32 %v2922, %v2799
      %v2924 = vadd.f32 %v2923, %v2803
      %v2925 = vadd.f32 %v2924, %v2807
      %v2926 = vadd.f32 %v2925, %v2811
      %v2927 = vadd.f32 %v2926, %v2815
      %v2928 = vadd.f32 %v2927, %v2819
      %v2929 = vadd.f32 %v2928, %v2823
      %v2930 = vadd.f32 %v2929, %v2827
      %v2931 = vadd.f32 %v2930, %v2831
      %v2932 = vadd.f32 %v2931, %v2835
      %v2933 = vadd.f32 %v2932, %v2839
      %v2934 = vadd.f32 %v2933, %v2843
      %v2935 = vadd.f32 %v2934, %v2847
      %v2936 = vadd.f32 %v2935, %v2851
      %v2937 = vadd.f32 %v2936, %v2855
      %v2938 = vadd.f32 %v2937, %v2859
      %v2939 = vadd.f32 %v2938, %v2863
      %v2940 = vadd.f32 %v2939, %v2867
      %v2941 = vadd.f32 %v2940, %v2871
      %v2942 = vrot.slane %v2941, 4
      %v2943 = vadd.f32 %v2941, %v2942
      %v2944 = vrot.slane %v2943, 2
      %v2945 = vadd.f32 %v2943, %v2944
      %v2946 = vrot.slane %v2945, 1
      %v2947 = vadd.f32 %v2945, %v2946
      %v2948 = vadd.f32 %v2748, %v2752
      %v2949 = vadd.f32 %v2948, %v2756
      %v2950 = vadd.f32 %v2949, %v2760
      %v2951 = vadd.f32 %v2950, %v2764
      %v2952 = vadd.f32 %v2951, %v2768
      %v2953 = vadd.f32 %v2952, %v2772
      %v2954 = vadd.f32 %v2953, %v2776
      %v2955 = vadd.f32 %v2954, %v2780
      %v2956 = vadd.f32 %v2955, %v2784
      %v2957 = vadd.f32 %v2956, %v2788
      %v2958 = vadd.f32 %v2957, %v2792
      %v2959 = vadd.f32 %v2958, %v2796
      %v2960 = vadd.f32 %v2959, %v2800
      %v2961 = vadd.f32 %v2960, %v2804
      %v2962 = vadd.f32 %v2961, %v2808
      %v2963 = vadd.f32 %v2962, %v2812
      %v2964 = vadd.f32 %v2963, %v2816
      %v2965 = vadd.f32 %v2964, %v2820
      %v2966 = vadd.f32 %v2965, %v2824
      %v2967 = vadd.f32 %v2966, %v2828
      %v2968 = vadd.f32 %v2967, %v2832
      %v2969 = vadd.f32 %v2968, %v2836
      %v2970 = vadd.f32 %v2969, %v2840
      %v2971 = vadd.f32 %v2970, %v2844
      %v2972 = vadd.f32 %v2971, %v2848
      %v2973 = vadd.f32 %v2972, %v2852
      %v2974 = vadd.f32 %v2973, %v2856
      %v2975 = vadd.f32 %v2974, %v2860
      %v2976 = vadd.f32 %v2975, %v2864
      %v2977 = vadd.f32 %v2976, %v2868
      %v2978 = vadd.f32 %v2977, %v2872
      %v2979 = vrot.slane %v2978, 4
      %v2980 = vadd.f32 %v2978, %v2979
      %v2981 = vrot.slane %v2980, 2
      %v2982 = vadd.f32 %v2980, %v2981
      %v2983 = vrot.slane %v2982, 1
      %v2984 = vadd.f32 %v2982, %v2983
      %v2985 = vadd.f32 %v2749, %v2753
      %v2986 = vadd.f32 %v2985, %v2757
      %v2987 = vadd.f32 %v2986, %v2761
      %v2988 = vadd.f32 %v2987, %v2765
      %v2989 = vadd.f32 %v2988, %v2769
      %v2990 = vadd.f32 %v2989, %v2773
      %v2991 = vadd.f32 %v2990, %v2777
      %v2992 = vadd.f32 %v2991, %v2781
      %v2993 = vadd.f32 %v2992, %v2785
      %v2994 = vadd.f32 %v2993, %v2789
      %v2995 = vadd.f32 %v2994, %v2793
      %v2996 = vadd.f32 %v2995, %v2797
      %v2997 = vadd.f32 %v2996, %v2801
      %v2998 = vadd.f32 %v2997, %v2805
      %v2999 = vadd.f32 %v2998, %v2809
      %v3000 = vadd.f32 %v2999, %v2813
      %v3001 = vadd.f32 %v3000, %v2817
      %v3002 = vadd.f32 %v3001, %v2821
      %v3003 = vadd.f32 %v3002, %v2825
      %v3004 = vadd.f32 %v3003, %v2829
      %v3005 = vadd.f32 %v3004, %v2833
      %v3006 = vadd.f32 %v3005, %v2837
      %v3007 = vadd.f32 %v3006, %v2841
      %v3008 = vadd.f32 %v3007, %v2845
      %v3009 = vadd.f32 %v3008, %v2849
      %v3010 = vadd.f32 %v3009, %v2853
      %v3011 = vadd.f32 %v3010, %v2857
      %v3012 = vadd.f32 %v3011, %v2861
      %v3013 = vadd.f32 %v3012, %v2865
      %v3014 = vadd.f32 %v3013, %v2869
      %v3015 = vadd.f32 %v3014, %v2873
      %v3016 = vrot.slane %v3015, 4
      %v3017 = vadd.f32 %v3015, %v3016
      %v3018 = vrot.slane %v3017, 2
      %v3019 = vadd.f32 %v3017, %v3018
      %v3020 = vrot.slane %v3019, 1
      %v3021 = vadd.f32 %v3019, %v3020
      %v3026 = vcombine.low %v2910, %v2947
      %v3027 = vcombine.low %v2984, %v3021
      %v3029 = vunpack.c.l.s4 1966171168
      %v3030 = vunpack.c.0.s8 %v3029
      %v3031 = vlaneseq
      %v3032 = vshrl.u32 %v3031, 7
      %v3033 = vsub.s32 %v3030, %v3032
      %v3034 = vrot.slane %v3026, %v3033
      %v3036 = vunpack.c.l.s4 1966171168
      %v3037 = vunpack.c.0.s8 %v3036
      %v3038 = vlaneseq
      %v3039 = vshrl.u32 %v3038, 7
      %v3040 = vsub.s32 %v3037, %v3039
      %v3041 = vrot.slane %v3027, %v3040
      %v3042 = vcombine.low %v3034, %v3041
      %v3044 = vunpack.c.l.s4 1966171168
      %v3045 = vunpack.c.0.s8 %v3044
      %v3046 = vlaneseq
      %v3047 = vshrl.u32 %v3046, 7
      %v3048 = vsub.s32 %v3045, %v3047
      %v3049 = vrot.slane %v3042, %v3048
      %s3051 = scalar_lea.vmem %s191, 1
      %3052 = vst.msk [vmem:[%s3051] ss:$2 sm:$0xf] %vm2744, %v3049
      %s3053 = smul.u32 32, %s15
      %p3054 = scmp.lt.s32.totalorder %s3053, 63
      %s3055 = scalar_select %p3054, %s3053, 63
      %s3056 = smul.addr %s3055, 4
      %s3057 = smul.addr %s3056, 4
      %s3058 = scalar_lea.vmem %s2, %s3057
      %p3059 = scmp.lt.s32.totalorder %s15, 1
      %s3060 = scalar_select %p3059, %s15, 1
      %s3061 = smul.addr %s3060, 4
      %s3062 = smul.addr %s3061, 2
      %s3063 = scalar_lea.vmem %s3, %s3062
      // Predicated region
      $region29: #{double_conv_pallas.6} parent=27 // pred_check
        %p3064 = pneg %p80
      $region30: #{double_conv_pallas.6} parent=27 // pred_check_branch
        %3066 = sbr.rel (%p3064) target = $region32
      $region31: #{double_conv_pallas.6} parent=27 // pred_region
        %s3067 = smul.u32 32, %s15
      $region32: #{double_conv_pallas.6} parent=27 // pred_fallthru
        _
      // Predicated region
      $region33: #{double_conv_pallas.6} parent=27 // pred_check
        %p3068 = pneg %p106
      $region34: #{double_conv_pallas.6} parent=27 // pred_check_branch
        %3070 = sbr.rel (%p3068) target = $region36
      $region35: #{double_conv_pallas.6} parent=27 // pred_region
        _
      $region36: #{double_conv_pallas.6} parent=27 // pred_fallthru
        _
    $region28: #{double_conv_pallas.6} parent=5 // pred_fallthru
      _
    %p3071 = scmp.le.s32.totalorder 2, %s10
    // Predicated region
    $region37: #{double_conv_pallas.6} parent=5 // pred_check
      %p3072 = pneg %p3071
    $region38: #{double_conv_pallas.6} parent=5 // pred_check_branch
      %3074 = sbr.rel (%p3072) target = $region40
    $region39: #{double_conv_pallas.6} parent=5 // pred_region
      %s3075 = ssub.s32 %s10, 2
      // Predicated region
      $region41: #{double_conv_pallas.6} parent=39 // pred_check
        %p3076 = pneg %p86
      $region42: #{double_conv_pallas.6} parent=39 // pred_check_branch
        %3078 = sbr.rel (%p3076) target = $region44
      $region43: #{double_conv_pallas.6} parent=39 // pred_region
        %s3079 = smul.u32 32, %s16
        %p3080 = scmp.lt.s32.totalorder %s3079, 63
        %s3081 = scalar_select %p3080, %s3079, 63
        %s3082 = smul.addr %s3081, 4
        %s3083 = smul.addr %s3082, 4
        %s3084 = scalar_lea.vmem %s2, %s3083
      $region44: #{double_conv_pallas.6} parent=39 // pred_fallthru
        _
      // Predicated region
      $region45: #{double_conv_pallas.6} parent=39 // pred_check
        %p3085 = pneg %p112
      $region46: #{double_conv_pallas.6} parent=39 // pred_check_branch
        %3087 = sbr.rel (%p3085) target = $region48
      $region47: #{double_conv_pallas.6} parent=39 // pred_region
        %p3088 = scmp.lt.s32.totalorder %s16, 1
        %s3089 = scalar_select %p3088, %s16, 1
        %s3090 = smul.addr %s3089, 4
        %s3091 = smul.addr %s3090, 2
        %s3092 = scalar_lea.vmem %s3, %s3091
      $region48: #{double_conv_pallas.6} parent=39 // pred_fallthru
        _
    $region40: #{double_conv_pallas.6} parent=5 // pred_fallthru
      _
  $region6: #{double_conv_pallas.6} parent=0 // loop_footer
    %s14 = sadd.s32 1, %s10
  $region7: #{double_conv_pallas.6} parent=0 // loop_footer_branch
    %9 = sbr.rel target = $region3
  $region8: #{double_conv_pallas.6} parent=0 // loop_exit
    _

</llo_original>
